<compile_context>
chip_gen: v6e
topology: v6e:2x2x1
jax: 0.10.0
libtpu: 0.0.40
codegen_flags: <defaults>
</compile_context>

<pallas_src>
import functools

import jax
import jax.numpy as jnp
from jax.experimental import pallas as pl
from jax.experimental.pallas import tpu as pltpu

EPS = 1e-5          # nn.GroupNorm default eps
NUM_GROUPS = 8      # GroupNorm(num_groups=8)


# ----------------------------------------------------------------------------
# Fused Pallas kernel: conv3x3 + GN(8) + ReLU, twice, for one batch element
# ----------------------------------------------------------------------------
def _decblock_kernel(xpad_ref, w1_ref, w2_ref, pp_ref, out_ref, pad2_ref,
                     *, cout, ho, wo, groups):
    """One batch element of decblock's two CBR blocks.

    xpad_ref : (1, Np, Cin)   zero-padded, channel-last, flattened input
                              (Np = (ho+2)*(wo+2)), f32
    w1_ref   : (9, Cin, Cout) conv1 weight, tap-major, bf16
    w2_ref   : (9, Cout, Cout) conv2 weight, tap-major, bf16
    pp_ref   : (6, Cout)      [b1, gamma1, beta1, b2, gamma2, beta2], f32
    out_ref  : (1, Nq, Cout)  conv-window strip of the final activation, f32
    pad2_ref : (Np, Cout)     VMEM scratch: zero-padded y1 for the second conv
    """
    f32 = jnp.float32
    wp = wo + 2
    np_flat = (ho + 2) * wp          # rows of the flattened padded grid
    nq = np_flat - 2 * wp - 2        # conv-window rows we actually compute
    q0 = wp + 1                      # flat index of output pixel (0, 0)
    cg = cout // groups
    n_valid = float(ho * wo)

    # --- constants built in-register (no extra DMA'd inputs) -----------------
    # valid-pixel mask: strip row r maps to padded flat index q = q0 + r; it is
    # a real output pixel iff its column (q mod wp) lies in [1, wo].
    # (float "mod" avoids vector integer div/rem.)
    ridx = jax.lax.broadcasted_iota(jnp.int32, (nq, 1), 0).astype(f32) + float(q0)
    col = ridx - jnp.floor(ridx * (1.0 / wp)) * float(wp)
    mask = jnp.where(jnp.logical_and(col >= 1.0, col <= float(wo)), 1.0, 0.0)
    mask = mask.astype(f32)                                        # (nq, 1)

    # GroupNorm group-averaging matrix: mix[i, j] = 1/(cg*HW) if channels i and
    # j share a group, else 0 (replaces the old HBM-resident gmix input).
    gi = jnp.floor(
        jax.lax.broadcasted_iota(jnp.int32, (cout, cout), 0).astype(f32) * (1.0 / cg))
    gj = jnp.floor(
        jax.lax.broadcasted_iota(jnp.int32, (cout, cout), 1).astype(f32) * (1.0 / cg))
    mix = jnp.where(gi == gj, 1.0 / (cg * n_valid), 0.0).astype(f32)

    pp = pp_ref[...].astype(f32)                                   # (6, cout)
    b1, g1, be1 = pp[0:1, :], pp[1:2, :], pp[2:3, :]
    b2, g2, be2 = pp[3:4, :], pp[4:5, :], pp[5:6, :]

    def conv3x3(read_slice, w_ref, bias):
        # 3x3 conv (padding=1) as 9 shifted matmuls; operands cast to bf16 at
        # the MXU, accumulation in f32.
        acc = jnp.zeros((nq, cout), f32)
        for k in range(9):
            dy, dx = divmod(k, 3)
            off = q0 + (dy - 1) * wp + (dx - 1)          # static row offset
            xs = read_slice(off).astype(jnp.bfloat16)    # (nq, cin) bf16
            acc = acc + jnp.dot(xs, w_ref[k], preferred_element_type=f32)
        return acc + bias

    def groupnorm_relu(y, gamma, beta):
        # stats over the valid pixels only (mask zeroes the in-row pad columns)
        ym = y * mask
        s1 = jnp.sum(ym, axis=0, keepdims=True)                    # (1, cout)
        s2 = jnp.sum(ym * ym, axis=0, keepdims=True)
        mean = jnp.dot(s1, mix, preferred_element_type=f32)        # per-group mean
        msq = jnp.dot(s2, mix, preferred_element_type=f32)         # per-group E[x^2]
        var = msq - mean * mean
        inv = jax.lax.rsqrt(var + EPS)
        yn = (y - mean) * (inv * gamma) + beta
        return jnp.maximum(yn, 0.0) * mask

    # ---- CBR block 1 (in-kernel im2col via shifted slices of the input) -----
    y1 = conv3x3(lambda off: xpad_ref[0, pl.ds(off, nq), :], w1_ref, b1)
    y1 = groupnorm_relu(y1, g1, be1)

    # stage y1 back onto a zero-padded flat grid (VMEM only, no HBM round trip)
    pad2_ref[...] = jnp.zeros_like(pad2_ref)
    pad2_ref[pl.ds(q0, nq), :] = y1

    # ---- CBR block 2 ---------------------------------------------------------
    y2 = conv3x3(lambda off: pad2_ref[pl.ds(off, nq), :], w2_ref, b2)
    y2 = groupnorm_relu(y2, g2, be2)

    out_ref[0] = y2.astype(out_ref.dtype)


# ----------------------------------------------------------------------------
# XLA glue (upconv + concat + padding/layout prep) and the pallas_call wrapper
# ----------------------------------------------------------------------------
def _upconv_cat(x1, x2, wup, bup):
    """ConvTranspose2d(in_ch, out_ch, 2, stride=2) on x1, then cat((x2, up), dim=1)."""
    B, cin, H, W = x1.shape
    cout = wup.shape[1]
    # out[b, o, 2h+d, 2w+e] = sum_c x1[b,c,h,w] * wup[c,o,d,e] + bup[o]
    up = jnp.einsum('bchw,code->bohdwe', x1, wup)
    up = up.reshape(B, cout, 2 * H, 2 * W) + bup[None, :, None, None]
    return jnp.concatenate([x2, up], axis=1)                       # NCHW


def decblock_forward(x1, x2, params):
    """decblock forward. x1: (B, in_ch, H, W), x2: (B, in_ch-out_ch, 2H, 2W)."""
    cout = params['wup'].shape[1]

    xcat = _upconv_cat(x1, x2, params['wup'], params['bup'])       # (B, Cin, Ho, Wo)
    B, cin1, Ho, Wo = xcat.shape
    Hp, Wp = Ho + 2, Wo + 2
    Np = Hp * Wp
    Nq = Np - 2 * Wp - 2
    Q0 = Wp + 1

    # channel-last, spatially zero-padded, flattened: (B, Np, Cin)
    xpad = jnp.pad(xcat, ((0, 0), (0, 0), (1, 1), (1, 1)))
    xpad = jnp.transpose(xpad, (0, 2, 3, 1)).reshape(B, Np, cin1).astype(jnp.float32)

    # conv weights in tap-major (9, Cin, Cout) layout, bf16 for the MXU
    w1t = jnp.transpose(params['w1'], (2, 3, 1, 0)).reshape(9, cin1, cout)
    w1t = w1t.astype(jnp.bfloat16)
    w2t = jnp.transpose(params['w2'], (2, 3, 1, 0)).reshape(9, cout, cout)
    w2t = w2t.astype(jnp.bfloat16)
    # fused per-channel parameter slab: conv bias / GN gamma / GN beta, both layers
    pp = jnp.stack([params['b1'], params['gw1'], params['gb1'],
                    params['b2'], params['gw2'], params['gb2']],
                   axis=0).astype(jnp.float32)                     # (6, Cout)

    kern = functools.partial(_decblock_kernel, cout=cout, ho=Ho, wo=Wo,
                             groups=NUM_GROUPS)
    out_strip = pl.pallas_call(
        kern,
        out_shape=jax.ShapeDtypeStruct((B, Nq, cout), jnp.float32),
        grid=(B,),
        in_specs=[
            pl.BlockSpec((1, Np, cin1), lambda b: (b, 0, 0)),
            pl.BlockSpec((9, cin1, cout), lambda b: (0, 0, 0)),
            pl.BlockSpec((9, cout, cout), lambda b: (0, 0, 0)),
            pl.BlockSpec((6, cout), lambda b: (0, 0)),
        ],
        out_specs=pl.BlockSpec((1, Nq, cout), lambda b: (b, 0, 0)),
        scratch_shapes=[pltpu.VMEM((Np, cout), jnp.float32)],
        compiler_params=pltpu.CompilerParams(dimension_semantics=("parallel",)),
    )(xpad, w1t, w2t, pp)

    # un-flatten: strip row r corresponds to padded flat index Q0 + r
    full = jnp.pad(out_strip, ((0, 0), (Q0, Np - Q0 - Nq), (0, 0)))
    full = full.reshape(B, Hp, Wp, cout)[:, 1:Ho + 1, 1:Wo + 1, :]
    return jnp.transpose(full, (0, 3, 1, 2))                        # NCHW


# ----------------------------------------------------------------------------
# parameter init + pure-JAX references (correctness check)
# ----------------------------------------------------------------------------
def init_params(key, in_ch, out_ch):
    ks = jax.random.split(key, 10)

    def conv_w(k, cout, cin, kh, kw):
        bound = (cin * kh * kw) ** -0.5
        return jax.random.uniform(k, (cout, cin, kh, kw), jnp.float32, -bound, bound)

    def vec(k, n, scale=0.1):
        return scale * jax.random.normal(k, (n,), jnp.float32)

    bound_up = (in_ch * 4) ** -0.5
    return dict(
        # ConvTranspose2d(in_ch, out_ch, 2, stride=2): weight (in_ch, out_ch, 2, 2)
        wup=jax.random.uniform(ks[0], (in_ch, out_ch, 2, 2), jnp.float32,
                               -bound_up, bound_up),
        bup=vec(ks[1], out_ch),
        # block1: Conv2d(in_ch, out_ch, 3, padding=1) + GroupNorm(8, out_ch)
        w1=conv_w(ks[2], out_ch, in_ch, 3, 3), b1=vec(ks[3], out_ch),
        gw1=1.0 + vec(ks[4], out_ch), gb1=vec(ks[5], out_ch),
        # block2: Conv2d(out_ch, out_ch, 3, padding=1) + GroupNorm(8, out_ch)
        w2=conv_w(ks[6], out_ch, out_ch, 3, 3), b2=vec(ks[7], out_ch),
        gw2=1.0 + vec(ks[8], out_ch), gb2=vec(ks[9], out_ch),
    )


def _cbr_ref(x, w, b, gw, gb, *, cast_bf16):
    if cast_bf16:
        x = x.astype(jnp.bfloat16).astype(jnp.float32)
        w = w.astype(jnp.bfloat16).astype(jnp.float32)
    o = jax.lax.conv_general_dilated(
        x, w, (1, 1), ((1, 1), (1, 1)),
        dimension_numbers=('NCHW', 'OIHW', 'NCHW')) + b[None, :, None, None]
    B, C, H, W = o.shape
    g = o.reshape(B, NUM_GROUPS, C // NUM_GROUPS, H, W)
    m = g.mean(axis=(2, 3, 4), keepdims=True)
    v = g.var(axis=(2, 3, 4), keepdims=True)
    o = ((g - m) * jax.lax.rsqrt(v + EPS)).reshape(B, C, H, W)
    o = o * gw[None, :, None, None] + gb[None, :, None, None]
    return jnp.maximum(o, 0.0)


def decblock_reference(x1, x2, params, *, cast_bf16):
    xcat = _upconv_cat(x1, x2, params['wup'], params['bup'])
    y = _cbr_ref(xcat, params['w1'], params['b1'], params['gw1'], params['gb1'],
                 cast_bf16=cast_bf16)
    y = _cbr_ref(y, params['w2'], params['b2'], params['gw2'], params['gb2'],
                 cast_bf16=cast_bf16)
    return y


# ----------------------------------------------------------------------------
if __name__ == "__main__":
    key = jax.random.PRNGKey(0)
    k1, k2, kp = jax.random.split(key, 3)

    B, in_ch, out_ch = 2, 32, 16      # out_ch divisible by 8 (GroupNorm groups)
    H = W = 8                         # x1 spatial; upconv doubles it to 16x16

    x1 = jax.random.normal(k1, (B, in_ch, H, W), jnp.float32)
    x2 = jax.random.normal(k2, (B, in_ch - out_ch, 2 * H, 2 * W), jnp.float32)
    params = init_params(kp, in_ch, out_ch)

    out = jax.block_until_ready(decblock_forward(x1, x2, params))
    assert out.shape == (B, out_ch, 2 * H, 2 * W), out.shape

    # reference whose matmul operands are also bf16 (mirrors kernel numerics)
    ref_bf16 = jax.block_until_ready(
        decblock_reference(x1, x2, params, cast_bf16=True))
    err = float(jnp.max(jnp.abs(out - ref_bf16)))
    assert jnp.allclose(out, ref_bf16, rtol=5e-3, atol=5e-3), err

    # loose sanity check against the full-f32 reference (bf16 rounding only)
    ref_f32 = jax.block_until_ready(
        decblock_reference(x1, x2, params, cast_bf16=False))
    assert float(jnp.max(jnp.abs(out - ref_f32))) < 0.25

    print("KERNEL_OK")
</pallas_src>

<mosaic_0001>
module attributes {stable_mosaic.version = 11 : i64} {
  func.func @_decblock_kernel(%arg0: i32, %arg1: memref<1x324x32xf32, #tpu.memory_space<vmem>>, %arg2: memref<9x32x16xbf16, #tpu.memory_space<vmem>>, %arg3: memref<9x16x16xbf16, #tpu.memory_space<vmem>>, %arg4: memref<6x16xf32, #tpu.memory_space<vmem>>, %arg5: memref<1x286x16xf32, #tpu.memory_space<vmem>>, %arg6: memref<324x16xf32, #tpu.memory_space<vmem>>) attributes {dimension_semantics = [#tpu.dimension_semantics<parallel>], iteration_bounds = array<i64: 2>, scalar_prefetch = 0 : i64, scratch_operands = 1 : i64, tpu.core_type = #tpu.core_type<tc>, window_params = [{transform_indices = @transform_0, window_bounds = array<i64: 1, 324, 32>}, {pipeline_mode = #tpu.pipeline_mode<synchronous>, transform_indices = @transform_1, window_bounds = array<i64: 9, 32, 16>}, {pipeline_mode = #tpu.pipeline_mode<synchronous>, transform_indices = @transform_2, window_bounds = array<i64: 9, 16, 16>}, {pipeline_mode = #tpu.pipeline_mode<synchronous>, transform_indices = @transform_3, window_bounds = array<i64: 6, 16>}, {transform_indices = @transform_4, window_bounds = array<i64: 1, 286, 16>}]} {
    %0 = tpu.iota {dimensions = array<i32: 0>} : vector<286x1xi32>
    %1 = arith.sitofp %0 : vector<286x1xi32> to vector<286x1xf32>
    %cst = arith.constant 1.900000e+01 : f32
    %2 = vector.broadcast %cst : f32 to vector<286x1xf32>
    %3 = arith.addf %1, %2 : vector<286x1xf32>
    %cst_0 = arith.constant 0.055555556 : f32
    %4 = vector.broadcast %cst_0 : f32 to vector<286x1xf32>
    %5 = arith.mulf %3, %4 : vector<286x1xf32>
    %6 = math.floor %5 : vector<286x1xf32>
    %cst_1 = arith.constant 1.800000e+01 : f32
    %7 = vector.broadcast %cst_1 : f32 to vector<286x1xf32>
    %8 = arith.mulf %6, %7 : vector<286x1xf32>
    %9 = arith.subf %3, %8 : vector<286x1xf32>
    %cst_2 = arith.constant 1.000000e+00 : f32
    %10 = vector.broadcast %cst_2 : f32 to vector<286x1xf32>
    %11 = arith.cmpf oge, %9, %10 : vector<286x1xf32>
    %cst_3 = arith.constant 1.600000e+01 : f32
    %12 = vector.broadcast %cst_3 : f32 to vector<286x1xf32>
    %13 = arith.cmpf ole, %9, %12 : vector<286x1xf32>
    %14 = arith.andi %11, %13 : vector<286x1xi1>
    %cst_4 = arith.constant 1.000000e+00 : f32
    %cst_5 = arith.constant 0.000000e+00 : f32
    %15 = vector.broadcast %cst_4 : f32 to vector<286x1xf32>
    %16 = vector.broadcast %cst_5 : f32 to vector<286x1xf32>
    %17 = arith.select %14, %15, %16 : vector<286x1xi1>, vector<286x1xf32>
    %18 = tpu.iota {dimensions = array<i32: 0>} : vector<16x16xi32>
    %19 = arith.sitofp %18 : vector<16x16xi32> to vector<16x16xf32>
    %cst_6 = arith.constant 5.000000e-01 : f32
    %20 = vector.broadcast %cst_6 : f32 to vector<16x16xf32>
    %21 = arith.mulf %19, %20 : vector<16x16xf32>
    %22 = math.floor %21 : vector<16x16xf32>
    %23 = tpu.iota {dimensions = array<i32: 1>} : vector<16x16xi32>
    %24 = arith.sitofp %23 : vector<16x16xi32> to vector<16x16xf32>
    %cst_7 = arith.constant 5.000000e-01 : f32
    %25 = vector.broadcast %cst_7 : f32 to vector<16x16xf32>
    %26 = arith.mulf %24, %25 : vector<16x16xf32>
    %27 = math.floor %26 : vector<16x16xf32>
    %28 = arith.cmpf oeq, %22, %27 : vector<16x16xf32>
    %cst_8 = arith.constant 0.001953125 : f32
    %cst_9 = arith.constant 0.000000e+00 : f32
    %29 = vector.broadcast %cst_8 : f32 to vector<16x16xf32>
    %30 = vector.broadcast %cst_9 : f32 to vector<16x16xf32>
    %31 = arith.select %28, %29, %30 : vector<16x16xi1>, vector<16x16xf32>
    %c0 = arith.constant 0 : index
    %c0_10 = arith.constant 0 : index
    %32 = vector.load %arg4[%c0, %c0_10] : memref<6x16xf32, #tpu.memory_space<vmem>>, vector<6x16xf32>
    %33 = vector.extract_strided_slice %32 {offsets = [0, 0], sizes = [1, 16], strides = [1, 1]} : vector<6x16xf32> to vector<1x16xf32>
    %34 = vector.extract_strided_slice %32 {offsets = [1, 0], sizes = [1, 16], strides = [1, 1]} : vector<6x16xf32> to vector<1x16xf32>
    %35 = vector.extract_strided_slice %32 {offsets = [2, 0], sizes = [1, 16], strides = [1, 1]} : vector<6x16xf32> to vector<1x16xf32>
    %36 = vector.extract_strided_slice %32 {offsets = [3, 0], sizes = [1, 16], strides = [1, 1]} : vector<6x16xf32> to vector<1x16xf32>
    %37 = vector.extract_strided_slice %32 {offsets = [4, 0], sizes = [1, 16], strides = [1, 1]} : vector<6x16xf32> to vector<1x16xf32>
    %38 = vector.extract_strided_slice %32 {offsets = [5, 0], sizes = [1, 16], strides = [1, 1]} : vector<6x16xf32> to vector<1x16xf32>
    %cst_11 = arith.constant 0.000000e+00 : f32
    %39 = vector.broadcast %cst_11 : f32 to vector<286x16xf32>
    %c0_12 = arith.constant 0 : index
    %c0_13 = arith.constant 0 : index
    %c0_14 = arith.constant 0 : index
    %40 = vector.load %arg1[%c0_12, %c0_13, %c0_14] : memref<1x324x32xf32, #tpu.memory_space<vmem>>, vector<1x286x32xf32>
    %41 = vector.shape_cast %40 : vector<1x286x32xf32> to vector<286x32xf32>
    %42 = arith.truncf %41 : vector<286x32xf32> to vector<286x32xbf16>
    %c0_15 = arith.constant 0 : index
    %c0_16 = arith.constant 0 : index
    %c0_17 = arith.constant 0 : index
    %43 = vector.load %arg2[%c0_15, %c0_16, %c0_17] : memref<9x32x16xbf16, #tpu.memory_space<vmem>>, vector<1x32x16xbf16>
    %44 = vector.shape_cast %43 : vector<1x32x16xbf16> to vector<32x16xbf16>
    %cst_18 = arith.constant dense<0.000000e+00> : vector<286x16xf32>
    %45 = tpu.matmul %42, %44, %cst_18 {dimension_numbers = #tpu.dot_dimension_numbers<[1], [0], [0], [1], [0, 0, 1, 1], [], []>} : vector<286x32xbf16>, vector<32x16xbf16>, vector<286x16xf32> -> vector<286x16xf32>
    %46 = arith.addf %39, %45 : vector<286x16xf32>
    %c0_19 = arith.constant 0 : index
    %c1 = arith.constant 1 : index
    %c0_20 = arith.constant 0 : index
    %47 = vector.load %arg1[%c0_19, %c1, %c0_20] : memref<1x324x32xf32, #tpu.memory_space<vmem>>, vector<1x286x32xf32>
    %48 = vector.shape_cast %47 : vector<1x286x32xf32> to vector<286x32xf32>
    %49 = arith.truncf %48 : vector<286x32xf32> to vector<286x32xbf16>
    %c1_21 = arith.constant 1 : index
    %c0_22 = arith.constant 0 : index
    %c0_23 = arith.constant 0 : index
    %50 = vector.load %arg2[%c1_21, %c0_22, %c0_23] : memref<9x32x16xbf16, #tpu.memory_space<vmem>>, vector<1x32x16xbf16>
    %51 = vector.shape_cast %50 : vector<1x32x16xbf16> to vector<32x16xbf16>
    %cst_24 = arith.constant dense<0.000000e+00> : vector<286x16xf32>
    %52 = tpu.matmul %49, %51, %cst_24 {dimension_numbers = #tpu.dot_dimension_numbers<[1], [0], [0], [1], [0, 0, 1, 1], [], []>} : vector<286x32xbf16>, vector<32x16xbf16>, vector<286x16xf32> -> vector<286x16xf32>
    %53 = arith.addf %46, %52 : vector<286x16xf32>
    %c0_25 = arith.constant 0 : index
    %c2 = arith.constant 2 : index
    %c0_26 = arith.constant 0 : index
    %54 = vector.load %arg1[%c0_25, %c2, %c0_26] : memref<1x324x32xf32, #tpu.memory_space<vmem>>, vector<1x286x32xf32>
    %55 = vector.shape_cast %54 : vector<1x286x32xf32> to vector<286x32xf32>
    %56 = arith.truncf %55 : vector<286x32xf32> to vector<286x32xbf16>
    %c2_27 = arith.constant 2 : index
    %c0_28 = arith.constant 0 : index
    %c0_29 = arith.constant 0 : index
    %57 = vector.load %arg2[%c2_27, %c0_28, %c0_29] : memref<9x32x16xbf16, #tpu.memory_space<vmem>>, vector<1x32x16xbf16>
    %58 = vector.shape_cast %57 : vector<1x32x16xbf16> to vector<32x16xbf16>
    %cst_30 = arith.constant dense<0.000000e+00> : vector<286x16xf32>
    %59 = tpu.matmul %56, %58, %cst_30 {dimension_numbers = #tpu.dot_dimension_numbers<[1], [0], [0], [1], [0, 0, 1, 1], [], []>} : vector<286x32xbf16>, vector<32x16xbf16>, vector<286x16xf32> -> vector<286x16xf32>
    %60 = arith.addf %53, %59 : vector<286x16xf32>
    %c0_31 = arith.constant 0 : index
    %c18 = arith.constant 18 : index
    %c0_32 = arith.constant 0 : index
    %61 = vector.load %arg1[%c0_31, %c18, %c0_32] : memref<1x324x32xf32, #tpu.memory_space<vmem>>, vector<1x286x32xf32>
    %62 = vector.shape_cast %61 : vector<1x286x32xf32> to vector<286x32xf32>
    %63 = arith.truncf %62 : vector<286x32xf32> to vector<286x32xbf16>
    %c3 = arith.constant 3 : index
    %c0_33 = arith.constant 0 : index
    %c0_34 = arith.constant 0 : index
    %64 = vector.load %arg2[%c3, %c0_33, %c0_34] : memref<9x32x16xbf16, #tpu.memory_space<vmem>>, vector<1x32x16xbf16>
    %65 = vector.shape_cast %64 : vector<1x32x16xbf16> to vector<32x16xbf16>
    %cst_35 = arith.constant dense<0.000000e+00> : vector<286x16xf32>
    %66 = tpu.matmul %63, %65, %cst_35 {dimension_numbers = #tpu.dot_dimension_numbers<[1], [0], [0], [1], [0, 0, 1, 1], [], []>} : vector<286x32xbf16>, vector<32x16xbf16>, vector<286x16xf32> -> vector<286x16xf32>
    %67 = arith.addf %60, %66 : vector<286x16xf32>
    %c0_36 = arith.constant 0 : index
    %c19 = arith.constant 19 : index
    %c0_37 = arith.constant 0 : index
    %68 = vector.load %arg1[%c0_36, %c19, %c0_37] : memref<1x324x32xf32, #tpu.memory_space<vmem>>, vector<1x286x32xf32>
    %69 = vector.shape_cast %68 : vector<1x286x32xf32> to vector<286x32xf32>
    %70 = arith.truncf %69 : vector<286x32xf32> to vector<286x32xbf16>
    %c4 = arith.constant 4 : index
    %c0_38 = arith.constant 0 : index
    %c0_39 = arith.constant 0 : index
    %71 = vector.load %arg2[%c4, %c0_38, %c0_39] : memref<9x32x16xbf16, #tpu.memory_space<vmem>>, vector<1x32x16xbf16>
    %72 = vector.shape_cast %71 : vector<1x32x16xbf16> to vector<32x16xbf16>
    %cst_40 = arith.constant dense<0.000000e+00> : vector<286x16xf32>
    %73 = tpu.matmul %70, %72, %cst_40 {dimension_numbers = #tpu.dot_dimension_numbers<[1], [0], [0], [1], [0, 0, 1, 1], [], []>} : vector<286x32xbf16>, vector<32x16xbf16>, vector<286x16xf32> -> vector<286x16xf32>
    %74 = arith.addf %67, %73 : vector<286x16xf32>
    %c0_41 = arith.constant 0 : index
    %c20 = arith.constant 20 : index
    %c0_42 = arith.constant 0 : index
    %75 = vector.load %arg1[%c0_41, %c20, %c0_42] : memref<1x324x32xf32, #tpu.memory_space<vmem>>, vector<1x286x32xf32>
    %76 = vector.shape_cast %75 : vector<1x286x32xf32> to vector<286x32xf32>
    %77 = arith.truncf %76 : vector<286x32xf32> to vector<286x32xbf16>
    %c5 = arith.constant 5 : index
    %c0_43 = arith.constant 0 : index
    %c0_44 = arith.constant 0 : index
    %78 = vector.load %arg2[%c5, %c0_43, %c0_44] : memref<9x32x16xbf16, #tpu.memory_space<vmem>>, vector<1x32x16xbf16>
    %79 = vector.shape_cast %78 : vector<1x32x16xbf16> to vector<32x16xbf16>
    %cst_45 = arith.constant dense<0.000000e+00> : vector<286x16xf32>
    %80 = tpu.matmul %77, %79, %cst_45 {dimension_numbers = #tpu.dot_dimension_numbers<[1], [0], [0], [1], [0, 0, 1, 1], [], []>} : vector<286x32xbf16>, vector<32x16xbf16>, vector<286x16xf32> -> vector<286x16xf32>
    %81 = arith.addf %74, %80 : vector<286x16xf32>
    %c0_46 = arith.constant 0 : index
    %c36 = arith.constant 36 : index
    %c0_47 = arith.constant 0 : index
    %82 = vector.load %arg1[%c0_46, %c36, %c0_47] : memref<1x324x32xf32, #tpu.memory_space<vmem>>, vector<1x286x32xf32>
    %83 = vector.shape_cast %82 : vector<1x286x32xf32> to vector<286x32xf32>
    %84 = arith.truncf %83 : vector<286x32xf32> to vector<286x32xbf16>
    %c6 = arith.constant 6 : index
    %c0_48 = arith.constant 0 : index
    %c0_49 = arith.constant 0 : index
    %85 = vector.load %arg2[%c6, %c0_48, %c0_49] : memref<9x32x16xbf16, #tpu.memory_space<vmem>>, vector<1x32x16xbf16>
    %86 = vector.shape_cast %85 : vector<1x32x16xbf16> to vector<32x16xbf16>
    %cst_50 = arith.constant dense<0.000000e+00> : vector<286x16xf32>
    %87 = tpu.matmul %84, %86, %cst_50 {dimension_numbers = #tpu.dot_dimension_numbers<[1], [0], [0], [1], [0, 0, 1, 1], [], []>} : vector<286x32xbf16>, vector<32x16xbf16>, vector<286x16xf32> -> vector<286x16xf32>
    %88 = arith.addf %81, %87 : vector<286x16xf32>
    %c0_51 = arith.constant 0 : index
    %c37 = arith.constant 37 : index
    %c0_52 = arith.constant 0 : index
    %89 = vector.load %arg1[%c0_51, %c37, %c0_52] : memref<1x324x32xf32, #tpu.memory_space<vmem>>, vector<1x286x32xf32>
    %90 = vector.shape_cast %89 : vector<1x286x32xf32> to vector<286x32xf32>
    %91 = arith.truncf %90 : vector<286x32xf32> to vector<286x32xbf16>
    %c7 = arith.constant 7 : index
    %c0_53 = arith.constant 0 : index
    %c0_54 = arith.constant 0 : index
    %92 = vector.load %arg2[%c7, %c0_53, %c0_54] : memref<9x32x16xbf16, #tpu.memory_space<vmem>>, vector<1x32x16xbf16>
    %93 = vector.shape_cast %92 : vector<1x32x16xbf16> to vector<32x16xbf16>
    %cst_55 = arith.constant dense<0.000000e+00> : vector<286x16xf32>
    %94 = tpu.matmul %91, %93, %cst_55 {dimension_numbers = #tpu.dot_dimension_numbers<[1], [0], [0], [1], [0, 0, 1, 1], [], []>} : vector<286x32xbf16>, vector<32x16xbf16>, vector<286x16xf32> -> vector<286x16xf32>
    %95 = arith.addf %88, %94 : vector<286x16xf32>
    %c0_56 = arith.constant 0 : index
    %c38 = arith.constant 38 : index
    %c0_57 = arith.constant 0 : index
    %96 = vector.load %arg1[%c0_56, %c38, %c0_57] : memref<1x324x32xf32, #tpu.memory_space<vmem>>, vector<1x286x32xf32>
    %97 = vector.shape_cast %96 : vector<1x286x32xf32> to vector<286x32xf32>
    %98 = arith.truncf %97 : vector<286x32xf32> to vector<286x32xbf16>
    %c8 = arith.constant 8 : index
    %c0_58 = arith.constant 0 : index
    %c0_59 = arith.constant 0 : index
    %99 = vector.load %arg2[%c8, %c0_58, %c0_59] : memref<9x32x16xbf16, #tpu.memory_space<vmem>>, vector<1x32x16xbf16>
    %100 = vector.shape_cast %99 : vector<1x32x16xbf16> to vector<32x16xbf16>
    %cst_60 = arith.constant dense<0.000000e+00> : vector<286x16xf32>
    %101 = tpu.matmul %98, %100, %cst_60 {dimension_numbers = #tpu.dot_dimension_numbers<[1], [0], [0], [1], [0, 0, 1, 1], [], []>} : vector<286x32xbf16>, vector<32x16xbf16>, vector<286x16xf32> -> vector<286x16xf32>
    %102 = arith.addf %95, %101 : vector<286x16xf32>
    %103 = vector.broadcast %33 : vector<1x16xf32> to vector<286x16xf32>
    %104 = arith.addf %102, %103 : vector<286x16xf32>
    %105 = vector.broadcast %17 : vector<286x1xf32> to vector<286x16xf32>
    %106 = arith.mulf %104, %105 : vector<286x16xf32>
    %cst_61 = arith.constant dense<0.000000e+00> : vector<16xf32>
    %107 = vector.multi_reduction <add>, %106, %cst_61 [0] : vector<286x16xf32> to vector<16xf32>
    %108 = vector.shape_cast %107 : vector<16xf32> to vector<1x16xf32>
    %109 = arith.mulf %106, %106 : vector<286x16xf32>
    %cst_62 = arith.constant dense<0.000000e+00> : vector<16xf32>
    %110 = vector.multi_reduction <add>, %109, %cst_62 [0] : vector<286x16xf32> to vector<16xf32>
    %111 = vector.shape_cast %110 : vector<16xf32> to vector<1x16xf32>
    %cst_63 = arith.constant dense<0.000000e+00> : vector<1x16xf32>
    %112 = tpu.matmul %108, %31, %cst_63 {dimension_numbers = #tpu.dot_dimension_numbers<[1], [0], [0], [1], [0, 0, 1, 1], [], []>} : vector<1x16xf32>, vector<16x16xf32>, vector<1x16xf32> -> vector<1x16xf32>
    %cst_64 = arith.constant dense<0.000000e+00> : vector<1x16xf32>
    %113 = tpu.matmul %111, %31, %cst_64 {dimension_numbers = #tpu.dot_dimension_numbers<[1], [0], [0], [1], [0, 0, 1, 1], [], []>} : vector<1x16xf32>, vector<16x16xf32>, vector<1x16xf32> -> vector<1x16xf32>
    %114 = arith.mulf %112, %112 : vector<1x16xf32>
    %115 = arith.subf %113, %114 : vector<1x16xf32>
    %cst_65 = arith.constant 9.99999974E-6 : f32
    %116 = vector.broadcast %cst_65 : f32 to vector<1x16xf32>
    %117 = arith.addf %115, %116 : vector<1x16xf32>
    %118 = math.rsqrt %117 : vector<1x16xf32>
    %119 = vector.broadcast %112 : vector<1x16xf32> to vector<286x16xf32>
    %120 = arith.subf %104, %119 : vector<286x16xf32>
    %121 = arith.mulf %118, %34 : vector<1x16xf32>
    %122 = vector.broadcast %121 : vector<1x16xf32> to vector<286x16xf32>
    %123 = arith.mulf %120, %122 : vector<286x16xf32>
    %124 = vector.broadcast %35 : vector<1x16xf32> to vector<286x16xf32>
    %125 = arith.addf %123, %124 : vector<286x16xf32>
    %cst_66 = arith.constant 0.000000e+00 : f32
    %126 = vector.broadcast %cst_66 : f32 to vector<286x16xf32>
    %127 = arith.maximumf %125, %126 : vector<286x16xf32>
    %128 = vector.broadcast %17 : vector<286x1xf32> to vector<286x16xf32>
    %129 = arith.mulf %127, %128 : vector<286x16xf32>
    %cst_67 = arith.constant 0.000000e+00 : f32
    %130 = vector.broadcast %cst_67 : f32 to vector<324x16xf32>
    %c0_68 = arith.constant 0 : index
    %c0_69 = arith.constant 0 : index
    %131 = vector.load %arg6[%c0_68, %c0_69] : memref<324x16xf32, #tpu.memory_space<vmem>>, vector<324x16xf32>
    tpu.vector_store %arg6[%c0_68, %c0_69], %130 {strides = array<i32>} : memref<324x16xf32, #tpu.memory_space<vmem>>, vector<324x16xf32>,
    %c19_70 = arith.constant 19 : index
    %c0_71 = arith.constant 0 : index
    %132 = vector.load %arg6[%c19_70, %c0_71] : memref<324x16xf32, #tpu.memory_space<vmem>>, vector<286x16xf32>
    tpu.vector_store %arg6[%c19_70, %c0_71], %129 {strides = array<i32>} : memref<324x16xf32, #tpu.memory_space<vmem>>, vector<286x16xf32>,
    %cst_72 = arith.constant 0.000000e+00 : f32
    %133 = vector.broadcast %cst_72 : f32 to vector<286x16xf32>
    %c0_73 = arith.constant 0 : index
    %c0_74 = arith.constant 0 : index
    %134 = vector.load %arg6[%c0_73, %c0_74] : memref<324x16xf32, #tpu.memory_space<vmem>>, vector<286x16xf32>
    %135 = arith.truncf %134 : vector<286x16xf32> to vector<286x16xbf16>
    %c0_75 = arith.constant 0 : index
    %c0_76 = arith.constant 0 : index
    %c0_77 = arith.constant 0 : index
    %136 = vector.load %arg3[%c0_75, %c0_76, %c0_77] : memref<9x16x16xbf16, #tpu.memory_space<vmem>>, vector<1x16x16xbf16>
    %137 = vector.shape_cast %136 : vector<1x16x16xbf16> to vector<16x16xbf16>
    %cst_78 = arith.constant dense<0.000000e+00> : vector<286x16xf32>
    %138 = tpu.matmul %135, %137, %cst_78 {dimension_numbers = #tpu.dot_dimension_numbers<[1], [0], [0], [1], [0, 0, 1, 1], [], []>} : vector<286x16xbf16>, vector<16x16xbf16>, vector<286x16xf32> -> vector<286x16xf32>
    %139 = arith.addf %133, %138 : vector<286x16xf32>
    %c1_79 = arith.constant 1 : index
    %c0_80 = arith.constant 0 : index
    %140 = vector.load %arg6[%c1_79, %c0_80] : memref<324x16xf32, #tpu.memory_space<vmem>>, vector<286x16xf32>
    %141 = arith.truncf %140 : vector<286x16xf32> to vector<286x16xbf16>
    %c1_81 = arith.constant 1 : index
    %c0_82 = arith.constant 0 : index
    %c0_83 = arith.constant 0 : index
    %142 = vector.load %arg3[%c1_81, %c0_82, %c0_83] : memref<9x16x16xbf16, #tpu.memory_space<vmem>>, vector<1x16x16xbf16>
    %143 = vector.shape_cast %142 : vector<1x16x16xbf16> to vector<16x16xbf16>
    %cst_84 = arith.constant dense<0.000000e+00> : vector<286x16xf32>
    %144 = tpu.matmul %141, %143, %cst_84 {dimension_numbers = #tpu.dot_dimension_numbers<[1], [0], [0], [1], [0, 0, 1, 1], [], []>} : vector<286x16xbf16>, vector<16x16xbf16>, vector<286x16xf32> -> vector<286x16xf32>
    %145 = arith.addf %139, %144 : vector<286x16xf32>
    %c2_85 = arith.constant 2 : index
    %c0_86 = arith.constant 0 : index
    %146 = vector.load %arg6[%c2_85, %c0_86] : memref<324x16xf32, #tpu.memory_space<vmem>>, vector<286x16xf32>
    %147 = arith.truncf %146 : vector<286x16xf32> to vector<286x16xbf16>
    %c2_87 = arith.constant 2 : index
    %c0_88 = arith.constant 0 : index
    %c0_89 = arith.constant 0 : index
    %148 = vector.load %arg3[%c2_87, %c0_88, %c0_89] : memref<9x16x16xbf16, #tpu.memory_space<vmem>>, vector<1x16x16xbf16>
    %149 = vector.shape_cast %148 : vector<1x16x16xbf16> to vector<16x16xbf16>
    %cst_90 = arith.constant dense<0.000000e+00> : vector<286x16xf32>
    %150 = tpu.matmul %147, %149, %cst_90 {dimension_numbers = #tpu.dot_dimension_numbers<[1], [0], [0], [1], [0, 0, 1, 1], [], []>} : vector<286x16xbf16>, vector<16x16xbf16>, vector<286x16xf32> -> vector<286x16xf32>
    %151 = arith.addf %145, %150 : vector<286x16xf32>
    %c18_91 = arith.constant 18 : index
    %c0_92 = arith.constant 0 : index
    %152 = vector.load %arg6[%c18_91, %c0_92] : memref<324x16xf32, #tpu.memory_space<vmem>>, vector<286x16xf32>
    %153 = arith.truncf %152 : vector<286x16xf32> to vector<286x16xbf16>
    %c3_93 = arith.constant 3 : index
    %c0_94 = arith.constant 0 : index
    %c0_95 = arith.constant 0 : index
    %154 = vector.load %arg3[%c3_93, %c0_94, %c0_95] : memref<9x16x16xbf16, #tpu.memory_space<vmem>>, vector<1x16x16xbf16>
    %155 = vector.shape_cast %154 : vector<1x16x16xbf16> to vector<16x16xbf16>
    %cst_96 = arith.constant dense<0.000000e+00> : vector<286x16xf32>
    %156 = tpu.matmul %153, %155, %cst_96 {dimension_numbers = #tpu.dot_dimension_numbers<[1], [0], [0], [1], [0, 0, 1, 1], [], []>} : vector<286x16xbf16>, vector<16x16xbf16>, vector<286x16xf32> -> vector<286x16xf32>
    %157 = arith.addf %151, %156 : vector<286x16xf32>
    %c19_97 = arith.constant 19 : index
    %c0_98 = arith.constant 0 : index
    %158 = vector.load %arg6[%c19_97, %c0_98] : memref<324x16xf32, #tpu.memory_space<vmem>>, vector<286x16xf32>
    %159 = arith.truncf %158 : vector<286x16xf32> to vector<286x16xbf16>
    %c4_99 = arith.constant 4 : index
    %c0_100 = arith.constant 0 : index
    %c0_101 = arith.constant 0 : index
    %160 = vector.load %arg3[%c4_99, %c0_100, %c0_101] : memref<9x16x16xbf16, #tpu.memory_space<vmem>>, vector<1x16x16xbf16>
    %161 = vector.shape_cast %160 : vector<1x16x16xbf16> to vector<16x16xbf16>
    %cst_102 = arith.constant dense<0.000000e+00> : vector<286x16xf32>
    %162 = tpu.matmul %159, %161, %cst_102 {dimension_numbers = #tpu.dot_dimension_numbers<[1], [0], [0], [1], [0, 0, 1, 1], [], []>} : vector<286x16xbf16>, vector<16x16xbf16>, vector<286x16xf32> -> vector<286x16xf32>
    %163 = arith.addf %157, %162 : vector<286x16xf32>
    %c20_103 = arith.constant 20 : index
    %c0_104 = arith.constant 0 : index
    %164 = vector.load %arg6[%c20_103, %c0_104] : memref<324x16xf32, #tpu.memory_space<vmem>>, vector<286x16xf32>
    %165 = arith.truncf %164 : vector<286x16xf32> to vector<286x16xbf16>
    %c5_105 = arith.constant 5 : index
    %c0_106 = arith.constant 0 : index
    %c0_107 = arith.constant 0 : index
    %166 = vector.load %arg3[%c5_105, %c0_106, %c0_107] : memref<9x16x16xbf16, #tpu.memory_space<vmem>>, vector<1x16x16xbf16>
    %167 = vector.shape_cast %166 : vector<1x16x16xbf16> to vector<16x16xbf16>
    %cst_108 = arith.constant dense<0.000000e+00> : vector<286x16xf32>
    %168 = tpu.matmul %165, %167, %cst_108 {dimension_numbers = #tpu.dot_dimension_numbers<[1], [0], [0], [1], [0, 0, 1, 1], [], []>} : vector<286x16xbf16>, vector<16x16xbf16>, vector<286x16xf32> -> vector<286x16xf32>
    %169 = arith.addf %163, %168 : vector<286x16xf32>
    %c36_109 = arith.constant 36 : index
    %c0_110 = arith.constant 0 : index
    %170 = vector.load %arg6[%c36_109, %c0_110] : memref<324x16xf32, #tpu.memory_space<vmem>>, vector<286x16xf32>
    %171 = arith.truncf %170 : vector<286x16xf32> to vector<286x16xbf16>
    %c6_111 = arith.constant 6 : index
    %c0_112 = arith.constant 0 : index
    %c0_113 = arith.constant 0 : index
    %172 = vector.load %arg3[%c6_111, %c0_112, %c0_113] : memref<9x16x16xbf16, #tpu.memory_space<vmem>>, vector<1x16x16xbf16>
    %173 = vector.shape_cast %172 : vector<1x16x16xbf16> to vector<16x16xbf16>
    %cst_114 = arith.constant dense<0.000000e+00> : vector<286x16xf32>
    %174 = tpu.matmul %171, %173, %cst_114 {dimension_numbers = #tpu.dot_dimension_numbers<[1], [0], [0], [1], [0, 0, 1, 1], [], []>} : vector<286x16xbf16>, vector<16x16xbf16>, vector<286x16xf32> -> vector<286x16xf32>
    %175 = arith.addf %169, %174 : vector<286x16xf32>
    %c37_115 = arith.constant 37 : index
    %c0_116 = arith.constant 0 : index
    %176 = vector.load %arg6[%c37_115, %c0_116] : memref<324x16xf32, #tpu.memory_space<vmem>>, vector<286x16xf32>
    %177 = arith.truncf %176 : vector<286x16xf32> to vector<286x16xbf16>
    %c7_117 = arith.constant 7 : index
    %c0_118 = arith.constant 0 : index
    %c0_119 = arith.constant 0 : index
    %178 = vector.load %arg3[%c7_117, %c0_118, %c0_119] : memref<9x16x16xbf16, #tpu.memory_space<vmem>>, vector<1x16x16xbf16>
    %179 = vector.shape_cast %178 : vector<1x16x16xbf16> to vector<16x16xbf16>
    %cst_120 = arith.constant dense<0.000000e+00> : vector<286x16xf32>
    %180 = tpu.matmul %177, %179, %cst_120 {dimension_numbers = #tpu.dot_dimension_numbers<[1], [0], [0], [1], [0, 0, 1, 1], [], []>} : vector<286x16xbf16>, vector<16x16xbf16>, vector<286x16xf32> -> vector<286x16xf32>
    %181 = arith.addf %175, %180 : vector<286x16xf32>
    %c38_121 = arith.constant 38 : index
    %c0_122 = arith.constant 0 : index
    %182 = vector.load %arg6[%c38_121, %c0_122] : memref<324x16xf32, #tpu.memory_space<vmem>>, vector<286x16xf32>
    %183 = arith.truncf %182 : vector<286x16xf32> to vector<286x16xbf16>
    %c8_123 = arith.constant 8 : index
    %c0_124 = arith.constant 0 : index
    %c0_125 = arith.constant 0 : index
    %184 = vector.load %arg3[%c8_123, %c0_124, %c0_125] : memref<9x16x16xbf16, #tpu.memory_space<vmem>>, vector<1x16x16xbf16>
    %185 = vector.shape_cast %184 : vector<1x16x16xbf16> to vector<16x16xbf16>
    %cst_126 = arith.constant dense<0.000000e+00> : vector<286x16xf32>
    %186 = tpu.matmul %183, %185, %cst_126 {dimension_numbers = #tpu.dot_dimension_numbers<[1], [0], [0], [1], [0, 0, 1, 1], [], []>} : vector<286x16xbf16>, vector<16x16xbf16>, vector<286x16xf32> -> vector<286x16xf32>
    %187 = arith.addf %181, %186 : vector<286x16xf32>
    %188 = vector.broadcast %36 : vector<1x16xf32> to vector<286x16xf32>
    %189 = arith.addf %187, %188 : vector<286x16xf32>
    %190 = vector.broadcast %17 : vector<286x1xf32> to vector<286x16xf32>
    %191 = arith.mulf %189, %190 : vector<286x16xf32>
    %cst_127 = arith.constant dense<0.000000e+00> : vector<16xf32>
    %192 = vector.multi_reduction <add>, %191, %cst_127 [0] : vector<286x16xf32> to vector<16xf32>
    %193 = vector.shape_cast %192 : vector<16xf32> to vector<1x16xf32>
    %194 = arith.mulf %191, %191 : vector<286x16xf32>
    %cst_128 = arith.constant dense<0.000000e+00> : vector<16xf32>
    %195 = vector.multi_reduction <add>, %194, %cst_128 [0] : vector<286x16xf32> to vector<16xf32>
    %196 = vector.shape_cast %195 : vector<16xf32> to vector<1x16xf32>
    %cst_129 = arith.constant dense<0.000000e+00> : vector<1x16xf32>
    %197 = tpu.matmul %193, %31, %cst_129 {dimension_numbers = #tpu.dot_dimension_numbers<[1], [0], [0], [1], [0, 0, 1, 1], [], []>} : vector<1x16xf32>, vector<16x16xf32>, vector<1x16xf32> -> vector<1x16xf32>
    %cst_130 = arith.constant dense<0.000000e+00> : vector<1x16xf32>
    %198 = tpu.matmul %196, %31, %cst_130 {dimension_numbers = #tpu.dot_dimension_numbers<[1], [0], [0], [1], [0, 0, 1, 1], [], []>} : vector<1x16xf32>, vector<16x16xf32>, vector<1x16xf32> -> vector<1x16xf32>
    %199 = arith.mulf %197, %197 : vector<1x16xf32>
    %200 = arith.subf %198, %199 : vector<1x16xf32>
    %cst_131 = arith.constant 9.99999974E-6 : f32
    %201 = vector.broadcast %cst_131 : f32 to vector<1x16xf32>
    %202 = arith.addf %200, %201 : vector<1x16xf32>
    %203 = math.rsqrt %202 : vector<1x16xf32>
    %204 = vector.broadcast %197 : vector<1x16xf32> to vector<286x16xf32>
    %205 = arith.subf %189, %204 : vector<286x16xf32>
    %206 = arith.mulf %203, %37 : vector<1x16xf32>
    %207 = vector.broadcast %206 : vector<1x16xf32> to vector<286x16xf32>
    %208 = arith.mulf %205, %207 : vector<286x16xf32>
    %209 = vector.broadcast %38 : vector<1x16xf32> to vector<286x16xf32>
    %210 = arith.addf %208, %209 : vector<286x16xf32>
    %cst_132 = arith.constant 0.000000e+00 : f32
    %211 = vector.broadcast %cst_132 : f32 to vector<286x16xf32>
    %212 = arith.maximumf %210, %211 : vector<286x16xf32>
    %213 = vector.broadcast %17 : vector<286x1xf32> to vector<286x16xf32>
    %214 = arith.mulf %212, %213 : vector<286x16xf32>
    %c0_133 = arith.constant 0 : index
    %c0_134 = arith.constant 0 : index
    %c0_135 = arith.constant 0 : index
    %215 = vector.load %arg5[%c0_133, %c0_134, %c0_135] : memref<1x286x16xf32, #tpu.memory_space<vmem>>, vector<1x286x16xf32>
    %216 = vector.shape_cast %215 : vector<1x286x16xf32> to vector<286x16xf32>
    %217 = vector.shape_cast %214 : vector<286x16xf32> to vector<1x286x16xf32>
    tpu.vector_store %arg5[%c0_133, %c0_134, %c0_135], %217 {strides = array<i32>} : memref<1x286x16xf32, #tpu.memory_space<vmem>>, vector<1x286x16xf32>,
    return
  }
  func.func @transform_0(%arg0: i32) -> (i32, i32, i32) {
    %c0_i32 = arith.constant 0 : i32
    %c0_i32_0 = arith.constant 0 : i32
    %c0_i32_1 = arith.constant 0 : i32
    return %arg0, %c0_i32, %c0_i32_0 : i32, i32, i32
  }
  func.func @transform_1(%arg0: i32) -> (i32, i32, i32) {
    %c0_i32 = arith.constant 0 : i32
    %c0_i32_0 = arith.constant 0 : i32
    %c0_i32_1 = arith.constant 0 : i32
    %c0_i32_2 = arith.constant 0 : i32
    return %c0_i32, %c0_i32_0, %c0_i32_1 : i32, i32, i32
  }
  func.func @transform_2(%arg0: i32) -> (i32, i32, i32) {
    %c0_i32 = arith.constant 0 : i32
    %c0_i32_0 = arith.constant 0 : i32
    %c0_i32_1 = arith.constant 0 : i32
    %c0_i32_2 = arith.constant 0 : i32
    return %c0_i32, %c0_i32_0, %c0_i32_1 : i32, i32, i32
  }
  func.func @transform_3(%arg0: i32) -> (i32, i32) {
    %c0_i32 = arith.constant 0 : i32
    %c0_i32_0 = arith.constant 0 : i32
    %c0_i32_1 = arith.constant 0 : i32
    return %c0_i32, %c0_i32_0 : i32, i32
  }
  func.func @transform_4(%arg0: i32) -> (i32, i32, i32) {
    %c0_i32 = arith.constant 0 : i32
    %c0_i32_0 = arith.constant 0 : i32
    %c0_i32_1 = arith.constant 0 : i32
    return %arg0, %c0_i32, %c0_i32_0 : i32, i32, i32
  }
}

</mosaic_0001>

<llo_original>
// kernel: tpu_custom_call.1
$region0: #{tpu_custom_call.1}
  #allocation0 [shape = 'u32[]', space=smem, size = 0x4, offset = 0x4, fixed_abs, tag = 'smem constant byte address 0x4 - core index']
  #allocation1 [shape = 'u32[144,128]{1,0:T(1,128)}', space=vmem, size = 0x12000, scoped, tag = 'internal scratch']
  #allocation2 [shape = 'f32[324,16]{1,0:T(8,128)}', space=vmem, size = 0x29000, scoped, tag = 'scratch operand']
  %s0 = inlined_call_operand.vmem [shape: f32[2,324,32], index: 0, kind: input, shape index: {}]
  %s1 = inlined_call_operand.vmem [shape: bf16[9,32,16], index: 1, kind: input, shape index: {}]
  %s2 = inlined_call_operand.vmem [shape: bf16[9,16,16], index: 2, kind: input, shape index: {}]
  %s3 = inlined_call_operand.vmem [shape: f32[6,16], index: 3, kind: input, shape index: {}]
  %s4 = inlined_call_operand.vmem [shape: f32[2,286,16], index: 4, kind: output, shape index: {}]
  %s5 = sld [smem:[#allocation0]]
  $region49: #{tpu_custom_call.1} parent=0
    _
  %s7 = ssub.s32 1, %s5
  %s8 = scalar_select 0, %s7, %s5
  loop: start=0, step=1, limit=4
  $region2: #{tpu_custom_call.1} parent=0 // loop_pre_header
    _
  $region3: #{tpu_custom_call.1} parent=0 // loop_header
    %s10 = sphi 0, %s14
    %p11 = scmp.ge.s32.totalorder %s10, 4
    %s20 = sphi 0, %s22
    %s23 = sphi 0, %s20
    %s24 = sphi 0, %s23
    %s40 = sphi 0, %s24
    %s44 = sphi 0, %s44
    %s46 = sphi 0, %s44
    %s47 = sphi 0, %s46
    %s61 = sphi 0, %s47
    %s65 = sphi 0, %s65
    %s67 = sphi 0, %s65
    %s68 = sphi 0, %s67
    %s82 = sphi 0, %s68
    %s86 = sphi 0, %s86
    %s88 = sphi 0, %s86
    %s89 = sphi 0, %s88
    %s103 = sphi 0, %s89
    %s109 = sphi 0, %s111
    %s112 = sphi 0, %s109
    %s113 = sphi 0, %s112
    %s129 = sphi 0, %s113
  $region4: #{tpu_custom_call.1} parent=0 // loop_header_branch
    %13 = sbr.rel (%p11) target = $region8
  $region5: #{tpu_custom_call.1} parent=0 // loop_body
    %s15 = ssub.s32 %s10, 1
    %s16 = ssub.s32 %s10, 2
    %s17 = sadd.s32 %s10, 1
    %s18 = ssub.s32 %s10, %s17
    %p19 = scmp.eq.s32.totalorder %s18, 0
    %s21 = sadd.s32 %s20, 1
    %s22 = scalar_select %p19, %s20, %s21
    %p25 = pneg %p19
    %p26 = scmp.eq.s32.totalorder %s10, 1
    %p27 = por %p25, %p26
    %p28 = scmp.ne.s32.totalorder %s20, %s23
    %p29 = scmp.eq.s32.totalorder %s10, 0
    %p30 = por %p28, %p29
    %p31 = scmp.ne.s32.totalorder %s20, %s23
    %p32 = scmp.eq.s32.totalorder %s15, 1
    %p33 = por %p31, %p32
    %p34 = scmp.ne.s32.totalorder %s23, %s24
    %p35 = scmp.eq.s32.totalorder %s15, 0
    %p36 = por %p34, %p35
    %p37 = scmp.ne.s32.totalorder %s23, %s24
    %p38 = scmp.eq.s32.totalorder %s16, 1
    %p39 = por %p37, %p38
    %p41 = scmp.ne.s32.totalorder %s24, %s40
    %p42 = scmp.eq.s32.totalorder %s16, 0
    %p43 = por %p41, %p42
    %s45 = sadd.s32 %s44, 1
    %p48 = scmp.eq.s32.totalorder %s10, 1
    %p49 = scmp.ne.s32.totalorder %s44, %s46
    %p50 = scmp.eq.s32.totalorder %s10, 0
    %p51 = por %p49, %p50
    %p52 = scmp.ne.s32.totalorder %s44, %s46
    %p53 = scmp.eq.s32.totalorder %s15, 1
    %p54 = por %p52, %p53
    %p55 = scmp.ne.s32.totalorder %s46, %s47
    %p56 = scmp.eq.s32.totalorder %s15, 0
    %p57 = por %p55, %p56
    %p58 = scmp.ne.s32.totalorder %s46, %s47
    %p59 = scmp.eq.s32.totalorder %s16, 1
    %p60 = por %p58, %p59
    %p62 = scmp.ne.s32.totalorder %s47, %s61
    %p63 = scmp.eq.s32.totalorder %s16, 0
    %p64 = por %p62, %p63
    %s66 = sadd.s32 %s65, 1
    %p69 = scmp.eq.s32.totalorder %s10, 1
    %p70 = scmp.ne.s32.totalorder %s65, %s67
    %p71 = scmp.eq.s32.totalorder %s10, 0
    %p72 = por %p70, %p71
    %p73 = scmp.ne.s32.totalorder %s65, %s67
    %p74 = scmp.eq.s32.totalorder %s15, 1
    %p75 = por %p73, %p74
    %p76 = scmp.ne.s32.totalorder %s67, %s68
    %p77 = scmp.eq.s32.totalorder %s15, 0
    %p78 = por %p76, %p77
    %p79 = scmp.ne.s32.totalorder %s67, %s68
    %p80 = scmp.eq.s32.totalorder %s16, 1
    %p81 = por %p79, %p80
    %p83 = scmp.ne.s32.totalorder %s68, %s82
    %p84 = scmp.eq.s32.totalorder %s16, 0
    %p85 = por %p83, %p84
    %s87 = sadd.s32 %s86, 1
    %p90 = scmp.eq.s32.totalorder %s10, 1
    %p91 = scmp.ne.s32.totalorder %s86, %s88
    %p92 = scmp.eq.s32.totalorder %s10, 0
    %p93 = por %p91, %p92
    %p94 = scmp.ne.s32.totalorder %s86, %s88
    %p95 = scmp.eq.s32.totalorder %s15, 1
    %p96 = por %p94, %p95
    %p97 = scmp.ne.s32.totalorder %s88, %s89
    %p98 = scmp.eq.s32.totalorder %s15, 0
    %p99 = por %p97, %p98
    %p100 = scmp.ne.s32.totalorder %s88, %s89
    %p101 = scmp.eq.s32.totalorder %s16, 1
    %p102 = por %p100, %p101
    %p104 = scmp.ne.s32.totalorder %s89, %s103
    %p105 = scmp.eq.s32.totalorder %s16, 0
    %p106 = por %p104, %p105
    %s107 = ssub.s32 %s10, %s17
    %p108 = scmp.eq.s32.totalorder %s107, 0
    %s110 = sadd.s32 %s109, 1
    %s111 = scalar_select %p108, %s109, %s110
    %p114 = pneg %p108
    %p115 = scmp.eq.s32.totalorder %s10, 1
    %p116 = por %p114, %p115
    %p117 = scmp.ne.s32.totalorder %s109, %s112
    %p118 = scmp.eq.s32.totalorder %s10, 0
    %p119 = por %p117, %p118
    %p120 = scmp.ne.s32.totalorder %s109, %s112
    %p121 = scmp.eq.s32.totalorder %s15, 1
    %p122 = por %p120, %p121
    %p123 = scmp.ne.s32.totalorder %s112, %s113
    %p124 = scmp.eq.s32.totalorder %s15, 0
    %p125 = por %p123, %p124
    %p126 = scmp.ne.s32.totalorder %s112, %s113
    %p127 = scmp.eq.s32.totalorder %s16, 1
    %p128 = por %p126, %p127
    %p130 = scmp.ne.s32.totalorder %s113, %s129
    %p131 = scmp.eq.s32.totalorder %s16, 0
    %p132 = por %p130, %p131
    %p133 = scmp.le.s32.totalorder 1, %s10
    %p134 = scmp.lt.s32.totalorder %s10, 3
    %p135 = pnand %p133, %p134
    %p136 = pneg %p135
    // Predicated region
    $region9: #{tpu_custom_call.1} parent=5 // pred_check
      _
    $region10: #{tpu_custom_call.1} parent=5 // pred_check_branch
      %138 = sbr.rel (%p135) target = $region12
    $region11: #{tpu_custom_call.1} parent=5 // pred_region
      %s139 = ssub.s32 %s10, 1
      // Predicated region
      $region13: #{tpu_custom_call.1} parent=11 // pred_check
        %p140 = pneg %p57
      $region14: #{tpu_custom_call.1} parent=11 // pred_check_branch
        %142 = sbr.rel (%p140) target = $region16
      $region15: #{tpu_custom_call.1} parent=11 // pred_region
        _
      $region16: #{tpu_custom_call.1} parent=11 // pred_fallthru
        _
      // Predicated region
      $region17: #{tpu_custom_call.1} parent=11 // pred_check
        %p143 = pneg %p78
      $region18: #{tpu_custom_call.1} parent=11 // pred_check_branch
        %145 = sbr.rel (%p143) target = $region20
      $region19: #{tpu_custom_call.1} parent=11 // pred_region
        _
      $region20: #{tpu_custom_call.1} parent=11 // pred_fallthru
        _
      // Predicated region
      $region21: #{tpu_custom_call.1} parent=11 // pred_check
        %p146 = pneg %p99
      $region22: #{tpu_custom_call.1} parent=11 // pred_check_branch
        %148 = sbr.rel (%p146) target = $region24
      $region23: #{tpu_custom_call.1} parent=11 // pred_region
        _
      $region24: #{tpu_custom_call.1} parent=11 // pred_fallthru
        _
    $region12: #{tpu_custom_call.1} parent=5 // pred_fallthru
      _
    %p149 = scmp.lt.s32.totalorder %s10, 2
    // Predicated region
    $region25: #{tpu_custom_call.1} parent=5 // pred_check
      %p150 = pneg %p149
    $region26: #{tpu_custom_call.1} parent=5 // pred_check_branch
      %152 = sbr.rel (%p150) target = $region28
    $region27: #{tpu_custom_call.1} parent=5 // pred_region
      // Predicated region
      $region29: #{tpu_custom_call.1} parent=27 // pred_check
        %p153 = pneg %p30
      $region30: #{tpu_custom_call.1} parent=27 // pred_check_branch
        %155 = sbr.rel (%p153) target = $region32
      $region31: #{tpu_custom_call.1} parent=27 // pred_region
        %p156 = scmp.lt.s32.totalorder %s10, 1
        %s157 = scalar_select %p156, %s10, 1
        %s158 = smul.addr %s157, 41
        %s159 = smul.addr %s158, 8
        %s160 = scalar_lea.vmem %s0, %s159
      $region32: #{tpu_custom_call.1} parent=27 // pred_fallthru
        _
    $region28: #{tpu_custom_call.1} parent=5 // pred_fallthru
      _
    %p161 = scmp.le.s32.totalorder 1, %s10
    %p162 = scmp.lt.s32.totalorder %s10, 3
    %p163 = pnand %p161, %p162
    %p164 = pneg %p163
    // Predicated region
    $region33: #{tpu_custom_call.1} parent=5 // pred_check
      _
    $region34: #{tpu_custom_call.1} parent=5 // pred_check_branch
      %166 = sbr.rel (%p163) target = $region36
    $region35: #{tpu_custom_call.1} parent=5 // pred_region
      %s167 = ssub.s32 %s10, 1
      %p168 = scmp.lt.s32.totalorder %s15, 1
      %s169 = scalar_select %p168, %s15, 1
      %s170 = smul.addr %s169, 41
      %s171 = smul.addr %s170, 8
      %s172 = scalar_lea.vmem %s0, %s171
      %p173 = pneg %p36
      %p174 = pneg %p33
      %p175 = pneg %p57
      %p176 = pneg %p54
      %p177 = pneg %p78
      %p178 = pneg %p75
      %p179 = pneg %p99
      %p180 = pneg %p96
      %p181 = pneg %p125
      %p182 = pneg %p122
      %p183 = scmp.lt.s32.totalorder %s15, 1
      %s184 = scalar_select %p183, %s15, 1
      %s185 = smul.addr %s184, 36
      %s186 = smul.addr %s185, 8
      %s187 = scalar_lea.vmem %s4, %s186
      %p188 = scmp.lt.s32.totalorder %s15, 1
      %s189 = scalar_select %p188, %s15, 1
      %s190 = smul.addr %s189, 41
      %s191 = smul.addr %s190, 8
      %s192 = scalar_lea.vmem %s0, %s191
      %p193 = scmp.lt.s32.totalorder %s15, 1
      %s194 = scalar_select %p193, %s15, 1
      %s195 = smul.addr %s194, 36
      %s196 = smul.addr %s195, 8
      %s197 = scalar_lea.vmem %s4, %s196
      %v199 = vlaneseq
      %v200 = vshrl.u32 %v199, 7
      %v201 = vadd.s32 %v200, 8
      %v202 = vadd.s32 %v200, 16
      %v203 = vadd.s32 %v200, 24
      %v204 = vadd.s32 %v200, 32
      %v205 = vadd.s32 %v200, 40
      %v206 = vadd.s32 %v200, 48
      %v207 = vadd.s32 %v200, 56
      %v208 = vadd.s32 %v200, 64
      %v209 = vadd.s32 %v200, 72
      %v210 = vadd.s32 %v200, 80
      %v211 = vadd.s32 %v200, 88
      %v212 = vadd.s32 %v200, 96
      %v213 = vadd.s32 %v200, 104
      %v214 = vadd.s32 %v200, 112
      %v215 = vadd.s32 %v200, 120
      %v216 = vadd.s32 %v200, 128
      %v217 = vadd.s32 %v200, 136
      %v218 = vadd.s32 %v200, 144
      %v219 = vadd.s32 %v200, 152
      %v220 = vadd.s32 %v200, 160
      %v221 = vadd.s32 %v200, 168
      %v222 = vadd.s32 %v200, 176
      %v223 = vadd.s32 %v200, 184
      %v224 = vadd.s32 %v200, 192
      %v225 = vadd.s32 %v200, 200
      %v226 = vadd.s32 %v200, 208
      %v227 = vadd.s32 %v200, 216
      %v228 = vadd.s32 %v200, 224
      %v229 = vadd.s32 %v200, 232
      %v230 = vadd.s32 %v200, 240
      %v231 = vadd.s32 %v200, 248
      %v232 = vadd.s32 %v200, 256
      %v233 = vadd.s32 %v200, 264
      %v234 = vadd.s32 %v200, 272
      %v235 = vadd.s32 %v200, 280
      %v236 = vcvt.s32.f32 %v200
      %v237 = vcvt.s32.f32 %v201
      %v238 = vcvt.s32.f32 %v202
      %v239 = vcvt.s32.f32 %v203
      %v240 = vcvt.s32.f32 %v204
      %v241 = vcvt.s32.f32 %v205
      %v242 = vcvt.s32.f32 %v206
      %v243 = vcvt.s32.f32 %v207
      %v244 = vcvt.s32.f32 %v208
      %v245 = vcvt.s32.f32 %v209
      %v246 = vcvt.s32.f32 %v210
      %v247 = vcvt.s32.f32 %v211
      %v248 = vcvt.s32.f32 %v212
      %v249 = vcvt.s32.f32 %v213
      %v250 = vcvt.s32.f32 %v214
      %v251 = vcvt.s32.f32 %v215
      %v252 = vcvt.s32.f32 %v216
      %v253 = vcvt.s32.f32 %v217
      %v254 = vcvt.s32.f32 %v218
      %v255 = vcvt.s32.f32 %v219
      %v256 = vcvt.s32.f32 %v220
      %v257 = vcvt.s32.f32 %v221
      %v258 = vcvt.s32.f32 %v222
      %v259 = vcvt.s32.f32 %v223
      %v260 = vcvt.s32.f32 %v224
      %v261 = vcvt.s32.f32 %v225
      %v262 = vcvt.s32.f32 %v226
      %v263 = vcvt.s32.f32 %v227
      %v264 = vcvt.s32.f32 %v228
      %v265 = vcvt.s32.f32 %v229
      %v266 = vcvt.s32.f32 %v230
      %v267 = vcvt.s32.f32 %v231
      %v268 = vcvt.s32.f32 %v232
      %v269 = vcvt.s32.f32 %v233
      %v270 = vcvt.s32.f32 %v234
      %v271 = vcvt.s32.f32 %v235
      %v272 = vadd.f32 %v236, 19.0
      %v273 = vadd.f32 %v237, 19.0
      %v274 = vadd.f32 %v238, 19.0
      %v275 = vadd.f32 %v239, 19.0
      %v276 = vadd.f32 %v240, 19.0
      %v277 = vadd.f32 %v241, 19.0
      %v278 = vadd.f32 %v242, 19.0
      %v279 = vadd.f32 %v243, 19.0
      %v280 = vadd.f32 %v244, 19.0
      %v281 = vadd.f32 %v245, 19.0
      %v282 = vadd.f32 %v246, 19.0
      %v283 = vadd.f32 %v247, 19.0
      %v284 = vadd.f32 %v248, 19.0
      %v285 = vadd.f32 %v249, 19.0
      %v286 = vadd.f32 %v250, 19.0
      %v287 = vadd.f32 %v251, 19.0
      %v288 = vadd.f32 %v252, 19.0
      %v289 = vadd.f32 %v253, 19.0
      %v290 = vadd.f32 %v254, 19.0
      %v291 = vadd.f32 %v255, 19.0
      %v292 = vadd.f32 %v256, 19.0
      %v293 = vadd.f32 %v257, 19.0
      %v294 = vadd.f32 %v258, 19.0
      %v295 = vadd.f32 %v259, 19.0
      %v296 = vadd.f32 %v260, 19.0
      %v297 = vadd.f32 %v261, 19.0
      %v298 = vadd.f32 %v262, 19.0
      %v299 = vadd.f32 %v263, 19.0
      %v300 = vadd.f32 %v264, 19.0
      %v301 = vadd.f32 %v265, 19.0
      %v302 = vadd.f32 %v266, 19.0
      %v303 = vadd.f32 %v267, 19.0
      %v304 = vadd.f32 %v268, 19.0
      %v305 = vadd.f32 %v269, 19.0
      %v306 = vadd.f32 %v270, 19.0
      %v307 = vadd.f32 %v271, 19.0
      %v308 = vmul.f32 %v272, 0.055555556
      %v309 = vmul.f32 %v273, 0.055555556
      %v310 = vmul.f32 %v274, 0.055555556
      %v311 = vmul.f32 %v275, 0.055555556
      %v312 = vmul.f32 %v276, 0.055555556
      %v313 = vmul.f32 %v277, 0.055555556
      %v314 = vmul.f32 %v278, 0.055555556
      %v315 = vmul.f32 %v279, 0.055555556
      %v316 = vmul.f32 %v280, 0.055555556
      %v317 = vmul.f32 %v281, 0.055555556
      %v318 = vmul.f32 %v282, 0.055555556
      %v319 = vmul.f32 %v283, 0.055555556
      %v320 = vmul.f32 %v284, 0.055555556
      %v321 = vmul.f32 %v285, 0.055555556
      %v322 = vmul.f32 %v286, 0.055555556
      %v323 = vmul.f32 %v287, 0.055555556
      %v324 = vmul.f32 %v288, 0.055555556
      %v325 = vmul.f32 %v289, 0.055555556
      %v326 = vmul.f32 %v290, 0.055555556
      %v327 = vmul.f32 %v291, 0.055555556
      %v328 = vmul.f32 %v292, 0.055555556
      %v329 = vmul.f32 %v293, 0.055555556
      %v330 = vmul.f32 %v294, 0.055555556
      %v331 = vmul.f32 %v295, 0.055555556
      %v332 = vmul.f32 %v296, 0.055555556
      %v333 = vmul.f32 %v297, 0.055555556
      %v334 = vmul.f32 %v298, 0.055555556
      %v335 = vmul.f32 %v299, 0.055555556
      %v336 = vmul.f32 %v300, 0.055555556
      %v337 = vmul.f32 %v301, 0.055555556
      %v338 = vmul.f32 %v302, 0.055555556
      %v339 = vmul.f32 %v303, 0.055555556
      %v340 = vmul.f32 %v304, 0.055555556
      %v341 = vmul.f32 %v305, 0.055555556
      %v342 = vmul.f32 %v306, 0.055555556
      %v343 = vmul.f32 %v307, 0.055555556
      %v344 = vfloor.f32 %v308
      %v345 = vfloor.f32 %v309
      %v346 = vfloor.f32 %v310
      %v347 = vfloor.f32 %v311
      %v348 = vfloor.f32 %v312
      %v349 = vfloor.f32 %v313
      %v350 = vfloor.f32 %v314
      %v351 = vfloor.f32 %v315
      %v352 = vfloor.f32 %v316
      %v353 = vfloor.f32 %v317
      %v354 = vfloor.f32 %v318
      %v355 = vfloor.f32 %v319
      %v356 = vfloor.f32 %v320
      %v357 = vfloor.f32 %v321
      %v358 = vfloor.f32 %v322
      %v359 = vfloor.f32 %v323
      %v360 = vfloor.f32 %v324
      %v361 = vfloor.f32 %v325
      %v362 = vfloor.f32 %v326
      %v363 = vfloor.f32 %v327
      %v364 = vfloor.f32 %v328
      %v365 = vfloor.f32 %v329
      %v366 = vfloor.f32 %v330
      %v367 = vfloor.f32 %v331
      %v368 = vfloor.f32 %v332
      %v369 = vfloor.f32 %v333
      %v370 = vfloor.f32 %v334
      %v371 = vfloor.f32 %v335
      %v372 = vfloor.f32 %v336
      %v373 = vfloor.f32 %v337
      %v374 = vfloor.f32 %v338
      %v375 = vfloor.f32 %v339
      %v376 = vfloor.f32 %v340
      %v377 = vfloor.f32 %v341
      %v378 = vfloor.f32 %v342
      %v379 = vfloor.f32 %v343
      %v380 = vmul.f32 %v344, 18.0
      %v381 = vmul.f32 %v345, 18.0
      %v382 = vmul.f32 %v346, 18.0
      %v383 = vmul.f32 %v347, 18.0
      %v384 = vmul.f32 %v348, 18.0
      %v385 = vmul.f32 %v349, 18.0
      %v386 = vmul.f32 %v350, 18.0
      %v387 = vmul.f32 %v351, 18.0
      %v388 = vmul.f32 %v352, 18.0
      %v389 = vmul.f32 %v353, 18.0
      %v390 = vmul.f32 %v354, 18.0
      %v391 = vmul.f32 %v355, 18.0
      %v392 = vmul.f32 %v356, 18.0
      %v393 = vmul.f32 %v357, 18.0
      %v394 = vmul.f32 %v358, 18.0
      %v395 = vmul.f32 %v359, 18.0
      %v396 = vmul.f32 %v360, 18.0
      %v397 = vmul.f32 %v361, 18.0
      %v398 = vmul.f32 %v362, 18.0
      %v399 = vmul.f32 %v363, 18.0
      %v400 = vmul.f32 %v364, 18.0
      %v401 = vmul.f32 %v365, 18.0
      %v402 = vmul.f32 %v366, 18.0
      %v403 = vmul.f32 %v367, 18.0
      %v404 = vmul.f32 %v368, 18.0
      %v405 = vmul.f32 %v369, 18.0
      %v406 = vmul.f32 %v370, 18.0
      %v407 = vmul.f32 %v371, 18.0
      %v408 = vmul.f32 %v372, 18.0
      %v409 = vmul.f32 %v373, 18.0
      %v410 = vmul.f32 %v374, 18.0
      %v411 = vmul.f32 %v375, 18.0
      %v412 = vmul.f32 %v376, 18.0
      %v413 = vmul.f32 %v377, 18.0
      %v414 = vmul.f32 %v378, 18.0
      %v415 = vmul.f32 %v379, 18.0
      %v416 = vsub.f32 %v272, %v380
      %v417 = vsub.f32 %v273, %v381
      %v418 = vsub.f32 %v274, %v382
      %v419 = vsub.f32 %v275, %v383
      %v420 = vsub.f32 %v276, %v384
      %v421 = vsub.f32 %v277, %v385
      %v422 = vsub.f32 %v278, %v386
      %v423 = vsub.f32 %v279, %v387
      %v424 = vsub.f32 %v280, %v388
      %v425 = vsub.f32 %v281, %v389
      %v426 = vsub.f32 %v282, %v390
      %v427 = vsub.f32 %v283, %v391
      %v428 = vsub.f32 %v284, %v392
      %v429 = vsub.f32 %v285, %v393
      %v430 = vsub.f32 %v286, %v394
      %v431 = vsub.f32 %v287, %v395
      %v432 = vsub.f32 %v288, %v396
      %v433 = vsub.f32 %v289, %v397
      %v434 = vsub.f32 %v290, %v398
      %v435 = vsub.f32 %v291, %v399
      %v436 = vsub.f32 %v292, %v400
      %v437 = vsub.f32 %v293, %v401
      %v438 = vsub.f32 %v294, %v402
      %v439 = vsub.f32 %v295, %v403
      %v440 = vsub.f32 %v296, %v404
      %v441 = vsub.f32 %v297, %v405
      %v442 = vsub.f32 %v298, %v406
      %v443 = vsub.f32 %v299, %v407
      %v444 = vsub.f32 %v300, %v408
      %v445 = vsub.f32 %v301, %v409
      %v446 = vsub.f32 %v302, %v410
      %v447 = vsub.f32 %v303, %v411
      %v448 = vsub.f32 %v304, %v412
      %v449 = vsub.f32 %v305, %v413
      %v450 = vsub.f32 %v306, %v414
      %v451 = vsub.f32 %v307, %v415
      %vm452 = vcmp.ge.f32.partialorder %v416, 1.0
      %vm453 = vcmp.ge.f32.partialorder %v417, 1.0
      %vm454 = vcmp.ge.f32.partialorder %v418, 1.0
      %vm455 = vcmp.ge.f32.partialorder %v419, 1.0
      %vm456 = vcmp.ge.f32.partialorder %v420, 1.0
      %vm457 = vcmp.ge.f32.partialorder %v421, 1.0
      %vm458 = vcmp.ge.f32.partialorder %v422, 1.0
      %vm459 = vcmp.ge.f32.partialorder %v423, 1.0
      %vm460 = vcmp.ge.f32.partialorder %v424, 1.0
      %vm461 = vcmp.ge.f32.partialorder %v425, 1.0
      %vm462 = vcmp.ge.f32.partialorder %v426, 1.0
      %vm463 = vcmp.ge.f32.partialorder %v427, 1.0
      %vm464 = vcmp.ge.f32.partialorder %v428, 1.0
      %vm465 = vcmp.ge.f32.partialorder %v429, 1.0
      %vm466 = vcmp.ge.f32.partialorder %v430, 1.0
      %vm467 = vcmp.ge.f32.partialorder %v431, 1.0
      %vm468 = vcmp.ge.f32.partialorder %v432, 1.0
      %vm469 = vcmp.ge.f32.partialorder %v433, 1.0
      %vm470 = vcmp.ge.f32.partialorder %v434, 1.0
      %vm471 = vcmp.ge.f32.partialorder %v435, 1.0
      %vm472 = vcmp.ge.f32.partialorder %v436, 1.0
      %vm473 = vcmp.ge.f32.partialorder %v437, 1.0
      %vm474 = vcmp.ge.f32.partialorder %v438, 1.0
      %vm475 = vcmp.ge.f32.partialorder %v439, 1.0
      %vm476 = vcmp.ge.f32.partialorder %v440, 1.0
      %vm477 = vcmp.ge.f32.partialorder %v441, 1.0
      %vm478 = vcmp.ge.f32.partialorder %v442, 1.0
      %vm479 = vcmp.ge.f32.partialorder %v443, 1.0
      %vm480 = vcmp.ge.f32.partialorder %v444, 1.0
      %vm481 = vcmp.ge.f32.partialorder %v445, 1.0
      %vm482 = vcmp.ge.f32.partialorder %v446, 1.0
      %vm483 = vcmp.ge.f32.partialorder %v447, 1.0
      %vm484 = vcmp.ge.f32.partialorder %v448, 1.0
      %vm485 = vcmp.ge.f32.partialorder %v449, 1.0
      %vm486 = vcmp.ge.f32.partialorder %v450, 1.0
      %vm487 = vcmp.ge.f32.partialorder %v451, 1.0
      %vm488 = vcmp.le.f32.partialorder %v416, 16.0
      %vm489 = vcmp.le.f32.partialorder %v417, 16.0
      %vm490 = vcmp.le.f32.partialorder %v418, 16.0
      %vm491 = vcmp.le.f32.partialorder %v419, 16.0
      %vm492 = vcmp.le.f32.partialorder %v420, 16.0
      %vm493 = vcmp.le.f32.partialorder %v421, 16.0
      %vm494 = vcmp.le.f32.partialorder %v422, 16.0
      %vm495 = vcmp.le.f32.partialorder %v423, 16.0
      %vm496 = vcmp.le.f32.partialorder %v424, 16.0
      %vm497 = vcmp.le.f32.partialorder %v425, 16.0
      %vm498 = vcmp.le.f32.partialorder %v426, 16.0
      %vm499 = vcmp.le.f32.partialorder %v427, 16.0
      %vm500 = vcmp.le.f32.partialorder %v428, 16.0
      %vm501 = vcmp.le.f32.partialorder %v429, 16.0
      %vm502 = vcmp.le.f32.partialorder %v430, 16.0
      %vm503 = vcmp.le.f32.partialorder %v431, 16.0
      %vm504 = vcmp.le.f32.partialorder %v432, 16.0
      %vm505 = vcmp.le.f32.partialorder %v433, 16.0
      %vm506 = vcmp.le.f32.partialorder %v434, 16.0
      %vm507 = vcmp.le.f32.partialorder %v435, 16.0
      %vm508 = vcmp.le.f32.partialorder %v436, 16.0
      %vm509 = vcmp.le.f32.partialorder %v437, 16.0
      %vm510 = vcmp.le.f32.partialorder %v438, 16.0
      %vm511 = vcmp.le.f32.partialorder %v439, 16.0
      %vm512 = vcmp.le.f32.partialorder %v440, 16.0
      %vm513 = vcmp.le.f32.partialorder %v441, 16.0
      %vm514 = vcmp.le.f32.partialorder %v442, 16.0
      %vm515 = vcmp.le.f32.partialorder %v443, 16.0
      %vm516 = vcmp.le.f32.partialorder %v444, 16.0
      %vm517 = vcmp.le.f32.partialorder %v445, 16.0
      %vm518 = vcmp.le.f32.partialorder %v446, 16.0
      %vm519 = vcmp.le.f32.partialorder %v447, 16.0
      %vm520 = vcmp.le.f32.partialorder %v448, 16.0
      %vm521 = vcmp.le.f32.partialorder %v449, 16.0
      %vm522 = vcmp.le.f32.partialorder %v450, 16.0
      %vm523 = vcmp.le.f32.partialorder %v451, 16.0
      %vm524 = vmand %vm452, %vm488
      %vm525 = vmand %vm453, %vm489
      %vm526 = vmand %vm454, %vm490
      %vm527 = vmand %vm455, %vm491
      %vm528 = vmand %vm456, %vm492
      %vm529 = vmand %vm457, %vm493
      %vm530 = vmand %vm458, %vm494
      %vm531 = vmand %vm459, %vm495
      %vm532 = vmand %vm460, %vm496
      %vm533 = vmand %vm461, %vm497
      %vm534 = vmand %vm462, %vm498
      %vm535 = vmand %vm463, %vm499
      %vm536 = vmand %vm464, %vm500
      %vm537 = vmand %vm465, %vm501
      %vm538 = vmand %vm466, %vm502
      %vm539 = vmand %vm467, %vm503
      %vm540 = vmand %vm468, %vm504
      %vm541 = vmand %vm469, %vm505
      %vm542 = vmand %vm470, %vm506
      %vm543 = vmand %vm471, %vm507
      %vm544 = vmand %vm472, %vm508
      %vm545 = vmand %vm473, %vm509
      %vm546 = vmand %vm474, %vm510
      %vm547 = vmand %vm475, %vm511
      %vm548 = vmand %vm476, %vm512
      %vm549 = vmand %vm477, %vm513
      %vm550 = vmand %vm478, %vm514
      %vm551 = vmand %vm479, %vm515
      %vm552 = vmand %vm480, %vm516
      %vm553 = vmand %vm481, %vm517
      %vm554 = vmand %vm482, %vm518
      %vm555 = vmand %vm483, %vm519
      %vm556 = vmand %vm484, %vm520
      %vm557 = vmand %vm485, %vm521
      %vm558 = vmand %vm486, %vm522
      %vm559 = vmand %vm487, %vm523
      %v560 = vsel %vm524, 1.0, 0.0
      %v561 = vsel %vm525, 1.0, 0.0
      %v562 = vsel %vm526, 1.0, 0.0
      %v563 = vsel %vm527, 1.0, 0.0
      %v564 = vsel %vm528, 1.0, 0.0
      %v565 = vsel %vm529, 1.0, 0.0
      %v566 = vsel %vm530, 1.0, 0.0
      %v567 = vsel %vm531, 1.0, 0.0
      %v568 = vsel %vm532, 1.0, 0.0
      %v569 = vsel %vm533, 1.0, 0.0
      %v570 = vsel %vm534, 1.0, 0.0
      %v571 = vsel %vm535, 1.0, 0.0
      %v572 = vsel %vm536, 1.0, 0.0
      %v573 = vsel %vm537, 1.0, 0.0
      %v574 = vsel %vm538, 1.0, 0.0
      %v575 = vsel %vm539, 1.0, 0.0
      %v576 = vsel %vm540, 1.0, 0.0
      %v577 = vsel %vm541, 1.0, 0.0
      %v578 = vsel %vm542, 1.0, 0.0
      %v579 = vsel %vm543, 1.0, 0.0
      %v580 = vsel %vm544, 1.0, 0.0
      %v581 = vsel %vm545, 1.0, 0.0
      %v582 = vsel %vm546, 1.0, 0.0
      %v583 = vsel %vm547, 1.0, 0.0
      %v584 = vsel %vm548, 1.0, 0.0
      %v585 = vsel %vm549, 1.0, 0.0
      %v586 = vsel %vm550, 1.0, 0.0
      %v587 = vsel %vm551, 1.0, 0.0
      %v588 = vsel %vm552, 1.0, 0.0
      %v589 = vsel %vm553, 1.0, 0.0
      %v590 = vsel %vm554, 1.0, 0.0
      %v591 = vsel %vm555, 1.0, 0.0
      %v592 = vsel %vm556, 1.0, 0.0
      %v593 = vsel %vm557, 1.0, 0.0
      %v594 = vsel %vm558, 1.0, 0.0
      %v595 = vsel %vm559, 1.0, 0.0
      %v596 = vmul.f32 %v236, 0.5
      %v597 = vmul.f32 %v237, 0.5
      %v598 = vfloor.f32 %v596
      %v599 = vfloor.f32 %v597
      %v600 = vlaneseq
      %v601 = vand.u32 %v600, 127
      %v602 = vcvt.s32.f32 %v601
      %v603 = vmul.f32 %v602, 0.5
      %v604 = vfloor.f32 %v603
      %vm605 = vcmp.eq.f32.partialorder %v598, %v604
      %vm606 = vcmp.eq.f32.partialorder %v599, %v604
      %v607 = vsel %vm605, 0.001953125, 0.0
      %v608 = vsel %vm606, 0.001953125, 0.0
      %v609 = vld [vmem:[%s3] sm:$0x3f]
      %v610 = vld [vmem:[%s192] sm:$0xff]
      %v611 = vld [vmem:[%s192 + $0x8] sm:$0xff]
      %v612 = vld [vmem:[%s192 + $0x10] sm:$0xff]
      %v613 = vld [vmem:[%s192 + $0x18] sm:$0xff]
      %v614 = vld [vmem:[%s192 + $0x20] sm:$0xff]
      %v615 = vld [vmem:[%s192 + $0x28] sm:$0xff]
      %v616 = vld [vmem:[%s192 + $0x30] sm:$0xff]
      %v617 = vld [vmem:[%s192 + $0x38] sm:$0xff]
      %v618 = vld [vmem:[%s192 + $0x40] sm:$0xff]
      %v619 = vld [vmem:[%s192 + $0x48] sm:$0xff]
      %v620 = vld [vmem:[%s192 + $0x50] sm:$0xff]
      %v621 = vld [vmem:[%s192 + $0x58] sm:$0xff]
      %v622 = vld [vmem:[%s192 + $0x60] sm:$0xff]
      %v623 = vld [vmem:[%s192 + $0x68] sm:$0xff]
      %v624 = vld [vmem:[%s192 + $0x70] sm:$0xff]
      %v625 = vld [vmem:[%s192 + $0x78] sm:$0xff]
      %v626 = vld [vmem:[%s192 + $0x80] sm:$0xff]
      %v627 = vld [vmem:[%s192 + $0x88] sm:$0xff]
      %v628 = vld [vmem:[%s192 + $0x90] sm:$0xff]
      %v629 = vld [vmem:[%s192 + $0x98] sm:$0xff]
      %v630 = vld [vmem:[%s192 + $0xa0] sm:$0xff]
      %v631 = vld [vmem:[%s192 + $0xa8] sm:$0xff]
      %v632 = vld [vmem:[%s192 + $0xb0] sm:$0xff]
      %v633 = vld [vmem:[%s192 + $0xb8] sm:$0xff]
      %v634 = vld [vmem:[%s192 + $0xc0] sm:$0xff]
      %v635 = vld [vmem:[%s192 + $0xc8] sm:$0xff]
      %v636 = vld [vmem:[%s192 + $0xd0] sm:$0xff]
      %v637 = vld [vmem:[%s192 + $0xd8] sm:$0xff]
      %v638 = vld [vmem:[%s192 + $0xe0] sm:$0xff]
      %v639 = vld [vmem:[%s192 + $0xe8] sm:$0xff]
      %v640 = vld [vmem:[%s192 + $0xf0] sm:$0xff]
      %v641 = vld [vmem:[%s192 + $0xf8] sm:$0xff]
      %v642 = vld [vmem:[%s192 + $0x100] sm:$0xff]
      %v643 = vld [vmem:[%s192 + $0x108] sm:$0xff]
      %v644 = vld [vmem:[%s192 + $0x110] sm:$0xff]
      %v645 = vld [vmem:[%s192 + $0x118] sm:$0x3f]
      %v646 = vpack.c.bf16 %v611, %v610
      %v647 = vpack.c.bf16 %v613, %v612
      %v648 = vpack.c.bf16 %v615, %v614
      %v649 = vpack.c.bf16 %v617, %v616
      %v650 = vpack.c.bf16 %v619, %v618
      %v651 = vpack.c.bf16 %v621, %v620
      %v652 = vpack.c.bf16 %v623, %v622
      %v653 = vpack.c.bf16 %v625, %v624
      %v654 = vpack.c.bf16 %v627, %v626
      %v655 = vpack.c.bf16 %v629, %v628
      %v656 = vpack.c.bf16 %v631, %v630
      %v657 = vpack.c.bf16 %v633, %v632
      %v658 = vpack.c.bf16 %v635, %v634
      %v659 = vpack.c.bf16 %v637, %v636
      %v660 = vpack.c.bf16 %v639, %v638
      %v661 = vpack.c.bf16 %v641, %v640
      %v662 = vpack.c.bf16 %v643, %v642
      %v663 = vpack.c.bf16 %v645, %v644
      %v664 = vld [vmem:[%s1] sm:$0xf]
      %v665 = vld [vmem:[%s1 + $0x4] sm:$0xf]
      %v666 = vld [vmem:[%s1 + $0x8] sm:$0xf]
      %v667 = vld [vmem:[%s1 + $0xc] sm:$0xf]
      %v668 = vld [vmem:[%s192 + $0x1] sm:$0xff]
      %v669 = vld [vmem:[%s192 + $0x9] sm:$0xff]
      %v670 = vld [vmem:[%s192 + $0x11] sm:$0xff]
      %v671 = vld [vmem:[%s192 + $0x19] sm:$0xff]
      %v672 = vld [vmem:[%s192 + $0x21] sm:$0xff]
      %v673 = vld [vmem:[%s192 + $0x29] sm:$0xff]
      %v674 = vld [vmem:[%s192 + $0x31] sm:$0xff]
      %v675 = vld [vmem:[%s192 + $0x39] sm:$0xff]
      %v676 = vld [vmem:[%s192 + $0x41] sm:$0xff]
      %v677 = vld [vmem:[%s192 + $0x49] sm:$0xff]
      %v678 = vld [vmem:[%s192 + $0x51] sm:$0xff]
      %v679 = vld [vmem:[%s192 + $0x59] sm:$0xff]
      %v680 = vld [vmem:[%s192 + $0x61] sm:$0xff]
      %v681 = vld [vmem:[%s192 + $0x69] sm:$0xff]
      %v682 = vld [vmem:[%s192 + $0x71] sm:$0xff]
      %v683 = vld [vmem:[%s192 + $0x79] sm:$0xff]
      %v684 = vld [vmem:[%s192 + $0x81] sm:$0xff]
      %v685 = vld [vmem:[%s192 + $0x89] sm:$0xff]
      %v686 = vld [vmem:[%s192 + $0x91] sm:$0xff]
      %v687 = vld [vmem:[%s192 + $0x99] sm:$0xff]
      %v688 = vld [vmem:[%s192 + $0xa1] sm:$0xff]
      %v689 = vld [vmem:[%s192 + $0xa9] sm:$0xff]
      %v690 = vld [vmem:[%s192 + $0xb1] sm:$0xff]
      %v691 = vld [vmem:[%s192 + $0xb9] sm:$0xff]
      %v692 = vld [vmem:[%s192 + $0xc1] sm:$0xff]
      %v693 = vld [vmem:[%s192 + $0xc9] sm:$0xff]
      %v694 = vld [vmem:[%s192 + $0xd1] sm:$0xff]
      %v695 = vld [vmem:[%s192 + $0xd9] sm:$0xff]
      %v696 = vld [vmem:[%s192 + $0xe1] sm:$0xff]
      %v697 = vld [vmem:[%s192 + $0xe9] sm:$0xff]
      %v698 = vld [vmem:[%s192 + $0xf1] sm:$0xff]
      %v699 = vld [vmem:[%s192 + $0xf9] sm:$0xff]
      %v700 = vld [vmem:[%s192 + $0x101] sm:$0xff]
      %v701 = vld [vmem:[%s192 + $0x109] sm:$0xff]
      %v702 = vld [vmem:[%s192 + $0x111] sm:$0xff]
      %v703 = vld [vmem:[%s192 + $0x119] sm:$0x3f]
      %v704 = vpack.c.bf16 %v669, %v668
      %v705 = vpack.c.bf16 %v671, %v670
      %v706 = vpack.c.bf16 %v673, %v672
      %v707 = vpack.c.bf16 %v675, %v674
      %v708 = vpack.c.bf16 %v677, %v676
      %v709 = vpack.c.bf16 %v679, %v678
      %v710 = vpack.c.bf16 %v681, %v680
      %v711 = vpack.c.bf16 %v683, %v682
      %v712 = vpack.c.bf16 %v685, %v684
      %v713 = vpack.c.bf16 %v687, %v686
      %v714 = vpack.c.bf16 %v689, %v688
      %v715 = vpack.c.bf16 %v691, %v690
      %v716 = vpack.c.bf16 %v693, %v692
      %v717 = vpack.c.bf16 %v695, %v694
      %v718 = vpack.c.bf16 %v697, %v696
      %v719 = vpack.c.bf16 %v699, %v698
      %v720 = vpack.c.bf16 %v701, %v700
      %v721 = vpack.c.bf16 %v703, %v702
      %s722 = scalar_lea.vmem %s1, 16
      %v723 = vld [vmem:[%s722] sm:$0xf]
      %v724 = vld [vmem:[%s722 + $0x4] sm:$0xf]
      %v725 = vld [vmem:[%s722 + $0x8] sm:$0xf]
      %v726 = vld [vmem:[%s722 + $0xc] sm:$0xf]
      %v731 = vunpack.c.l.b16 %v723
      %v732 = vunpack.c.l.b16 %v724
      %v733 = vunpack.c.l.b16 %v725
      %v734 = vunpack.c.l.b16 %v726
      %v735 = vpack.c.b16 %v732, %v731
      %v736 = vpack.c.b16 %v734, %v733
      %vm739 = vcmask 261120
      %v741 = vsel %vm739, %v704, 0
      %v744 = vsel %vm739, %v705, 0
      %v747 = vsel %vm739, %v706, 0
      %v750 = vsel %vm739, %v707, 0
      %v753 = vsel %vm739, %v708, 0
      %v756 = vsel %vm739, %v709, 0
      %v759 = vsel %vm739, %v710, 0
      %v762 = vsel %vm739, %v711, 0
      %v765 = vsel %vm739, %v712, 0
      %v768 = vsel %vm739, %v713, 0
      %v771 = vsel %vm739, %v714, 0
      %v774 = vsel %vm739, %v715, 0
      %v777 = vsel %vm739, %v716, 0
      %v780 = vsel %vm739, %v717, 0
      %v783 = vsel %vm739, %v718, 0
      %v786 = vsel %vm739, %v719, 0
      %v789 = vsel %vm739, %v720, 0
      %v792 = vsel %vm739, %v721, 0
      %794 = vmatprep.subr.bf16.mxu0 0
      %795 = vmatpush1.bf16.msra.mxu0 0
      %796 = vmatprep.subr.bf16.mxu0 0
      %797 = vmatpush1.bf16.msra.mxu0 0
      %798 = vmatprep.subr.bf16.mxu0 0
      %799 = vmatpush1.bf16.msra.mxu0 0
      %800 = vmatprep.subr.bf16.mxu0 0
      %801 = vmatpush1.bf16.msra.mxu0 0
      %802 = vmatprep.subr.bf16.mxu0 0
      %803 = vmatpush1.bf16.msra.mxu0 0
      %804 = vmatprep.subr.bf16.mxu0 0
      %805 = vmatpush1.bf16.msra.mxu0 0
      %806 = vmatprep.subr.bf16.mxu0 0
      %807 = vmatpush1.bf16.msra.mxu0 %v736
      %808 = vmatprep.subr.bf16.mxu0 0
      %809 = vmatpush1.bf16.msra.mxu0 %v735
      %810 = vmatprep.subr.bf16.mxu0 0
      %811 = vmatpush2.bf16.msra.mxu0 0
      %812 = vmatprep.subr.bf16.mxu0 0
      %813 = vmatpush2.bf16.msra.mxu0 0
      %814 = vmatprep.subr.bf16.mxu0 0
      %815 = vmatpush2.bf16.msra.mxu0 0
      %816 = vmatprep.subr.bf16.mxu0 0
      %817 = vmatpush2.bf16.msra.mxu0 0
      %818 = vmatprep.subr.bf16.mxu0 0
      %819 = vmatpush2.bf16.msra.mxu0 0
      %820 = vmatprep.subr.bf16.mxu0 0
      %821 = vmatpush2.bf16.msra.mxu0 0
      %822 = vmatprep.subr.bf16.mxu0 0
      %823 = vmatpush2.bf16.msra.mxu0 0
      %824 = vmatprep.subr.bf16.mxu0 0
      %825 = vmatpush2.bf16.msra.mxu0 0
      %826 = vmatprep.mubr.bf16.mxu0 0
      %827 = vmatmul.mubr.bf16.gmra.mxu0 %v741
      %v828 = vpop.f32.mrf.mxu0
      %v829 = vadd.f32 0.0, %v828
      %v830 = vpop.f32.mrf.mxu0
      %v831 = vpop.f32.mrf.mxu0
      %v832 = vadd.f32 0.0, %v831
      %v833 = vpop.f32.mrf.mxu0
      %834 = vmatprep.mubr.bf16.mxu0 0
      %835 = vmatmul.mubr.bf16.gmra.mxu0 %v744
      %v836 = vpop.f32.mrf.mxu0
      %v837 = vadd.f32 0.0, %v836
      %v838 = vpop.f32.mrf.mxu0
      %v839 = vpop.f32.mrf.mxu0
      %v840 = vadd.f32 0.0, %v839
      %v841 = vpop.f32.mrf.mxu0
      %842 = vmatprep.mubr.bf16.mxu0 0
      %843 = vmatmul.mubr.bf16.gmra.mxu0 %v747
      %v844 = vpop.f32.mrf.mxu0
      %v845 = vadd.f32 0.0, %v844
      %v846 = vpop.f32.mrf.mxu0
      %v847 = vpop.f32.mrf.mxu0
      %v848 = vadd.f32 0.0, %v847
      %v849 = vpop.f32.mrf.mxu0
      %850 = vmatprep.mubr.bf16.mxu0 0
      %851 = vmatmul.mubr.bf16.gmra.mxu0 %v750
      %v852 = vpop.f32.mrf.mxu0
      %v853 = vadd.f32 0.0, %v852
      %v854 = vpop.f32.mrf.mxu0
      %v855 = vpop.f32.mrf.mxu0
      %v856 = vadd.f32 0.0, %v855
      %v857 = vpop.f32.mrf.mxu0
      %858 = vmatprep.mubr.bf16.mxu0 0
      %859 = vmatmul.mubr.bf16.gmra.mxu0 %v753
      %v860 = vpop.f32.mrf.mxu0
      %v861 = vadd.f32 0.0, %v860
      %v862 = vpop.f32.mrf.mxu0
      %v863 = vpop.f32.mrf.mxu0
      %v864 = vadd.f32 0.0, %v863
      %v865 = vpop.f32.mrf.mxu0
      %866 = vmatprep.mubr.bf16.mxu0 0
      %867 = vmatmul.mubr.bf16.gmra.mxu0 %v756
      %v868 = vpop.f32.mrf.mxu0
      %v869 = vadd.f32 0.0, %v868
      %v870 = vpop.f32.mrf.mxu0
      %v871 = vpop.f32.mrf.mxu0
      %v872 = vadd.f32 0.0, %v871
      %v873 = vpop.f32.mrf.mxu0
      %874 = vmatprep.mubr.bf16.mxu0 0
      %875 = vmatmul.mubr.bf16.gmra.mxu0 %v759
      %v876 = vpop.f32.mrf.mxu0
      %v877 = vadd.f32 0.0, %v876
      %v878 = vpop.f32.mrf.mxu0
      %v879 = vpop.f32.mrf.mxu0
      %v880 = vadd.f32 0.0, %v879
      %v881 = vpop.f32.mrf.mxu0
      %882 = vmatprep.mubr.bf16.mxu0 0
      %883 = vmatmul.mubr.bf16.gmra.mxu0 %v762
      %v884 = vpop.f32.mrf.mxu0
      %v885 = vadd.f32 0.0, %v884
      %v886 = vpop.f32.mrf.mxu0
      %v887 = vpop.f32.mrf.mxu0
      %v888 = vadd.f32 0.0, %v887
      %v889 = vpop.f32.mrf.mxu0
      %890 = vmatprep.mubr.bf16.mxu0 0
      %891 = vmatmul.mubr.bf16.gmra.mxu0 %v765
      %v892 = vpop.f32.mrf.mxu0
      %v893 = vadd.f32 0.0, %v892
      %v894 = vpop.f32.mrf.mxu0
      %v895 = vpop.f32.mrf.mxu0
      %v896 = vadd.f32 0.0, %v895
      %v897 = vpop.f32.mrf.mxu0
      %898 = vmatprep.mubr.bf16.mxu0 0
      %899 = vmatmul.mubr.bf16.gmra.mxu0 %v768
      %v900 = vpop.f32.mrf.mxu0
      %v901 = vadd.f32 0.0, %v900
      %v902 = vpop.f32.mrf.mxu0
      %v903 = vpop.f32.mrf.mxu0
      %v904 = vadd.f32 0.0, %v903
      %v905 = vpop.f32.mrf.mxu0
      %906 = vmatprep.mubr.bf16.mxu0 0
      %907 = vmatmul.mubr.bf16.gmra.mxu0 %v771
      %v908 = vpop.f32.mrf.mxu0
      %v909 = vadd.f32 0.0, %v908
      %v910 = vpop.f32.mrf.mxu0
      %v911 = vpop.f32.mrf.mxu0
      %v912 = vadd.f32 0.0, %v911
      %v913 = vpop.f32.mrf.mxu0
      %914 = vmatprep.mubr.bf16.mxu0 0
      %915 = vmatmul.mubr.bf16.gmra.mxu0 %v774
      %v916 = vpop.f32.mrf.mxu0
      %v917 = vadd.f32 0.0, %v916
      %v918 = vpop.f32.mrf.mxu0
      %v919 = vpop.f32.mrf.mxu0
      %v920 = vadd.f32 0.0, %v919
      %v921 = vpop.f32.mrf.mxu0
      %922 = vmatprep.mubr.bf16.mxu0 0
      %923 = vmatmul.mubr.bf16.gmra.mxu0 %v777
      %v924 = vpop.f32.mrf.mxu0
      %v925 = vadd.f32 0.0, %v924
      %v926 = vpop.f32.mrf.mxu0
      %v927 = vpop.f32.mrf.mxu0
      %v928 = vadd.f32 0.0, %v927
      %v929 = vpop.f32.mrf.mxu0
      %930 = vmatprep.mubr.bf16.mxu0 0
      %931 = vmatmul.mubr.bf16.gmra.mxu0 %v780
      %v932 = vpop.f32.mrf.mxu0
      %v933 = vadd.f32 0.0, %v932
      %v934 = vpop.f32.mrf.mxu0
      %v935 = vpop.f32.mrf.mxu0
      %v936 = vadd.f32 0.0, %v935
      %v937 = vpop.f32.mrf.mxu0
      %938 = vmatprep.mubr.bf16.mxu0 0
      %939 = vmatmul.mubr.bf16.gmra.mxu0 %v783
      %v940 = vpop.f32.mrf.mxu0
      %v941 = vadd.f32 0.0, %v940
      %v942 = vpop.f32.mrf.mxu0
      %v943 = vpop.f32.mrf.mxu0
      %v944 = vadd.f32 0.0, %v943
      %v945 = vpop.f32.mrf.mxu0
      %946 = vmatprep.mubr.bf16.mxu0 0
      %947 = vmatmul.mubr.bf16.gmra.mxu0 %v786
      %v948 = vpop.f32.mrf.mxu0
      %v949 = vadd.f32 0.0, %v948
      %v950 = vpop.f32.mrf.mxu0
      %v951 = vpop.f32.mrf.mxu0
      %v952 = vadd.f32 0.0, %v951
      %v953 = vpop.f32.mrf.mxu0
      %954 = vmatprep.mubr.bf16.mxu0 0
      %955 = vmatmul.mubr.bf16.gmra.mxu0 %v789
      %v956 = vpop.f32.mrf.mxu0
      %v957 = vadd.f32 0.0, %v956
      %v958 = vpop.f32.mrf.mxu0
      %v959 = vpop.f32.mrf.mxu0
      %v960 = vadd.f32 0.0, %v959
      %v961 = vpop.f32.mrf.mxu0
      %962 = vmatprep.mubr.bf16.mxu0 0
      %963 = vmatmul.mubr.bf16.gmra.mxu0 %v792
      %v964 = vpop.f32.mrf.mxu0
      %v965 = vadd.f32 0.0, %v964
      %v966 = vpop.f32.mrf.mxu0
      %v967 = vpop.f32.mrf.mxu0
      %v968 = vadd.f32 0.0, %v967
      %v969 = vpop.f32.mrf.mxu0
      %970 = vdwg.mxu0
      %v975 = vunpack.c.l.b16 %v664
      %v976 = vunpack.c.l.b16 %v665
      %v977 = vunpack.c.l.b16 %v666
      %v978 = vunpack.c.l.b16 %v667
      %v979 = vpack.c.b16 %v976, %v975
      %v980 = vpack.c.b16 %v978, %v977
      %v984 = vsel %vm739, %v646, 0
      %v987 = vsel %vm739, %v647, 0
      %v990 = vsel %vm739, %v648, 0
      %v993 = vsel %vm739, %v649, 0
      %v996 = vsel %vm739, %v650, 0
      %v999 = vsel %vm739, %v651, 0
      %v1002 = vsel %vm739, %v652, 0
      %v1005 = vsel %vm739, %v653, 0
      %v1008 = vsel %vm739, %v654, 0
      %v1011 = vsel %vm739, %v655, 0
      %v1014 = vsel %vm739, %v656, 0
      %v1017 = vsel %vm739, %v657, 0
      %v1020 = vsel %vm739, %v658, 0
      %v1023 = vsel %vm739, %v659, 0
      %v1026 = vsel %vm739, %v660, 0
      %v1029 = vsel %vm739, %v661, 0
      %v1032 = vsel %vm739, %v662, 0
      %v1035 = vsel %vm739, %v663, 0
      %1037 = vmatprep.subr.bf16.mxu0 0
      %1038 = vmatpush1.bf16.msra.mxu0 0
      %1039 = vmatprep.subr.bf16.mxu0 0
      %1040 = vmatpush1.bf16.msra.mxu0 0
      %1041 = vmatprep.subr.bf16.mxu0 0
      %1042 = vmatpush1.bf16.msra.mxu0 0
      %1043 = vmatprep.subr.bf16.mxu0 0
      %1044 = vmatpush1.bf16.msra.mxu0 0
      %1045 = vmatprep.subr.bf16.mxu0 0
      %1046 = vmatpush1.bf16.msra.mxu0 0
      %1047 = vmatprep.subr.bf16.mxu0 0
      %1048 = vmatpush1.bf16.msra.mxu0 0
      %1049 = vmatprep.subr.bf16.mxu0 0
      %1050 = vmatpush1.bf16.msra.mxu0 %v980
      %1051 = vmatprep.subr.bf16.mxu0 0
      %1052 = vmatpush1.bf16.msra.mxu0 %v979
      %1053 = vmatprep.subr.bf16.mxu0 0
      %1054 = vmatpush2.bf16.msra.mxu0 0
      %1055 = vmatprep.subr.bf16.mxu0 0
      %1056 = vmatpush2.bf16.msra.mxu0 0
      %1057 = vmatprep.subr.bf16.mxu0 0
      %1058 = vmatpush2.bf16.msra.mxu0 0
      %1059 = vmatprep.subr.bf16.mxu0 0
      %1060 = vmatpush2.bf16.msra.mxu0 0
      %1061 = vmatprep.subr.bf16.mxu0 0
      %1062 = vmatpush2.bf16.msra.mxu0 0
      %1063 = vmatprep.subr.bf16.mxu0 0
      %1064 = vmatpush2.bf16.msra.mxu0 0
      %1065 = vmatprep.subr.bf16.mxu0 0
      %1066 = vmatpush2.bf16.msra.mxu0 0
      %1067 = vmatprep.subr.bf16.mxu0 0
      %1068 = vmatpush2.bf16.msra.mxu0 0
      %1069 = vmatprep.mubr.bf16.mxu0 0
      %1070 = vmatmul.mubr.bf16.gmra.mxu0 %v984
      %v1071 = vpop.f32.mrf.mxu0
      %v1072 = vadd.f32 %v829, %v1071
      %v1073 = vpop.f32.mrf.mxu0
      %v1074 = vpop.f32.mrf.mxu0
      %v1075 = vadd.f32 %v832, %v1074
      %v1076 = vpop.f32.mrf.mxu0
      %1077 = vmatprep.mubr.bf16.mxu0 0
      %1078 = vmatmul.mubr.bf16.gmra.mxu0 %v987
      %v1079 = vpop.f32.mrf.mxu0
      %v1080 = vadd.f32 %v837, %v1079
      %v1081 = vpop.f32.mrf.mxu0
      %v1082 = vpop.f32.mrf.mxu0
      %v1083 = vadd.f32 %v840, %v1082
      %v1084 = vpop.f32.mrf.mxu0
      %1085 = vmatprep.mubr.bf16.mxu0 0
      %1086 = vmatmul.mubr.bf16.gmra.mxu0 %v990
      %v1087 = vpop.f32.mrf.mxu0
      %v1088 = vadd.f32 %v845, %v1087
      %v1089 = vpop.f32.mrf.mxu0
      %v1090 = vpop.f32.mrf.mxu0
      %v1091 = vadd.f32 %v848, %v1090
      %v1092 = vpop.f32.mrf.mxu0
      %1093 = vmatprep.mubr.bf16.mxu0 0
      %1094 = vmatmul.mubr.bf16.gmra.mxu0 %v993
      %v1095 = vpop.f32.mrf.mxu0
      %v1096 = vadd.f32 %v853, %v1095
      %v1097 = vpop.f32.mrf.mxu0
      %v1098 = vpop.f32.mrf.mxu0
      %v1099 = vadd.f32 %v856, %v1098
      %v1100 = vpop.f32.mrf.mxu0
      %1101 = vmatprep.mubr.bf16.mxu0 0
      %1102 = vmatmul.mubr.bf16.gmra.mxu0 %v996
      %v1103 = vpop.f32.mrf.mxu0
      %v1104 = vadd.f32 %v861, %v1103
      %v1105 = vpop.f32.mrf.mxu0
      %v1106 = vpop.f32.mrf.mxu0
      %v1107 = vadd.f32 %v864, %v1106
      %v1108 = vpop.f32.mrf.mxu0
      %1109 = vmatprep.mubr.bf16.mxu0 0
      %1110 = vmatmul.mubr.bf16.gmra.mxu0 %v999
      %v1111 = vpop.f32.mrf.mxu0
      %v1112 = vadd.f32 %v869, %v1111
      %v1113 = vpop.f32.mrf.mxu0
      %v1114 = vpop.f32.mrf.mxu0
      %v1115 = vadd.f32 %v872, %v1114
      %v1116 = vpop.f32.mrf.mxu0
      %1117 = vmatprep.mubr.bf16.mxu0 0
      %1118 = vmatmul.mubr.bf16.gmra.mxu0 %v1002
      %v1119 = vpop.f32.mrf.mxu0
      %v1120 = vadd.f32 %v877, %v1119
      %v1121 = vpop.f32.mrf.mxu0
      %v1122 = vpop.f32.mrf.mxu0
      %v1123 = vadd.f32 %v880, %v1122
      %v1124 = vpop.f32.mrf.mxu0
      %1125 = vmatprep.mubr.bf16.mxu0 0
      %1126 = vmatmul.mubr.bf16.gmra.mxu0 %v1005
      %v1127 = vpop.f32.mrf.mxu0
      %v1128 = vadd.f32 %v885, %v1127
      %v1129 = vpop.f32.mrf.mxu0
      %v1130 = vpop.f32.mrf.mxu0
      %v1131 = vadd.f32 %v888, %v1130
      %v1132 = vpop.f32.mrf.mxu0
      %1133 = vmatprep.mubr.bf16.mxu0 0
      %1134 = vmatmul.mubr.bf16.gmra.mxu0 %v1008
      %v1135 = vpop.f32.mrf.mxu0
      %v1136 = vadd.f32 %v893, %v1135
      %v1137 = vpop.f32.mrf.mxu0
      %v1138 = vpop.f32.mrf.mxu0
      %v1139 = vadd.f32 %v896, %v1138
      %v1140 = vpop.f32.mrf.mxu0
      %1141 = vmatprep.mubr.bf16.mxu0 0
      %1142 = vmatmul.mubr.bf16.gmra.mxu0 %v1011
      %v1143 = vpop.f32.mrf.mxu0
      %v1144 = vadd.f32 %v901, %v1143
      %v1145 = vpop.f32.mrf.mxu0
      %v1146 = vpop.f32.mrf.mxu0
      %v1147 = vadd.f32 %v904, %v1146
      %v1148 = vpop.f32.mrf.mxu0
      %1149 = vmatprep.mubr.bf16.mxu0 0
      %1150 = vmatmul.mubr.bf16.gmra.mxu0 %v1014
      %v1151 = vpop.f32.mrf.mxu0
      %v1152 = vadd.f32 %v909, %v1151
      %v1153 = vpop.f32.mrf.mxu0
      %v1154 = vpop.f32.mrf.mxu0
      %v1155 = vadd.f32 %v912, %v1154
      %v1156 = vpop.f32.mrf.mxu0
      %1157 = vmatprep.mubr.bf16.mxu0 0
      %1158 = vmatmul.mubr.bf16.gmra.mxu0 %v1017
      %v1159 = vpop.f32.mrf.mxu0
      %v1160 = vadd.f32 %v917, %v1159
      %v1161 = vpop.f32.mrf.mxu0
      %v1162 = vpop.f32.mrf.mxu0
      %v1163 = vadd.f32 %v920, %v1162
      %v1164 = vpop.f32.mrf.mxu0
      %1165 = vmatprep.mubr.bf16.mxu0 0
      %1166 = vmatmul.mubr.bf16.gmra.mxu0 %v1020
      %v1167 = vpop.f32.mrf.mxu0
      %v1168 = vadd.f32 %v925, %v1167
      %v1169 = vpop.f32.mrf.mxu0
      %v1170 = vpop.f32.mrf.mxu0
      %v1171 = vadd.f32 %v928, %v1170
      %v1172 = vpop.f32.mrf.mxu0
      %1173 = vmatprep.mubr.bf16.mxu0 0
      %1174 = vmatmul.mubr.bf16.gmra.mxu0 %v1023
      %v1175 = vpop.f32.mrf.mxu0
      %v1176 = vadd.f32 %v933, %v1175
      %v1177 = vpop.f32.mrf.mxu0
      %v1178 = vpop.f32.mrf.mxu0
      %v1179 = vadd.f32 %v936, %v1178
      %v1180 = vpop.f32.mrf.mxu0
      %1181 = vmatprep.mubr.bf16.mxu0 0
      %1182 = vmatmul.mubr.bf16.gmra.mxu0 %v1026
      %v1183 = vpop.f32.mrf.mxu0
      %v1184 = vadd.f32 %v941, %v1183
      %v1185 = vpop.f32.mrf.mxu0
      %v1186 = vpop.f32.mrf.mxu0
      %v1187 = vadd.f32 %v944, %v1186
      %v1188 = vpop.f32.mrf.mxu0
      %1189 = vmatprep.mubr.bf16.mxu0 0
      %1190 = vmatmul.mubr.bf16.gmra.mxu0 %v1029
      %v1191 = vpop.f32.mrf.mxu0
      %v1192 = vadd.f32 %v949, %v1191
      %v1193 = vpop.f32.mrf.mxu0
      %v1194 = vpop.f32.mrf.mxu0
      %v1195 = vadd.f32 %v952, %v1194
      %v1196 = vpop.f32.mrf.mxu0
      %1197 = vmatprep.mubr.bf16.mxu0 0
      %1198 = vmatmul.mubr.bf16.gmra.mxu0 %v1032
      %v1199 = vpop.f32.mrf.mxu0
      %v1200 = vadd.f32 %v957, %v1199
      %v1201 = vpop.f32.mrf.mxu0
      %v1202 = vpop.f32.mrf.mxu0
      %v1203 = vadd.f32 %v960, %v1202
      %v1204 = vpop.f32.mrf.mxu0
      %1205 = vmatprep.mubr.bf16.mxu0 0
      %1206 = vmatmul.mubr.bf16.gmra.mxu0 %v1035
      %v1207 = vpop.f32.mrf.mxu0
      %v1208 = vadd.f32 %v965, %v1207
      %v1209 = vpop.f32.mrf.mxu0
      %v1210 = vpop.f32.mrf.mxu0
      %v1211 = vadd.f32 %v968, %v1210
      %v1212 = vpop.f32.mrf.mxu0
      %1213 = vdwg.mxu0
      %v1214 = vld [vmem:[%s192 + $0x2] sm:$0xff]
      %v1215 = vld [vmem:[%s192 + $0xa] sm:$0xff]
      %v1216 = vld [vmem:[%s192 + $0x12] sm:$0xff]
      %v1217 = vld [vmem:[%s192 + $0x1a] sm:$0xff]
      %v1218 = vld [vmem:[%s192 + $0x22] sm:$0xff]
      %v1219 = vld [vmem:[%s192 + $0x2a] sm:$0xff]
      %v1220 = vld [vmem:[%s192 + $0x32] sm:$0xff]
      %v1221 = vld [vmem:[%s192 + $0x3a] sm:$0xff]
      %v1222 = vld [vmem:[%s192 + $0x42] sm:$0xff]
      %v1223 = vld [vmem:[%s192 + $0x4a] sm:$0xff]
      %v1224 = vld [vmem:[%s192 + $0x52] sm:$0xff]
      %v1225 = vld [vmem:[%s192 + $0x5a] sm:$0xff]
      %v1226 = vld [vmem:[%s192 + $0x62] sm:$0xff]
      %v1227 = vld [vmem:[%s192 + $0x6a] sm:$0xff]
      %v1228 = vld [vmem:[%s192 + $0x72] sm:$0xff]
      %v1229 = vld [vmem:[%s192 + $0x7a] sm:$0xff]
      %v1230 = vld [vmem:[%s192 + $0x82] sm:$0xff]
      %v1231 = vld [vmem:[%s192 + $0x8a] sm:$0xff]
      %v1232 = vld [vmem:[%s192 + $0x92] sm:$0xff]
      %v1233 = vld [vmem:[%s192 + $0x9a] sm:$0xff]
      %v1234 = vld [vmem:[%s192 + $0xa2] sm:$0xff]
      %v1235 = vld [vmem:[%s192 + $0xaa] sm:$0xff]
      %v1236 = vld [vmem:[%s192 + $0xb2] sm:$0xff]
      %v1237 = vld [vmem:[%s192 + $0xba] sm:$0xff]
      %v1238 = vld [vmem:[%s192 + $0xc2] sm:$0xff]
      %v1239 = vld [vmem:[%s192 + $0xca] sm:$0xff]
      %v1240 = vld [vmem:[%s192 + $0xd2] sm:$0xff]
      %v1241 = vld [vmem:[%s192 + $0xda] sm:$0xff]
      %v1242 = vld [vmem:[%s192 + $0xe2] sm:$0xff]
      %v1243 = vld [vmem:[%s192 + $0xea] sm:$0xff]
      %v1244 = vld [vmem:[%s192 + $0xf2] sm:$0xff]
      %v1245 = vld [vmem:[%s192 + $0xfa] sm:$0xff]
      %v1246 = vld [vmem:[%s192 + $0x102] sm:$0xff]
      %v1247 = vld [vmem:[%s192 + $0x10a] sm:$0xff]
      %v1248 = vld [vmem:[%s192 + $0x112] sm:$0xff]
      %v1249 = vld [vmem:[%s192 + $0x11a] sm:$0x3f]
      %v1250 = vpack.c.bf16 %v1215, %v1214
      %v1251 = vpack.c.bf16 %v1217, %v1216
      %v1252 = vpack.c.bf16 %v1219, %v1218
      %v1253 = vpack.c.bf16 %v1221, %v1220
      %v1254 = vpack.c.bf16 %v1223, %v1222
      %v1255 = vpack.c.bf16 %v1225, %v1224
      %v1256 = vpack.c.bf16 %v1227, %v1226
      %v1257 = vpack.c.bf16 %v1229, %v1228
      %v1258 = vpack.c.bf16 %v1231, %v1230
      %v1259 = vpack.c.bf16 %v1233, %v1232
      %v1260 = vpack.c.bf16 %v1235, %v1234
      %v1261 = vpack.c.bf16 %v1237, %v1236
      %v1262 = vpack.c.bf16 %v1239, %v1238
      %v1263 = vpack.c.bf16 %v1241, %v1240
      %v1264 = vpack.c.bf16 %v1243, %v1242
      %v1265 = vpack.c.bf16 %v1245, %v1244
      %v1266 = vpack.c.bf16 %v1247, %v1246
      %v1267 = vpack.c.bf16 %v1249, %v1248
      %s1268 = scalar_lea.vmem %s1, 32
      %v1269 = vld [vmem:[%s1268] sm:$0xf]
      %v1270 = vld [vmem:[%s1268 + $0x4] sm:$0xf]
      %v1271 = vld [vmem:[%s1268 + $0x8] sm:$0xf]
      %v1272 = vld [vmem:[%s1268 + $0xc] sm:$0xf]
      %v1277 = vunpack.c.l.b16 %v1269
      %v1278 = vunpack.c.l.b16 %v1270
      %v1279 = vunpack.c.l.b16 %v1271
      %v1280 = vunpack.c.l.b16 %v1272
      %v1281 = vpack.c.b16 %v1278, %v1277
      %v1282 = vpack.c.b16 %v1280, %v1279
      %v1286 = vsel %vm739, %v1250, 0
      %v1289 = vsel %vm739, %v1251, 0
      %v1292 = vsel %vm739, %v1252, 0
      %v1295 = vsel %vm739, %v1253, 0
      %v1298 = vsel %vm739, %v1254, 0
      %v1301 = vsel %vm739, %v1255, 0
      %v1304 = vsel %vm739, %v1256, 0
      %v1307 = vsel %vm739, %v1257, 0
      %v1310 = vsel %vm739, %v1258, 0
      %v1313 = vsel %vm739, %v1259, 0
      %v1316 = vsel %vm739, %v1260, 0
      %v1319 = vsel %vm739, %v1261, 0
      %v1322 = vsel %vm739, %v1262, 0
      %v1325 = vsel %vm739, %v1263, 0
      %v1328 = vsel %vm739, %v1264, 0
      %v1331 = vsel %vm739, %v1265, 0
      %v1334 = vsel %vm739, %v1266, 0
      %v1337 = vsel %vm739, %v1267, 0
      %1339 = vmatprep.subr.bf16.mxu0 0
      %1340 = vmatpush1.bf16.msra.mxu0 0
      %1341 = vmatprep.subr.bf16.mxu0 0
      %1342 = vmatpush1.bf16.msra.mxu0 0
      %1343 = vmatprep.subr.bf16.mxu0 0
      %1344 = vmatpush1.bf16.msra.mxu0 0
      %1345 = vmatprep.subr.bf16.mxu0 0
      %1346 = vmatpush1.bf16.msra.mxu0 0
      %1347 = vmatprep.subr.bf16.mxu0 0
      %1348 = vmatpush1.bf16.msra.mxu0 0
      %1349 = vmatprep.subr.bf16.mxu0 0
      %1350 = vmatpush1.bf16.msra.mxu0 0
      %1351 = vmatprep.subr.bf16.mxu0 0
      %1352 = vmatpush1.bf16.msra.mxu0 %v1282
      %1353 = vmatprep.subr.bf16.mxu0 0
      %1354 = vmatpush1.bf16.msra.mxu0 %v1281
      %1355 = vmatprep.subr.bf16.mxu0 0
      %1356 = vmatpush2.bf16.msra.mxu0 0
      %1357 = vmatprep.subr.bf16.mxu0 0
      %1358 = vmatpush2.bf16.msra.mxu0 0
      %1359 = vmatprep.subr.bf16.mxu0 0
      %1360 = vmatpush2.bf16.msra.mxu0 0
      %1361 = vmatprep.subr.bf16.mxu0 0
      %1362 = vmatpush2.bf16.msra.mxu0 0
      %1363 = vmatprep.subr.bf16.mxu0 0
      %1364 = vmatpush2.bf16.msra.mxu0 0
      %1365 = vmatprep.subr.bf16.mxu0 0
      %1366 = vmatpush2.bf16.msra.mxu0 0
      %1367 = vmatprep.subr.bf16.mxu0 0
      %1368 = vmatpush2.bf16.msra.mxu0 0
      %1369 = vmatprep.subr.bf16.mxu0 0
      %1370 = vmatpush2.bf16.msra.mxu0 0
      %1371 = vmatprep.mubr.bf16.mxu0 0
      %1372 = vmatmul.mubr.bf16.gmra.mxu0 %v1286
      %v1373 = vpop.f32.mrf.mxu0
      %v1374 = vadd.f32 0.0, %v1373
      %v1375 = vpop.f32.mrf.mxu0
      %v1376 = vpop.f32.mrf.mxu0
      %v1377 = vadd.f32 0.0, %v1376
      %v1378 = vpop.f32.mrf.mxu0
      %1379 = vmatprep.mubr.bf16.mxu0 0
      %1380 = vmatmul.mubr.bf16.gmra.mxu0 %v1289
      %v1381 = vpop.f32.mrf.mxu0
      %v1382 = vadd.f32 0.0, %v1381
      %v1383 = vpop.f32.mrf.mxu0
      %v1384 = vpop.f32.mrf.mxu0
      %v1385 = vadd.f32 0.0, %v1384
      %v1386 = vpop.f32.mrf.mxu0
      %1387 = vmatprep.mubr.bf16.mxu0 0
      %1388 = vmatmul.mubr.bf16.gmra.mxu0 %v1292
      %v1389 = vpop.f32.mrf.mxu0
      %v1390 = vadd.f32 0.0, %v1389
      %v1391 = vpop.f32.mrf.mxu0
      %v1392 = vpop.f32.mrf.mxu0
      %v1393 = vadd.f32 0.0, %v1392
      %v1394 = vpop.f32.mrf.mxu0
      %1395 = vmatprep.mubr.bf16.mxu0 0
      %1396 = vmatmul.mubr.bf16.gmra.mxu0 %v1295
      %v1397 = vpop.f32.mrf.mxu0
      %v1398 = vadd.f32 0.0, %v1397
      %v1399 = vpop.f32.mrf.mxu0
      %v1400 = vpop.f32.mrf.mxu0
      %v1401 = vadd.f32 0.0, %v1400
      %v1402 = vpop.f32.mrf.mxu0
      %1403 = vmatprep.mubr.bf16.mxu0 0
      %1404 = vmatmul.mubr.bf16.gmra.mxu0 %v1298
      %v1405 = vpop.f32.mrf.mxu0
      %v1406 = vadd.f32 0.0, %v1405
      %v1407 = vpop.f32.mrf.mxu0
      %v1408 = vpop.f32.mrf.mxu0
      %v1409 = vadd.f32 0.0, %v1408
      %v1410 = vpop.f32.mrf.mxu0
      %1411 = vmatprep.mubr.bf16.mxu0 0
      %1412 = vmatmul.mubr.bf16.gmra.mxu0 %v1301
      %v1413 = vpop.f32.mrf.mxu0
      %v1414 = vadd.f32 0.0, %v1413
      %v1415 = vpop.f32.mrf.mxu0
      %v1416 = vpop.f32.mrf.mxu0
      %v1417 = vadd.f32 0.0, %v1416
      %v1418 = vpop.f32.mrf.mxu0
      %1419 = vmatprep.mubr.bf16.mxu0 0
      %1420 = vmatmul.mubr.bf16.gmra.mxu0 %v1304
      %v1421 = vpop.f32.mrf.mxu0
      %v1422 = vadd.f32 0.0, %v1421
      %v1423 = vpop.f32.mrf.mxu0
      %v1424 = vpop.f32.mrf.mxu0
      %v1425 = vadd.f32 0.0, %v1424
      %v1426 = vpop.f32.mrf.mxu0
      %1427 = vmatprep.mubr.bf16.mxu0 0
      %1428 = vmatmul.mubr.bf16.gmra.mxu0 %v1307
      %v1429 = vpop.f32.mrf.mxu0
      %v1430 = vadd.f32 0.0, %v1429
      %v1431 = vpop.f32.mrf.mxu0
      %v1432 = vpop.f32.mrf.mxu0
      %v1433 = vadd.f32 0.0, %v1432
      %v1434 = vpop.f32.mrf.mxu0
      %1435 = vmatprep.mubr.bf16.mxu0 0
      %1436 = vmatmul.mubr.bf16.gmra.mxu0 %v1310
      %v1437 = vpop.f32.mrf.mxu0
      %v1438 = vadd.f32 0.0, %v1437
      %v1439 = vpop.f32.mrf.mxu0
      %v1440 = vpop.f32.mrf.mxu0
      %v1441 = vadd.f32 0.0, %v1440
      %v1442 = vpop.f32.mrf.mxu0
      %1443 = vmatprep.mubr.bf16.mxu0 0
      %1444 = vmatmul.mubr.bf16.gmra.mxu0 %v1313
      %v1445 = vpop.f32.mrf.mxu0
      %v1446 = vadd.f32 0.0, %v1445
      %v1447 = vpop.f32.mrf.mxu0
      %v1448 = vpop.f32.mrf.mxu0
      %v1449 = vadd.f32 0.0, %v1448
      %v1450 = vpop.f32.mrf.mxu0
      %1451 = vmatprep.mubr.bf16.mxu0 0
      %1452 = vmatmul.mubr.bf16.gmra.mxu0 %v1316
      %v1453 = vpop.f32.mrf.mxu0
      %v1454 = vadd.f32 0.0, %v1453
      %v1455 = vpop.f32.mrf.mxu0
      %v1456 = vpop.f32.mrf.mxu0
      %v1457 = vadd.f32 0.0, %v1456
      %v1458 = vpop.f32.mrf.mxu0
      %1459 = vmatprep.mubr.bf16.mxu0 0
      %1460 = vmatmul.mubr.bf16.gmra.mxu0 %v1319
      %v1461 = vpop.f32.mrf.mxu0
      %v1462 = vadd.f32 0.0, %v1461
      %v1463 = vpop.f32.mrf.mxu0
      %v1464 = vpop.f32.mrf.mxu0
      %v1465 = vadd.f32 0.0, %v1464
      %v1466 = vpop.f32.mrf.mxu0
      %1467 = vmatprep.mubr.bf16.mxu0 0
      %1468 = vmatmul.mubr.bf16.gmra.mxu0 %v1322
      %v1469 = vpop.f32.mrf.mxu0
      %v1470 = vadd.f32 0.0, %v1469
      %v1471 = vpop.f32.mrf.mxu0
      %v1472 = vpop.f32.mrf.mxu0
      %v1473 = vadd.f32 0.0, %v1472
      %v1474 = vpop.f32.mrf.mxu0
      %1475 = vmatprep.mubr.bf16.mxu0 0
      %1476 = vmatmul.mubr.bf16.gmra.mxu0 %v1325
      %v1477 = vpop.f32.mrf.mxu0
      %v1478 = vadd.f32 0.0, %v1477
      %v1479 = vpop.f32.mrf.mxu0
      %v1480 = vpop.f32.mrf.mxu0
      %v1481 = vadd.f32 0.0, %v1480
      %v1482 = vpop.f32.mrf.mxu0
      %1483 = vmatprep.mubr.bf16.mxu0 0
      %1484 = vmatmul.mubr.bf16.gmra.mxu0 %v1328
      %v1485 = vpop.f32.mrf.mxu0
      %v1486 = vadd.f32 0.0, %v1485
      %v1487 = vpop.f32.mrf.mxu0
      %v1488 = vpop.f32.mrf.mxu0
      %v1489 = vadd.f32 0.0, %v1488
      %v1490 = vpop.f32.mrf.mxu0
      %1491 = vmatprep.mubr.bf16.mxu0 0
      %1492 = vmatmul.mubr.bf16.gmra.mxu0 %v1331
      %v1493 = vpop.f32.mrf.mxu0
      %v1494 = vadd.f32 0.0, %v1493
      %v1495 = vpop.f32.mrf.mxu0
      %v1496 = vpop.f32.mrf.mxu0
      %v1497 = vadd.f32 0.0, %v1496
      %v1498 = vpop.f32.mrf.mxu0
      %1499 = vmatprep.mubr.bf16.mxu0 0
      %1500 = vmatmul.mubr.bf16.gmra.mxu0 %v1334
      %v1501 = vpop.f32.mrf.mxu0
      %v1502 = vadd.f32 0.0, %v1501
      %v1503 = vpop.f32.mrf.mxu0
      %v1504 = vpop.f32.mrf.mxu0
      %v1505 = vadd.f32 0.0, %v1504
      %v1506 = vpop.f32.mrf.mxu0
      %1507 = vmatprep.mubr.bf16.mxu0 0
      %1508 = vmatmul.mubr.bf16.gmra.mxu0 %v1337
      %v1509 = vpop.f32.mrf.mxu0
      %v1510 = vadd.f32 0.0, %v1509
      %v1511 = vpop.f32.mrf.mxu0
      %v1512 = vpop.f32.mrf.mxu0
      %v1513 = vadd.f32 0.0, %v1512
      %v1514 = vpop.f32.mrf.mxu0
      %1515 = vdwg.mxu0
      %v1516 = vadd.f32 %v1072, %v1374
      %v1517 = vadd.f32 %v1075, %v1377
      %v1518 = vadd.f32 %v1080, %v1382
      %v1519 = vadd.f32 %v1083, %v1385
      %v1520 = vadd.f32 %v1088, %v1390
      %v1521 = vadd.f32 %v1091, %v1393
      %v1522 = vadd.f32 %v1096, %v1398
      %v1523 = vadd.f32 %v1099, %v1401
      %v1524 = vadd.f32 %v1104, %v1406
      %v1525 = vadd.f32 %v1107, %v1409
      %v1526 = vadd.f32 %v1112, %v1414
      %v1527 = vadd.f32 %v1115, %v1417
      %v1528 = vadd.f32 %v1120, %v1422
      %v1529 = vadd.f32 %v1123, %v1425
      %v1530 = vadd.f32 %v1128, %v1430
      %v1531 = vadd.f32 %v1131, %v1433
      %v1532 = vadd.f32 %v1136, %v1438
      %v1533 = vadd.f32 %v1139, %v1441
      %v1534 = vadd.f32 %v1144, %v1446
      %v1535 = vadd.f32 %v1147, %v1449
      %v1536 = vadd.f32 %v1152, %v1454
      %v1537 = vadd.f32 %v1155, %v1457
      %v1538 = vadd.f32 %v1160, %v1462
      %v1539 = vadd.f32 %v1163, %v1465
      %v1540 = vadd.f32 %v1168, %v1470
      %v1541 = vadd.f32 %v1171, %v1473
      %v1542 = vadd.f32 %v1176, %v1478
      %v1543 = vadd.f32 %v1179, %v1481
      %v1544 = vadd.f32 %v1184, %v1486
      %v1545 = vadd.f32 %v1187, %v1489
      %v1546 = vadd.f32 %v1192, %v1494
      %v1547 = vadd.f32 %v1195, %v1497
      %v1548 = vadd.f32 %v1200, %v1502
      %v1549 = vadd.f32 %v1203, %v1505
      %v1550 = vadd.f32 %v1208, %v1510
      %v1551 = vadd.f32 %v1211, %v1513
      %v1552 = vld [vmem:[%s192 + $0x12] sm:$0xff]
      %v1553 = vld [vmem:[%s192 + $0x1a] sm:$0xff]
      %v1554 = vld [vmem:[%s192 + $0x22] sm:$0xff]
      %v1555 = vld [vmem:[%s192 + $0x2a] sm:$0xff]
      %v1556 = vld [vmem:[%s192 + $0x32] sm:$0xff]
      %v1557 = vld [vmem:[%s192 + $0x3a] sm:$0xff]
      %v1558 = vld [vmem:[%s192 + $0x42] sm:$0xff]
      %v1559 = vld [vmem:[%s192 + $0x4a] sm:$0xff]
      %v1560 = vld [vmem:[%s192 + $0x52] sm:$0xff]
      %v1561 = vld [vmem:[%s192 + $0x5a] sm:$0xff]
      %v1562 = vld [vmem:[%s192 + $0x62] sm:$0xff]
      %v1563 = vld [vmem:[%s192 + $0x6a] sm:$0xff]
      %v1564 = vld [vmem:[%s192 + $0x72] sm:$0xff]
      %v1565 = vld [vmem:[%s192 + $0x7a] sm:$0xff]
      %v1566 = vld [vmem:[%s192 + $0x82] sm:$0xff]
      %v1567 = vld [vmem:[%s192 + $0x8a] sm:$0xff]
      %v1568 = vld [vmem:[%s192 + $0x92] sm:$0xff]
      %v1569 = vld [vmem:[%s192 + $0x9a] sm:$0xff]
      %v1570 = vld [vmem:[%s192 + $0xa2] sm:$0xff]
      %v1571 = vld [vmem:[%s192 + $0xaa] sm:$0xff]
      %v1572 = vld [vmem:[%s192 + $0xb2] sm:$0xff]
      %v1573 = vld [vmem:[%s192 + $0xba] sm:$0xff]
      %v1574 = vld [vmem:[%s192 + $0xc2] sm:$0xff]
      %v1575 = vld [vmem:[%s192 + $0xca] sm:$0xff]
      %v1576 = vld [vmem:[%s192 + $0xd2] sm:$0xff]
      %v1577 = vld [vmem:[%s192 + $0xda] sm:$0xff]
      %v1578 = vld [vmem:[%s192 + $0xe2] sm:$0xff]
      %v1579 = vld [vmem:[%s192 + $0xea] sm:$0xff]
      %v1580 = vld [vmem:[%s192 + $0xf2] sm:$0xff]
      %v1581 = vld [vmem:[%s192 + $0xfa] sm:$0xff]
      %v1582 = vld [vmem:[%s192 + $0x102] sm:$0xff]
      %v1583 = vld [vmem:[%s192 + $0x10a] sm:$0xff]
      %v1584 = vld [vmem:[%s192 + $0x112] sm:$0xff]
      %v1585 = vld [vmem:[%s192 + $0x11a] sm:$0xff]
      %v1586 = vld [vmem:[%s192 + $0x122] sm:$0xff]
      %v1587 = vld [vmem:[%s192 + $0x12a] sm:$0x3f]
      %v1588 = vpack.c.bf16 %v1553, %v1552
      %v1589 = vpack.c.bf16 %v1555, %v1554
      %v1590 = vpack.c.bf16 %v1557, %v1556
      %v1591 = vpack.c.bf16 %v1559, %v1558
      %v1592 = vpack.c.bf16 %v1561, %v1560
      %v1593 = vpack.c.bf16 %v1563, %v1562
      %v1594 = vpack.c.bf16 %v1565, %v1564
      %v1595 = vpack.c.bf16 %v1567, %v1566
      %v1596 = vpack.c.bf16 %v1569, %v1568
      %v1597 = vpack.c.bf16 %v1571, %v1570
      %v1598 = vpack.c.bf16 %v1573, %v1572
      %v1599 = vpack.c.bf16 %v1575, %v1574
      %v1600 = vpack.c.bf16 %v1577, %v1576
      %v1601 = vpack.c.bf16 %v1579, %v1578
      %v1602 = vpack.c.bf16 %v1581, %v1580
      %v1603 = vpack.c.bf16 %v1583, %v1582
      %v1604 = vpack.c.bf16 %v1585, %v1584
      %v1605 = vpack.c.bf16 %v1587, %v1586
      %s1606 = scalar_lea.vmem %s1, 48
      %v1607 = vld [vmem:[%s1606] sm:$0xf]
      %v1608 = vld [vmem:[%s1606 + $0x4] sm:$0xf]
      %v1609 = vld [vmem:[%s1606 + $0x8] sm:$0xf]
      %v1610 = vld [vmem:[%s1606 + $0xc] sm:$0xf]
      %v1615 = vunpack.c.l.b16 %v1607
      %v1616 = vunpack.c.l.b16 %v1608
      %v1617 = vunpack.c.l.b16 %v1609
      %v1618 = vunpack.c.l.b16 %v1610
      %v1619 = vpack.c.b16 %v1616, %v1615
      %v1620 = vpack.c.b16 %v1618, %v1617
      %v1624 = vsel %vm739, %v1588, 0
      %v1627 = vsel %vm739, %v1589, 0
      %v1630 = vsel %vm739, %v1590, 0
      %v1633 = vsel %vm739, %v1591, 0
      %v1636 = vsel %vm739, %v1592, 0
      %v1639 = vsel %vm739, %v1593, 0
      %v1642 = vsel %vm739, %v1594, 0
      %v1645 = vsel %vm739, %v1595, 0
      %v1648 = vsel %vm739, %v1596, 0
      %v1651 = vsel %vm739, %v1597, 0
      %v1654 = vsel %vm739, %v1598, 0
      %v1657 = vsel %vm739, %v1599, 0
      %v1660 = vsel %vm739, %v1600, 0
      %v1663 = vsel %vm739, %v1601, 0
      %v1666 = vsel %vm739, %v1602, 0
      %v1669 = vsel %vm739, %v1603, 0
      %v1672 = vsel %vm739, %v1604, 0
      %v1675 = vsel %vm739, %v1605, 0
      %1677 = vmatprep.subr.bf16.mxu0 0
      %1678 = vmatpush1.bf16.msra.mxu0 0
      %1679 = vmatprep.subr.bf16.mxu0 0
      %1680 = vmatpush1.bf16.msra.mxu0 0
      %1681 = vmatprep.subr.bf16.mxu0 0
      %1682 = vmatpush1.bf16.msra.mxu0 0
      %1683 = vmatprep.subr.bf16.mxu0 0
      %1684 = vmatpush1.bf16.msra.mxu0 0
      %1685 = vmatprep.subr.bf16.mxu0 0
      %1686 = vmatpush1.bf16.msra.mxu0 0
      %1687 = vmatprep.subr.bf16.mxu0 0
      %1688 = vmatpush1.bf16.msra.mxu0 0
      %1689 = vmatprep.subr.bf16.mxu0 0
      %1690 = vmatpush1.bf16.msra.mxu0 %v1620
      %1691 = vmatprep.subr.bf16.mxu0 0
      %1692 = vmatpush1.bf16.msra.mxu0 %v1619
      %1693 = vmatprep.subr.bf16.mxu0 0
      %1694 = vmatpush2.bf16.msra.mxu0 0
      %1695 = vmatprep.subr.bf16.mxu0 0
      %1696 = vmatpush2.bf16.msra.mxu0 0
      %1697 = vmatprep.subr.bf16.mxu0 0
      %1698 = vmatpush2.bf16.msra.mxu0 0
      %1699 = vmatprep.subr.bf16.mxu0 0
      %1700 = vmatpush2.bf16.msra.mxu0 0
      %1701 = vmatprep.subr.bf16.mxu0 0
      %1702 = vmatpush2.bf16.msra.mxu0 0
      %1703 = vmatprep.subr.bf16.mxu0 0
      %1704 = vmatpush2.bf16.msra.mxu0 0
      %1705 = vmatprep.subr.bf16.mxu0 0
      %1706 = vmatpush2.bf16.msra.mxu0 0
      %1707 = vmatprep.subr.bf16.mxu0 0
      %1708 = vmatpush2.bf16.msra.mxu0 0
      %1709 = vmatprep.mubr.bf16.mxu0 0
      %1710 = vmatmul.mubr.bf16.gmra.mxu0 %v1624
      %v1711 = vpop.f32.mrf.mxu0
      %v1712 = vadd.f32 0.0, %v1711
      %v1713 = vpop.f32.mrf.mxu0
      %v1714 = vpop.f32.mrf.mxu0
      %v1715 = vadd.f32 0.0, %v1714
      %v1716 = vpop.f32.mrf.mxu0
      %1717 = vmatprep.mubr.bf16.mxu0 0
      %1718 = vmatmul.mubr.bf16.gmra.mxu0 %v1627
      %v1719 = vpop.f32.mrf.mxu0
      %v1720 = vadd.f32 0.0, %v1719
      %v1721 = vpop.f32.mrf.mxu0
      %v1722 = vpop.f32.mrf.mxu0
      %v1723 = vadd.f32 0.0, %v1722
      %v1724 = vpop.f32.mrf.mxu0
      %1725 = vmatprep.mubr.bf16.mxu0 0
      %1726 = vmatmul.mubr.bf16.gmra.mxu0 %v1630
      %v1727 = vpop.f32.mrf.mxu0
      %v1728 = vadd.f32 0.0, %v1727
      %v1729 = vpop.f32.mrf.mxu0
      %v1730 = vpop.f32.mrf.mxu0
      %v1731 = vadd.f32 0.0, %v1730
      %v1732 = vpop.f32.mrf.mxu0
      %1733 = vmatprep.mubr.bf16.mxu0 0
      %1734 = vmatmul.mubr.bf16.gmra.mxu0 %v1633
      %v1735 = vpop.f32.mrf.mxu0
      %v1736 = vadd.f32 0.0, %v1735
      %v1737 = vpop.f32.mrf.mxu0
      %v1738 = vpop.f32.mrf.mxu0
      %v1739 = vadd.f32 0.0, %v1738
      %v1740 = vpop.f32.mrf.mxu0
      %1741 = vmatprep.mubr.bf16.mxu0 0
      %1742 = vmatmul.mubr.bf16.gmra.mxu0 %v1636
      %v1743 = vpop.f32.mrf.mxu0
      %v1744 = vadd.f32 0.0, %v1743
      %v1745 = vpop.f32.mrf.mxu0
      %v1746 = vpop.f32.mrf.mxu0
      %v1747 = vadd.f32 0.0, %v1746
      %v1748 = vpop.f32.mrf.mxu0
      %1749 = vmatprep.mubr.bf16.mxu0 0
      %1750 = vmatmul.mubr.bf16.gmra.mxu0 %v1639
      %v1751 = vpop.f32.mrf.mxu0
      %v1752 = vadd.f32 0.0, %v1751
      %v1753 = vpop.f32.mrf.mxu0
      %v1754 = vpop.f32.mrf.mxu0
      %v1755 = vadd.f32 0.0, %v1754
      %v1756 = vpop.f32.mrf.mxu0
      %1757 = vmatprep.mubr.bf16.mxu0 0
      %1758 = vmatmul.mubr.bf16.gmra.mxu0 %v1642
      %v1759 = vpop.f32.mrf.mxu0
      %v1760 = vadd.f32 0.0, %v1759
      %v1761 = vpop.f32.mrf.mxu0
      %v1762 = vpop.f32.mrf.mxu0
      %v1763 = vadd.f32 0.0, %v1762
      %v1764 = vpop.f32.mrf.mxu0
      %1765 = vmatprep.mubr.bf16.mxu0 0
      %1766 = vmatmul.mubr.bf16.gmra.mxu0 %v1645
      %v1767 = vpop.f32.mrf.mxu0
      %v1768 = vadd.f32 0.0, %v1767
      %v1769 = vpop.f32.mrf.mxu0
      %v1770 = vpop.f32.mrf.mxu0
      %v1771 = vadd.f32 0.0, %v1770
      %v1772 = vpop.f32.mrf.mxu0
      %1773 = vmatprep.mubr.bf16.mxu0 0
      %1774 = vmatmul.mubr.bf16.gmra.mxu0 %v1648
      %v1775 = vpop.f32.mrf.mxu0
      %v1776 = vadd.f32 0.0, %v1775
      %v1777 = vpop.f32.mrf.mxu0
      %v1778 = vpop.f32.mrf.mxu0
      %v1779 = vadd.f32 0.0, %v1778
      %v1780 = vpop.f32.mrf.mxu0
      %1781 = vmatprep.mubr.bf16.mxu0 0
      %1782 = vmatmul.mubr.bf16.gmra.mxu0 %v1651
      %v1783 = vpop.f32.mrf.mxu0
      %v1784 = vadd.f32 0.0, %v1783
      %v1785 = vpop.f32.mrf.mxu0
      %v1786 = vpop.f32.mrf.mxu0
      %v1787 = vadd.f32 0.0, %v1786
      %v1788 = vpop.f32.mrf.mxu0
      %1789 = vmatprep.mubr.bf16.mxu0 0
      %1790 = vmatmul.mubr.bf16.gmra.mxu0 %v1654
      %v1791 = vpop.f32.mrf.mxu0
      %v1792 = vadd.f32 0.0, %v1791
      %v1793 = vpop.f32.mrf.mxu0
      %v1794 = vpop.f32.mrf.mxu0
      %v1795 = vadd.f32 0.0, %v1794
      %v1796 = vpop.f32.mrf.mxu0
      %1797 = vmatprep.mubr.bf16.mxu0 0
      %1798 = vmatmul.mubr.bf16.gmra.mxu0 %v1657
      %v1799 = vpop.f32.mrf.mxu0
      %v1800 = vadd.f32 0.0, %v1799
      %v1801 = vpop.f32.mrf.mxu0
      %v1802 = vpop.f32.mrf.mxu0
      %v1803 = vadd.f32 0.0, %v1802
      %v1804 = vpop.f32.mrf.mxu0
      %1805 = vmatprep.mubr.bf16.mxu0 0
      %1806 = vmatmul.mubr.bf16.gmra.mxu0 %v1660
      %v1807 = vpop.f32.mrf.mxu0
      %v1808 = vadd.f32 0.0, %v1807
      %v1809 = vpop.f32.mrf.mxu0
      %v1810 = vpop.f32.mrf.mxu0
      %v1811 = vadd.f32 0.0, %v1810
      %v1812 = vpop.f32.mrf.mxu0
      %1813 = vmatprep.mubr.bf16.mxu0 0
      %1814 = vmatmul.mubr.bf16.gmra.mxu0 %v1663
      %v1815 = vpop.f32.mrf.mxu0
      %v1816 = vadd.f32 0.0, %v1815
      %v1817 = vpop.f32.mrf.mxu0
      %v1818 = vpop.f32.mrf.mxu0
      %v1819 = vadd.f32 0.0, %v1818
      %v1820 = vpop.f32.mrf.mxu0
      %1821 = vmatprep.mubr.bf16.mxu0 0
      %1822 = vmatmul.mubr.bf16.gmra.mxu0 %v1666
      %v1823 = vpop.f32.mrf.mxu0
      %v1824 = vadd.f32 0.0, %v1823
      %v1825 = vpop.f32.mrf.mxu0
      %v1826 = vpop.f32.mrf.mxu0
      %v1827 = vadd.f32 0.0, %v1826
      %v1828 = vpop.f32.mrf.mxu0
      %1829 = vmatprep.mubr.bf16.mxu0 0
      %1830 = vmatmul.mubr.bf16.gmra.mxu0 %v1669
      %v1831 = vpop.f32.mrf.mxu0
      %v1832 = vadd.f32 0.0, %v1831
      %v1833 = vpop.f32.mrf.mxu0
      %v1834 = vpop.f32.mrf.mxu0
      %v1835 = vadd.f32 0.0, %v1834
      %v1836 = vpop.f32.mrf.mxu0
      %1837 = vmatprep.mubr.bf16.mxu0 0
      %1838 = vmatmul.mubr.bf16.gmra.mxu0 %v1672
      %v1839 = vpop.f32.mrf.mxu0
      %v1840 = vadd.f32 0.0, %v1839
      %v1841 = vpop.f32.mrf.mxu0
      %v1842 = vpop.f32.mrf.mxu0
      %v1843 = vadd.f32 0.0, %v1842
      %v1844 = vpop.f32.mrf.mxu0
      %1845 = vmatprep.mubr.bf16.mxu0 0
      %1846 = vmatmul.mubr.bf16.gmra.mxu0 %v1675
      %v1847 = vpop.f32.mrf.mxu0
      %v1848 = vadd.f32 0.0, %v1847
      %v1849 = vpop.f32.mrf.mxu0
      %v1850 = vpop.f32.mrf.mxu0
      %v1851 = vadd.f32 0.0, %v1850
      %v1852 = vpop.f32.mrf.mxu0
      %1853 = vdwg.mxu0
      %v1854 = vadd.f32 %v1516, %v1712
      %v1855 = vadd.f32 %v1517, %v1715
      %v1856 = vadd.f32 %v1518, %v1720
      %v1857 = vadd.f32 %v1519, %v1723
      %v1858 = vadd.f32 %v1520, %v1728
      %v1859 = vadd.f32 %v1521, %v1731
      %v1860 = vadd.f32 %v1522, %v1736
      %v1861 = vadd.f32 %v1523, %v1739
      %v1862 = vadd.f32 %v1524, %v1744
      %v1863 = vadd.f32 %v1525, %v1747
      %v1864 = vadd.f32 %v1526, %v1752
      %v1865 = vadd.f32 %v1527, %v1755
      %v1866 = vadd.f32 %v1528, %v1760
      %v1867 = vadd.f32 %v1529, %v1763
      %v1868 = vadd.f32 %v1530, %v1768
      %v1869 = vadd.f32 %v1531, %v1771
      %v1870 = vadd.f32 %v1532, %v1776
      %v1871 = vadd.f32 %v1533, %v1779
      %v1872 = vadd.f32 %v1534, %v1784
      %v1873 = vadd.f32 %v1535, %v1787
      %v1874 = vadd.f32 %v1536, %v1792
      %v1875 = vadd.f32 %v1537, %v1795
      %v1876 = vadd.f32 %v1538, %v1800
      %v1877 = vadd.f32 %v1539, %v1803
      %v1878 = vadd.f32 %v1540, %v1808
      %v1879 = vadd.f32 %v1541, %v1811
      %v1880 = vadd.f32 %v1542, %v1816
      %v1881 = vadd.f32 %v1543, %v1819
      %v1882 = vadd.f32 %v1544, %v1824
      %v1883 = vadd.f32 %v1545, %v1827
      %v1884 = vadd.f32 %v1546, %v1832
      %v1885 = vadd.f32 %v1547, %v1835
      %v1886 = vadd.f32 %v1548, %v1840
      %v1887 = vadd.f32 %v1549, %v1843
      %v1888 = vadd.f32 %v1550, %v1848
      %v1889 = vadd.f32 %v1551, %v1851
      %v1890 = vld [vmem:[%s192 + $0x13] sm:$0xff]
      %v1891 = vld [vmem:[%s192 + $0x1b] sm:$0xff]
      %v1892 = vld [vmem:[%s192 + $0x23] sm:$0xff]
      %v1893 = vld [vmem:[%s192 + $0x2b] sm:$0xff]
      %v1894 = vld [vmem:[%s192 + $0x33] sm:$0xff]
      %v1895 = vld [vmem:[%s192 + $0x3b] sm:$0xff]
      %v1896 = vld [vmem:[%s192 + $0x43] sm:$0xff]
      %v1897 = vld [vmem:[%s192 + $0x4b] sm:$0xff]
      %v1898 = vld [vmem:[%s192 + $0x53] sm:$0xff]
      %v1899 = vld [vmem:[%s192 + $0x5b] sm:$0xff]
      %v1900 = vld [vmem:[%s192 + $0x63] sm:$0xff]
      %v1901 = vld [vmem:[%s192 + $0x6b] sm:$0xff]
      %v1902 = vld [vmem:[%s192 + $0x73] sm:$0xff]
      %v1903 = vld [vmem:[%s192 + $0x7b] sm:$0xff]
      %v1904 = vld [vmem:[%s192 + $0x83] sm:$0xff]
      %v1905 = vld [vmem:[%s192 + $0x8b] sm:$0xff]
      %v1906 = vld [vmem:[%s192 + $0x93] sm:$0xff]
      %v1907 = vld [vmem:[%s192 + $0x9b] sm:$0xff]
      %v1908 = vld [vmem:[%s192 + $0xa3] sm:$0xff]
      %v1909 = vld [vmem:[%s192 + $0xab] sm:$0xff]
      %v1910 = vld [vmem:[%s192 + $0xb3] sm:$0xff]
      %v1911 = vld [vmem:[%s192 + $0xbb] sm:$0xff]
      %v1912 = vld [vmem:[%s192 + $0xc3] sm:$0xff]
      %v1913 = vld [vmem:[%s192 + $0xcb] sm:$0xff]
      %v1914 = vld [vmem:[%s192 + $0xd3] sm:$0xff]
      %v1915 = vld [vmem:[%s192 + $0xdb] sm:$0xff]
      %v1916 = vld [vmem:[%s192 + $0xe3] sm:$0xff]
      %v1917 = vld [vmem:[%s192 + $0xeb] sm:$0xff]
      %v1918 = vld [vmem:[%s192 + $0xf3] sm:$0xff]
      %v1919 = vld [vmem:[%s192 + $0xfb] sm:$0xff]
      %v1920 = vld [vmem:[%s192 + $0x103] sm:$0xff]
      %v1921 = vld [vmem:[%s192 + $0x10b] sm:$0xff]
      %v1922 = vld [vmem:[%s192 + $0x113] sm:$0xff]
      %v1923 = vld [vmem:[%s192 + $0x11b] sm:$0xff]
      %v1924 = vld [vmem:[%s192 + $0x123] sm:$0xff]
      %v1925 = vld [vmem:[%s192 + $0x12b] sm:$0x3f]
      %v1926 = vpack.c.bf16 %v1891, %v1890
      %v1927 = vpack.c.bf16 %v1893, %v1892
      %v1928 = vpack.c.bf16 %v1895, %v1894
      %v1929 = vpack.c.bf16 %v1897, %v1896
      %v1930 = vpack.c.bf16 %v1899, %v1898
      %v1931 = vpack.c.bf16 %v1901, %v1900
      %v1932 = vpack.c.bf16 %v1903, %v1902
      %v1933 = vpack.c.bf16 %v1905, %v1904
      %v1934 = vpack.c.bf16 %v1907, %v1906
      %v1935 = vpack.c.bf16 %v1909, %v1908
      %v1936 = vpack.c.bf16 %v1911, %v1910
      %v1937 = vpack.c.bf16 %v1913, %v1912
      %v1938 = vpack.c.bf16 %v1915, %v1914
      %v1939 = vpack.c.bf16 %v1917, %v1916
      %v1940 = vpack.c.bf16 %v1919, %v1918
      %v1941 = vpack.c.bf16 %v1921, %v1920
      %v1942 = vpack.c.bf16 %v1923, %v1922
      %v1943 = vpack.c.bf16 %v1925, %v1924
      %s1944 = scalar_lea.vmem %s1, 64
      %v1945 = vld [vmem:[%s1944] sm:$0xf]
      %v1946 = vld [vmem:[%s1944 + $0x4] sm:$0xf]
      %v1947 = vld [vmem:[%s1944 + $0x8] sm:$0xf]
      %v1948 = vld [vmem:[%s1944 + $0xc] sm:$0xf]
      %v1953 = vunpack.c.l.b16 %v1945
      %v1954 = vunpack.c.l.b16 %v1946
      %v1955 = vunpack.c.l.b16 %v1947
      %v1956 = vunpack.c.l.b16 %v1948
      %v1957 = vpack.c.b16 %v1954, %v1953
      %v1958 = vpack.c.b16 %v1956, %v1955
      %v1962 = vsel %vm739, %v1926, 0
      %v1965 = vsel %vm739, %v1927, 0
      %v1968 = vsel %vm739, %v1928, 0
      %v1971 = vsel %vm739, %v1929, 0
      %v1974 = vsel %vm739, %v1930, 0
      %v1977 = vsel %vm739, %v1931, 0
      %v1980 = vsel %vm739, %v1932, 0
      %v1983 = vsel %vm739, %v1933, 0
      %v1986 = vsel %vm739, %v1934, 0
      %v1989 = vsel %vm739, %v1935, 0
      %v1992 = vsel %vm739, %v1936, 0
      %v1995 = vsel %vm739, %v1937, 0
      %v1998 = vsel %vm739, %v1938, 0
      %v2001 = vsel %vm739, %v1939, 0
      %v2004 = vsel %vm739, %v1940, 0
      %v2007 = vsel %vm739, %v1941, 0
      %v2010 = vsel %vm739, %v1942, 0
      %v2013 = vsel %vm739, %v1943, 0
      %2015 = vmatprep.subr.bf16.mxu0 0
      %2016 = vmatpush1.bf16.msra.mxu0 0
      %2017 = vmatprep.subr.bf16.mxu0 0
      %2018 = vmatpush1.bf16.msra.mxu0 0
      %2019 = vmatprep.subr.bf16.mxu0 0
      %2020 = vmatpush1.bf16.msra.mxu0 0
      %2021 = vmatprep.subr.bf16.mxu0 0
      %2022 = vmatpush1.bf16.msra.mxu0 0
      %2023 = vmatprep.subr.bf16.mxu0 0
      %2024 = vmatpush1.bf16.msra.mxu0 0
      %2025 = vmatprep.subr.bf16.mxu0 0
      %2026 = vmatpush1.bf16.msra.mxu0 0
      %2027 = vmatprep.subr.bf16.mxu0 0
      %2028 = vmatpush1.bf16.msra.mxu0 %v1958
      %2029 = vmatprep.subr.bf16.mxu0 0
      %2030 = vmatpush1.bf16.msra.mxu0 %v1957
      %2031 = vmatprep.subr.bf16.mxu0 0
      %2032 = vmatpush2.bf16.msra.mxu0 0
      %2033 = vmatprep.subr.bf16.mxu0 0
      %2034 = vmatpush2.bf16.msra.mxu0 0
      %2035 = vmatprep.subr.bf16.mxu0 0
      %2036 = vmatpush2.bf16.msra.mxu0 0
      %2037 = vmatprep.subr.bf16.mxu0 0
      %2038 = vmatpush2.bf16.msra.mxu0 0
      %2039 = vmatprep.subr.bf16.mxu0 0
      %2040 = vmatpush2.bf16.msra.mxu0 0
      %2041 = vmatprep.subr.bf16.mxu0 0
      %2042 = vmatpush2.bf16.msra.mxu0 0
      %2043 = vmatprep.subr.bf16.mxu0 0
      %2044 = vmatpush2.bf16.msra.mxu0 0
      %2045 = vmatprep.subr.bf16.mxu0 0
      %2046 = vmatpush2.bf16.msra.mxu0 0
      %2047 = vmatprep.mubr.bf16.mxu0 0
      %2048 = vmatmul.mubr.bf16.gmra.mxu0 %v1962
      %v2049 = vpop.f32.mrf.mxu0
      %v2050 = vadd.f32 0.0, %v2049
      %v2051 = vpop.f32.mrf.mxu0
      %v2052 = vpop.f32.mrf.mxu0
      %v2053 = vadd.f32 0.0, %v2052
      %v2054 = vpop.f32.mrf.mxu0
      %2055 = vmatprep.mubr.bf16.mxu0 0
      %2056 = vmatmul.mubr.bf16.gmra.mxu0 %v1965
      %v2057 = vpop.f32.mrf.mxu0
      %v2058 = vadd.f32 0.0, %v2057
      %v2059 = vpop.f32.mrf.mxu0
      %v2060 = vpop.f32.mrf.mxu0
      %v2061 = vadd.f32 0.0, %v2060
      %v2062 = vpop.f32.mrf.mxu0
      %2063 = vmatprep.mubr.bf16.mxu0 0
      %2064 = vmatmul.mubr.bf16.gmra.mxu0 %v1968
      %v2065 = vpop.f32.mrf.mxu0
      %v2066 = vadd.f32 0.0, %v2065
      %v2067 = vpop.f32.mrf.mxu0
      %v2068 = vpop.f32.mrf.mxu0
      %v2069 = vadd.f32 0.0, %v2068
      %v2070 = vpop.f32.mrf.mxu0
      %2071 = vmatprep.mubr.bf16.mxu0 0
      %2072 = vmatmul.mubr.bf16.gmra.mxu0 %v1971
      %v2073 = vpop.f32.mrf.mxu0
      %v2074 = vadd.f32 0.0, %v2073
      %v2075 = vpop.f32.mrf.mxu0
      %v2076 = vpop.f32.mrf.mxu0
      %v2077 = vadd.f32 0.0, %v2076
      %v2078 = vpop.f32.mrf.mxu0
      %2079 = vmatprep.mubr.bf16.mxu0 0
      %2080 = vmatmul.mubr.bf16.gmra.mxu0 %v1974
      %v2081 = vpop.f32.mrf.mxu0
      %v2082 = vadd.f32 0.0, %v2081
      %v2083 = vpop.f32.mrf.mxu0
      %v2084 = vpop.f32.mrf.mxu0
      %v2085 = vadd.f32 0.0, %v2084
      %v2086 = vpop.f32.mrf.mxu0
      %2087 = vmatprep.mubr.bf16.mxu0 0
      %2088 = vmatmul.mubr.bf16.gmra.mxu0 %v1977
      %v2089 = vpop.f32.mrf.mxu0
      %v2090 = vadd.f32 0.0, %v2089
      %v2091 = vpop.f32.mrf.mxu0
      %v2092 = vpop.f32.mrf.mxu0
      %v2093 = vadd.f32 0.0, %v2092
      %v2094 = vpop.f32.mrf.mxu0
      %2095 = vmatprep.mubr.bf16.mxu0 0
      %2096 = vmatmul.mubr.bf16.gmra.mxu0 %v1980
      %v2097 = vpop.f32.mrf.mxu0
      %v2098 = vadd.f32 0.0, %v2097
      %v2099 = vpop.f32.mrf.mxu0
      %v2100 = vpop.f32.mrf.mxu0
      %v2101 = vadd.f32 0.0, %v2100
      %v2102 = vpop.f32.mrf.mxu0
      %2103 = vmatprep.mubr.bf16.mxu0 0
      %2104 = vmatmul.mubr.bf16.gmra.mxu0 %v1983
      %v2105 = vpop.f32.mrf.mxu0
      %v2106 = vadd.f32 0.0, %v2105
      %v2107 = vpop.f32.mrf.mxu0
      %v2108 = vpop.f32.mrf.mxu0
      %v2109 = vadd.f32 0.0, %v2108
      %v2110 = vpop.f32.mrf.mxu0
      %2111 = vmatprep.mubr.bf16.mxu0 0
      %2112 = vmatmul.mubr.bf16.gmra.mxu0 %v1986
      %v2113 = vpop.f32.mrf.mxu0
      %v2114 = vadd.f32 0.0, %v2113
      %v2115 = vpop.f32.mrf.mxu0
      %v2116 = vpop.f32.mrf.mxu0
      %v2117 = vadd.f32 0.0, %v2116
      %v2118 = vpop.f32.mrf.mxu0
      %2119 = vmatprep.mubr.bf16.mxu0 0
      %2120 = vmatmul.mubr.bf16.gmra.mxu0 %v1989
      %v2121 = vpop.f32.mrf.mxu0
      %v2122 = vadd.f32 0.0, %v2121
      %v2123 = vpop.f32.mrf.mxu0
      %v2124 = vpop.f32.mrf.mxu0
      %v2125 = vadd.f32 0.0, %v2124
      %v2126 = vpop.f32.mrf.mxu0
      %2127 = vmatprep.mubr.bf16.mxu0 0
      %2128 = vmatmul.mubr.bf16.gmra.mxu0 %v1992
      %v2129 = vpop.f32.mrf.mxu0
      %v2130 = vadd.f32 0.0, %v2129
      %v2131 = vpop.f32.mrf.mxu0
      %v2132 = vpop.f32.mrf.mxu0
      %v2133 = vadd.f32 0.0, %v2132
      %v2134 = vpop.f32.mrf.mxu0
      %2135 = vmatprep.mubr.bf16.mxu0 0
      %2136 = vmatmul.mubr.bf16.gmra.mxu0 %v1995
      %v2137 = vpop.f32.mrf.mxu0
      %v2138 = vadd.f32 0.0, %v2137
      %v2139 = vpop.f32.mrf.mxu0
      %v2140 = vpop.f32.mrf.mxu0
      %v2141 = vadd.f32 0.0, %v2140
      %v2142 = vpop.f32.mrf.mxu0
      %2143 = vmatprep.mubr.bf16.mxu0 0
      %2144 = vmatmul.mubr.bf16.gmra.mxu0 %v1998
      %v2145 = vpop.f32.mrf.mxu0
      %v2146 = vadd.f32 0.0, %v2145
      %v2147 = vpop.f32.mrf.mxu0
      %v2148 = vpop.f32.mrf.mxu0
      %v2149 = vadd.f32 0.0, %v2148
      %v2150 = vpop.f32.mrf.mxu0
      %2151 = vmatprep.mubr.bf16.mxu0 0
      %2152 = vmatmul.mubr.bf16.gmra.mxu0 %v2001
      %v2153 = vpop.f32.mrf.mxu0
      %v2154 = vadd.f32 0.0, %v2153
      %v2155 = vpop.f32.mrf.mxu0
      %v2156 = vpop.f32.mrf.mxu0
      %v2157 = vadd.f32 0.0, %v2156
      %v2158 = vpop.f32.mrf.mxu0
      %2159 = vmatprep.mubr.bf16.mxu0 0
      %2160 = vmatmul.mubr.bf16.gmra.mxu0 %v2004
      %v2161 = vpop.f32.mrf.mxu0
      %v2162 = vadd.f32 0.0, %v2161
      %v2163 = vpop.f32.mrf.mxu0
      %v2164 = vpop.f32.mrf.mxu0
      %v2165 = vadd.f32 0.0, %v2164
      %v2166 = vpop.f32.mrf.mxu0
      %2167 = vmatprep.mubr.bf16.mxu0 0
      %2168 = vmatmul.mubr.bf16.gmra.mxu0 %v2007
      %v2169 = vpop.f32.mrf.mxu0
      %v2170 = vadd.f32 0.0, %v2169
      %v2171 = vpop.f32.mrf.mxu0
      %v2172 = vpop.f32.mrf.mxu0
      %v2173 = vadd.f32 0.0, %v2172
      %v2174 = vpop.f32.mrf.mxu0
      %2175 = vmatprep.mubr.bf16.mxu0 0
      %2176 = vmatmul.mubr.bf16.gmra.mxu0 %v2010
      %v2177 = vpop.f32.mrf.mxu0
      %v2178 = vadd.f32 0.0, %v2177
      %v2179 = vpop.f32.mrf.mxu0
      %v2180 = vpop.f32.mrf.mxu0
      %v2181 = vadd.f32 0.0, %v2180
      %v2182 = vpop.f32.mrf.mxu0
      %2183 = vmatprep.mubr.bf16.mxu0 0
      %2184 = vmatmul.mubr.bf16.gmra.mxu0 %v2013
      %v2185 = vpop.f32.mrf.mxu0
      %v2186 = vadd.f32 0.0, %v2185
      %v2187 = vpop.f32.mrf.mxu0
      %v2188 = vpop.f32.mrf.mxu0
      %v2189 = vadd.f32 0.0, %v2188
      %v2190 = vpop.f32.mrf.mxu0
      %2191 = vdwg.mxu0
      %v2192 = vadd.f32 %v1854, %v2050
      %v2193 = vadd.f32 %v1855, %v2053
      %v2194 = vadd.f32 %v1856, %v2058
      %v2195 = vadd.f32 %v1857, %v2061
      %v2196 = vadd.f32 %v1858, %v2066
      %v2197 = vadd.f32 %v1859, %v2069
      %v2198 = vadd.f32 %v1860, %v2074
      %v2199 = vadd.f32 %v1861, %v2077
      %v2200 = vadd.f32 %v1862, %v2082
      %v2201 = vadd.f32 %v1863, %v2085
      %v2202 = vadd.f32 %v1864, %v2090
      %v2203 = vadd.f32 %v1865, %v2093
      %v2204 = vadd.f32 %v1866, %v2098
      %v2205 = vadd.f32 %v1867, %v2101
      %v2206 = vadd.f32 %v1868, %v2106
      %v2207 = vadd.f32 %v1869, %v2109
      %v2208 = vadd.f32 %v1870, %v2114
      %v2209 = vadd.f32 %v1871, %v2117
      %v2210 = vadd.f32 %v1872, %v2122
      %v2211 = vadd.f32 %v1873, %v2125
      %v2212 = vadd.f32 %v1874, %v2130
      %v2213 = vadd.f32 %v1875, %v2133
      %v2214 = vadd.f32 %v1876, %v2138
      %v2215 = vadd.f32 %v1877, %v2141
      %v2216 = vadd.f32 %v1878, %v2146
      %v2217 = vadd.f32 %v1879, %v2149
      %v2218 = vadd.f32 %v1880, %v2154
      %v2219 = vadd.f32 %v1881, %v2157
      %v2220 = vadd.f32 %v1882, %v2162
      %v2221 = vadd.f32 %v1883, %v2165
      %v2222 = vadd.f32 %v1884, %v2170
      %v2223 = vadd.f32 %v1885, %v2173
      %v2224 = vadd.f32 %v1886, %v2178
      %v2225 = vadd.f32 %v1887, %v2181
      %v2226 = vadd.f32 %v1888, %v2186
      %v2227 = vadd.f32 %v1889, %v2189
      %v2228 = vld [vmem:[%s192 + $0x14] sm:$0xff]
      %v2229 = vld [vmem:[%s192 + $0x1c] sm:$0xff]
      %v2230 = vld [vmem:[%s192 + $0x24] sm:$0xff]
      %v2231 = vld [vmem:[%s192 + $0x2c] sm:$0xff]
      %v2232 = vld [vmem:[%s192 + $0x34] sm:$0xff]
      %v2233 = vld [vmem:[%s192 + $0x3c] sm:$0xff]
      %v2234 = vld [vmem:[%s192 + $0x44] sm:$0xff]
      %v2235 = vld [vmem:[%s192 + $0x4c] sm:$0xff]
      %v2236 = vld [vmem:[%s192 + $0x54] sm:$0xff]
      %v2237 = vld [vmem:[%s192 + $0x5c] sm:$0xff]
      %v2238 = vld [vmem:[%s192 + $0x64] sm:$0xff]
      %v2239 = vld [vmem:[%s192 + $0x6c] sm:$0xff]
      %v2240 = vld [vmem:[%s192 + $0x74] sm:$0xff]
      %v2241 = vld [vmem:[%s192 + $0x7c] sm:$0xff]
      %v2242 = vld [vmem:[%s192 + $0x84] sm:$0xff]
      %v2243 = vld [vmem:[%s192 + $0x8c] sm:$0xff]
      %v2244 = vld [vmem:[%s192 + $0x94] sm:$0xff]
      %v2245 = vld [vmem:[%s192 + $0x9c] sm:$0xff]
      %v2246 = vld [vmem:[%s192 + $0xa4] sm:$0xff]
      %v2247 = vld [vmem:[%s192 + $0xac] sm:$0xff]
      %v2248 = vld [vmem:[%s192 + $0xb4] sm:$0xff]
      %v2249 = vld [vmem:[%s192 + $0xbc] sm:$0xff]
      %v2250 = vld [vmem:[%s192 + $0xc4] sm:$0xff]
      %v2251 = vld [vmem:[%s192 + $0xcc] sm:$0xff]
      %v2252 = vld [vmem:[%s192 + $0xd4] sm:$0xff]
      %v2253 = vld [vmem:[%s192 + $0xdc] sm:$0xff]
      %v2254 = vld [vmem:[%s192 + $0xe4] sm:$0xff]
      %v2255 = vld [vmem:[%s192 + $0xec] sm:$0xff]
      %v2256 = vld [vmem:[%s192 + $0xf4] sm:$0xff]
      %v2257 = vld [vmem:[%s192 + $0xfc] sm:$0xff]
      %v2258 = vld [vmem:[%s192 + $0x104] sm:$0xff]
      %v2259 = vld [vmem:[%s192 + $0x10c] sm:$0xff]
      %v2260 = vld [vmem:[%s192 + $0x114] sm:$0xff]
      %v2261 = vld [vmem:[%s192 + $0x11c] sm:$0xff]
      %v2262 = vld [vmem:[%s192 + $0x124] sm:$0xff]
      %v2263 = vld [vmem:[%s192 + $0x12c] sm:$0x3f]
      %v2264 = vpack.c.bf16 %v2229, %v2228
      %v2265 = vpack.c.bf16 %v2231, %v2230
      %v2266 = vpack.c.bf16 %v2233, %v2232
      %v2267 = vpack.c.bf16 %v2235, %v2234
      %v2268 = vpack.c.bf16 %v2237, %v2236
      %v2269 = vpack.c.bf16 %v2239, %v2238
      %v2270 = vpack.c.bf16 %v2241, %v2240
      %v2271 = vpack.c.bf16 %v2243, %v2242
      %v2272 = vpack.c.bf16 %v2245, %v2244
      %v2273 = vpack.c.bf16 %v2247, %v2246
      %v2274 = vpack.c.bf16 %v2249, %v2248
      %v2275 = vpack.c.bf16 %v2251, %v2250
      %v2276 = vpack.c.bf16 %v2253, %v2252
      %v2277 = vpack.c.bf16 %v2255, %v2254
      %v2278 = vpack.c.bf16 %v2257, %v2256
      %v2279 = vpack.c.bf16 %v2259, %v2258
      %v2280 = vpack.c.bf16 %v2261, %v2260
      %v2281 = vpack.c.bf16 %v2263, %v2262
      %s2282 = scalar_lea.vmem %s1, 80
      %v2283 = vld [vmem:[%s2282] sm:$0xf]
      %v2284 = vld [vmem:[%s2282 + $0x4] sm:$0xf]
      %v2285 = vld [vmem:[%s2282 + $0x8] sm:$0xf]
      %v2286 = vld [vmem:[%s2282 + $0xc] sm:$0xf]
      %v2291 = vunpack.c.l.b16 %v2283
      %v2292 = vunpack.c.l.b16 %v2284
      %v2293 = vunpack.c.l.b16 %v2285
      %v2294 = vunpack.c.l.b16 %v2286
      %v2295 = vpack.c.b16 %v2292, %v2291
      %v2296 = vpack.c.b16 %v2294, %v2293
      %v2300 = vsel %vm739, %v2264, 0
      %v2303 = vsel %vm739, %v2265, 0
      %v2306 = vsel %vm739, %v2266, 0
      %v2309 = vsel %vm739, %v2267, 0
      %v2312 = vsel %vm739, %v2268, 0
      %v2315 = vsel %vm739, %v2269, 0
      %v2318 = vsel %vm739, %v2270, 0
      %v2321 = vsel %vm739, %v2271, 0
      %v2324 = vsel %vm739, %v2272, 0
      %v2327 = vsel %vm739, %v2273, 0
      %v2330 = vsel %vm739, %v2274, 0
      %v2333 = vsel %vm739, %v2275, 0
      %v2336 = vsel %vm739, %v2276, 0
      %v2339 = vsel %vm739, %v2277, 0
      %v2342 = vsel %vm739, %v2278, 0
      %v2345 = vsel %vm739, %v2279, 0
      %v2348 = vsel %vm739, %v2280, 0
      %v2351 = vsel %vm739, %v2281, 0
      %2353 = vmatprep.subr.bf16.mxu0 0
      %2354 = vmatpush1.bf16.msra.mxu0 0
      %2355 = vmatprep.subr.bf16.mxu0 0
      %2356 = vmatpush1.bf16.msra.mxu0 0
      %2357 = vmatprep.subr.bf16.mxu0 0
      %2358 = vmatpush1.bf16.msra.mxu0 0
      %2359 = vmatprep.subr.bf16.mxu0 0
      %2360 = vmatpush1.bf16.msra.mxu0 0
      %2361 = vmatprep.subr.bf16.mxu0 0
      %2362 = vmatpush1.bf16.msra.mxu0 0
      %2363 = vmatprep.subr.bf16.mxu0 0
      %2364 = vmatpush1.bf16.msra.mxu0 0
      %2365 = vmatprep.subr.bf16.mxu0 0
      %2366 = vmatpush1.bf16.msra.mxu0 %v2296
      %2367 = vmatprep.subr.bf16.mxu0 0
      %2368 = vmatpush1.bf16.msra.mxu0 %v2295
      %2369 = vmatprep.subr.bf16.mxu0 0
      %2370 = vmatpush2.bf16.msra.mxu0 0
      %2371 = vmatprep.subr.bf16.mxu0 0
      %2372 = vmatpush2.bf16.msra.mxu0 0
      %2373 = vmatprep.subr.bf16.mxu0 0
      %2374 = vmatpush2.bf16.msra.mxu0 0
      %2375 = vmatprep.subr.bf16.mxu0 0
      %2376 = vmatpush2.bf16.msra.mxu0 0
      %2377 = vmatprep.subr.bf16.mxu0 0
      %2378 = vmatpush2.bf16.msra.mxu0 0
      %2379 = vmatprep.subr.bf16.mxu0 0
      %2380 = vmatpush2.bf16.msra.mxu0 0
      %2381 = vmatprep.subr.bf16.mxu0 0
      %2382 = vmatpush2.bf16.msra.mxu0 0
      %2383 = vmatprep.subr.bf16.mxu0 0
      %2384 = vmatpush2.bf16.msra.mxu0 0
      %2385 = vmatprep.mubr.bf16.mxu0 0
      %2386 = vmatmul.mubr.bf16.gmra.mxu0 %v2300
      %v2387 = vpop.f32.mrf.mxu0
      %v2388 = vadd.f32 0.0, %v2387
      %v2389 = vpop.f32.mrf.mxu0
      %v2390 = vpop.f32.mrf.mxu0
      %v2391 = vadd.f32 0.0, %v2390
      %v2392 = vpop.f32.mrf.mxu0
      %2393 = vmatprep.mubr.bf16.mxu0 0
      %2394 = vmatmul.mubr.bf16.gmra.mxu0 %v2303
      %v2395 = vpop.f32.mrf.mxu0
      %v2396 = vadd.f32 0.0, %v2395
      %v2397 = vpop.f32.mrf.mxu0
      %v2398 = vpop.f32.mrf.mxu0
      %v2399 = vadd.f32 0.0, %v2398
      %v2400 = vpop.f32.mrf.mxu0
      %2401 = vmatprep.mubr.bf16.mxu0 0
      %2402 = vmatmul.mubr.bf16.gmra.mxu0 %v2306
      %v2403 = vpop.f32.mrf.mxu0
      %v2404 = vadd.f32 0.0, %v2403
      %v2405 = vpop.f32.mrf.mxu0
      %v2406 = vpop.f32.mrf.mxu0
      %v2407 = vadd.f32 0.0, %v2406
      %v2408 = vpop.f32.mrf.mxu0
      %2409 = vmatprep.mubr.bf16.mxu0 0
      %2410 = vmatmul.mubr.bf16.gmra.mxu0 %v2309
      %v2411 = vpop.f32.mrf.mxu0
      %v2412 = vadd.f32 0.0, %v2411
      %v2413 = vpop.f32.mrf.mxu0
      %v2414 = vpop.f32.mrf.mxu0
      %v2415 = vadd.f32 0.0, %v2414
      %v2416 = vpop.f32.mrf.mxu0
      %2417 = vmatprep.mubr.bf16.mxu0 0
      %2418 = vmatmul.mubr.bf16.gmra.mxu0 %v2312
      %v2419 = vpop.f32.mrf.mxu0
      %v2420 = vadd.f32 0.0, %v2419
      %v2421 = vpop.f32.mrf.mxu0
      %v2422 = vpop.f32.mrf.mxu0
      %v2423 = vadd.f32 0.0, %v2422
      %v2424 = vpop.f32.mrf.mxu0
      %2425 = vmatprep.mubr.bf16.mxu0 0
      %2426 = vmatmul.mubr.bf16.gmra.mxu0 %v2315
      %v2427 = vpop.f32.mrf.mxu0
      %v2428 = vadd.f32 0.0, %v2427
      %v2429 = vpop.f32.mrf.mxu0
      %v2430 = vpop.f32.mrf.mxu0
      %v2431 = vadd.f32 0.0, %v2430
      %v2432 = vpop.f32.mrf.mxu0
      %2433 = vmatprep.mubr.bf16.mxu0 0
      %2434 = vmatmul.mubr.bf16.gmra.mxu0 %v2318
      %v2435 = vpop.f32.mrf.mxu0
      %v2436 = vadd.f32 0.0, %v2435
      %v2437 = vpop.f32.mrf.mxu0
      %v2438 = vpop.f32.mrf.mxu0
      %v2439 = vadd.f32 0.0, %v2438
      %v2440 = vpop.f32.mrf.mxu0
      %2441 = vmatprep.mubr.bf16.mxu0 0
      %2442 = vmatmul.mubr.bf16.gmra.mxu0 %v2321
      %v2443 = vpop.f32.mrf.mxu0
      %v2444 = vadd.f32 0.0, %v2443
      %v2445 = vpop.f32.mrf.mxu0
      %v2446 = vpop.f32.mrf.mxu0
      %v2447 = vadd.f32 0.0, %v2446
      %v2448 = vpop.f32.mrf.mxu0
      %2449 = vmatprep.mubr.bf16.mxu0 0
      %2450 = vmatmul.mubr.bf16.gmra.mxu0 %v2324
      %v2451 = vpop.f32.mrf.mxu0
      %v2452 = vadd.f32 0.0, %v2451
      %v2453 = vpop.f32.mrf.mxu0
      %v2454 = vpop.f32.mrf.mxu0
      %v2455 = vadd.f32 0.0, %v2454
      %v2456 = vpop.f32.mrf.mxu0
      %2457 = vmatprep.mubr.bf16.mxu0 0
      %2458 = vmatmul.mubr.bf16.gmra.mxu0 %v2327
      %v2459 = vpop.f32.mrf.mxu0
      %v2460 = vadd.f32 0.0, %v2459
      %v2461 = vpop.f32.mrf.mxu0
      %v2462 = vpop.f32.mrf.mxu0
      %v2463 = vadd.f32 0.0, %v2462
      %v2464 = vpop.f32.mrf.mxu0
      %2465 = vmatprep.mubr.bf16.mxu0 0
      %2466 = vmatmul.mubr.bf16.gmra.mxu0 %v2330
      %v2467 = vpop.f32.mrf.mxu0
      %v2468 = vadd.f32 0.0, %v2467
      %v2469 = vpop.f32.mrf.mxu0
      %v2470 = vpop.f32.mrf.mxu0
      %v2471 = vadd.f32 0.0, %v2470
      %v2472 = vpop.f32.mrf.mxu0
      %2473 = vmatprep.mubr.bf16.mxu0 0
      %2474 = vmatmul.mubr.bf16.gmra.mxu0 %v2333
      %v2475 = vpop.f32.mrf.mxu0
      %v2476 = vadd.f32 0.0, %v2475
      %v2477 = vpop.f32.mrf.mxu0
      %v2478 = vpop.f32.mrf.mxu0
      %v2479 = vadd.f32 0.0, %v2478
      %v2480 = vpop.f32.mrf.mxu0
      %2481 = vmatprep.mubr.bf16.mxu0 0
      %2482 = vmatmul.mubr.bf16.gmra.mxu0 %v2336
      %v2483 = vpop.f32.mrf.mxu0
      %v2484 = vadd.f32 0.0, %v2483
      %v2485 = vpop.f32.mrf.mxu0
      %v2486 = vpop.f32.mrf.mxu0
      %v2487 = vadd.f32 0.0, %v2486
      %v2488 = vpop.f32.mrf.mxu0
      %2489 = vmatprep.mubr.bf16.mxu0 0
      %2490 = vmatmul.mubr.bf16.gmra.mxu0 %v2339
      %v2491 = vpop.f32.mrf.mxu0
      %v2492 = vadd.f32 0.0, %v2491
      %v2493 = vpop.f32.mrf.mxu0
      %v2494 = vpop.f32.mrf.mxu0
      %v2495 = vadd.f32 0.0, %v2494
      %v2496 = vpop.f32.mrf.mxu0
      %2497 = vmatprep.mubr.bf16.mxu0 0
      %2498 = vmatmul.mubr.bf16.gmra.mxu0 %v2342
      %v2499 = vpop.f32.mrf.mxu0
      %v2500 = vadd.f32 0.0, %v2499
      %v2501 = vpop.f32.mrf.mxu0
      %v2502 = vpop.f32.mrf.mxu0
      %v2503 = vadd.f32 0.0, %v2502
      %v2504 = vpop.f32.mrf.mxu0
      %2505 = vmatprep.mubr.bf16.mxu0 0
      %2506 = vmatmul.mubr.bf16.gmra.mxu0 %v2345
      %v2507 = vpop.f32.mrf.mxu0
      %v2508 = vadd.f32 0.0, %v2507
      %v2509 = vpop.f32.mrf.mxu0
      %v2510 = vpop.f32.mrf.mxu0
      %v2511 = vadd.f32 0.0, %v2510
      %v2512 = vpop.f32.mrf.mxu0
      %2513 = vmatprep.mubr.bf16.mxu0 0
      %2514 = vmatmul.mubr.bf16.gmra.mxu0 %v2348
      %v2515 = vpop.f32.mrf.mxu0
      %v2516 = vadd.f32 0.0, %v2515
      %v2517 = vpop.f32.mrf.mxu0
      %v2518 = vpop.f32.mrf.mxu0
      %v2519 = vadd.f32 0.0, %v2518
      %v2520 = vpop.f32.mrf.mxu0
      %2521 = vmatprep.mubr.bf16.mxu0 0
      %2522 = vmatmul.mubr.bf16.gmra.mxu0 %v2351
      %v2523 = vpop.f32.mrf.mxu0
      %v2524 = vadd.f32 0.0, %v2523
      %v2525 = vpop.f32.mrf.mxu0
      %v2526 = vpop.f32.mrf.mxu0
      %v2527 = vadd.f32 0.0, %v2526
      %v2528 = vpop.f32.mrf.mxu0
      %2529 = vdwg.mxu0
      %v2530 = vadd.f32 %v2192, %v2388
      %v2531 = vadd.f32 %v2193, %v2391
      %v2532 = vadd.f32 %v2194, %v2396
      %v2533 = vadd.f32 %v2195, %v2399
      %v2534 = vadd.f32 %v2196, %v2404
      %v2535 = vadd.f32 %v2197, %v2407
      %v2536 = vadd.f32 %v2198, %v2412
      %v2537 = vadd.f32 %v2199, %v2415
      %v2538 = vadd.f32 %v2200, %v2420
      %v2539 = vadd.f32 %v2201, %v2423
      %v2540 = vadd.f32 %v2202, %v2428
      %v2541 = vadd.f32 %v2203, %v2431
      %v2542 = vadd.f32 %v2204, %v2436
      %v2543 = vadd.f32 %v2205, %v2439
      %v2544 = vadd.f32 %v2206, %v2444
      %v2545 = vadd.f32 %v2207, %v2447
      %v2546 = vadd.f32 %v2208, %v2452
      %v2547 = vadd.f32 %v2209, %v2455
      %v2548 = vadd.f32 %v2210, %v2460
      %v2549 = vadd.f32 %v2211, %v2463
      %v2550 = vadd.f32 %v2212, %v2468
      %v2551 = vadd.f32 %v2213, %v2471
      %v2552 = vadd.f32 %v2214, %v2476
      %v2553 = vadd.f32 %v2215, %v2479
      %v2554 = vadd.f32 %v2216, %v2484
      %v2555 = vadd.f32 %v2217, %v2487
      %v2556 = vadd.f32 %v2218, %v2492
      %v2557 = vadd.f32 %v2219, %v2495
      %v2558 = vadd.f32 %v2220, %v2500
      %v2559 = vadd.f32 %v2221, %v2503
      %v2560 = vadd.f32 %v2222, %v2508
      %v2561 = vadd.f32 %v2223, %v2511
      %v2562 = vadd.f32 %v2224, %v2516
      %v2563 = vadd.f32 %v2225, %v2519
      %v2564 = vadd.f32 %v2226, %v2524
      %v2565 = vadd.f32 %v2227, %v2527
      %v2566 = vld [vmem:[%s192 + $0x24] sm:$0xff]
      %v2567 = vld [vmem:[%s192 + $0x2c] sm:$0xff]
      %v2568 = vld [vmem:[%s192 + $0x34] sm:$0xff]
      %v2569 = vld [vmem:[%s192 + $0x3c] sm:$0xff]
      %v2570 = vld [vmem:[%s192 + $0x44] sm:$0xff]
      %v2571 = vld [vmem:[%s192 + $0x4c] sm:$0xff]
      %v2572 = vld [vmem:[%s192 + $0x54] sm:$0xff]
      %v2573 = vld [vmem:[%s192 + $0x5c] sm:$0xff]
      %v2574 = vld [vmem:[%s192 + $0x64] sm:$0xff]
      %v2575 = vld [vmem:[%s192 + $0x6c] sm:$0xff]
      %v2576 = vld [vmem:[%s192 + $0x74] sm:$0xff]
      %v2577 = vld [vmem:[%s192 + $0x7c] sm:$0xff]
      %v2578 = vld [vmem:[%s192 + $0x84] sm:$0xff]
      %v2579 = vld [vmem:[%s192 + $0x8c] sm:$0xff]
      %v2580 = vld [vmem:[%s192 + $0x94] sm:$0xff]
      %v2581 = vld [vmem:[%s192 + $0x9c] sm:$0xff]
      %v2582 = vld [vmem:[%s192 + $0xa4] sm:$0xff]
      %v2583 = vld [vmem:[%s192 + $0xac] sm:$0xff]
      %v2584 = vld [vmem:[%s192 + $0xb4] sm:$0xff]
      %v2585 = vld [vmem:[%s192 + $0xbc] sm:$0xff]
      %v2586 = vld [vmem:[%s192 + $0xc4] sm:$0xff]
      %v2587 = vld [vmem:[%s192 + $0xcc] sm:$0xff]
      %v2588 = vld [vmem:[%s192 + $0xd4] sm:$0xff]
      %v2589 = vld [vmem:[%s192 + $0xdc] sm:$0xff]
      %v2590 = vld [vmem:[%s192 + $0xe4] sm:$0xff]
      %v2591 = vld [vmem:[%s192 + $0xec] sm:$0xff]
      %v2592 = vld [vmem:[%s192 + $0xf4] sm:$0xff]
      %v2593 = vld [vmem:[%s192 + $0xfc] sm:$0xff]
      %v2594 = vld [vmem:[%s192 + $0x104] sm:$0xff]
      %v2595 = vld [vmem:[%s192 + $0x10c] sm:$0xff]
      %v2596 = vld [vmem:[%s192 + $0x114] sm:$0xff]
      %v2597 = vld [vmem:[%s192 + $0x11c] sm:$0xff]
      %v2598 = vld [vmem:[%s192 + $0x124] sm:$0xff]
      %v2599 = vld [vmem:[%s192 + $0x12c] sm:$0xff]
      %v2600 = vld [vmem:[%s192 + $0x134] sm:$0xff]
      %v2601 = vld [vmem:[%s192 + $0x13c] sm:$0x3f]
      %v2602 = vpack.c.bf16 %v2567, %v2566
      %v2603 = vpack.c.bf16 %v2569, %v2568
      %v2604 = vpack.c.bf16 %v2571, %v2570
      %v2605 = vpack.c.bf16 %v2573, %v2572
      %v2606 = vpack.c.bf16 %v2575, %v2574
      %v2607 = vpack.c.bf16 %v2577, %v2576
      %v2608 = vpack.c.bf16 %v2579, %v2578
      %v2609 = vpack.c.bf16 %v2581, %v2580
      %v2610 = vpack.c.bf16 %v2583, %v2582
      %v2611 = vpack.c.bf16 %v2585, %v2584
      %v2612 = vpack.c.bf16 %v2587, %v2586
      %v2613 = vpack.c.bf16 %v2589, %v2588
      %v2614 = vpack.c.bf16 %v2591, %v2590
      %v2615 = vpack.c.bf16 %v2593, %v2592
      %v2616 = vpack.c.bf16 %v2595, %v2594
      %v2617 = vpack.c.bf16 %v2597, %v2596
      %v2618 = vpack.c.bf16 %v2599, %v2598
      %v2619 = vpack.c.bf16 %v2601, %v2600
      %s2620 = scalar_lea.vmem %s1, 96
      %v2621 = vld [vmem:[%s2620] sm:$0xf]
      %v2622 = vld [vmem:[%s2620 + $0x4] sm:$0xf]
      %v2623 = vld [vmem:[%s2620 + $0x8] sm:$0xf]
      %v2624 = vld [vmem:[%s2620 + $0xc] sm:$0xf]
      %v2629 = vunpack.c.l.b16 %v2621
      %v2630 = vunpack.c.l.b16 %v2622
      %v2631 = vunpack.c.l.b16 %v2623
      %v2632 = vunpack.c.l.b16 %v2624
      %v2633 = vpack.c.b16 %v2630, %v2629
      %v2634 = vpack.c.b16 %v2632, %v2631
      %v2638 = vsel %vm739, %v2602, 0
      %v2641 = vsel %vm739, %v2603, 0
      %v2644 = vsel %vm739, %v2604, 0
      %v2647 = vsel %vm739, %v2605, 0
      %v2650 = vsel %vm739, %v2606, 0
      %v2653 = vsel %vm739, %v2607, 0
      %v2656 = vsel %vm739, %v2608, 0
      %v2659 = vsel %vm739, %v2609, 0
      %v2662 = vsel %vm739, %v2610, 0
      %v2665 = vsel %vm739, %v2611, 0
      %v2668 = vsel %vm739, %v2612, 0
      %v2671 = vsel %vm739, %v2613, 0
      %v2674 = vsel %vm739, %v2614, 0
      %v2677 = vsel %vm739, %v2615, 0
      %v2680 = vsel %vm739, %v2616, 0
      %v2683 = vsel %vm739, %v2617, 0
      %v2686 = vsel %vm739, %v2618, 0
      %v2689 = vsel %vm739, %v2619, 0
      %2691 = vmatprep.subr.bf16.mxu0 0
      %2692 = vmatpush1.bf16.msra.mxu0 0
      %2693 = vmatprep.subr.bf16.mxu0 0
      %2694 = vmatpush1.bf16.msra.mxu0 0
      %2695 = vmatprep.subr.bf16.mxu0 0
      %2696 = vmatpush1.bf16.msra.mxu0 0
      %2697 = vmatprep.subr.bf16.mxu0 0
      %2698 = vmatpush1.bf16.msra.mxu0 0
      %2699 = vmatprep.subr.bf16.mxu0 0
      %2700 = vmatpush1.bf16.msra.mxu0 0
      %2701 = vmatprep.subr.bf16.mxu0 0
      %2702 = vmatpush1.bf16.msra.mxu0 0
      %2703 = vmatprep.subr.bf16.mxu0 0
      %2704 = vmatpush1.bf16.msra.mxu0 %v2634
      %2705 = vmatprep.subr.bf16.mxu0 0
      %2706 = vmatpush1.bf16.msra.mxu0 %v2633
      %2707 = vmatprep.subr.bf16.mxu0 0
      %2708 = vmatpush2.bf16.msra.mxu0 0
      %2709 = vmatprep.subr.bf16.mxu0 0
      %2710 = vmatpush2.bf16.msra.mxu0 0
      %2711 = vmatprep.subr.bf16.mxu0 0
      %2712 = vmatpush2.bf16.msra.mxu0 0
      %2713 = vmatprep.subr.bf16.mxu0 0
      %2714 = vmatpush2.bf16.msra.mxu0 0
      %2715 = vmatprep.subr.bf16.mxu0 0
      %2716 = vmatpush2.bf16.msra.mxu0 0
      %2717 = vmatprep.subr.bf16.mxu0 0
      %2718 = vmatpush2.bf16.msra.mxu0 0
      %2719 = vmatprep.subr.bf16.mxu0 0
      %2720 = vmatpush2.bf16.msra.mxu0 0
      %2721 = vmatprep.subr.bf16.mxu0 0
      %2722 = vmatpush2.bf16.msra.mxu0 0
      %2723 = vmatprep.mubr.bf16.mxu0 0
      %2724 = vmatmul.mubr.bf16.gmra.mxu0 %v2638
      %v2725 = vpop.f32.mrf.mxu0
      %v2726 = vadd.f32 0.0, %v2725
      %v2727 = vpop.f32.mrf.mxu0
      %v2728 = vpop.f32.mrf.mxu0
      %v2729 = vadd.f32 0.0, %v2728
      %v2730 = vpop.f32.mrf.mxu0
      %2731 = vmatprep.mubr.bf16.mxu0 0
      %2732 = vmatmul.mubr.bf16.gmra.mxu0 %v2641
      %v2733 = vpop.f32.mrf.mxu0
      %v2734 = vadd.f32 0.0, %v2733
      %v2735 = vpop.f32.mrf.mxu0
      %v2736 = vpop.f32.mrf.mxu0
      %v2737 = vadd.f32 0.0, %v2736
      %v2738 = vpop.f32.mrf.mxu0
      %2739 = vmatprep.mubr.bf16.mxu0 0
      %2740 = vmatmul.mubr.bf16.gmra.mxu0 %v2644
      %v2741 = vpop.f32.mrf.mxu0
      %v2742 = vadd.f32 0.0, %v2741
      %v2743 = vpop.f32.mrf.mxu0
      %v2744 = vpop.f32.mrf.mxu0
      %v2745 = vadd.f32 0.0, %v2744
      %v2746 = vpop.f32.mrf.mxu0
      %2747 = vmatprep.mubr.bf16.mxu0 0
      %2748 = vmatmul.mubr.bf16.gmra.mxu0 %v2647
      %v2749 = vpop.f32.mrf.mxu0
      %v2750 = vadd.f32 0.0, %v2749
      %v2751 = vpop.f32.mrf.mxu0
      %v2752 = vpop.f32.mrf.mxu0
      %v2753 = vadd.f32 0.0, %v2752
      %v2754 = vpop.f32.mrf.mxu0
      %2755 = vmatprep.mubr.bf16.mxu0 0
      %2756 = vmatmul.mubr.bf16.gmra.mxu0 %v2650
      %v2757 = vpop.f32.mrf.mxu0
      %v2758 = vadd.f32 0.0, %v2757
      %v2759 = vpop.f32.mrf.mxu0
      %v2760 = vpop.f32.mrf.mxu0
      %v2761 = vadd.f32 0.0, %v2760
      %v2762 = vpop.f32.mrf.mxu0
      %2763 = vmatprep.mubr.bf16.mxu0 0
      %2764 = vmatmul.mubr.bf16.gmra.mxu0 %v2653
      %v2765 = vpop.f32.mrf.mxu0
      %v2766 = vadd.f32 0.0, %v2765
      %v2767 = vpop.f32.mrf.mxu0
      %v2768 = vpop.f32.mrf.mxu0
      %v2769 = vadd.f32 0.0, %v2768
      %v2770 = vpop.f32.mrf.mxu0
      %2771 = vmatprep.mubr.bf16.mxu0 0
      %2772 = vmatmul.mubr.bf16.gmra.mxu0 %v2656
      %v2773 = vpop.f32.mrf.mxu0
      %v2774 = vadd.f32 0.0, %v2773
      %v2775 = vpop.f32.mrf.mxu0
      %v2776 = vpop.f32.mrf.mxu0
      %v2777 = vadd.f32 0.0, %v2776
      %v2778 = vpop.f32.mrf.mxu0
      %2779 = vmatprep.mubr.bf16.mxu0 0
      %2780 = vmatmul.mubr.bf16.gmra.mxu0 %v2659
      %v2781 = vpop.f32.mrf.mxu0
      %v2782 = vadd.f32 0.0, %v2781
      %v2783 = vpop.f32.mrf.mxu0
      %v2784 = vpop.f32.mrf.mxu0
      %v2785 = vadd.f32 0.0, %v2784
      %v2786 = vpop.f32.mrf.mxu0
      %2787 = vmatprep.mubr.bf16.mxu0 0
      %2788 = vmatmul.mubr.bf16.gmra.mxu0 %v2662
      %v2789 = vpop.f32.mrf.mxu0
      %v2790 = vadd.f32 0.0, %v2789
      %v2791 = vpop.f32.mrf.mxu0
      %v2792 = vpop.f32.mrf.mxu0
      %v2793 = vadd.f32 0.0, %v2792
      %v2794 = vpop.f32.mrf.mxu0
      %2795 = vmatprep.mubr.bf16.mxu0 0
      %2796 = vmatmul.mubr.bf16.gmra.mxu0 %v2665
      %v2797 = vpop.f32.mrf.mxu0
      %v2798 = vadd.f32 0.0, %v2797
      %v2799 = vpop.f32.mrf.mxu0
      %v2800 = vpop.f32.mrf.mxu0
      %v2801 = vadd.f32 0.0, %v2800
      %v2802 = vpop.f32.mrf.mxu0
      %2803 = vmatprep.mubr.bf16.mxu0 0
      %2804 = vmatmul.mubr.bf16.gmra.mxu0 %v2668
      %v2805 = vpop.f32.mrf.mxu0
      %v2806 = vadd.f32 0.0, %v2805
      %v2807 = vpop.f32.mrf.mxu0
      %v2808 = vpop.f32.mrf.mxu0
      %v2809 = vadd.f32 0.0, %v2808
      %v2810 = vpop.f32.mrf.mxu0
      %2811 = vmatprep.mubr.bf16.mxu0 0
      %2812 = vmatmul.mubr.bf16.gmra.mxu0 %v2671
      %v2813 = vpop.f32.mrf.mxu0
      %v2814 = vadd.f32 0.0, %v2813
      %v2815 = vpop.f32.mrf.mxu0
      %v2816 = vpop.f32.mrf.mxu0
      %v2817 = vadd.f32 0.0, %v2816
      %v2818 = vpop.f32.mrf.mxu0
      %2819 = vmatprep.mubr.bf16.mxu0 0
      %2820 = vmatmul.mubr.bf16.gmra.mxu0 %v2674
      %v2821 = vpop.f32.mrf.mxu0
      %v2822 = vadd.f32 0.0, %v2821
      %v2823 = vpop.f32.mrf.mxu0
      %v2824 = vpop.f32.mrf.mxu0
      %v2825 = vadd.f32 0.0, %v2824
      %v2826 = vpop.f32.mrf.mxu0
      %2827 = vmatprep.mubr.bf16.mxu0 0
      %2828 = vmatmul.mubr.bf16.gmra.mxu0 %v2677
      %v2829 = vpop.f32.mrf.mxu0
      %v2830 = vadd.f32 0.0, %v2829
      %v2831 = vpop.f32.mrf.mxu0
      %v2832 = vpop.f32.mrf.mxu0
      %v2833 = vadd.f32 0.0, %v2832
      %v2834 = vpop.f32.mrf.mxu0
      %2835 = vmatprep.mubr.bf16.mxu0 0
      %2836 = vmatmul.mubr.bf16.gmra.mxu0 %v2680
      %v2837 = vpop.f32.mrf.mxu0
      %v2838 = vadd.f32 0.0, %v2837
      %v2839 = vpop.f32.mrf.mxu0
      %v2840 = vpop.f32.mrf.mxu0
      %v2841 = vadd.f32 0.0, %v2840
      %v2842 = vpop.f32.mrf.mxu0
      %2843 = vmatprep.mubr.bf16.mxu0 0
      %2844 = vmatmul.mubr.bf16.gmra.mxu0 %v2683
      %v2845 = vpop.f32.mrf.mxu0
      %v2846 = vadd.f32 0.0, %v2845
      %v2847 = vpop.f32.mrf.mxu0
      %v2848 = vpop.f32.mrf.mxu0
      %v2849 = vadd.f32 0.0, %v2848
      %v2850 = vpop.f32.mrf.mxu0
      %2851 = vmatprep.mubr.bf16.mxu0 0
      %2852 = vmatmul.mubr.bf16.gmra.mxu0 %v2686
      %v2853 = vpop.f32.mrf.mxu0
      %v2854 = vadd.f32 0.0, %v2853
      %v2855 = vpop.f32.mrf.mxu0
      %v2856 = vpop.f32.mrf.mxu0
      %v2857 = vadd.f32 0.0, %v2856
      %v2858 = vpop.f32.mrf.mxu0
      %2859 = vmatprep.mubr.bf16.mxu0 0
      %2860 = vmatmul.mubr.bf16.gmra.mxu0 %v2689
      %v2861 = vpop.f32.mrf.mxu0
      %v2862 = vadd.f32 0.0, %v2861
      %v2863 = vpop.f32.mrf.mxu0
      %v2864 = vpop.f32.mrf.mxu0
      %v2865 = vadd.f32 0.0, %v2864
      %v2866 = vpop.f32.mrf.mxu0
      %2867 = vdwg.mxu0
      %v2868 = vadd.f32 %v2530, %v2726
      %v2869 = vadd.f32 %v2531, %v2729
      %v2870 = vadd.f32 %v2532, %v2734
      %v2871 = vadd.f32 %v2533, %v2737
      %v2872 = vadd.f32 %v2534, %v2742
      %v2873 = vadd.f32 %v2535, %v2745
      %v2874 = vadd.f32 %v2536, %v2750
      %v2875 = vadd.f32 %v2537, %v2753
      %v2876 = vadd.f32 %v2538, %v2758
      %v2877 = vadd.f32 %v2539, %v2761
      %v2878 = vadd.f32 %v2540, %v2766
      %v2879 = vadd.f32 %v2541, %v2769
      %v2880 = vadd.f32 %v2542, %v2774
      %v2881 = vadd.f32 %v2543, %v2777
      %v2882 = vadd.f32 %v2544, %v2782
      %v2883 = vadd.f32 %v2545, %v2785
      %v2884 = vadd.f32 %v2546, %v2790
      %v2885 = vadd.f32 %v2547, %v2793
      %v2886 = vadd.f32 %v2548, %v2798
      %v2887 = vadd.f32 %v2549, %v2801
      %v2888 = vadd.f32 %v2550, %v2806
      %v2889 = vadd.f32 %v2551, %v2809
      %v2890 = vadd.f32 %v2552, %v2814
      %v2891 = vadd.f32 %v2553, %v2817
      %v2892 = vadd.f32 %v2554, %v2822
      %v2893 = vadd.f32 %v2555, %v2825
      %v2894 = vadd.f32 %v2556, %v2830
      %v2895 = vadd.f32 %v2557, %v2833
      %v2896 = vadd.f32 %v2558, %v2838
      %v2897 = vadd.f32 %v2559, %v2841
      %v2898 = vadd.f32 %v2560, %v2846
      %v2899 = vadd.f32 %v2561, %v2849
      %v2900 = vadd.f32 %v2562, %v2854
      %v2901 = vadd.f32 %v2563, %v2857
      %v2902 = vadd.f32 %v2564, %v2862
      %v2903 = vadd.f32 %v2565, %v2865
      %v2904 = vld [vmem:[%s192 + $0x25] sm:$0xff]
      %v2905 = vld [vmem:[%s192 + $0x2d] sm:$0xff]
      %v2906 = vld [vmem:[%s192 + $0x35] sm:$0xff]
      %v2907 = vld [vmem:[%s192 + $0x3d] sm:$0xff]
      %v2908 = vld [vmem:[%s192 + $0x45] sm:$0xff]
      %v2909 = vld [vmem:[%s192 + $0x4d] sm:$0xff]
      %v2910 = vld [vmem:[%s192 + $0x55] sm:$0xff]
      %v2911 = vld [vmem:[%s192 + $0x5d] sm:$0xff]
      %v2912 = vld [vmem:[%s192 + $0x65] sm:$0xff]
      %v2913 = vld [vmem:[%s192 + $0x6d] sm:$0xff]
      %v2914 = vld [vmem:[%s192 + $0x75] sm:$0xff]
      %v2915 = vld [vmem:[%s192 + $0x7d] sm:$0xff]
      %v2916 = vld [vmem:[%s192 + $0x85] sm:$0xff]
      %v2917 = vld [vmem:[%s192 + $0x8d] sm:$0xff]
      %v2918 = vld [vmem:[%s192 + $0x95] sm:$0xff]
      %v2919 = vld [vmem:[%s192 + $0x9d] sm:$0xff]
      %v2920 = vld [vmem:[%s192 + $0xa5] sm:$0xff]
      %v2921 = vld [vmem:[%s192 + $0xad] sm:$0xff]
      %v2922 = vld [vmem:[%s192 + $0xb5] sm:$0xff]
      %v2923 = vld [vmem:[%s192 + $0xbd] sm:$0xff]
      %v2924 = vld [vmem:[%s192 + $0xc5] sm:$0xff]
      %v2925 = vld [vmem:[%s192 + $0xcd] sm:$0xff]
      %v2926 = vld [vmem:[%s192 + $0xd5] sm:$0xff]
      %v2927 = vld [vmem:[%s192 + $0xdd] sm:$0xff]
      %v2928 = vld [vmem:[%s192 + $0xe5] sm:$0xff]
      %v2929 = vld [vmem:[%s192 + $0xed] sm:$0xff]
      %v2930 = vld [vmem:[%s192 + $0xf5] sm:$0xff]
      %v2931 = vld [vmem:[%s192 + $0xfd] sm:$0xff]
      %v2932 = vld [vmem:[%s192 + $0x105] sm:$0xff]
      %v2933 = vld [vmem:[%s192 + $0x10d] sm:$0xff]
      %v2934 = vld [vmem:[%s192 + $0x115] sm:$0xff]
      %v2935 = vld [vmem:[%s192 + $0x11d] sm:$0xff]
      %v2936 = vld [vmem:[%s192 + $0x125] sm:$0xff]
      %v2937 = vld [vmem:[%s192 + $0x12d] sm:$0xff]
      %v2938 = vld [vmem:[%s192 + $0x135] sm:$0xff]
      %v2939 = vld [vmem:[%s192 + $0x13d] sm:$0x3f]
      %v2940 = vpack.c.bf16 %v2905, %v2904
      %v2941 = vpack.c.bf16 %v2907, %v2906
      %v2942 = vpack.c.bf16 %v2909, %v2908
      %v2943 = vpack.c.bf16 %v2911, %v2910
      %v2944 = vpack.c.bf16 %v2913, %v2912
      %v2945 = vpack.c.bf16 %v2915, %v2914
      %v2946 = vpack.c.bf16 %v2917, %v2916
      %v2947 = vpack.c.bf16 %v2919, %v2918
      %v2948 = vpack.c.bf16 %v2921, %v2920
      %v2949 = vpack.c.bf16 %v2923, %v2922
      %v2950 = vpack.c.bf16 %v2925, %v2924
      %v2951 = vpack.c.bf16 %v2927, %v2926
      %v2952 = vpack.c.bf16 %v2929, %v2928
      %v2953 = vpack.c.bf16 %v2931, %v2930
      %v2954 = vpack.c.bf16 %v2933, %v2932
      %v2955 = vpack.c.bf16 %v2935, %v2934
      %v2956 = vpack.c.bf16 %v2937, %v2936
      %v2957 = vpack.c.bf16 %v2939, %v2938
      %s2958 = scalar_lea.vmem %s1, 112
      %v2959 = vld [vmem:[%s2958] sm:$0xf]
      %v2960 = vld [vmem:[%s2958 + $0x4] sm:$0xf]
      %v2961 = vld [vmem:[%s2958 + $0x8] sm:$0xf]
      %v2962 = vld [vmem:[%s2958 + $0xc] sm:$0xf]
      %v2967 = vunpack.c.l.b16 %v2959
      %v2968 = vunpack.c.l.b16 %v2960
      %v2969 = vunpack.c.l.b16 %v2961
      %v2970 = vunpack.c.l.b16 %v2962
      %v2971 = vpack.c.b16 %v2968, %v2967
      %v2972 = vpack.c.b16 %v2970, %v2969
      %v2976 = vsel %vm739, %v2940, 0
      %v2979 = vsel %vm739, %v2941, 0
      %v2982 = vsel %vm739, %v2942, 0
      %v2985 = vsel %vm739, %v2943, 0
      %v2988 = vsel %vm739, %v2944, 0
      %v2991 = vsel %vm739, %v2945, 0
      %v2994 = vsel %vm739, %v2946, 0
      %v2997 = vsel %vm739, %v2947, 0
      %v3000 = vsel %vm739, %v2948, 0
      %v3003 = vsel %vm739, %v2949, 0
      %v3006 = vsel %vm739, %v2950, 0
      %v3009 = vsel %vm739, %v2951, 0
      %v3012 = vsel %vm739, %v2952, 0
      %v3015 = vsel %vm739, %v2953, 0
      %v3018 = vsel %vm739, %v2954, 0
      %v3021 = vsel %vm739, %v2955, 0
      %v3024 = vsel %vm739, %v2956, 0
      %v3027 = vsel %vm739, %v2957, 0
      %3029 = vmatprep.subr.bf16.mxu0 0
      %3030 = vmatpush1.bf16.msra.mxu0 0
      %3031 = vmatprep.subr.bf16.mxu0 0
      %3032 = vmatpush1.bf16.msra.mxu0 0
      %3033 = vmatprep.subr.bf16.mxu0 0
      %3034 = vmatpush1.bf16.msra.mxu0 0
      %3035 = vmatprep.subr.bf16.mxu0 0
      %3036 = vmatpush1.bf16.msra.mxu0 0
      %3037 = vmatprep.subr.bf16.mxu0 0
      %3038 = vmatpush1.bf16.msra.mxu0 0
      %3039 = vmatprep.subr.bf16.mxu0 0
      %3040 = vmatpush1.bf16.msra.mxu0 0
      %3041 = vmatprep.subr.bf16.mxu0 0
      %3042 = vmatpush1.bf16.msra.mxu0 %v2972
      %3043 = vmatprep.subr.bf16.mxu0 0
      %3044 = vmatpush1.bf16.msra.mxu0 %v2971
      %3045 = vmatprep.subr.bf16.mxu0 0
      %3046 = vmatpush2.bf16.msra.mxu0 0
      %3047 = vmatprep.subr.bf16.mxu0 0
      %3048 = vmatpush2.bf16.msra.mxu0 0
      %3049 = vmatprep.subr.bf16.mxu0 0
      %3050 = vmatpush2.bf16.msra.mxu0 0
      %3051 = vmatprep.subr.bf16.mxu0 0
      %3052 = vmatpush2.bf16.msra.mxu0 0
      %3053 = vmatprep.subr.bf16.mxu0 0
      %3054 = vmatpush2.bf16.msra.mxu0 0
      %3055 = vmatprep.subr.bf16.mxu0 0
      %3056 = vmatpush2.bf16.msra.mxu0 0
      %3057 = vmatprep.subr.bf16.mxu0 0
      %3058 = vmatpush2.bf16.msra.mxu0 0
      %3059 = vmatprep.subr.bf16.mxu0 0
      %3060 = vmatpush2.bf16.msra.mxu0 0
      %3061 = vmatprep.mubr.bf16.mxu0 0
      %3062 = vmatmul.mubr.bf16.gmra.mxu0 %v2976
      %v3063 = vpop.f32.mrf.mxu0
      %v3064 = vadd.f32 0.0, %v3063
      %v3065 = vpop.f32.mrf.mxu0
      %v3066 = vpop.f32.mrf.mxu0
      %v3067 = vadd.f32 0.0, %v3066
      %v3068 = vpop.f32.mrf.mxu0
      %3069 = vmatprep.mubr.bf16.mxu0 0
      %3070 = vmatmul.mubr.bf16.gmra.mxu0 %v2979
      %v3071 = vpop.f32.mrf.mxu0
      %v3072 = vadd.f32 0.0, %v3071
      %v3073 = vpop.f32.mrf.mxu0
      %v3074 = vpop.f32.mrf.mxu0
      %v3075 = vadd.f32 0.0, %v3074
      %v3076 = vpop.f32.mrf.mxu0
      %3077 = vmatprep.mubr.bf16.mxu0 0
      %3078 = vmatmul.mubr.bf16.gmra.mxu0 %v2982
      %v3079 = vpop.f32.mrf.mxu0
      %v3080 = vadd.f32 0.0, %v3079
      %v3081 = vpop.f32.mrf.mxu0
      %v3082 = vpop.f32.mrf.mxu0
      %v3083 = vadd.f32 0.0, %v3082
      %v3084 = vpop.f32.mrf.mxu0
      %3085 = vmatprep.mubr.bf16.mxu0 0
      %3086 = vmatmul.mubr.bf16.gmra.mxu0 %v2985
      %v3087 = vpop.f32.mrf.mxu0
      %v3088 = vadd.f32 0.0, %v3087
      %v3089 = vpop.f32.mrf.mxu0
      %v3090 = vpop.f32.mrf.mxu0
      %v3091 = vadd.f32 0.0, %v3090
      %v3092 = vpop.f32.mrf.mxu0
      %3093 = vmatprep.mubr.bf16.mxu0 0
      %3094 = vmatmul.mubr.bf16.gmra.mxu0 %v2988
      %v3095 = vpop.f32.mrf.mxu0
      %v3096 = vadd.f32 0.0, %v3095
      %v3097 = vpop.f32.mrf.mxu0
      %v3098 = vpop.f32.mrf.mxu0
      %v3099 = vadd.f32 0.0, %v3098
      %v3100 = vpop.f32.mrf.mxu0
      %3101 = vmatprep.mubr.bf16.mxu0 0
      %3102 = vmatmul.mubr.bf16.gmra.mxu0 %v2991
      %v3103 = vpop.f32.mrf.mxu0
      %v3104 = vadd.f32 0.0, %v3103
      %v3105 = vpop.f32.mrf.mxu0
      %v3106 = vpop.f32.mrf.mxu0
      %v3107 = vadd.f32 0.0, %v3106
      %v3108 = vpop.f32.mrf.mxu0
      %3109 = vmatprep.mubr.bf16.mxu0 0
      %3110 = vmatmul.mubr.bf16.gmra.mxu0 %v2994
      %v3111 = vpop.f32.mrf.mxu0
      %v3112 = vadd.f32 0.0, %v3111
      %v3113 = vpop.f32.mrf.mxu0
      %v3114 = vpop.f32.mrf.mxu0
      %v3115 = vadd.f32 0.0, %v3114
      %v3116 = vpop.f32.mrf.mxu0
      %3117 = vmatprep.mubr.bf16.mxu0 0
      %3118 = vmatmul.mubr.bf16.gmra.mxu0 %v2997
      %v3119 = vpop.f32.mrf.mxu0
      %v3120 = vadd.f32 0.0, %v3119
      %v3121 = vpop.f32.mrf.mxu0
      %v3122 = vpop.f32.mrf.mxu0
      %v3123 = vadd.f32 0.0, %v3122
      %v3124 = vpop.f32.mrf.mxu0
      %3125 = vmatprep.mubr.bf16.mxu0 0
      %3126 = vmatmul.mubr.bf16.gmra.mxu0 %v3000
      %v3127 = vpop.f32.mrf.mxu0
      %v3128 = vadd.f32 0.0, %v3127
      %v3129 = vpop.f32.mrf.mxu0
      %v3130 = vpop.f32.mrf.mxu0
      %v3131 = vadd.f32 0.0, %v3130
      %v3132 = vpop.f32.mrf.mxu0
      %3133 = vmatprep.mubr.bf16.mxu0 0
      %3134 = vmatmul.mubr.bf16.gmra.mxu0 %v3003
      %v3135 = vpop.f32.mrf.mxu0
      %v3136 = vadd.f32 0.0, %v3135
      %v3137 = vpop.f32.mrf.mxu0
      %v3138 = vpop.f32.mrf.mxu0
      %v3139 = vadd.f32 0.0, %v3138
      %v3140 = vpop.f32.mrf.mxu0
      %3141 = vmatprep.mubr.bf16.mxu0 0
      %3142 = vmatmul.mubr.bf16.gmra.mxu0 %v3006
      %v3143 = vpop.f32.mrf.mxu0
      %v3144 = vadd.f32 0.0, %v3143
      %v3145 = vpop.f32.mrf.mxu0
      %v3146 = vpop.f32.mrf.mxu0
      %v3147 = vadd.f32 0.0, %v3146
      %v3148 = vpop.f32.mrf.mxu0
      %3149 = vmatprep.mubr.bf16.mxu0 0
      %3150 = vmatmul.mubr.bf16.gmra.mxu0 %v3009
      %v3151 = vpop.f32.mrf.mxu0
      %v3152 = vadd.f32 0.0, %v3151
      %v3153 = vpop.f32.mrf.mxu0
      %v3154 = vpop.f32.mrf.mxu0
      %v3155 = vadd.f32 0.0, %v3154
      %v3156 = vpop.f32.mrf.mxu0
      %3157 = vmatprep.mubr.bf16.mxu0 0
      %3158 = vmatmul.mubr.bf16.gmra.mxu0 %v3012
      %v3159 = vpop.f32.mrf.mxu0
      %v3160 = vadd.f32 0.0, %v3159
      %v3161 = vpop.f32.mrf.mxu0
      %v3162 = vpop.f32.mrf.mxu0
      %v3163 = vadd.f32 0.0, %v3162
      %v3164 = vpop.f32.mrf.mxu0
      %3165 = vmatprep.mubr.bf16.mxu0 0
      %3166 = vmatmul.mubr.bf16.gmra.mxu0 %v3015
      %v3167 = vpop.f32.mrf.mxu0
      %v3168 = vadd.f32 0.0, %v3167
      %v3169 = vpop.f32.mrf.mxu0
      %v3170 = vpop.f32.mrf.mxu0
      %v3171 = vadd.f32 0.0, %v3170
      %v3172 = vpop.f32.mrf.mxu0
      %3173 = vmatprep.mubr.bf16.mxu0 0
      %3174 = vmatmul.mubr.bf16.gmra.mxu0 %v3018
      %v3175 = vpop.f32.mrf.mxu0
      %v3176 = vadd.f32 0.0, %v3175
      %v3177 = vpop.f32.mrf.mxu0
      %v3178 = vpop.f32.mrf.mxu0
      %v3179 = vadd.f32 0.0, %v3178
      %v3180 = vpop.f32.mrf.mxu0
      %3181 = vmatprep.mubr.bf16.mxu0 0
      %3182 = vmatmul.mubr.bf16.gmra.mxu0 %v3021
      %v3183 = vpop.f32.mrf.mxu0
      %v3184 = vadd.f32 0.0, %v3183
      %v3185 = vpop.f32.mrf.mxu0
      %v3186 = vpop.f32.mrf.mxu0
      %v3187 = vadd.f32 0.0, %v3186
      %v3188 = vpop.f32.mrf.mxu0
      %3189 = vmatprep.mubr.bf16.mxu0 0
      %3190 = vmatmul.mubr.bf16.gmra.mxu0 %v3024
      %v3191 = vpop.f32.mrf.mxu0
      %v3192 = vadd.f32 0.0, %v3191
      %v3193 = vpop.f32.mrf.mxu0
      %v3194 = vpop.f32.mrf.mxu0
      %v3195 = vadd.f32 0.0, %v3194
      %v3196 = vpop.f32.mrf.mxu0
      %3197 = vmatprep.mubr.bf16.mxu0 0
      %3198 = vmatmul.mubr.bf16.gmra.mxu0 %v3027
      %v3199 = vpop.f32.mrf.mxu0
      %v3200 = vadd.f32 0.0, %v3199
      %v3201 = vpop.f32.mrf.mxu0
      %v3202 = vpop.f32.mrf.mxu0
      %v3203 = vadd.f32 0.0, %v3202
      %v3204 = vpop.f32.mrf.mxu0
      %3205 = vdwg.mxu0
      %v3206 = vadd.f32 %v2868, %v3064
      %v3207 = vadd.f32 %v2869, %v3067
      %v3208 = vadd.f32 %v2870, %v3072
      %v3209 = vadd.f32 %v2871, %v3075
      %v3210 = vadd.f32 %v2872, %v3080
      %v3211 = vadd.f32 %v2873, %v3083
      %v3212 = vadd.f32 %v2874, %v3088
      %v3213 = vadd.f32 %v2875, %v3091
      %v3214 = vadd.f32 %v2876, %v3096
      %v3215 = vadd.f32 %v2877, %v3099
      %v3216 = vadd.f32 %v2878, %v3104
      %v3217 = vadd.f32 %v2879, %v3107
      %v3218 = vadd.f32 %v2880, %v3112
      %v3219 = vadd.f32 %v2881, %v3115
      %v3220 = vadd.f32 %v2882, %v3120
      %v3221 = vadd.f32 %v2883, %v3123
      %v3222 = vadd.f32 %v2884, %v3128
      %v3223 = vadd.f32 %v2885, %v3131
      %v3224 = vadd.f32 %v2886, %v3136
      %v3225 = vadd.f32 %v2887, %v3139
      %v3226 = vadd.f32 %v2888, %v3144
      %v3227 = vadd.f32 %v2889, %v3147
      %v3228 = vadd.f32 %v2890, %v3152
      %v3229 = vadd.f32 %v2891, %v3155
      %v3230 = vadd.f32 %v2892, %v3160
      %v3231 = vadd.f32 %v2893, %v3163
      %v3232 = vadd.f32 %v2894, %v3168
      %v3233 = vadd.f32 %v2895, %v3171
      %v3234 = vadd.f32 %v2896, %v3176
      %v3235 = vadd.f32 %v2897, %v3179
      %v3236 = vadd.f32 %v2898, %v3184
      %v3237 = vadd.f32 %v2899, %v3187
      %v3238 = vadd.f32 %v2900, %v3192
      %v3239 = vadd.f32 %v2901, %v3195
      %v3240 = vadd.f32 %v2902, %v3200
      %v3241 = vadd.f32 %v2903, %v3203
      %v3242 = vld [vmem:[%s192 + $0x26] sm:$0xff]
      %v3243 = vld [vmem:[%s192 + $0x2e] sm:$0xff]
      %v3244 = vld [vmem:[%s192 + $0x36] sm:$0xff]
      %v3245 = vld [vmem:[%s192 + $0x3e] sm:$0xff]
      %v3246 = vld [vmem:[%s192 + $0x46] sm:$0xff]
      %v3247 = vld [vmem:[%s192 + $0x4e] sm:$0xff]
      %v3248 = vld [vmem:[%s192 + $0x56] sm:$0xff]
      %v3249 = vld [vmem:[%s192 + $0x5e] sm:$0xff]
      %v3250 = vld [vmem:[%s192 + $0x66] sm:$0xff]
      %v3251 = vld [vmem:[%s192 + $0x6e] sm:$0xff]
      %v3252 = vld [vmem:[%s192 + $0x76] sm:$0xff]
      %v3253 = vld [vmem:[%s192 + $0x7e] sm:$0xff]
      %v3254 = vld [vmem:[%s192 + $0x86] sm:$0xff]
      %v3255 = vld [vmem:[%s192 + $0x8e] sm:$0xff]
      %v3256 = vld [vmem:[%s192 + $0x96] sm:$0xff]
      %v3257 = vld [vmem:[%s192 + $0x9e] sm:$0xff]
      %v3258 = vld [vmem:[%s192 + $0xa6] sm:$0xff]
      %v3259 = vld [vmem:[%s192 + $0xae] sm:$0xff]
      %v3260 = vld [vmem:[%s192 + $0xb6] sm:$0xff]
      %v3261 = vld [vmem:[%s192 + $0xbe] sm:$0xff]
      %v3262 = vld [vmem:[%s192 + $0xc6] sm:$0xff]
      %v3263 = vld [vmem:[%s192 + $0xce] sm:$0xff]
      %v3264 = vld [vmem:[%s192 + $0xd6] sm:$0xff]
      %v3265 = vld [vmem:[%s192 + $0xde] sm:$0xff]
      %v3266 = vld [vmem:[%s192 + $0xe6] sm:$0xff]
      %v3267 = vld [vmem:[%s192 + $0xee] sm:$0xff]
      %v3268 = vld [vmem:[%s192 + $0xf6] sm:$0xff]
      %v3269 = vld [vmem:[%s192 + $0xfe] sm:$0xff]
      %v3270 = vld [vmem:[%s192 + $0x106] sm:$0xff]
      %v3271 = vld [vmem:[%s192 + $0x10e] sm:$0xff]
      %v3272 = vld [vmem:[%s192 + $0x116] sm:$0xff]
      %v3273 = vld [vmem:[%s192 + $0x11e] sm:$0xff]
      %v3274 = vld [vmem:[%s192 + $0x126] sm:$0xff]
      %v3275 = vld [vmem:[%s192 + $0x12e] sm:$0xff]
      %v3276 = vld [vmem:[%s192 + $0x136] sm:$0xff]
      %v3277 = vld [vmem:[%s192 + $0x13e] sm:$0x3f]
      %v3278 = vpack.c.bf16 %v3243, %v3242
      %v3279 = vpack.c.bf16 %v3245, %v3244
      %v3280 = vpack.c.bf16 %v3247, %v3246
      %v3281 = vpack.c.bf16 %v3249, %v3248
      %v3282 = vpack.c.bf16 %v3251, %v3250
      %v3283 = vpack.c.bf16 %v3253, %v3252
      %v3284 = vpack.c.bf16 %v3255, %v3254
      %v3285 = vpack.c.bf16 %v3257, %v3256
      %v3286 = vpack.c.bf16 %v3259, %v3258
      %v3287 = vpack.c.bf16 %v3261, %v3260
      %v3288 = vpack.c.bf16 %v3263, %v3262
      %v3289 = vpack.c.bf16 %v3265, %v3264
      %v3290 = vpack.c.bf16 %v3267, %v3266
      %v3291 = vpack.c.bf16 %v3269, %v3268
      %v3292 = vpack.c.bf16 %v3271, %v3270
      %v3293 = vpack.c.bf16 %v3273, %v3272
      %v3294 = vpack.c.bf16 %v3275, %v3274
      %v3295 = vpack.c.bf16 %v3277, %v3276
      %s3296 = scalar_lea.vmem %s1, 128
      %v3297 = vld [vmem:[%s3296] sm:$0xf]
      %v3298 = vld [vmem:[%s3296 + $0x4] sm:$0xf]
      %v3299 = vld [vmem:[%s3296 + $0x8] sm:$0xf]
      %v3300 = vld [vmem:[%s3296 + $0xc] sm:$0xf]
      %v3305 = vunpack.c.l.b16 %v3297
      %v3306 = vunpack.c.l.b16 %v3298
      %v3307 = vunpack.c.l.b16 %v3299
      %v3308 = vunpack.c.l.b16 %v3300
      %v3309 = vpack.c.b16 %v3306, %v3305
      %v3310 = vpack.c.b16 %v3308, %v3307
      %v3314 = vsel %vm739, %v3278, 0
      %v3317 = vsel %vm739, %v3279, 0
      %v3320 = vsel %vm739, %v3280, 0
      %v3323 = vsel %vm739, %v3281, 0
      %v3326 = vsel %vm739, %v3282, 0
      %v3329 = vsel %vm739, %v3283, 0
      %v3332 = vsel %vm739, %v3284, 0
      %v3335 = vsel %vm739, %v3285, 0
      %v3338 = vsel %vm739, %v3286, 0
      %v3341 = vsel %vm739, %v3287, 0
      %v3344 = vsel %vm739, %v3288, 0
      %v3347 = vsel %vm739, %v3289, 0
      %v3350 = vsel %vm739, %v3290, 0
      %v3353 = vsel %vm739, %v3291, 0
      %v3356 = vsel %vm739, %v3292, 0
      %v3359 = vsel %vm739, %v3293, 0
      %v3362 = vsel %vm739, %v3294, 0
      %v3365 = vsel %vm739, %v3295, 0
      %3367 = vmatprep.subr.bf16.mxu0 0
      %3368 = vmatpush1.bf16.msra.mxu0 0
      %3369 = vmatprep.subr.bf16.mxu0 0
      %3370 = vmatpush1.bf16.msra.mxu0 0
      %3371 = vmatprep.subr.bf16.mxu0 0
      %3372 = vmatpush1.bf16.msra.mxu0 0
      %3373 = vmatprep.subr.bf16.mxu0 0
      %3374 = vmatpush1.bf16.msra.mxu0 0
      %3375 = vmatprep.subr.bf16.mxu0 0
      %3376 = vmatpush1.bf16.msra.mxu0 0
      %3377 = vmatprep.subr.bf16.mxu0 0
      %3378 = vmatpush1.bf16.msra.mxu0 0
      %3379 = vmatprep.subr.bf16.mxu0 0
      %3380 = vmatpush1.bf16.msra.mxu0 %v3310
      %3381 = vmatprep.subr.bf16.mxu0 0
      %3382 = vmatpush1.bf16.msra.mxu0 %v3309
      %3383 = vmatprep.subr.bf16.mxu0 0
      %3384 = vmatpush2.bf16.msra.mxu0 0
      %3385 = vmatprep.subr.bf16.mxu0 0
      %3386 = vmatpush2.bf16.msra.mxu0 0
      %3387 = vmatprep.subr.bf16.mxu0 0
      %3388 = vmatpush2.bf16.msra.mxu0 0
      %3389 = vmatprep.subr.bf16.mxu0 0
      %3390 = vmatpush2.bf16.msra.mxu0 0
      %3391 = vmatprep.subr.bf16.mxu0 0
      %3392 = vmatpush2.bf16.msra.mxu0 0
      %3393 = vmatprep.subr.bf16.mxu0 0
      %3394 = vmatpush2.bf16.msra.mxu0 0
      %3395 = vmatprep.subr.bf16.mxu0 0
      %3396 = vmatpush2.bf16.msra.mxu0 0
      %3397 = vmatprep.subr.bf16.mxu0 0
      %3398 = vmatpush2.bf16.msra.mxu0 0
      %3399 = vmatprep.mubr.bf16.mxu0 0
      %3400 = vmatmul.mubr.bf16.gmra.mxu0 %v3314
      %v3401 = vpop.f32.mrf.mxu0
      %v3402 = vadd.f32 0.0, %v3401
      %v3403 = vpop.f32.mrf.mxu0
      %v3404 = vpop.f32.mrf.mxu0
      %v3405 = vadd.f32 0.0, %v3404
      %v3406 = vpop.f32.mrf.mxu0
      %3407 = vmatprep.mubr.bf16.mxu0 0
      %3408 = vmatmul.mubr.bf16.gmra.mxu0 %v3317
      %v3409 = vpop.f32.mrf.mxu0
      %v3410 = vadd.f32 0.0, %v3409
      %v3411 = vpop.f32.mrf.mxu0
      %v3412 = vpop.f32.mrf.mxu0
      %v3413 = vadd.f32 0.0, %v3412
      %v3414 = vpop.f32.mrf.mxu0
      %3415 = vmatprep.mubr.bf16.mxu0 0
      %3416 = vmatmul.mubr.bf16.gmra.mxu0 %v3320
      %v3417 = vpop.f32.mrf.mxu0
      %v3418 = vadd.f32 0.0, %v3417
      %v3419 = vpop.f32.mrf.mxu0
      %v3420 = vpop.f32.mrf.mxu0
      %v3421 = vadd.f32 0.0, %v3420
      %v3422 = vpop.f32.mrf.mxu0
      %3423 = vmatprep.mubr.bf16.mxu0 0
      %3424 = vmatmul.mubr.bf16.gmra.mxu0 %v3323
      %v3425 = vpop.f32.mrf.mxu0
      %v3426 = vadd.f32 0.0, %v3425
      %v3427 = vpop.f32.mrf.mxu0
      %v3428 = vpop.f32.mrf.mxu0
      %v3429 = vadd.f32 0.0, %v3428
      %v3430 = vpop.f32.mrf.mxu0
      %3431 = vmatprep.mubr.bf16.mxu0 0
      %3432 = vmatmul.mubr.bf16.gmra.mxu0 %v3326
      %v3433 = vpop.f32.mrf.mxu0
      %v3434 = vadd.f32 0.0, %v3433
      %v3435 = vpop.f32.mrf.mxu0
      %v3436 = vpop.f32.mrf.mxu0
      %v3437 = vadd.f32 0.0, %v3436
      %v3438 = vpop.f32.mrf.mxu0
      %3439 = vmatprep.mubr.bf16.mxu0 0
      %3440 = vmatmul.mubr.bf16.gmra.mxu0 %v3329
      %v3441 = vpop.f32.mrf.mxu0
      %v3442 = vadd.f32 0.0, %v3441
      %v3443 = vpop.f32.mrf.mxu0
      %v3444 = vpop.f32.mrf.mxu0
      %v3445 = vadd.f32 0.0, %v3444
      %v3446 = vpop.f32.mrf.mxu0
      %3447 = vmatprep.mubr.bf16.mxu0 0
      %3448 = vmatmul.mubr.bf16.gmra.mxu0 %v3332
      %v3449 = vpop.f32.mrf.mxu0
      %v3450 = vadd.f32 0.0, %v3449
      %v3451 = vpop.f32.mrf.mxu0
      %v3452 = vpop.f32.mrf.mxu0
      %v3453 = vadd.f32 0.0, %v3452
      %v3454 = vpop.f32.mrf.mxu0
      %3455 = vmatprep.mubr.bf16.mxu0 0
      %3456 = vmatmul.mubr.bf16.gmra.mxu0 %v3335
      %v3457 = vpop.f32.mrf.mxu0
      %v3458 = vadd.f32 0.0, %v3457
      %v3459 = vpop.f32.mrf.mxu0
      %v3460 = vpop.f32.mrf.mxu0
      %v3461 = vadd.f32 0.0, %v3460
      %v3462 = vpop.f32.mrf.mxu0
      %3463 = vmatprep.mubr.bf16.mxu0 0
      %3464 = vmatmul.mubr.bf16.gmra.mxu0 %v3338
      %v3465 = vpop.f32.mrf.mxu0
      %v3466 = vadd.f32 0.0, %v3465
      %v3467 = vpop.f32.mrf.mxu0
      %v3468 = vpop.f32.mrf.mxu0
      %v3469 = vadd.f32 0.0, %v3468
      %v3470 = vpop.f32.mrf.mxu0
      %3471 = vmatprep.mubr.bf16.mxu0 0
      %3472 = vmatmul.mubr.bf16.gmra.mxu0 %v3341
      %v3473 = vpop.f32.mrf.mxu0
      %v3474 = vadd.f32 0.0, %v3473
      %v3475 = vpop.f32.mrf.mxu0
      %v3476 = vpop.f32.mrf.mxu0
      %v3477 = vadd.f32 0.0, %v3476
      %v3478 = vpop.f32.mrf.mxu0
      %3479 = vmatprep.mubr.bf16.mxu0 0
      %3480 = vmatmul.mubr.bf16.gmra.mxu0 %v3344
      %v3481 = vpop.f32.mrf.mxu0
      %v3482 = vadd.f32 0.0, %v3481
      %v3483 = vpop.f32.mrf.mxu0
      %v3484 = vpop.f32.mrf.mxu0
      %v3485 = vadd.f32 0.0, %v3484
      %v3486 = vpop.f32.mrf.mxu0
      %3487 = vmatprep.mubr.bf16.mxu0 0
      %3488 = vmatmul.mubr.bf16.gmra.mxu0 %v3347
      %v3489 = vpop.f32.mrf.mxu0
      %v3490 = vadd.f32 0.0, %v3489
      %v3491 = vpop.f32.mrf.mxu0
      %v3492 = vpop.f32.mrf.mxu0
      %v3493 = vadd.f32 0.0, %v3492
      %v3494 = vpop.f32.mrf.mxu0
      %3495 = vmatprep.mubr.bf16.mxu0 0
      %3496 = vmatmul.mubr.bf16.gmra.mxu0 %v3350
      %v3497 = vpop.f32.mrf.mxu0
      %v3498 = vadd.f32 0.0, %v3497
      %v3499 = vpop.f32.mrf.mxu0
      %v3500 = vpop.f32.mrf.mxu0
      %v3501 = vadd.f32 0.0, %v3500
      %v3502 = vpop.f32.mrf.mxu0
      %3503 = vmatprep.mubr.bf16.mxu0 0
      %3504 = vmatmul.mubr.bf16.gmra.mxu0 %v3353
      %v3505 = vpop.f32.mrf.mxu0
      %v3506 = vadd.f32 0.0, %v3505
      %v3507 = vpop.f32.mrf.mxu0
      %v3508 = vpop.f32.mrf.mxu0
      %v3509 = vadd.f32 0.0, %v3508
      %v3510 = vpop.f32.mrf.mxu0
      %3511 = vmatprep.mubr.bf16.mxu0 0
      %3512 = vmatmul.mubr.bf16.gmra.mxu0 %v3356
      %v3513 = vpop.f32.mrf.mxu0
      %v3514 = vadd.f32 0.0, %v3513
      %v3515 = vpop.f32.mrf.mxu0
      %v3516 = vpop.f32.mrf.mxu0
      %v3517 = vadd.f32 0.0, %v3516
      %v3518 = vpop.f32.mrf.mxu0
      %3519 = vmatprep.mubr.bf16.mxu0 0
      %3520 = vmatmul.mubr.bf16.gmra.mxu0 %v3359
      %v3521 = vpop.f32.mrf.mxu0
      %v3522 = vadd.f32 0.0, %v3521
      %v3523 = vpop.f32.mrf.mxu0
      %v3524 = vpop.f32.mrf.mxu0
      %v3525 = vadd.f32 0.0, %v3524
      %v3526 = vpop.f32.mrf.mxu0
      %3527 = vmatprep.mubr.bf16.mxu0 0
      %3528 = vmatmul.mubr.bf16.gmra.mxu0 %v3362
      %v3529 = vpop.f32.mrf.mxu0
      %v3530 = vadd.f32 0.0, %v3529
      %v3531 = vpop.f32.mrf.mxu0
      %v3532 = vpop.f32.mrf.mxu0
      %v3533 = vadd.f32 0.0, %v3532
      %v3534 = vpop.f32.mrf.mxu0
      %3535 = vmatprep.mubr.bf16.mxu0 0
      %3536 = vmatmul.mubr.bf16.gmra.mxu0 %v3365
      %v3537 = vpop.f32.mrf.mxu0
      %v3538 = vadd.f32 0.0, %v3537
      %v3539 = vpop.f32.mrf.mxu0
      %v3540 = vpop.f32.mrf.mxu0
      %v3541 = vadd.f32 0.0, %v3540
      %v3542 = vpop.f32.mrf.mxu0
      %3543 = vdwg.mxu0
      %v3544 = vadd.f32 %v3206, %v3402
      %v3545 = vadd.f32 %v3207, %v3405
      %v3546 = vadd.f32 %v3208, %v3410
      %v3547 = vadd.f32 %v3209, %v3413
      %v3548 = vadd.f32 %v3210, %v3418
      %v3549 = vadd.f32 %v3211, %v3421
      %v3550 = vadd.f32 %v3212, %v3426
      %v3551 = vadd.f32 %v3213, %v3429
      %v3552 = vadd.f32 %v3214, %v3434
      %v3553 = vadd.f32 %v3215, %v3437
      %v3554 = vadd.f32 %v3216, %v3442
      %v3555 = vadd.f32 %v3217, %v3445
      %v3556 = vadd.f32 %v3218, %v3450
      %v3557 = vadd.f32 %v3219, %v3453
      %v3558 = vadd.f32 %v3220, %v3458
      %v3559 = vadd.f32 %v3221, %v3461
      %v3560 = vadd.f32 %v3222, %v3466
      %v3561 = vadd.f32 %v3223, %v3469
      %v3562 = vadd.f32 %v3224, %v3474
      %v3563 = vadd.f32 %v3225, %v3477
      %v3564 = vadd.f32 %v3226, %v3482
      %v3565 = vadd.f32 %v3227, %v3485
      %v3566 = vadd.f32 %v3228, %v3490
      %v3567 = vadd.f32 %v3229, %v3493
      %v3568 = vadd.f32 %v3230, %v3498
      %v3569 = vadd.f32 %v3231, %v3501
      %v3570 = vadd.f32 %v3232, %v3506
      %v3571 = vadd.f32 %v3233, %v3509
      %v3572 = vadd.f32 %v3234, %v3514
      %v3573 = vadd.f32 %v3235, %v3517
      %v3574 = vadd.f32 %v3236, %v3522
      %v3575 = vadd.f32 %v3237, %v3525
      %v3576 = vadd.f32 %v3238, %v3530
      %v3577 = vadd.f32 %v3239, %v3533
      %v3578 = vadd.f32 %v3240, %v3538
      %v3579 = vadd.f32 %v3241, %v3541
      %v3580 = vlaneseq
      %v3581 = vshrl.u32 %v3580, 7
      %v3582 = vsub.s32 0, %v3581
      %v3583 = vrot.slane %v609, %v3582
      %v3584 = vadd.f32 %v3544, %v3583
      %v3585 = vadd.f32 %v3545, %v3583
      %v3586 = vadd.f32 %v3546, %v3583
      %v3587 = vadd.f32 %v3547, %v3583
      %v3588 = vadd.f32 %v3548, %v3583
      %v3589 = vadd.f32 %v3549, %v3583
      %v3590 = vadd.f32 %v3550, %v3583
      %v3591 = vadd.f32 %v3551, %v3583
      %v3592 = vadd.f32 %v3552, %v3583
      %v3593 = vadd.f32 %v3553, %v3583
      %v3594 = vadd.f32 %v3554, %v3583
      %v3595 = vadd.f32 %v3555, %v3583
      %v3596 = vadd.f32 %v3556, %v3583
      %v3597 = vadd.f32 %v3557, %v3583
      %v3598 = vadd.f32 %v3558, %v3583
      %v3599 = vadd.f32 %v3559, %v3583
      %v3600 = vadd.f32 %v3560, %v3583
      %v3601 = vadd.f32 %v3561, %v3583
      %v3602 = vadd.f32 %v3562, %v3583
      %v3603 = vadd.f32 %v3563, %v3583
      %v3604 = vadd.f32 %v3564, %v3583
      %v3605 = vadd.f32 %v3565, %v3583
      %v3606 = vadd.f32 %v3566, %v3583
      %v3607 = vadd.f32 %v3567, %v3583
      %v3608 = vadd.f32 %v3568, %v3583
      %v3609 = vadd.f32 %v3569, %v3583
      %v3610 = vadd.f32 %v3570, %v3583
      %v3611 = vadd.f32 %v3571, %v3583
      %v3612 = vadd.f32 %v3572, %v3583
      %v3613 = vadd.f32 %v3573, %v3583
      %v3614 = vadd.f32 %v3574, %v3583
      %v3615 = vadd.f32 %v3575, %v3583
      %v3616 = vadd.f32 %v3576, %v3583
      %v3617 = vadd.f32 %v3577, %v3583
      %v3618 = vadd.f32 %v3578, %v3583
      %v3619 = vadd.f32 %v3579, %v3583
      %v3620 = vmul.f32 %v3584, %v560
      %v3621 = vmul.f32 %v3585, %v561
      %v3622 = vmul.f32 %v3586, %v562
      %v3623 = vmul.f32 %v3587, %v563
      %v3624 = vmul.f32 %v3588, %v564
      %v3625 = vmul.f32 %v3589, %v565
      %v3626 = vmul.f32 %v3590, %v566
      %v3627 = vmul.f32 %v3591, %v567
      %v3628 = vmul.f32 %v3592, %v568
      %v3629 = vmul.f32 %v3593, %v569
      %v3630 = vmul.f32 %v3594, %v570
      %v3631 = vmul.f32 %v3595, %v571
      %v3632 = vmul.f32 %v3596, %v572
      %v3633 = vmul.f32 %v3597, %v573
      %v3634 = vmul.f32 %v3598, %v574
      %v3635 = vmul.f32 %v3599, %v575
      %v3636 = vmul.f32 %v3600, %v576
      %v3637 = vmul.f32 %v3601, %v577
      %v3638 = vmul.f32 %v3602, %v578
      %v3639 = vmul.f32 %v3603, %v579
      %v3640 = vmul.f32 %v3604, %v580
      %v3641 = vmul.f32 %v3605, %v581
      %v3642 = vmul.f32 %v3606, %v582
      %v3643 = vmul.f32 %v3607, %v583
      %v3644 = vmul.f32 %v3608, %v584
      %v3645 = vmul.f32 %v3609, %v585
      %v3646 = vmul.f32 %v3610, %v586
      %v3647 = vmul.f32 %v3611, %v587
      %v3648 = vmul.f32 %v3612, %v588
      %v3649 = vmul.f32 %v3613, %v589
      %v3650 = vmul.f32 %v3614, %v590
      %v3651 = vmul.f32 %v3615, %v591
      %v3652 = vmul.f32 %v3616, %v592
      %v3653 = vmul.f32 %v3617, %v593
      %v3654 = vmul.f32 %v3618, %v594
      %v3655 = vmul.f32 %v3619, %v595
      %vm3656 = vcmask 130048
      %v3657 = vsel %vm3656, %v3620, 0.0
      %v3658 = vsel %vm3656, %v3621, 0.0
      %v3659 = vadd.f32 %v3657, %v3658
      %v3660 = vsel %vm3656, %v3622, 0.0
      %v3661 = vadd.f32 %v3659, %v3660
      %v3662 = vsel %vm3656, %v3623, 0.0
      %v3663 = vadd.f32 %v3661, %v3662
      %v3664 = vsel %vm3656, %v3624, 0.0
      %v3665 = vadd.f32 %v3663, %v3664
      %v3666 = vsel %vm3656, %v3625, 0.0
      %v3667 = vadd.f32 %v3665, %v3666
      %v3668 = vsel %vm3656, %v3626, 0.0
      %v3669 = vadd.f32 %v3667, %v3668
      %v3670 = vsel %vm3656, %v3627, 0.0
      %v3671 = vadd.f32 %v3669, %v3670
      %v3672 = vsel %vm3656, %v3628, 0.0
      %v3673 = vadd.f32 %v3671, %v3672
      %v3674 = vsel %vm3656, %v3629, 0.0
      %v3675 = vadd.f32 %v3673, %v3674
      %v3676 = vsel %vm3656, %v3630, 0.0
      %v3677 = vadd.f32 %v3675, %v3676
      %v3678 = vsel %vm3656, %v3631, 0.0
      %v3679 = vadd.f32 %v3677, %v3678
      %v3680 = vsel %vm3656, %v3632, 0.0
      %v3681 = vadd.f32 %v3679, %v3680
      %v3682 = vsel %vm3656, %v3633, 0.0
      %v3683 = vadd.f32 %v3681, %v3682
      %v3684 = vsel %vm3656, %v3634, 0.0
      %v3685 = vadd.f32 %v3683, %v3684
      %v3686 = vsel %vm3656, %v3635, 0.0
      %v3687 = vadd.f32 %v3685, %v3686
      %v3688 = vsel %vm3656, %v3636, 0.0
      %v3689 = vadd.f32 %v3687, %v3688
      %v3690 = vsel %vm3656, %v3637, 0.0
      %v3691 = vadd.f32 %v3689, %v3690
      %v3692 = vsel %vm3656, %v3638, 0.0
      %v3693 = vadd.f32 %v3691, %v3692
      %v3694 = vsel %vm3656, %v3639, 0.0
      %v3695 = vadd.f32 %v3693, %v3694
      %v3696 = vsel %vm3656, %v3640, 0.0
      %v3697 = vadd.f32 %v3695, %v3696
      %v3698 = vsel %vm3656, %v3641, 0.0
      %v3699 = vadd.f32 %v3697, %v3698
      %v3700 = vsel %vm3656, %v3642, 0.0
      %v3701 = vadd.f32 %v3699, %v3700
      %v3702 = vsel %vm3656, %v3643, 0.0
      %v3703 = vadd.f32 %v3701, %v3702
      %v3704 = vsel %vm3656, %v3644, 0.0
      %v3705 = vadd.f32 %v3703, %v3704
      %v3706 = vsel %vm3656, %v3645, 0.0
      %v3707 = vadd.f32 %v3705, %v3706
      %v3708 = vsel %vm3656, %v3646, 0.0
      %v3709 = vadd.f32 %v3707, %v3708
      %v3710 = vsel %vm3656, %v3647, 0.0
      %v3711 = vadd.f32 %v3709, %v3710
      %v3712 = vsel %vm3656, %v3648, 0.0
      %v3713 = vadd.f32 %v3711, %v3712
      %v3714 = vsel %vm3656, %v3649, 0.0
      %v3715 = vadd.f32 %v3713, %v3714
      %v3716 = vsel %vm3656, %v3650, 0.0
      %v3717 = vadd.f32 %v3715, %v3716
      %v3718 = vsel %vm3656, %v3651, 0.0
      %v3719 = vadd.f32 %v3717, %v3718
      %v3720 = vsel %vm3656, %v3652, 0.0
      %v3721 = vadd.f32 %v3719, %v3720
      %v3722 = vsel %vm3656, %v3653, 0.0
      %v3723 = vadd.f32 %v3721, %v3722
      %v3724 = vsel %vm3656, %v3654, 0.0
      %v3725 = vadd.f32 %v3723, %v3724
      %vm3726 = vcmask 128000
      %v3727 = vsel %vm3726, %v3655, 0.0
      %v3728 = vadd.f32 %v3725, %v3727
      %v3729 = vrot.slane %v3728, 4
      %v3730 = vadd.f32 %v3728, %v3729
      %v3731 = vrot.slane %v3730, 2
      %v3732 = vadd.f32 %v3730, %v3731
      %v3733 = vrot.slane %v3732, 1
      %v3734 = vadd.f32 %v3732, %v3733
      %v3735 = vmul.f32 %v3620, %v3620
      %v3736 = vmul.f32 %v3621, %v3621
      %v3737 = vmul.f32 %v3622, %v3622
      %v3738 = vmul.f32 %v3623, %v3623
      %v3739 = vmul.f32 %v3624, %v3624
      %v3740 = vmul.f32 %v3625, %v3625
      %v3741 = vmul.f32 %v3626, %v3626
      %v3742 = vmul.f32 %v3627, %v3627
      %v3743 = vmul.f32 %v3628, %v3628
      %v3744 = vmul.f32 %v3629, %v3629
      %v3745 = vmul.f32 %v3630, %v3630
      %v3746 = vmul.f32 %v3631, %v3631
      %v3747 = vmul.f32 %v3632, %v3632
      %v3748 = vmul.f32 %v3633, %v3633
      %v3749 = vmul.f32 %v3634, %v3634
      %v3750 = vmul.f32 %v3635, %v3635
      %v3751 = vmul.f32 %v3636, %v3636
      %v3752 = vmul.f32 %v3637, %v3637
      %v3753 = vmul.f32 %v3638, %v3638
      %v3754 = vmul.f32 %v3639, %v3639
      %v3755 = vmul.f32 %v3640, %v3640
      %v3756 = vmul.f32 %v3641, %v3641
      %v3757 = vmul.f32 %v3642, %v3642
      %v3758 = vmul.f32 %v3643, %v3643
      %v3759 = vmul.f32 %v3644, %v3644
      %v3760 = vmul.f32 %v3645, %v3645
      %v3761 = vmul.f32 %v3646, %v3646
      %v3762 = vmul.f32 %v3647, %v3647
      %v3763 = vmul.f32 %v3648, %v3648
      %v3764 = vmul.f32 %v3649, %v3649
      %v3765 = vmul.f32 %v3650, %v3650
      %v3766 = vmul.f32 %v3651, %v3651
      %v3767 = vmul.f32 %v3652, %v3652
      %v3768 = vmul.f32 %v3653, %v3653
      %v3769 = vmul.f32 %v3654, %v3654
      %v3770 = vmul.f32 %v3655, %v3655
      %v3771 = vsel %vm3656, %v3735, 0.0
      %v3772 = vsel %vm3656, %v3736, 0.0
      %v3773 = vadd.f32 %v3771, %v3772
      %v3774 = vsel %vm3656, %v3737, 0.0
      %v3775 = vadd.f32 %v3773, %v3774
      %v3776 = vsel %vm3656, %v3738, 0.0
      %v3777 = vadd.f32 %v3775, %v3776
      %v3778 = vsel %vm3656, %v3739, 0.0
      %v3779 = vadd.f32 %v3777, %v3778
      %v3780 = vsel %vm3656, %v3740, 0.0
      %v3781 = vadd.f32 %v3779, %v3780
      %v3782 = vsel %vm3656, %v3741, 0.0
      %v3783 = vadd.f32 %v3781, %v3782
      %v3784 = vsel %vm3656, %v3742, 0.0
      %v3785 = vadd.f32 %v3783, %v3784
      %v3786 = vsel %vm3656, %v3743, 0.0
      %v3787 = vadd.f32 %v3785, %v3786
      %v3788 = vsel %vm3656, %v3744, 0.0
      %v3789 = vadd.f32 %v3787, %v3788
      %v3790 = vsel %vm3656, %v3745, 0.0
      %v3791 = vadd.f32 %v3789, %v3790
      %v3792 = vsel %vm3656, %v3746, 0.0
      %v3793 = vadd.f32 %v3791, %v3792
      %v3794 = vsel %vm3656, %v3747, 0.0
      %v3795 = vadd.f32 %v3793, %v3794
      %v3796 = vsel %vm3656, %v3748, 0.0
      %v3797 = vadd.f32 %v3795, %v3796
      %v3798 = vsel %vm3656, %v3749, 0.0
      %v3799 = vadd.f32 %v3797, %v3798
      %v3800 = vsel %vm3656, %v3750, 0.0
      %v3801 = vadd.f32 %v3799, %v3800
      %v3802 = vsel %vm3656, %v3751, 0.0
      %v3803 = vadd.f32 %v3801, %v3802
      %v3804 = vsel %vm3656, %v3752, 0.0
      %v3805 = vadd.f32 %v3803, %v3804
      %v3806 = vsel %vm3656, %v3753, 0.0
      %v3807 = vadd.f32 %v3805, %v3806
      %v3808 = vsel %vm3656, %v3754, 0.0
      %v3809 = vadd.f32 %v3807, %v3808
      %v3810 = vsel %vm3656, %v3755, 0.0
      %v3811 = vadd.f32 %v3809, %v3810
      %v3812 = vsel %vm3656, %v3756, 0.0
      %v3813 = vadd.f32 %v3811, %v3812
      %v3814 = vsel %vm3656, %v3757, 0.0
      %v3815 = vadd.f32 %v3813, %v3814
      %v3816 = vsel %vm3656, %v3758, 0.0
      %v3817 = vadd.f32 %v3815, %v3816
      %v3818 = vsel %vm3656, %v3759, 0.0
      %v3819 = vadd.f32 %v3817, %v3818
      %v3820 = vsel %vm3656, %v3760, 0.0
      %v3821 = vadd.f32 %v3819, %v3820
      %v3822 = vsel %vm3656, %v3761, 0.0
      %v3823 = vadd.f32 %v3821, %v3822
      %v3824 = vsel %vm3656, %v3762, 0.0
      %v3825 = vadd.f32 %v3823, %v3824
      %v3826 = vsel %vm3656, %v3763, 0.0
      %v3827 = vadd.f32 %v3825, %v3826
      %v3828 = vsel %vm3656, %v3764, 0.0
      %v3829 = vadd.f32 %v3827, %v3828
      %v3830 = vsel %vm3656, %v3765, 0.0
      %v3831 = vadd.f32 %v3829, %v3830
      %v3832 = vsel %vm3656, %v3766, 0.0
      %v3833 = vadd.f32 %v3831, %v3832
      %v3834 = vsel %vm3656, %v3767, 0.0
      %v3835 = vadd.f32 %v3833, %v3834
      %v3836 = vsel %vm3656, %v3768, 0.0
      %v3837 = vadd.f32 %v3835, %v3836
      %v3838 = vsel %vm3656, %v3769, 0.0
      %v3839 = vadd.f32 %v3837, %v3838
      %v3840 = vsel %vm3726, %v3770, 0.0
      %v3841 = vadd.f32 %v3839, %v3840
      %v3842 = vrot.slane %v3841, 4
      %v3843 = vadd.f32 %v3841, %v3842
      %v3844 = vrot.slane %v3843, 2
      %v3845 = vadd.f32 %v3843, %v3844
      %v3846 = vrot.slane %v3845, 1
      %v3847 = vadd.f32 %v3845, %v3846
      %v3849 = vsel %vm3656, %v3734, 0
      %3851 = vmatprep.subr.mxu0 0.0
      %3852 = vmatpush1.msra.mxu0 0.0
      %3853 = vmatprep.subr.mxu0 0.0
      %3854 = vmatpush1.msra.mxu0 0.0
      %3855 = vmatprep.subr.mxu0 0.0
      %3856 = vmatpush1.msra.mxu0 0.0
      %3857 = vmatprep.subr.mxu0 0.0
      %3858 = vmatpush1.msra.mxu0 0.0
      %3859 = vmatprep.subr.mxu0 0.0
      %3860 = vmatpush1.msra.mxu0 0.0
      %3861 = vmatprep.subr.mxu0 0.0
      %3862 = vmatpush1.msra.mxu0 0.0
      %3863 = vmatprep.subr.mxu0 0.0
      %3864 = vmatpush1.msra.mxu0 0.0
      %3865 = vmatprep.subr.mxu0 0.0
      %3866 = vmatpush1.msra.mxu0 0.0
      %3867 = vmatprep.subr.mxu0 0.0
      %3868 = vmatpush1.msra.mxu0 0.0
      %3869 = vmatprep.subr.mxu0 0.0
      %3870 = vmatpush1.msra.mxu0 0.0
      %3871 = vmatprep.subr.mxu0 0.0
      %3872 = vmatpush1.msra.mxu0 0.0
      %3873 = vmatprep.subr.mxu0 0.0
      %3874 = vmatpush1.msra.mxu0 0.0
      %3875 = vmatprep.subr.mxu0 0.0
      %3876 = vmatpush1.msra.mxu0 0.0
      %3877 = vmatprep.subr.mxu0 0.0
      %3878 = vmatpush1.msra.mxu0 0.0
      %3879 = vmatprep.subr.mxu0 0.0
      %3880 = vmatpush1.msra.mxu0 %v608
      %3881 = vmatprep.subr.mxu0 0.0
      %3882 = vmatpush1.msra.mxu0 %v607
      %3883 = vmatprep.subr.mxu0 0.0
      %3884 = vmatpush2.msra.mxu0 0.0
      %3885 = vmatprep.subr.mxu0 0.0
      %3886 = vmatpush2.msra.mxu0 0.0
      %3887 = vmatprep.subr.mxu0 0.0
      %3888 = vmatpush2.msra.mxu0 0.0
      %3889 = vmatprep.subr.mxu0 0.0
      %3890 = vmatpush2.msra.mxu0 0.0
      %3891 = vmatprep.subr.mxu0 0.0
      %3892 = vmatpush2.msra.mxu0 0.0
      %3893 = vmatprep.subr.mxu0 0.0
      %3894 = vmatpush2.msra.mxu0 0.0
      %3895 = vmatprep.subr.mxu0 0.0
      %3896 = vmatpush2.msra.mxu0 0.0
      %3897 = vmatprep.subr.mxu0 0.0
      %3898 = vmatpush2.msra.mxu0 0.0
      %3899 = vmatprep.subr.mxu0 0.0
      %3900 = vmatpush2.msra.mxu0 0.0
      %3901 = vmatprep.subr.mxu0 0.0
      %3902 = vmatpush2.msra.mxu0 0.0
      %3903 = vmatprep.subr.mxu0 0.0
      %3904 = vmatpush2.msra.mxu0 0.0
      %3905 = vmatprep.subr.mxu0 0.0
      %3906 = vmatpush2.msra.mxu0 0.0
      %3907 = vmatprep.subr.mxu0 0.0
      %3908 = vmatpush2.msra.mxu0 0.0
      %3909 = vmatprep.subr.mxu0 0.0
      %3910 = vmatpush2.msra.mxu0 0.0
      %3911 = vmatprep.subr.mxu0 0.0
      %3912 = vmatpush2.msra.mxu0 0.0
      %3913 = vmatprep.subr.mxu0 0.0
      %3914 = vmatpush2.msra.mxu0 0.0
      %3915 = vmatprep.mubr.f32.mxu0 0.0
      %3916 = vmatmul.mubr.f32.gmra.mxu0 %v3849
      %v3917 = vpop.f32.mrf.mxu0
      %v3918 = vadd.f32 0.0, %v3917
      %v3919 = vpop.f32.mrf.mxu0
      %3920 = vdwg.mxu0
      %v3922 = vsel %vm3656, %v3847, 0
      %3924 = vmatprep.subr.mxu0 0.0
      %3925 = vmatpush1.msra.mxu0 0.0
      %3926 = vmatprep.subr.mxu0 0.0
      %3927 = vmatpush1.msra.mxu0 0.0
      %3928 = vmatprep.subr.mxu0 0.0
      %3929 = vmatpush1.msra.mxu0 0.0
      %3930 = vmatprep.subr.mxu0 0.0
      %3931 = vmatpush1.msra.mxu0 0.0
      %3932 = vmatprep.subr.mxu0 0.0
      %3933 = vmatpush1.msra.mxu0 0.0
      %3934 = vmatprep.subr.mxu0 0.0
      %3935 = vmatpush1.msra.mxu0 0.0
      %3936 = vmatprep.subr.mxu0 0.0
      %3937 = vmatpush1.msra.mxu0 0.0
      %3938 = vmatprep.subr.mxu0 0.0
      %3939 = vmatpush1.msra.mxu0 0.0
      %3940 = vmatprep.subr.mxu0 0.0
      %3941 = vmatpush1.msra.mxu0 0.0
      %3942 = vmatprep.subr.mxu0 0.0
      %3943 = vmatpush1.msra.mxu0 0.0
      %3944 = vmatprep.subr.mxu0 0.0
      %3945 = vmatpush1.msra.mxu0 0.0
      %3946 = vmatprep.subr.mxu0 0.0
      %3947 = vmatpush1.msra.mxu0 0.0
      %3948 = vmatprep.subr.mxu0 0.0
      %3949 = vmatpush1.msra.mxu0 0.0
      %3950 = vmatprep.subr.mxu0 0.0
      %3951 = vmatpush1.msra.mxu0 0.0
      %3952 = vmatprep.subr.mxu0 0.0
      %3953 = vmatpush1.msra.mxu0 %v608
      %3954 = vmatprep.subr.mxu0 0.0
      %3955 = vmatpush1.msra.mxu0 %v607
      %3956 = vmatprep.subr.mxu0 0.0
      %3957 = vmatpush2.msra.mxu0 0.0
      %3958 = vmatprep.subr.mxu0 0.0
      %3959 = vmatpush2.msra.mxu0 0.0
      %3960 = vmatprep.subr.mxu0 0.0
      %3961 = vmatpush2.msra.mxu0 0.0
      %3962 = vmatprep.subr.mxu0 0.0
      %3963 = vmatpush2.msra.mxu0 0.0
      %3964 = vmatprep.subr.mxu0 0.0
      %3965 = vmatpush2.msra.mxu0 0.0
      %3966 = vmatprep.subr.mxu0 0.0
      %3967 = vmatpush2.msra.mxu0 0.0
      %3968 = vmatprep.subr.mxu0 0.0
      %3969 = vmatpush2.msra.mxu0 0.0
      %3970 = vmatprep.subr.mxu0 0.0
      %3971 = vmatpush2.msra.mxu0 0.0
      %3972 = vmatprep.subr.mxu0 0.0
      %3973 = vmatpush2.msra.mxu0 0.0
      %3974 = vmatprep.subr.mxu0 0.0
      %3975 = vmatpush2.msra.mxu0 0.0
      %3976 = vmatprep.subr.mxu0 0.0
      %3977 = vmatpush2.msra.mxu0 0.0
      %3978 = vmatprep.subr.mxu0 0.0
      %3979 = vmatpush2.msra.mxu0 0.0
      %3980 = vmatprep.subr.mxu0 0.0
      %3981 = vmatpush2.msra.mxu0 0.0
      %3982 = vmatprep.subr.mxu0 0.0
      %3983 = vmatpush2.msra.mxu0 0.0
      %3984 = vmatprep.subr.mxu0 0.0
      %3985 = vmatpush2.msra.mxu0 0.0
      %3986 = vmatprep.subr.mxu0 0.0
      %3987 = vmatpush2.msra.mxu0 0.0
      %3988 = vmatprep.mubr.f32.mxu0 0.0
      %3989 = vmatmul.mubr.f32.gmra.mxu0 %v3922
      %v3990 = vpop.f32.mrf.mxu0
      %v3991 = vadd.f32 0.0, %v3990
      %v3992 = vpop.f32.mrf.mxu0
      %3993 = vdwg.mxu0
      %v3994 = vmul.f32 %v3918, %v3918
      %v3995 = vsub.f32 %v3991, %v3994
      %v3996 = vadd.f32 %v3995, 1e-05
      %v3997 = vrsqrt.pop %v3996
      %v3998 = vlaneseq
      %v3999 = vshrl.u32 %v3998, 7
      %v4000 = vsub.s32 0, %v3999
      %v4001 = vrot.slane %v3918, %v4000
      %v4002 = vsub.f32 %v3584, %v4001
      %v4003 = vsub.f32 %v3585, %v4001
      %v4004 = vsub.f32 %v3586, %v4001
      %v4005 = vsub.f32 %v3587, %v4001
      %v4006 = vsub.f32 %v3588, %v4001
      %v4007 = vsub.f32 %v3589, %v4001
      %v4008 = vsub.f32 %v3590, %v4001
      %v4009 = vsub.f32 %v3591, %v4001
      %v4010 = vsub.f32 %v3592, %v4001
      %v4011 = vsub.f32 %v3593, %v4001
      %v4012 = vsub.f32 %v3594, %v4001
      %v4013 = vsub.f32 %v3595, %v4001
      %v4014 = vsub.f32 %v3596, %v4001
      %v4015 = vsub.f32 %v3597, %v4001
      %v4016 = vsub.f32 %v3598, %v4001
      %v4017 = vsub.f32 %v3599, %v4001
      %v4018 = vsub.f32 %v3600, %v4001
      %v4019 = vsub.f32 %v3601, %v4001
      %v4020 = vsub.f32 %v3602, %v4001
      %v4021 = vsub.f32 %v3603, %v4001
      %v4022 = vsub.f32 %v3604, %v4001
      %v4023 = vsub.f32 %v3605, %v4001
      %v4024 = vsub.f32 %v3606, %v4001
      %v4025 = vsub.f32 %v3607, %v4001
      %v4026 = vsub.f32 %v3608, %v4001
      %v4027 = vsub.f32 %v3609, %v4001
      %v4028 = vsub.f32 %v3610, %v4001
      %v4029 = vsub.f32 %v3611, %v4001
      %v4030 = vsub.f32 %v3612, %v4001
      %v4031 = vsub.f32 %v3613, %v4001
      %v4032 = vsub.f32 %v3614, %v4001
      %v4033 = vsub.f32 %v3615, %v4001
      %v4034 = vsub.f32 %v3616, %v4001
      %v4035 = vsub.f32 %v3617, %v4001
      %v4036 = vsub.f32 %v3618, %v4001
      %v4037 = vsub.f32 %v3619, %v4001
      %v4039 = vrot.slane %v609, 1
      %v4041 = vmul.f32 %v3997, %v4039
      %v4042 = vlaneseq
      %v4043 = vshrl.u32 %v4042, 7
      %v4044 = vsub.s32 0, %v4043
      %v4045 = vrot.slane %v4041, %v4044
      %v4046 = vmul.f32 %v4002, %v4045
      %v4047 = vmul.f32 %v4003, %v4045
      %v4048 = vmul.f32 %v4004, %v4045
      %v4049 = vmul.f32 %v4005, %v4045
      %v4050 = vmul.f32 %v4006, %v4045
      %v4051 = vmul.f32 %v4007, %v4045
      %v4052 = vmul.f32 %v4008, %v4045
      %v4053 = vmul.f32 %v4009, %v4045
      %v4054 = vmul.f32 %v4010, %v4045
      %v4055 = vmul.f32 %v4011, %v4045
      %v4056 = vmul.f32 %v4012, %v4045
      %v4057 = vmul.f32 %v4013, %v4045
      %v4058 = vmul.f32 %v4014, %v4045
      %v4059 = vmul.f32 %v4015, %v4045
      %v4060 = vmul.f32 %v4016, %v4045
      %v4061 = vmul.f32 %v4017, %v4045
      %v4062 = vmul.f32 %v4018, %v4045
      %v4063 = vmul.f32 %v4019, %v4045
      %v4064 = vmul.f32 %v4020, %v4045
      %v4065 = vmul.f32 %v4021, %v4045
      %v4066 = vmul.f32 %v4022, %v4045
      %v4067 = vmul.f32 %v4023, %v4045
      %v4068 = vmul.f32 %v4024, %v4045
      %v4069 = vmul.f32 %v4025, %v4045
      %v4070 = vmul.f32 %v4026, %v4045
      %v4071 = vmul.f32 %v4027, %v4045
      %v4072 = vmul.f32 %v4028, %v4045
      %v4073 = vmul.f32 %v4029, %v4045
      %v4074 = vmul.f32 %v4030, %v4045
      %v4075 = vmul.f32 %v4031, %v4045
      %v4076 = vmul.f32 %v4032, %v4045
      %v4077 = vmul.f32 %v4033, %v4045
      %v4078 = vmul.f32 %v4034, %v4045
      %v4079 = vmul.f32 %v4035, %v4045
      %v4080 = vmul.f32 %v4036, %v4045
      %v4081 = vmul.f32 %v4037, %v4045
      %v4082 = vlaneseq
      %v4083 = vshrl.u32 %v4082, 7
      %v4084 = vsub.s32 2, %v4083
      %v4085 = vrot.slane %v609, %v4084
      %v4086 = vadd.f32 %v4046, %v4085
      %v4087 = vadd.f32 %v4047, %v4085
      %v4088 = vadd.f32 %v4048, %v4085
      %v4089 = vadd.f32 %v4049, %v4085
      %v4090 = vadd.f32 %v4050, %v4085
      %v4091 = vadd.f32 %v4051, %v4085
      %v4092 = vadd.f32 %v4052, %v4085
      %v4093 = vadd.f32 %v4053, %v4085
      %v4094 = vadd.f32 %v4054, %v4085
      %v4095 = vadd.f32 %v4055, %v4085
      %v4096 = vadd.f32 %v4056, %v4085
      %v4097 = vadd.f32 %v4057, %v4085
      %v4098 = vadd.f32 %v4058, %v4085
      %v4099 = vadd.f32 %v4059, %v4085
      %v4100 = vadd.f32 %v4060, %v4085
      %v4101 = vadd.f32 %v4061, %v4085
      %v4102 = vadd.f32 %v4062, %v4085
      %v4103 = vadd.f32 %v4063, %v4085
      %v4104 = vadd.f32 %v4064, %v4085
      %v4105 = vadd.f32 %v4065, %v4085
      %v4106 = vadd.f32 %v4066, %v4085
      %v4107 = vadd.f32 %v4067, %v4085
      %v4108 = vadd.f32 %v4068, %v4085
      %v4109 = vadd.f32 %v4069, %v4085
      %v4110 = vadd.f32 %v4070, %v4085
      %v4111 = vadd.f32 %v4071, %v4085
      %v4112 = vadd.f32 %v4072, %v4085
      %v4113 = vadd.f32 %v4073, %v4085
      %v4114 = vadd.f32 %v4074, %v4085
      %v4115 = vadd.f32 %v4075, %v4085
      %v4116 = vadd.f32 %v4076, %v4085
      %v4117 = vadd.f32 %v4077, %v4085
      %v4118 = vadd.f32 %v4078, %v4085
      %v4119 = vadd.f32 %v4079, %v4085
      %v4120 = vadd.f32 %v4080, %v4085
      %v4121 = vadd.f32 %v4081, %v4085
      %v4122 = vmax.f32 %v4086, 0.0
      %v4123 = vmax.f32 %v4087, 0.0
      %v4124 = vmax.f32 %v4088, 0.0
      %v4125 = vmax.f32 %v4089, 0.0
      %v4126 = vmax.f32 %v4090, 0.0
      %v4127 = vmax.f32 %v4091, 0.0
      %v4128 = vmax.f32 %v4092, 0.0
      %v4129 = vmax.f32 %v4093, 0.0
      %v4130 = vmax.f32 %v4094, 0.0
      %v4131 = vmax.f32 %v4095, 0.0
      %v4132 = vmax.f32 %v4096, 0.0
      %v4133 = vmax.f32 %v4097, 0.0
      %v4134 = vmax.f32 %v4098, 0.0
      %v4135 = vmax.f32 %v4099, 0.0
      %v4136 = vmax.f32 %v4100, 0.0
      %v4137 = vmax.f32 %v4101, 0.0
      %v4138 = vmax.f32 %v4102, 0.0
      %v4139 = vmax.f32 %v4103, 0.0
      %v4140 = vmax.f32 %v4104, 0.0
      %v4141 = vmax.f32 %v4105, 0.0
      %v4142 = vmax.f32 %v4106, 0.0
      %v4143 = vmax.f32 %v4107, 0.0
      %v4144 = vmax.f32 %v4108, 0.0
      %v4145 = vmax.f32 %v4109, 0.0
      %v4146 = vmax.f32 %v4110, 0.0
      %v4147 = vmax.f32 %v4111, 0.0
      %v4148 = vmax.f32 %v4112, 0.0
      %v4149 = vmax.f32 %v4113, 0.0
      %v4150 = vmax.f32 %v4114, 0.0
      %v4151 = vmax.f32 %v4115, 0.0
      %v4152 = vmax.f32 %v4116, 0.0
      %v4153 = vmax.f32 %v4117, 0.0
      %v4154 = vmax.f32 %v4118, 0.0
      %v4155 = vmax.f32 %v4119, 0.0
      %v4156 = vmax.f32 %v4120, 0.0
      %v4157 = vmax.f32 %v4121, 0.0
      %v4158 = vmul.f32 %v4122, %v560
      %v4159 = vmul.f32 %v4123, %v561
      %v4160 = vmul.f32 %v4124, %v562
      %v4161 = vmul.f32 %v4125, %v563
      %v4162 = vmul.f32 %v4126, %v564
      %v4163 = vmul.f32 %v4127, %v565
      %v4164 = vmul.f32 %v4128, %v566
      %v4165 = vmul.f32 %v4129, %v567
      %v4166 = vmul.f32 %v4130, %v568
      %v4167 = vmul.f32 %v4131, %v569
      %v4168 = vmul.f32 %v4132, %v570
      %v4169 = vmul.f32 %v4133, %v571
      %v4170 = vmul.f32 %v4134, %v572
      %v4171 = vmul.f32 %v4135, %v573
      %v4172 = vmul.f32 %v4136, %v574
      %v4173 = vmul.f32 %v4137, %v575
      %v4174 = vmul.f32 %v4138, %v576
      %v4175 = vmul.f32 %v4139, %v577
      %v4176 = vmul.f32 %v4140, %v578
      %v4177 = vmul.f32 %v4141, %v579
      %v4178 = vmul.f32 %v4142, %v580
      %v4179 = vmul.f32 %v4143, %v581
      %v4180 = vmul.f32 %v4144, %v582
      %v4181 = vmul.f32 %v4145, %v583
      %v4182 = vmul.f32 %v4146, %v584
      %v4183 = vmul.f32 %v4147, %v585
      %v4184 = vmul.f32 %v4148, %v586
      %v4185 = vmul.f32 %v4149, %v587
      %v4186 = vmul.f32 %v4150, %v588
      %v4187 = vmul.f32 %v4151, %v589
      %v4188 = vmul.f32 %v4152, %v590
      %v4189 = vmul.f32 %v4153, %v591
      %v4190 = vmul.f32 %v4154, %v592
      %v4191 = vmul.f32 %v4155, %v593
      %v4192 = vmul.f32 %v4156, %v594
      %v4193 = vmul.f32 %v4157, %v595
      %4194 = vst.msk [vmem:[#allocation2] sm:$0xff] %vm3656, 0.0
      %4195 = vst.msk [vmem:[#allocation2 + $0x8] sm:$0xff] %vm3656, 0.0
      %4196 = vst.msk [vmem:[#allocation2 + $0x10] sm:$0xff] %vm3656, 0.0
      %4197 = vst.msk [vmem:[#allocation2 + $0x18] sm:$0xff] %vm3656, 0.0
      %4198 = vst.msk [vmem:[#allocation2 + $0x20] sm:$0xff] %vm3656, 0.0
      %4199 = vst.msk [vmem:[#allocation2 + $0x28] sm:$0xff] %vm3656, 0.0
      %4200 = vst.msk [vmem:[#allocation2 + $0x30] sm:$0xff] %vm3656, 0.0
      %4201 = vst.msk [vmem:[#allocation2 + $0x38] sm:$0xff] %vm3656, 0.0
      %4202 = vst.msk [vmem:[#allocation2 + $0x40] sm:$0xff] %vm3656, 0.0
      %4203 = vst.msk [vmem:[#allocation2 + $0x48] sm:$0xff] %vm3656, 0.0
      %4204 = vst.msk [vmem:[#allocation2 + $0x50] sm:$0xff] %vm3656, 0.0
      %4205 = vst.msk [vmem:[#allocation2 + $0x58] sm:$0xff] %vm3656, 0.0
      %4206 = vst.msk [vmem:[#allocation2 + $0x60] sm:$0xff] %vm3656, 0.0
      %4207 = vst.msk [vmem:[#allocation2 + $0x68] sm:$0xff] %vm3656, 0.0
      %4208 = vst.msk [vmem:[#allocation2 + $0x70] sm:$0xff] %vm3656, 0.0
      %4209 = vst.msk [vmem:[#allocation2 + $0x78] sm:$0xff] %vm3656, 0.0
      %4210 = vst.msk [vmem:[#allocation2 + $0x80] sm:$0xff] %vm3656, 0.0
      %4211 = vst.msk [vmem:[#allocation2 + $0x88] sm:$0xff] %vm3656, 0.0
      %4212 = vst.msk [vmem:[#allocation2 + $0x90] sm:$0xff] %vm3656, 0.0
      %4213 = vst.msk [vmem:[#allocation2 + $0x98] sm:$0xff] %vm3656, 0.0
      %4214 = vst.msk [vmem:[#allocation2 + $0xa0] sm:$0xff] %vm3656, 0.0
      %4215 = vst.msk [vmem:[#allocation2 + $0xa8] sm:$0xff] %vm3656, 0.0
      %4216 = vst.msk [vmem:[#allocation2 + $0xb0] sm:$0xff] %vm3656, 0.0
      %4217 = vst.msk [vmem:[#allocation2 + $0xb8] sm:$0xff] %vm3656, 0.0
      %4218 = vst.msk [vmem:[#allocation2 + $0xc0] sm:$0xff] %vm3656, 0.0
      %4219 = vst.msk [vmem:[#allocation2 + $0xc8] sm:$0xff] %vm3656, 0.0
      %4220 = vst.msk [vmem:[#allocation2 + $0xd0] sm:$0xff] %vm3656, 0.0
      %4221 = vst.msk [vmem:[#allocation2 + $0xd8] sm:$0xff] %vm3656, 0.0
      %4222 = vst.msk [vmem:[#allocation2 + $0xe0] sm:$0xff] %vm3656, 0.0
      %4223 = vst.msk [vmem:[#allocation2 + $0xe8] sm:$0xff] %vm3656, 0.0
      %4224 = vst.msk [vmem:[#allocation2 + $0xf0] sm:$0xff] %vm3656, 0.0
      %4225 = vst.msk [vmem:[#allocation2 + $0xf8] sm:$0xff] %vm3656, 0.0
      %4226 = vst.msk [vmem:[#allocation2 + $0x100] sm:$0xff] %vm3656, 0.0
      %4227 = vst.msk [vmem:[#allocation2 + $0x108] sm:$0xff] %vm3656, 0.0
      %4228 = vst.msk [vmem:[#allocation2 + $0x110] sm:$0xff] %vm3656, 0.0
      %4229 = vst.msk [vmem:[#allocation2 + $0x118] sm:$0xff] %vm3656, 0.0
      %4230 = vst.msk [vmem:[#allocation2 + $0x120] sm:$0xff] %vm3656, 0.0
      %4231 = vst.msk [vmem:[#allocation2 + $0x128] sm:$0xff] %vm3656, 0.0
      %4232 = vst.msk [vmem:[#allocation2 + $0x130] sm:$0xff] %vm3656, 0.0
      %4233 = vst.msk [vmem:[#allocation2 + $0x138] sm:$0xff] %vm3656, 0.0
      %vm4234 = vcmask 125952
      %4235 = vst.msk [vmem:[#allocation2 + $0x140] sm:$0xf] %vm4234, 0.0
      %4236 = vst.msk [vmem:[#allocation2 + $0x13] sm:$0xff] %vm3656, %v4158
      %4237 = vst.msk [vmem:[#allocation2 + $0x1b] sm:$0xff] %vm3656, %v4159
      %4238 = vst.msk [vmem:[#allocation2 + $0x23] sm:$0xff] %vm3656, %v4160
      %4239 = vst.msk [vmem:[#allocation2 + $0x2b] sm:$0xff] %vm3656, %v4161
      %4240 = vst.msk [vmem:[#allocation2 + $0x33] sm:$0xff] %vm3656, %v4162
      %4241 = vst.msk [vmem:[#allocation2 + $0x3b] sm:$0xff] %vm3656, %v4163
      %4242 = vst.msk [vmem:[#allocation2 + $0x43] sm:$0xff] %vm3656, %v4164
      %4243 = vst.msk [vmem:[#allocation2 + $0x4b] sm:$0xff] %vm3656, %v4165
      %4244 = vst.msk [vmem:[#allocation2 + $0x53] sm:$0xff] %vm3656, %v4166
      %4245 = vst.msk [vmem:[#allocation2 + $0x5b] sm:$0xff] %vm3656, %v4167
      %4246 = vst.msk [vmem:[#allocation2 + $0x63] sm:$0xff] %vm3656, %v4168
      %4247 = vst.msk [vmem:[#allocation2 + $0x6b] sm:$0xff] %vm3656, %v4169
      %4248 = vst.msk [vmem:[#allocation2 + $0x73] sm:$0xff] %vm3656, %v4170
      %4249 = vst.msk [vmem:[#allocation2 + $0x7b] sm:$0xff] %vm3656, %v4171
      %4250 = vst.msk [vmem:[#allocation2 + $0x83] sm:$0xff] %vm3656, %v4172
      %4251 = vst.msk [vmem:[#allocation2 + $0x8b] sm:$0xff] %vm3656, %v4173
      %4252 = vst.msk [vmem:[#allocation2 + $0x93] sm:$0xff] %vm3656, %v4174
      %4253 = vst.msk [vmem:[#allocation2 + $0x9b] sm:$0xff] %vm3656, %v4175
      %4254 = vst.msk [vmem:[#allocation2 + $0xa3] sm:$0xff] %vm3656, %v4176
      %4255 = vst.msk [vmem:[#allocation2 + $0xab] sm:$0xff] %vm3656, %v4177
      %4256 = vst.msk [vmem:[#allocation2 + $0xb3] sm:$0xff] %vm3656, %v4178
      %4257 = vst.msk [vmem:[#allocation2 + $0xbb] sm:$0xff] %vm3656, %v4179
      %4258 = vst.msk [vmem:[#allocation2 + $0xc3] sm:$0xff] %vm3656, %v4180
      %4259 = vst.msk [vmem:[#allocation2 + $0xcb] sm:$0xff] %vm3656, %v4181
      %4260 = vst.msk [vmem:[#allocation2 + $0xd3] sm:$0xff] %vm3656, %v4182
      %4261 = vst.msk [vmem:[#allocation2 + $0xdb] sm:$0xff] %vm3656, %v4183
      %4262 = vst.msk [vmem:[#allocation2 + $0xe3] sm:$0xff] %vm3656, %v4184
      %4263 = vst.msk [vmem:[#allocation2 + $0xeb] sm:$0xff] %vm3656, %v4185
      %4264 = vst.msk [vmem:[#allocation2 + $0xf3] sm:$0xff] %vm3656, %v4186
      %4265 = vst.msk [vmem:[#allocation2 + $0xfb] sm:$0xff] %vm3656, %v4187
      %4266 = vst.msk [vmem:[#allocation2 + $0x103] sm:$0xff] %vm3656, %v4188
      %4267 = vst.msk [vmem:[#allocation2 + $0x10b] sm:$0xff] %vm3656, %v4189
      %4268 = vst.msk [vmem:[#allocation2 + $0x113] sm:$0xff] %vm3656, %v4190
      %4269 = vst.msk [vmem:[#allocation2 + $0x11b] sm:$0xff] %vm3656, %v4191
      %4270 = vst.msk [vmem:[#allocation2 + $0x123] sm:$0xff] %vm3656, %v4192
      %4271 = vst.msk [vmem:[#allocation2 + $0x12b] sm:$0x3f] %vm3726, %v4193
      %v4272 = vld [vmem:[#allocation2] sm:$0xff]
      %v4273 = vld [vmem:[#allocation2 + $0x8] sm:$0xff]
      %v4274 = vld [vmem:[#allocation2 + $0x10] sm:$0xff]
      %v4275 = vld [vmem:[#allocation2 + $0x18] sm:$0xff]
      %v4276 = vld [vmem:[#allocation2 + $0x20] sm:$0xff]
      %v4277 = vld [vmem:[#allocation2 + $0x28] sm:$0xff]
      %v4278 = vld [vmem:[#allocation2 + $0x30] sm:$0xff]
      %v4279 = vld [vmem:[#allocation2 + $0x38] sm:$0xff]
      %v4280 = vld [vmem:[#allocation2 + $0x40] sm:$0xff]
      %v4281 = vld [vmem:[#allocation2 + $0x48] sm:$0xff]
      %v4282 = vld [vmem:[#allocation2 + $0x50] sm:$0xff]
      %v4283 = vld [vmem:[#allocation2 + $0x58] sm:$0xff]
      %v4284 = vld [vmem:[#allocation2 + $0x60] sm:$0xff]
      %v4285 = vld [vmem:[#allocation2 + $0x68] sm:$0xff]
      %v4286 = vld [vmem:[#allocation2 + $0x70] sm:$0xff]
      %v4287 = vld [vmem:[#allocation2 + $0x78] sm:$0xff]
      %v4288 = vld [vmem:[#allocation2 + $0x80] sm:$0xff]
      %v4289 = vld [vmem:[#allocation2 + $0x88] sm:$0xff]
      %v4290 = vld [vmem:[#allocation2 + $0x90] sm:$0xff]
      %v4291 = vld [vmem:[#allocation2 + $0x98] sm:$0xff]
      %v4292 = vld [vmem:[#allocation2 + $0xa0] sm:$0xff]
      %v4293 = vld [vmem:[#allocation2 + $0xa8] sm:$0xff]
      %v4294 = vld [vmem:[#allocation2 + $0xb0] sm:$0xff]
      %v4295 = vld [vmem:[#allocation2 + $0xb8] sm:$0xff]
      %v4296 = vld [vmem:[#allocation2 + $0xc0] sm:$0xff]
      %v4297 = vld [vmem:[#allocation2 + $0xc8] sm:$0xff]
      %v4298 = vld [vmem:[#allocation2 + $0xd0] sm:$0xff]
      %v4299 = vld [vmem:[#allocation2 + $0xd8] sm:$0xff]
      %v4300 = vld [vmem:[#allocation2 + $0xe0] sm:$0xff]
      %v4301 = vld [vmem:[#allocation2 + $0xe8] sm:$0xff]
      %v4302 = vld [vmem:[#allocation2 + $0xf0] sm:$0xff]
      %v4303 = vld [vmem:[#allocation2 + $0xf8] sm:$0xff]
      %v4304 = vld [vmem:[#allocation2 + $0x100] sm:$0xff]
      %v4305 = vld [vmem:[#allocation2 + $0x108] sm:$0xff]
      %v4306 = vld [vmem:[#allocation2 + $0x110] sm:$0xff]
      %v4307 = vld [vmem:[#allocation2 + $0x118] sm:$0x3f]
      %v4308 = vpack.c.bf16 %v4273, %v4272
      %v4309 = vpack.c.bf16 %v4275, %v4274
      %v4310 = vpack.c.bf16 %v4277, %v4276
      %v4311 = vpack.c.bf16 %v4279, %v4278
      %v4312 = vpack.c.bf16 %v4281, %v4280
      %v4313 = vpack.c.bf16 %v4283, %v4282
      %v4314 = vpack.c.bf16 %v4285, %v4284
      %v4315 = vpack.c.bf16 %v4287, %v4286
      %v4316 = vpack.c.bf16 %v4289, %v4288
      %v4317 = vpack.c.bf16 %v4291, %v4290
      %v4318 = vpack.c.bf16 %v4293, %v4292
      %v4319 = vpack.c.bf16 %v4295, %v4294
      %v4320 = vpack.c.bf16 %v4297, %v4296
      %v4321 = vpack.c.bf16 %v4299, %v4298
      %v4322 = vpack.c.bf16 %v4301, %v4300
      %v4323 = vpack.c.bf16 %v4303, %v4302
      %v4324 = vpack.c.bf16 %v4305, %v4304
      %v4325 = vpack.c.bf16 %v4307, %v4306
      %v4326 = vld [vmem:[%s2] sm:$0xf]
      %v4327 = vld [vmem:[%s2 + $0x4] sm:$0xf]
      %v4328 = vld [vmem:[#allocation2 + $0x1] sm:$0xff]
      %v4329 = vld [vmem:[#allocation2 + $0x9] sm:$0xff]
      %v4330 = vld [vmem:[#allocation2 + $0x11] sm:$0xff]
      %v4331 = vld [vmem:[#allocation2 + $0x19] sm:$0xff]
      %v4332 = vld [vmem:[#allocation2 + $0x21] sm:$0xff]
      %v4333 = vld [vmem:[#allocation2 + $0x29] sm:$0xff]
      %v4334 = vld [vmem:[#allocation2 + $0x31] sm:$0xff]
      %v4335 = vld [vmem:[#allocation2 + $0x39] sm:$0xff]
      %v4336 = vld [vmem:[#allocation2 + $0x41] sm:$0xff]
      %v4337 = vld [vmem:[#allocation2 + $0x49] sm:$0xff]
      %v4338 = vld [vmem:[#allocation2 + $0x51] sm:$0xff]
      %v4339 = vld [vmem:[#allocation2 + $0x59] sm:$0xff]
      %v4340 = vld [vmem:[#allocation2 + $0x61] sm:$0xff]
      %v4341 = vld [vmem:[#allocation2 + $0x69] sm:$0xff]
      %v4342 = vld [vmem:[#allocation2 + $0x71] sm:$0xff]
      %v4343 = vld [vmem:[#allocation2 + $0x79] sm:$0xff]
      %v4344 = vld [vmem:[#allocation2 + $0x81] sm:$0xff]
      %v4345 = vld [vmem:[#allocation2 + $0x89] sm:$0xff]
      %v4346 = vld [vmem:[#allocation2 + $0x91] sm:$0xff]
      %v4347 = vld [vmem:[#allocation2 + $0x99] sm:$0xff]
      %v4348 = vld [vmem:[#allocation2 + $0xa1] sm:$0xff]
      %v4349 = vld [vmem:[#allocation2 + $0xa9] sm:$0xff]
      %v4350 = vld [vmem:[#allocation2 + $0xb1] sm:$0xff]
      %v4351 = vld [vmem:[#allocation2 + $0xb9] sm:$0xff]
      %v4352 = vld [vmem:[#allocation2 + $0xc1] sm:$0xff]
      %v4353 = vld [vmem:[#allocation2 + $0xc9] sm:$0xff]
      %v4354 = vld [vmem:[#allocation2 + $0xd1] sm:$0xff]
      %v4355 = vld [vmem:[#allocation2 + $0xd9] sm:$0xff]
      %v4356 = vld [vmem:[#allocation2 + $0xe1] sm:$0xff]
      %v4357 = vld [vmem:[#allocation2 + $0xe9] sm:$0xff]
      %v4358 = vld [vmem:[#allocation2 + $0xf1] sm:$0xff]
      %v4359 = vld [vmem:[#allocation2 + $0xf9] sm:$0xff]
      %v4360 = vld [vmem:[#allocation2 + $0x101] sm:$0xff]
      %v4361 = vld [vmem:[#allocation2 + $0x109] sm:$0xff]
      %v4362 = vld [vmem:[#allocation2 + $0x111] sm:$0xff]
      %v4363 = vld [vmem:[#allocation2 + $0x119] sm:$0x3f]
      %v4364 = vpack.c.bf16 %v4329, %v4328
      %v4365 = vpack.c.bf16 %v4331, %v4330
      %v4366 = vpack.c.bf16 %v4333, %v4332
      %v4367 = vpack.c.bf16 %v4335, %v4334
      %v4368 = vpack.c.bf16 %v4337, %v4336
      %v4369 = vpack.c.bf16 %v4339, %v4338
      %v4370 = vpack.c.bf16 %v4341, %v4340
      %v4371 = vpack.c.bf16 %v4343, %v4342
      %v4372 = vpack.c.bf16 %v4345, %v4344
      %v4373 = vpack.c.bf16 %v4347, %v4346
      %v4374 = vpack.c.bf16 %v4349, %v4348
      %v4375 = vpack.c.bf16 %v4351, %v4350
      %v4376 = vpack.c.bf16 %v4353, %v4352
      %v4377 = vpack.c.bf16 %v4355, %v4354
      %v4378 = vpack.c.bf16 %v4357, %v4356
      %v4379 = vpack.c.bf16 %v4359, %v4358
      %v4380 = vpack.c.bf16 %v4361, %v4360
      %v4381 = vpack.c.bf16 %v4363, %v4362
      %s4382 = scalar_lea.vmem %s2, 8
      %v4383 = vld [vmem:[%s4382] sm:$0xf]
      %v4384 = vld [vmem:[%s4382 + $0x4] sm:$0xf]
      %v4387 = vunpack.c.l.b16 %v4383
      %v4388 = vunpack.c.l.b16 %v4384
      %v4389 = vpack.c.b16 %v4388, %v4387
      %v4392 = vsel %vm3656, %v4364, 0
      %v4395 = vsel %vm3656, %v4365, 0
      %v4398 = vsel %vm3656, %v4366, 0
      %v4401 = vsel %vm3656, %v4367, 0
      %v4404 = vsel %vm3656, %v4368, 0
      %v4407 = vsel %vm3656, %v4369, 0
      %v4410 = vsel %vm3656, %v4370, 0
      %v4413 = vsel %vm3656, %v4371, 0
      %v4416 = vsel %vm3656, %v4372, 0
      %v4419 = vsel %vm3656, %v4373, 0
      %v4422 = vsel %vm3656, %v4374, 0
      %v4425 = vsel %vm3656, %v4375, 0
      %v4428 = vsel %vm3656, %v4376, 0
      %v4431 = vsel %vm3656, %v4377, 0
      %v4434 = vsel %vm3656, %v4378, 0
      %v4437 = vsel %vm3656, %v4379, 0
      %v4440 = vsel %vm3656, %v4380, 0
      %v4443 = vsel %vm3656, %v4381, 0
      %4445 = vmatprep.subr.bf16.mxu0 0
      %4446 = vmatpush1.bf16.msra.mxu0 0
      %4447 = vmatprep.subr.bf16.mxu0 0
      %4448 = vmatpush1.bf16.msra.mxu0 0
      %4449 = vmatprep.subr.bf16.mxu0 0
      %4450 = vmatpush1.bf16.msra.mxu0 0
      %4451 = vmatprep.subr.bf16.mxu0 0
      %4452 = vmatpush1.bf16.msra.mxu0 0
      %4453 = vmatprep.subr.bf16.mxu0 0
      %4454 = vmatpush1.bf16.msra.mxu0 0
      %4455 = vmatprep.subr.bf16.mxu0 0
      %4456 = vmatpush1.bf16.msra.mxu0 0
      %4457 = vmatprep.subr.bf16.mxu0 0
      %4458 = vmatpush1.bf16.msra.mxu0 0
      %4459 = vmatprep.subr.bf16.mxu0 0
      %4460 = vmatpush1.bf16.msra.mxu0 %v4389
      %4461 = vmatprep.subr.bf16.mxu0 0
      %4462 = vmatpush2.bf16.msra.mxu0 0
      %4463 = vmatprep.subr.bf16.mxu0 0
      %4464 = vmatpush2.bf16.msra.mxu0 0
      %4465 = vmatprep.subr.bf16.mxu0 0
      %4466 = vmatpush2.bf16.msra.mxu0 0
      %4467 = vmatprep.subr.bf16.mxu0 0
      %4468 = vmatpush2.bf16.msra.mxu0 0
      %4469 = vmatprep.subr.bf16.mxu0 0
      %4470 = vmatpush2.bf16.msra.mxu0 0
      %4471 = vmatprep.subr.bf16.mxu0 0
      %4472 = vmatpush2.bf16.msra.mxu0 0
      %4473 = vmatprep.subr.bf16.mxu0 0
      %4474 = vmatpush2.bf16.msra.mxu0 0
      %4475 = vmatprep.subr.bf16.mxu0 0
      %4476 = vmatpush2.bf16.msra.mxu0 0
      %4477 = vmatprep.mubr.bf16.mxu0 0
      %4478 = vmatmul.mubr.bf16.gmra.mxu0 %v4392
      %v4479 = vpop.f32.mrf.mxu0
      %v4480 = vadd.f32 0.0, %v4479
      %v4481 = vpop.f32.mrf.mxu0
      %v4482 = vpop.f32.mrf.mxu0
      %v4483 = vadd.f32 0.0, %v4482
      %v4484 = vpop.f32.mrf.mxu0
      %4485 = vmatprep.mubr.bf16.mxu0 0
      %4486 = vmatmul.mubr.bf16.gmra.mxu0 %v4395
      %v4487 = vpop.f32.mrf.mxu0
      %v4488 = vadd.f32 0.0, %v4487
      %v4489 = vpop.f32.mrf.mxu0
      %v4490 = vpop.f32.mrf.mxu0
      %v4491 = vadd.f32 0.0, %v4490
      %v4492 = vpop.f32.mrf.mxu0
      %4493 = vmatprep.mubr.bf16.mxu0 0
      %4494 = vmatmul.mubr.bf16.gmra.mxu0 %v4398
      %v4495 = vpop.f32.mrf.mxu0
      %v4496 = vadd.f32 0.0, %v4495
      %v4497 = vpop.f32.mrf.mxu0
      %v4498 = vpop.f32.mrf.mxu0
      %v4499 = vadd.f32 0.0, %v4498
      %v4500 = vpop.f32.mrf.mxu0
      %4501 = vmatprep.mubr.bf16.mxu0 0
      %4502 = vmatmul.mubr.bf16.gmra.mxu0 %v4401
      %v4503 = vpop.f32.mrf.mxu0
      %v4504 = vadd.f32 0.0, %v4503
      %v4505 = vpop.f32.mrf.mxu0
      %v4506 = vpop.f32.mrf.mxu0
      %v4507 = vadd.f32 0.0, %v4506
      %v4508 = vpop.f32.mrf.mxu0
      %4509 = vmatprep.mubr.bf16.mxu0 0
      %4510 = vmatmul.mubr.bf16.gmra.mxu0 %v4404
      %v4511 = vpop.f32.mrf.mxu0
      %v4512 = vadd.f32 0.0, %v4511
      %v4513 = vpop.f32.mrf.mxu0
      %v4514 = vpop.f32.mrf.mxu0
      %v4515 = vadd.f32 0.0, %v4514
      %v4516 = vpop.f32.mrf.mxu0
      %4517 = vmatprep.mubr.bf16.mxu0 0
      %4518 = vmatmul.mubr.bf16.gmra.mxu0 %v4407
      %v4519 = vpop.f32.mrf.mxu0
      %v4520 = vadd.f32 0.0, %v4519
      %v4521 = vpop.f32.mrf.mxu0
      %v4522 = vpop.f32.mrf.mxu0
      %v4523 = vadd.f32 0.0, %v4522
      %v4524 = vpop.f32.mrf.mxu0
      %4525 = vmatprep.mubr.bf16.mxu0 0
      %4526 = vmatmul.mubr.bf16.gmra.mxu0 %v4410
      %v4527 = vpop.f32.mrf.mxu0
      %v4528 = vadd.f32 0.0, %v4527
      %v4529 = vpop.f32.mrf.mxu0
      %v4530 = vpop.f32.mrf.mxu0
      %v4531 = vadd.f32 0.0, %v4530
      %v4532 = vpop.f32.mrf.mxu0
      %4533 = vmatprep.mubr.bf16.mxu0 0
      %4534 = vmatmul.mubr.bf16.gmra.mxu0 %v4413
      %v4535 = vpop.f32.mrf.mxu0
      %v4536 = vadd.f32 0.0, %v4535
      %v4537 = vpop.f32.mrf.mxu0
      %v4538 = vpop.f32.mrf.mxu0
      %v4539 = vadd.f32 0.0, %v4538
      %v4540 = vpop.f32.mrf.mxu0
      %4541 = vmatprep.mubr.bf16.mxu0 0
      %4542 = vmatmul.mubr.bf16.gmra.mxu0 %v4416
      %v4543 = vpop.f32.mrf.mxu0
      %v4544 = vadd.f32 0.0, %v4543
      %v4545 = vpop.f32.mrf.mxu0
      %v4546 = vpop.f32.mrf.mxu0
      %v4547 = vadd.f32 0.0, %v4546
      %v4548 = vpop.f32.mrf.mxu0
      %4549 = vmatprep.mubr.bf16.mxu0 0
      %4550 = vmatmul.mubr.bf16.gmra.mxu0 %v4419
      %v4551 = vpop.f32.mrf.mxu0
      %v4552 = vadd.f32 0.0, %v4551
      %v4553 = vpop.f32.mrf.mxu0
      %v4554 = vpop.f32.mrf.mxu0
      %v4555 = vadd.f32 0.0, %v4554
      %v4556 = vpop.f32.mrf.mxu0
      %4557 = vmatprep.mubr.bf16.mxu0 0
      %4558 = vmatmul.mubr.bf16.gmra.mxu0 %v4422
      %v4559 = vpop.f32.mrf.mxu0
      %v4560 = vadd.f32 0.0, %v4559
      %v4561 = vpop.f32.mrf.mxu0
      %v4562 = vpop.f32.mrf.mxu0
      %v4563 = vadd.f32 0.0, %v4562
      %v4564 = vpop.f32.mrf.mxu0
      %4565 = vmatprep.mubr.bf16.mxu0 0
      %4566 = vmatmul.mubr.bf16.gmra.mxu0 %v4425
      %v4567 = vpop.f32.mrf.mxu0
      %v4568 = vadd.f32 0.0, %v4567
      %v4569 = vpop.f32.mrf.mxu0
      %v4570 = vpop.f32.mrf.mxu0
      %v4571 = vadd.f32 0.0, %v4570
      %v4572 = vpop.f32.mrf.mxu0
      %4573 = vmatprep.mubr.bf16.mxu0 0
      %4574 = vmatmul.mubr.bf16.gmra.mxu0 %v4428
      %v4575 = vpop.f32.mrf.mxu0
      %v4576 = vadd.f32 0.0, %v4575
      %v4577 = vpop.f32.mrf.mxu0
      %v4578 = vpop.f32.mrf.mxu0
      %v4579 = vadd.f32 0.0, %v4578
      %v4580 = vpop.f32.mrf.mxu0
      %4581 = vmatprep.mubr.bf16.mxu0 0
      %4582 = vmatmul.mubr.bf16.gmra.mxu0 %v4431
      %v4583 = vpop.f32.mrf.mxu0
      %v4584 = vadd.f32 0.0, %v4583
      %v4585 = vpop.f32.mrf.mxu0
      %v4586 = vpop.f32.mrf.mxu0
      %v4587 = vadd.f32 0.0, %v4586
      %v4588 = vpop.f32.mrf.mxu0
      %4589 = vmatprep.mubr.bf16.mxu0 0
      %4590 = vmatmul.mubr.bf16.gmra.mxu0 %v4434
      %v4591 = vpop.f32.mrf.mxu0
      %v4592 = vadd.f32 0.0, %v4591
      %v4593 = vpop.f32.mrf.mxu0
      %v4594 = vpop.f32.mrf.mxu0
      %v4595 = vadd.f32 0.0, %v4594
      %v4596 = vpop.f32.mrf.mxu0
      %4597 = vmatprep.mubr.bf16.mxu0 0
      %4598 = vmatmul.mubr.bf16.gmra.mxu0 %v4437
      %v4599 = vpop.f32.mrf.mxu0
      %v4600 = vadd.f32 0.0, %v4599
      %v4601 = vpop.f32.mrf.mxu0
      %v4602 = vpop.f32.mrf.mxu0
      %v4603 = vadd.f32 0.0, %v4602
      %v4604 = vpop.f32.mrf.mxu0
      %4605 = vmatprep.mubr.bf16.mxu0 0
      %4606 = vmatmul.mubr.bf16.gmra.mxu0 %v4440
      %v4607 = vpop.f32.mrf.mxu0
      %v4608 = vadd.f32 0.0, %v4607
      %v4609 = vpop.f32.mrf.mxu0
      %v4610 = vpop.f32.mrf.mxu0
      %v4611 = vadd.f32 0.0, %v4610
      %v4612 = vpop.f32.mrf.mxu0
      %4613 = vmatprep.mubr.bf16.mxu0 0
      %4614 = vmatmul.mubr.bf16.gmra.mxu0 %v4443
      %v4615 = vpop.f32.mrf.mxu0
      %v4616 = vadd.f32 0.0, %v4615
      %v4617 = vpop.f32.mrf.mxu0
      %v4618 = vpop.f32.mrf.mxu0
      %v4619 = vadd.f32 0.0, %v4618
      %v4620 = vpop.f32.mrf.mxu0
      %4621 = vdwg.mxu0
      %v4624 = vunpack.c.l.b16 %v4326
      %v4625 = vunpack.c.l.b16 %v4327
      %v4626 = vpack.c.b16 %v4625, %v4624
      %v4629 = vsel %vm3656, %v4308, 0
      %v4632 = vsel %vm3656, %v4309, 0
      %v4635 = vsel %vm3656, %v4310, 0
      %v4638 = vsel %vm3656, %v4311, 0
      %v4641 = vsel %vm3656, %v4312, 0
      %v4644 = vsel %vm3656, %v4313, 0
      %v4647 = vsel %vm3656, %v4314, 0
      %v4650 = vsel %vm3656, %v4315, 0
      %v4653 = vsel %vm3656, %v4316, 0
      %v4656 = vsel %vm3656, %v4317, 0
      %v4659 = vsel %vm3656, %v4318, 0
      %v4662 = vsel %vm3656, %v4319, 0
      %v4665 = vsel %vm3656, %v4320, 0
      %v4668 = vsel %vm3656, %v4321, 0
      %v4671 = vsel %vm3656, %v4322, 0
      %v4674 = vsel %vm3656, %v4323, 0
      %v4677 = vsel %vm3656, %v4324, 0
      %v4680 = vsel %vm3656, %v4325, 0
      %4682 = vmatprep.subr.bf16.mxu0 0
      %4683 = vmatpush1.bf16.msra.mxu0 0
      %4684 = vmatprep.subr.bf16.mxu0 0
      %4685 = vmatpush1.bf16.msra.mxu0 0
      %4686 = vmatprep.subr.bf16.mxu0 0
      %4687 = vmatpush1.bf16.msra.mxu0 0
      %4688 = vmatprep.subr.bf16.mxu0 0
      %4689 = vmatpush1.bf16.msra.mxu0 0
      %4690 = vmatprep.subr.bf16.mxu0 0
      %4691 = vmatpush1.bf16.msra.mxu0 0
      %4692 = vmatprep.subr.bf16.mxu0 0
      %4693 = vmatpush1.bf16.msra.mxu0 0
      %4694 = vmatprep.subr.bf16.mxu0 0
      %4695 = vmatpush1.bf16.msra.mxu0 0
      %4696 = vmatprep.subr.bf16.mxu0 0
      %4697 = vmatpush1.bf16.msra.mxu0 %v4626
      %4698 = vmatprep.subr.bf16.mxu0 0
      %4699 = vmatpush2.bf16.msra.mxu0 0
      %4700 = vmatprep.subr.bf16.mxu0 0
      %4701 = vmatpush2.bf16.msra.mxu0 0
      %4702 = vmatprep.subr.bf16.mxu0 0
      %4703 = vmatpush2.bf16.msra.mxu0 0
      %4704 = vmatprep.subr.bf16.mxu0 0
      %4705 = vmatpush2.bf16.msra.mxu0 0
      %4706 = vmatprep.subr.bf16.mxu0 0
      %4707 = vmatpush2.bf16.msra.mxu0 0
      %4708 = vmatprep.subr.bf16.mxu0 0
      %4709 = vmatpush2.bf16.msra.mxu0 0
      %4710 = vmatprep.subr.bf16.mxu0 0
      %4711 = vmatpush2.bf16.msra.mxu0 0
      %4712 = vmatprep.subr.bf16.mxu0 0
      %4713 = vmatpush2.bf16.msra.mxu0 0
      %4714 = vmatprep.mubr.bf16.mxu0 0
      %4715 = vmatmul.mubr.bf16.gmra.mxu0 %v4629
      %v4716 = vpop.f32.mrf.mxu0
      %v4717 = vadd.f32 %v4480, %v4716
      %v4718 = vpop.f32.mrf.mxu0
      %v4719 = vpop.f32.mrf.mxu0
      %v4720 = vadd.f32 %v4483, %v4719
      %v4721 = vpop.f32.mrf.mxu0
      %4722 = vmatprep.mubr.bf16.mxu0 0
      %4723 = vmatmul.mubr.bf16.gmra.mxu0 %v4632
      %v4724 = vpop.f32.mrf.mxu0
      %v4725 = vadd.f32 %v4488, %v4724
      %v4726 = vpop.f32.mrf.mxu0
      %v4727 = vpop.f32.mrf.mxu0
      %v4728 = vadd.f32 %v4491, %v4727
      %v4729 = vpop.f32.mrf.mxu0
      %4730 = vmatprep.mubr.bf16.mxu0 0
      %4731 = vmatmul.mubr.bf16.gmra.mxu0 %v4635
      %v4732 = vpop.f32.mrf.mxu0
      %v4733 = vadd.f32 %v4496, %v4732
      %v4734 = vpop.f32.mrf.mxu0
      %v4735 = vpop.f32.mrf.mxu0
      %v4736 = vadd.f32 %v4499, %v4735
      %v4737 = vpop.f32.mrf.mxu0
      %4738 = vmatprep.mubr.bf16.mxu0 0
      %4739 = vmatmul.mubr.bf16.gmra.mxu0 %v4638
      %v4740 = vpop.f32.mrf.mxu0
      %v4741 = vadd.f32 %v4504, %v4740
      %v4742 = vpop.f32.mrf.mxu0
      %v4743 = vpop.f32.mrf.mxu0
      %v4744 = vadd.f32 %v4507, %v4743
      %v4745 = vpop.f32.mrf.mxu0
      %4746 = vmatprep.mubr.bf16.mxu0 0
      %4747 = vmatmul.mubr.bf16.gmra.mxu0 %v4641
      %v4748 = vpop.f32.mrf.mxu0
      %v4749 = vadd.f32 %v4512, %v4748
      %v4750 = vpop.f32.mrf.mxu0
      %v4751 = vpop.f32.mrf.mxu0
      %v4752 = vadd.f32 %v4515, %v4751
      %v4753 = vpop.f32.mrf.mxu0
      %4754 = vmatprep.mubr.bf16.mxu0 0
      %4755 = vmatmul.mubr.bf16.gmra.mxu0 %v4644
      %v4756 = vpop.f32.mrf.mxu0
      %v4757 = vadd.f32 %v4520, %v4756
      %v4758 = vpop.f32.mrf.mxu0
      %v4759 = vpop.f32.mrf.mxu0
      %v4760 = vadd.f32 %v4523, %v4759
      %v4761 = vpop.f32.mrf.mxu0
      %4762 = vmatprep.mubr.bf16.mxu0 0
      %4763 = vmatmul.mubr.bf16.gmra.mxu0 %v4647
      %v4764 = vpop.f32.mrf.mxu0
      %v4765 = vadd.f32 %v4528, %v4764
      %v4766 = vpop.f32.mrf.mxu0
      %v4767 = vpop.f32.mrf.mxu0
      %v4768 = vadd.f32 %v4531, %v4767
      %v4769 = vpop.f32.mrf.mxu0
      %4770 = vmatprep.mubr.bf16.mxu0 0
      %4771 = vmatmul.mubr.bf16.gmra.mxu0 %v4650
      %v4772 = vpop.f32.mrf.mxu0
      %v4773 = vadd.f32 %v4536, %v4772
      %v4774 = vpop.f32.mrf.mxu0
      %v4775 = vpop.f32.mrf.mxu0
      %v4776 = vadd.f32 %v4539, %v4775
      %v4777 = vpop.f32.mrf.mxu0
      %4778 = vmatprep.mubr.bf16.mxu0 0
      %4779 = vmatmul.mubr.bf16.gmra.mxu0 %v4653
      %v4780 = vpop.f32.mrf.mxu0
      %v4781 = vadd.f32 %v4544, %v4780
      %v4782 = vpop.f32.mrf.mxu0
      %v4783 = vpop.f32.mrf.mxu0
      %v4784 = vadd.f32 %v4547, %v4783
      %v4785 = vpop.f32.mrf.mxu0
      %4786 = vmatprep.mubr.bf16.mxu0 0
      %4787 = vmatmul.mubr.bf16.gmra.mxu0 %v4656
      %v4788 = vpop.f32.mrf.mxu0
      %v4789 = vadd.f32 %v4552, %v4788
      %v4790 = vpop.f32.mrf.mxu0
      %v4791 = vpop.f32.mrf.mxu0
      %v4792 = vadd.f32 %v4555, %v4791
      %v4793 = vpop.f32.mrf.mxu0
      %4794 = vmatprep.mubr.bf16.mxu0 0
      %4795 = vmatmul.mubr.bf16.gmra.mxu0 %v4659
      %v4796 = vpop.f32.mrf.mxu0
      %v4797 = vadd.f32 %v4560, %v4796
      %v4798 = vpop.f32.mrf.mxu0
      %v4799 = vpop.f32.mrf.mxu0
      %v4800 = vadd.f32 %v4563, %v4799
      %v4801 = vpop.f32.mrf.mxu0
      %4802 = vmatprep.mubr.bf16.mxu0 0
      %4803 = vmatmul.mubr.bf16.gmra.mxu0 %v4662
      %v4804 = vpop.f32.mrf.mxu0
      %v4805 = vadd.f32 %v4568, %v4804
      %v4806 = vpop.f32.mrf.mxu0
      %v4807 = vpop.f32.mrf.mxu0
      %v4808 = vadd.f32 %v4571, %v4807
      %v4809 = vpop.f32.mrf.mxu0
      %4810 = vmatprep.mubr.bf16.mxu0 0
      %4811 = vmatmul.mubr.bf16.gmra.mxu0 %v4665
      %v4812 = vpop.f32.mrf.mxu0
      %v4813 = vadd.f32 %v4576, %v4812
      %v4814 = vpop.f32.mrf.mxu0
      %v4815 = vpop.f32.mrf.mxu0
      %v4816 = vadd.f32 %v4579, %v4815
      %v4817 = vpop.f32.mrf.mxu0
      %4818 = vmatprep.mubr.bf16.mxu0 0
      %4819 = vmatmul.mubr.bf16.gmra.mxu0 %v4668
      %v4820 = vpop.f32.mrf.mxu0
      %v4821 = vadd.f32 %v4584, %v4820
      %v4822 = vpop.f32.mrf.mxu0
      %v4823 = vpop.f32.mrf.mxu0
      %v4824 = vadd.f32 %v4587, %v4823
      %v4825 = vpop.f32.mrf.mxu0
      %4826 = vmatprep.mubr.bf16.mxu0 0
      %4827 = vmatmul.mubr.bf16.gmra.mxu0 %v4671
      %v4828 = vpop.f32.mrf.mxu0
      %v4829 = vadd.f32 %v4592, %v4828
      %v4830 = vpop.f32.mrf.mxu0
      %v4831 = vpop.f32.mrf.mxu0
      %v4832 = vadd.f32 %v4595, %v4831
      %v4833 = vpop.f32.mrf.mxu0
      %4834 = vmatprep.mubr.bf16.mxu0 0
      %4835 = vmatmul.mubr.bf16.gmra.mxu0 %v4674
      %v4836 = vpop.f32.mrf.mxu0
      %v4837 = vadd.f32 %v4600, %v4836
      %v4838 = vpop.f32.mrf.mxu0
      %v4839 = vpop.f32.mrf.mxu0
      %v4840 = vadd.f32 %v4603, %v4839
      %v4841 = vpop.f32.mrf.mxu0
      %4842 = vmatprep.mubr.bf16.mxu0 0
      %4843 = vmatmul.mubr.bf16.gmra.mxu0 %v4677
      %v4844 = vpop.f32.mrf.mxu0
      %v4845 = vadd.f32 %v4608, %v4844
      %v4846 = vpop.f32.mrf.mxu0
      %v4847 = vpop.f32.mrf.mxu0
      %v4848 = vadd.f32 %v4611, %v4847
      %v4849 = vpop.f32.mrf.mxu0
      %4850 = vmatprep.mubr.bf16.mxu0 0
      %4851 = vmatmul.mubr.bf16.gmra.mxu0 %v4680
      %v4852 = vpop.f32.mrf.mxu0
      %v4853 = vadd.f32 %v4616, %v4852
      %v4854 = vpop.f32.mrf.mxu0
      %v4855 = vpop.f32.mrf.mxu0
      %v4856 = vadd.f32 %v4619, %v4855
      %v4857 = vpop.f32.mrf.mxu0
      %4858 = vdwg.mxu0
      %v4859 = vld [vmem:[#allocation2 + $0x2] sm:$0xff]
      %v4860 = vld [vmem:[#allocation2 + $0xa] sm:$0xff]
      %v4861 = vld [vmem:[#allocation2 + $0x12] sm:$0xff]
      %v4862 = vld [vmem:[#allocation2 + $0x1a] sm:$0xff]
      %v4863 = vld [vmem:[#allocation2 + $0x22] sm:$0xff]
      %v4864 = vld [vmem:[#allocation2 + $0x2a] sm:$0xff]
      %v4865 = vld [vmem:[#allocation2 + $0x32] sm:$0xff]
      %v4866 = vld [vmem:[#allocation2 + $0x3a] sm:$0xff]
      %v4867 = vld [vmem:[#allocation2 + $0x42] sm:$0xff]
      %v4868 = vld [vmem:[#allocation2 + $0x4a] sm:$0xff]
      %v4869 = vld [vmem:[#allocation2 + $0x52] sm:$0xff]
      %v4870 = vld [vmem:[#allocation2 + $0x5a] sm:$0xff]
      %v4871 = vld [vmem:[#allocation2 + $0x62] sm:$0xff]
      %v4872 = vld [vmem:[#allocation2 + $0x6a] sm:$0xff]
      %v4873 = vld [vmem:[#allocation2 + $0x72] sm:$0xff]
      %v4874 = vld [vmem:[#allocation2 + $0x7a] sm:$0xff]
      %v4875 = vld [vmem:[#allocation2 + $0x82] sm:$0xff]
      %v4876 = vld [vmem:[#allocation2 + $0x8a] sm:$0xff]
      %v4877 = vld [vmem:[#allocation2 + $0x92] sm:$0xff]
      %v4878 = vld [vmem:[#allocation2 + $0x9a] sm:$0xff]
      %v4879 = vld [vmem:[#allocation2 + $0xa2] sm:$0xff]
      %v4880 = vld [vmem:[#allocation2 + $0xaa] sm:$0xff]
      %v4881 = vld [vmem:[#allocation2 + $0xb2] sm:$0xff]
      %v4882 = vld [vmem:[#allocation2 + $0xba] sm:$0xff]
      %v4883 = vld [vmem:[#allocation2 + $0xc2] sm:$0xff]
      %v4884 = vld [vmem:[#allocation2 + $0xca] sm:$0xff]
      %v4885 = vld [vmem:[#allocation2 + $0xd2] sm:$0xff]
      %v4886 = vld [vmem:[#allocation2 + $0xda] sm:$0xff]
      %v4887 = vld [vmem:[#allocation2 + $0xe2] sm:$0xff]
      %v4888 = vld [vmem:[#allocation2 + $0xea] sm:$0xff]
      %v4889 = vld [vmem:[#allocation2 + $0xf2] sm:$0xff]
      %v4890 = vld [vmem:[#allocation2 + $0xfa] sm:$0xff]
      %v4891 = vld [vmem:[#allocation2 + $0x102] sm:$0xff]
      %v4892 = vld [vmem:[#allocation2 + $0x10a] sm:$0xff]
      %v4893 = vld [vmem:[#allocation2 + $0x112] sm:$0xff]
      %v4894 = vld [vmem:[#allocation2 + $0x11a] sm:$0x3f]
      %v4895 = vpack.c.bf16 %v4860, %v4859
      %v4896 = vpack.c.bf16 %v4862, %v4861
      %v4897 = vpack.c.bf16 %v4864, %v4863
      %v4898 = vpack.c.bf16 %v4866, %v4865
      %v4899 = vpack.c.bf16 %v4868, %v4867
      %v4900 = vpack.c.bf16 %v4870, %v4869
      %v4901 = vpack.c.bf16 %v4872, %v4871
      %v4902 = vpack.c.bf16 %v4874, %v4873
      %v4903 = vpack.c.bf16 %v4876, %v4875
      %v4904 = vpack.c.bf16 %v4878, %v4877
      %v4905 = vpack.c.bf16 %v4880, %v4879
      %v4906 = vpack.c.bf16 %v4882, %v4881
      %v4907 = vpack.c.bf16 %v4884, %v4883
      %v4908 = vpack.c.bf16 %v4886, %v4885
      %v4909 = vpack.c.bf16 %v4888, %v4887
      %v4910 = vpack.c.bf16 %v4890, %v4889
      %v4911 = vpack.c.bf16 %v4892, %v4891
      %v4912 = vpack.c.bf16 %v4894, %v4893
      %s4913 = scalar_lea.vmem %s2, 16
      %v4914 = vld [vmem:[%s4913] sm:$0xf]
      %v4915 = vld [vmem:[%s4913 + $0x4] sm:$0xf]
      %v4918 = vunpack.c.l.b16 %v4914
      %v4919 = vunpack.c.l.b16 %v4915
      %v4920 = vpack.c.b16 %v4919, %v4918
      %v4923 = vsel %vm3656, %v4895, 0
      %v4926 = vsel %vm3656, %v4896, 0
      %v4929 = vsel %vm3656, %v4897, 0
      %v4932 = vsel %vm3656, %v4898, 0
      %v4935 = vsel %vm3656, %v4899, 0
      %v4938 = vsel %vm3656, %v4900, 0
      %v4941 = vsel %vm3656, %v4901, 0
      %v4944 = vsel %vm3656, %v4902, 0
      %v4947 = vsel %vm3656, %v4903, 0
      %v4950 = vsel %vm3656, %v4904, 0
      %v4953 = vsel %vm3656, %v4905, 0
      %v4956 = vsel %vm3656, %v4906, 0
      %v4959 = vsel %vm3656, %v4907, 0
      %v4962 = vsel %vm3656, %v4908, 0
      %v4965 = vsel %vm3656, %v4909, 0
      %v4968 = vsel %vm3656, %v4910, 0
      %v4971 = vsel %vm3656, %v4911, 0
      %v4974 = vsel %vm3656, %v4912, 0
      %4976 = vmatprep.subr.bf16.mxu0 0
      %4977 = vmatpush1.bf16.msra.mxu0 0
      %4978 = vmatprep.subr.bf16.mxu0 0
      %4979 = vmatpush1.bf16.msra.mxu0 0
      %4980 = vmatprep.subr.bf16.mxu0 0
      %4981 = vmatpush1.bf16.msra.mxu0 0
      %4982 = vmatprep.subr.bf16.mxu0 0
      %4983 = vmatpush1.bf16.msra.mxu0 0
      %4984 = vmatprep.subr.bf16.mxu0 0
      %4985 = vmatpush1.bf16.msra.mxu0 0
      %4986 = vmatprep.subr.bf16.mxu0 0
      %4987 = vmatpush1.bf16.msra.mxu0 0
      %4988 = vmatprep.subr.bf16.mxu0 0
      %4989 = vmatpush1.bf16.msra.mxu0 0
      %4990 = vmatprep.subr.bf16.mxu0 0
      %4991 = vmatpush1.bf16.msra.mxu0 %v4920
      %4992 = vmatprep.subr.bf16.mxu0 0
      %4993 = vmatpush2.bf16.msra.mxu0 0
      %4994 = vmatprep.subr.bf16.mxu0 0
      %4995 = vmatpush2.bf16.msra.mxu0 0
      %4996 = vmatprep.subr.bf16.mxu0 0
      %4997 = vmatpush2.bf16.msra.mxu0 0
      %4998 = vmatprep.subr.bf16.mxu0 0
      %4999 = vmatpush2.bf16.msra.mxu0 0
      %5000 = vmatprep.subr.bf16.mxu0 0
      %5001 = vmatpush2.bf16.msra.mxu0 0
      %5002 = vmatprep.subr.bf16.mxu0 0
      %5003 = vmatpush2.bf16.msra.mxu0 0
      %5004 = vmatprep.subr.bf16.mxu0 0
      %5005 = vmatpush2.bf16.msra.mxu0 0
      %5006 = vmatprep.subr.bf16.mxu0 0
      %5007 = vmatpush2.bf16.msra.mxu0 0
      %5008 = vmatprep.mubr.bf16.mxu0 0
      %5009 = vmatmul.mubr.bf16.gmra.mxu0 %v4923
      %v5010 = vpop.f32.mrf.mxu0
      %v5011 = vadd.f32 0.0, %v5010
      %v5012 = vpop.f32.mrf.mxu0
      %v5013 = vpop.f32.mrf.mxu0
      %v5014 = vadd.f32 0.0, %v5013
      %v5015 = vpop.f32.mrf.mxu0
      %5016 = vmatprep.mubr.bf16.mxu0 0
      %5017 = vmatmul.mubr.bf16.gmra.mxu0 %v4926
      %v5018 = vpop.f32.mrf.mxu0
      %v5019 = vadd.f32 0.0, %v5018
      %v5020 = vpop.f32.mrf.mxu0
      %v5021 = vpop.f32.mrf.mxu0
      %v5022 = vadd.f32 0.0, %v5021
      %v5023 = vpop.f32.mrf.mxu0
      %5024 = vmatprep.mubr.bf16.mxu0 0
      %5025 = vmatmul.mubr.bf16.gmra.mxu0 %v4929
      %v5026 = vpop.f32.mrf.mxu0
      %v5027 = vadd.f32 0.0, %v5026
      %v5028 = vpop.f32.mrf.mxu0
      %v5029 = vpop.f32.mrf.mxu0
      %v5030 = vadd.f32 0.0, %v5029
      %v5031 = vpop.f32.mrf.mxu0
      %5032 = vmatprep.mubr.bf16.mxu0 0
      %5033 = vmatmul.mubr.bf16.gmra.mxu0 %v4932
      %v5034 = vpop.f32.mrf.mxu0
      %v5035 = vadd.f32 0.0, %v5034
      %v5036 = vpop.f32.mrf.mxu0
      %v5037 = vpop.f32.mrf.mxu0
      %v5038 = vadd.f32 0.0, %v5037
      %v5039 = vpop.f32.mrf.mxu0
      %5040 = vmatprep.mubr.bf16.mxu0 0
      %5041 = vmatmul.mubr.bf16.gmra.mxu0 %v4935
      %v5042 = vpop.f32.mrf.mxu0
      %v5043 = vadd.f32 0.0, %v5042
      %v5044 = vpop.f32.mrf.mxu0
      %v5045 = vpop.f32.mrf.mxu0
      %v5046 = vadd.f32 0.0, %v5045
      %v5047 = vpop.f32.mrf.mxu0
      %5048 = vmatprep.mubr.bf16.mxu0 0
      %5049 = vmatmul.mubr.bf16.gmra.mxu0 %v4938
      %v5050 = vpop.f32.mrf.mxu0
      %v5051 = vadd.f32 0.0, %v5050
      %v5052 = vpop.f32.mrf.mxu0
      %v5053 = vpop.f32.mrf.mxu0
      %v5054 = vadd.f32 0.0, %v5053
      %v5055 = vpop.f32.mrf.mxu0
      %5056 = vmatprep.mubr.bf16.mxu0 0
      %5057 = vmatmul.mubr.bf16.gmra.mxu0 %v4941
      %v5058 = vpop.f32.mrf.mxu0
      %v5059 = vadd.f32 0.0, %v5058
      %v5060 = vpop.f32.mrf.mxu0
      %v5061 = vpop.f32.mrf.mxu0
      %v5062 = vadd.f32 0.0, %v5061
      %v5063 = vpop.f32.mrf.mxu0
      %5064 = vmatprep.mubr.bf16.mxu0 0
      %5065 = vmatmul.mubr.bf16.gmra.mxu0 %v4944
      %v5066 = vpop.f32.mrf.mxu0
      %v5067 = vadd.f32 0.0, %v5066
      %v5068 = vpop.f32.mrf.mxu0
      %v5069 = vpop.f32.mrf.mxu0
      %v5070 = vadd.f32 0.0, %v5069
      %v5071 = vpop.f32.mrf.mxu0
      %5072 = vmatprep.mubr.bf16.mxu0 0
      %5073 = vmatmul.mubr.bf16.gmra.mxu0 %v4947
      %v5074 = vpop.f32.mrf.mxu0
      %v5075 = vadd.f32 0.0, %v5074
      %v5076 = vpop.f32.mrf.mxu0
      %v5077 = vpop.f32.mrf.mxu0
      %v5078 = vadd.f32 0.0, %v5077
      %v5079 = vpop.f32.mrf.mxu0
      %5080 = vmatprep.mubr.bf16.mxu0 0
      %5081 = vmatmul.mubr.bf16.gmra.mxu0 %v4950
      %v5082 = vpop.f32.mrf.mxu0
      %v5083 = vadd.f32 0.0, %v5082
      %v5084 = vpop.f32.mrf.mxu0
      %v5085 = vpop.f32.mrf.mxu0
      %v5086 = vadd.f32 0.0, %v5085
      %v5087 = vpop.f32.mrf.mxu0
      %5088 = vmatprep.mubr.bf16.mxu0 0
      %5089 = vmatmul.mubr.bf16.gmra.mxu0 %v4953
      %v5090 = vpop.f32.mrf.mxu0
      %v5091 = vadd.f32 0.0, %v5090
      %v5092 = vpop.f32.mrf.mxu0
      %v5093 = vpop.f32.mrf.mxu0
      %v5094 = vadd.f32 0.0, %v5093
      %v5095 = vpop.f32.mrf.mxu0
      %5096 = vmatprep.mubr.bf16.mxu0 0
      %5097 = vmatmul.mubr.bf16.gmra.mxu0 %v4956
      %v5098 = vpop.f32.mrf.mxu0
      %v5099 = vadd.f32 0.0, %v5098
      %v5100 = vpop.f32.mrf.mxu0
      %v5101 = vpop.f32.mrf.mxu0
      %v5102 = vadd.f32 0.0, %v5101
      %v5103 = vpop.f32.mrf.mxu0
      %5104 = vmatprep.mubr.bf16.mxu0 0
      %5105 = vmatmul.mubr.bf16.gmra.mxu0 %v4959
      %v5106 = vpop.f32.mrf.mxu0
      %v5107 = vadd.f32 0.0, %v5106
      %v5108 = vpop.f32.mrf.mxu0
      %v5109 = vpop.f32.mrf.mxu0
      %v5110 = vadd.f32 0.0, %v5109
      %v5111 = vpop.f32.mrf.mxu0
      %5112 = vmatprep.mubr.bf16.mxu0 0
      %5113 = vmatmul.mubr.bf16.gmra.mxu0 %v4962
      %v5114 = vpop.f32.mrf.mxu0
      %v5115 = vadd.f32 0.0, %v5114
      %v5116 = vpop.f32.mrf.mxu0
      %v5117 = vpop.f32.mrf.mxu0
      %v5118 = vadd.f32 0.0, %v5117
      %v5119 = vpop.f32.mrf.mxu0
      %5120 = vmatprep.mubr.bf16.mxu0 0
      %5121 = vmatmul.mubr.bf16.gmra.mxu0 %v4965
      %v5122 = vpop.f32.mrf.mxu0
      %v5123 = vadd.f32 0.0, %v5122
      %v5124 = vpop.f32.mrf.mxu0
      %v5125 = vpop.f32.mrf.mxu0
      %v5126 = vadd.f32 0.0, %v5125
      %v5127 = vpop.f32.mrf.mxu0
      %5128 = vmatprep.mubr.bf16.mxu0 0
      %5129 = vmatmul.mubr.bf16.gmra.mxu0 %v4968
      %v5130 = vpop.f32.mrf.mxu0
      %v5131 = vadd.f32 0.0, %v5130
      %v5132 = vpop.f32.mrf.mxu0
      %v5133 = vpop.f32.mrf.mxu0
      %v5134 = vadd.f32 0.0, %v5133
      %v5135 = vpop.f32.mrf.mxu0
      %5136 = vmatprep.mubr.bf16.mxu0 0
      %5137 = vmatmul.mubr.bf16.gmra.mxu0 %v4971
      %v5138 = vpop.f32.mrf.mxu0
      %v5139 = vadd.f32 0.0, %v5138
      %v5140 = vpop.f32.mrf.mxu0
      %v5141 = vpop.f32.mrf.mxu0
      %v5142 = vadd.f32 0.0, %v5141
      %v5143 = vpop.f32.mrf.mxu0
      %5144 = vmatprep.mubr.bf16.mxu0 0
      %5145 = vmatmul.mubr.bf16.gmra.mxu0 %v4974
      %v5146 = vpop.f32.mrf.mxu0
      %v5147 = vadd.f32 0.0, %v5146
      %v5148 = vpop.f32.mrf.mxu0
      %v5149 = vpop.f32.mrf.mxu0
      %v5150 = vadd.f32 0.0, %v5149
      %v5151 = vpop.f32.mrf.mxu0
      %5152 = vdwg.mxu0
      %v5153 = vadd.f32 %v4717, %v5011
      %v5154 = vadd.f32 %v4720, %v5014
      %v5155 = vadd.f32 %v4725, %v5019
      %v5156 = vadd.f32 %v4728, %v5022
      %v5157 = vadd.f32 %v4733, %v5027
      %v5158 = vadd.f32 %v4736, %v5030
      %v5159 = vadd.f32 %v4741, %v5035
      %v5160 = vadd.f32 %v4744, %v5038
      %v5161 = vadd.f32 %v4749, %v5043
      %v5162 = vadd.f32 %v4752, %v5046
      %v5163 = vadd.f32 %v4757, %v5051
      %v5164 = vadd.f32 %v4760, %v5054
      %v5165 = vadd.f32 %v4765, %v5059
      %v5166 = vadd.f32 %v4768, %v5062
      %v5167 = vadd.f32 %v4773, %v5067
      %v5168 = vadd.f32 %v4776, %v5070
      %v5169 = vadd.f32 %v4781, %v5075
      %v5170 = vadd.f32 %v4784, %v5078
      %v5171 = vadd.f32 %v4789, %v5083
      %v5172 = vadd.f32 %v4792, %v5086
      %v5173 = vadd.f32 %v4797, %v5091
      %v5174 = vadd.f32 %v4800, %v5094
      %v5175 = vadd.f32 %v4805, %v5099
      %v5176 = vadd.f32 %v4808, %v5102
      %v5177 = vadd.f32 %v4813, %v5107
      %v5178 = vadd.f32 %v4816, %v5110
      %v5179 = vadd.f32 %v4821, %v5115
      %v5180 = vadd.f32 %v4824, %v5118
      %v5181 = vadd.f32 %v4829, %v5123
      %v5182 = vadd.f32 %v4832, %v5126
      %v5183 = vadd.f32 %v4837, %v5131
      %v5184 = vadd.f32 %v4840, %v5134
      %v5185 = vadd.f32 %v4845, %v5139
      %v5186 = vadd.f32 %v4848, %v5142
      %v5187 = vadd.f32 %v4853, %v5147
      %v5188 = vadd.f32 %v4856, %v5150
      %v5189 = vld [vmem:[#allocation2 + $0x12] sm:$0xff]
      %v5190 = vld [vmem:[#allocation2 + $0x1a] sm:$0xff]
      %v5191 = vld [vmem:[#allocation2 + $0x22] sm:$0xff]
      %v5192 = vld [vmem:[#allocation2 + $0x2a] sm:$0xff]
      %v5193 = vld [vmem:[#allocation2 + $0x32] sm:$0xff]
      %v5194 = vld [vmem:[#allocation2 + $0x3a] sm:$0xff]
      %v5195 = vld [vmem:[#allocation2 + $0x42] sm:$0xff]
      %v5196 = vld [vmem:[#allocation2 + $0x4a] sm:$0xff]
      %v5197 = vld [vmem:[#allocation2 + $0x52] sm:$0xff]
      %v5198 = vld [vmem:[#allocation2 + $0x5a] sm:$0xff]
      %v5199 = vld [vmem:[#allocation2 + $0x62] sm:$0xff]
      %v5200 = vld [vmem:[#allocation2 + $0x6a] sm:$0xff]
      %v5201 = vld [vmem:[#allocation2 + $0x72] sm:$0xff]
      %v5202 = vld [vmem:[#allocation2 + $0x7a] sm:$0xff]
      %v5203 = vld [vmem:[#allocation2 + $0x82] sm:$0xff]
      %v5204 = vld [vmem:[#allocation2 + $0x8a] sm:$0xff]
      %v5205 = vld [vmem:[#allocation2 + $0x92] sm:$0xff]
      %v5206 = vld [vmem:[#allocation2 + $0x9a] sm:$0xff]
      %v5207 = vld [vmem:[#allocation2 + $0xa2] sm:$0xff]
      %v5208 = vld [vmem:[#allocation2 + $0xaa] sm:$0xff]
      %v5209 = vld [vmem:[#allocation2 + $0xb2] sm:$0xff]
      %v5210 = vld [vmem:[#allocation2 + $0xba] sm:$0xff]
      %v5211 = vld [vmem:[#allocation2 + $0xc2] sm:$0xff]
      %v5212 = vld [vmem:[#allocation2 + $0xca] sm:$0xff]
      %v5213 = vld [vmem:[#allocation2 + $0xd2] sm:$0xff]
      %v5214 = vld [vmem:[#allocation2 + $0xda] sm:$0xff]
      %v5215 = vld [vmem:[#allocation2 + $0xe2] sm:$0xff]
      %v5216 = vld [vmem:[#allocation2 + $0xea] sm:$0xff]
      %v5217 = vld [vmem:[#allocation2 + $0xf2] sm:$0xff]
      %v5218 = vld [vmem:[#allocation2 + $0xfa] sm:$0xff]
      %v5219 = vld [vmem:[#allocation2 + $0x102] sm:$0xff]
      %v5220 = vld [vmem:[#allocation2 + $0x10a] sm:$0xff]
      %v5221 = vld [vmem:[#allocation2 + $0x112] sm:$0xff]
      %v5222 = vld [vmem:[#allocation2 + $0x11a] sm:$0xff]
      %v5223 = vld [vmem:[#allocation2 + $0x122] sm:$0xff]
      %v5224 = vld [vmem:[#allocation2 + $0x12a] sm:$0x3f]
      %v5225 = vpack.c.bf16 %v5190, %v5189
      %v5226 = vpack.c.bf16 %v5192, %v5191
      %v5227 = vpack.c.bf16 %v5194, %v5193
      %v5228 = vpack.c.bf16 %v5196, %v5195
      %v5229 = vpack.c.bf16 %v5198, %v5197
      %v5230 = vpack.c.bf16 %v5200, %v5199
      %v5231 = vpack.c.bf16 %v5202, %v5201
      %v5232 = vpack.c.bf16 %v5204, %v5203
      %v5233 = vpack.c.bf16 %v5206, %v5205
      %v5234 = vpack.c.bf16 %v5208, %v5207
      %v5235 = vpack.c.bf16 %v5210, %v5209
      %v5236 = vpack.c.bf16 %v5212, %v5211
      %v5237 = vpack.c.bf16 %v5214, %v5213
      %v5238 = vpack.c.bf16 %v5216, %v5215
      %v5239 = vpack.c.bf16 %v5218, %v5217
      %v5240 = vpack.c.bf16 %v5220, %v5219
      %v5241 = vpack.c.bf16 %v5222, %v5221
      %v5242 = vpack.c.bf16 %v5224, %v5223
      %s5243 = scalar_lea.vmem %s2, 24
      %v5244 = vld [vmem:[%s5243] sm:$0xf]
      %v5245 = vld [vmem:[%s5243 + $0x4] sm:$0xf]
      %v5248 = vunpack.c.l.b16 %v5244
      %v5249 = vunpack.c.l.b16 %v5245
      %v5250 = vpack.c.b16 %v5249, %v5248
      %v5253 = vsel %vm3656, %v5225, 0
      %v5256 = vsel %vm3656, %v5226, 0
      %v5259 = vsel %vm3656, %v5227, 0
      %v5262 = vsel %vm3656, %v5228, 0
      %v5265 = vsel %vm3656, %v5229, 0
      %v5268 = vsel %vm3656, %v5230, 0
      %v5271 = vsel %vm3656, %v5231, 0
      %v5274 = vsel %vm3656, %v5232, 0
      %v5277 = vsel %vm3656, %v5233, 0
      %v5280 = vsel %vm3656, %v5234, 0
      %v5283 = vsel %vm3656, %v5235, 0
      %v5286 = vsel %vm3656, %v5236, 0
      %v5289 = vsel %vm3656, %v5237, 0
      %v5292 = vsel %vm3656, %v5238, 0
      %v5295 = vsel %vm3656, %v5239, 0
      %v5298 = vsel %vm3656, %v5240, 0
      %v5301 = vsel %vm3656, %v5241, 0
      %v5304 = vsel %vm3656, %v5242, 0
      %5306 = vmatprep.subr.bf16.mxu0 0
      %5307 = vmatpush1.bf16.msra.mxu0 0
      %5308 = vmatprep.subr.bf16.mxu0 0
      %5309 = vmatpush1.bf16.msra.mxu0 0
      %5310 = vmatprep.subr.bf16.mxu0 0
      %5311 = vmatpush1.bf16.msra.mxu0 0
      %5312 = vmatprep.subr.bf16.mxu0 0
      %5313 = vmatpush1.bf16.msra.mxu0 0
      %5314 = vmatprep.subr.bf16.mxu0 0
      %5315 = vmatpush1.bf16.msra.mxu0 0
      %5316 = vmatprep.subr.bf16.mxu0 0
      %5317 = vmatpush1.bf16.msra.mxu0 0
      %5318 = vmatprep.subr.bf16.mxu0 0
      %5319 = vmatpush1.bf16.msra.mxu0 0
      %5320 = vmatprep.subr.bf16.mxu0 0
      %5321 = vmatpush1.bf16.msra.mxu0 %v5250
      %5322 = vmatprep.subr.bf16.mxu0 0
      %5323 = vmatpush2.bf16.msra.mxu0 0
      %5324 = vmatprep.subr.bf16.mxu0 0
      %5325 = vmatpush2.bf16.msra.mxu0 0
      %5326 = vmatprep.subr.bf16.mxu0 0
      %5327 = vmatpush2.bf16.msra.mxu0 0
      %5328 = vmatprep.subr.bf16.mxu0 0
      %5329 = vmatpush2.bf16.msra.mxu0 0
      %5330 = vmatprep.subr.bf16.mxu0 0
      %5331 = vmatpush2.bf16.msra.mxu0 0
      %5332 = vmatprep.subr.bf16.mxu0 0
      %5333 = vmatpush2.bf16.msra.mxu0 0
      %5334 = vmatprep.subr.bf16.mxu0 0
      %5335 = vmatpush2.bf16.msra.mxu0 0
      %5336 = vmatprep.subr.bf16.mxu0 0
      %5337 = vmatpush2.bf16.msra.mxu0 0
      %5338 = vmatprep.mubr.bf16.mxu0 0
      %5339 = vmatmul.mubr.bf16.gmra.mxu0 %v5253
      %v5340 = vpop.f32.mrf.mxu0
      %v5341 = vadd.f32 0.0, %v5340
      %v5342 = vpop.f32.mrf.mxu0
      %v5343 = vpop.f32.mrf.mxu0
      %v5344 = vadd.f32 0.0, %v5343
      %v5345 = vpop.f32.mrf.mxu0
      %5346 = vmatprep.mubr.bf16.mxu0 0
      %5347 = vmatmul.mubr.bf16.gmra.mxu0 %v5256
      %v5348 = vpop.f32.mrf.mxu0
      %v5349 = vadd.f32 0.0, %v5348
      %v5350 = vpop.f32.mrf.mxu0
      %v5351 = vpop.f32.mrf.mxu0
      %v5352 = vadd.f32 0.0, %v5351
      %v5353 = vpop.f32.mrf.mxu0
      %5354 = vmatprep.mubr.bf16.mxu0 0
      %5355 = vmatmul.mubr.bf16.gmra.mxu0 %v5259
      %v5356 = vpop.f32.mrf.mxu0
      %v5357 = vadd.f32 0.0, %v5356
      %v5358 = vpop.f32.mrf.mxu0
      %v5359 = vpop.f32.mrf.mxu0
      %v5360 = vadd.f32 0.0, %v5359
      %v5361 = vpop.f32.mrf.mxu0
      %5362 = vmatprep.mubr.bf16.mxu0 0
      %5363 = vmatmul.mubr.bf16.gmra.mxu0 %v5262
      %v5364 = vpop.f32.mrf.mxu0
      %v5365 = vadd.f32 0.0, %v5364
      %v5366 = vpop.f32.mrf.mxu0
      %v5367 = vpop.f32.mrf.mxu0
      %v5368 = vadd.f32 0.0, %v5367
      %v5369 = vpop.f32.mrf.mxu0
      %5370 = vmatprep.mubr.bf16.mxu0 0
      %5371 = vmatmul.mubr.bf16.gmra.mxu0 %v5265
      %v5372 = vpop.f32.mrf.mxu0
      %v5373 = vadd.f32 0.0, %v5372
      %v5374 = vpop.f32.mrf.mxu0
      %v5375 = vpop.f32.mrf.mxu0
      %v5376 = vadd.f32 0.0, %v5375
      %v5377 = vpop.f32.mrf.mxu0
      %5378 = vmatprep.mubr.bf16.mxu0 0
      %5379 = vmatmul.mubr.bf16.gmra.mxu0 %v5268
      %v5380 = vpop.f32.mrf.mxu0
      %v5381 = vadd.f32 0.0, %v5380
      %v5382 = vpop.f32.mrf.mxu0
      %v5383 = vpop.f32.mrf.mxu0
      %v5384 = vadd.f32 0.0, %v5383
      %v5385 = vpop.f32.mrf.mxu0
      %5386 = vmatprep.mubr.bf16.mxu0 0
      %5387 = vmatmul.mubr.bf16.gmra.mxu0 %v5271
      %v5388 = vpop.f32.mrf.mxu0
      %v5389 = vadd.f32 0.0, %v5388
      %v5390 = vpop.f32.mrf.mxu0
      %v5391 = vpop.f32.mrf.mxu0
      %v5392 = vadd.f32 0.0, %v5391
      %v5393 = vpop.f32.mrf.mxu0
      %5394 = vmatprep.mubr.bf16.mxu0 0
      %5395 = vmatmul.mubr.bf16.gmra.mxu0 %v5274
      %v5396 = vpop.f32.mrf.mxu0
      %v5397 = vadd.f32 0.0, %v5396
      %v5398 = vpop.f32.mrf.mxu0
      %v5399 = vpop.f32.mrf.mxu0
      %v5400 = vadd.f32 0.0, %v5399
      %v5401 = vpop.f32.mrf.mxu0
      %5402 = vmatprep.mubr.bf16.mxu0 0
      %5403 = vmatmul.mubr.bf16.gmra.mxu0 %v5277
      %v5404 = vpop.f32.mrf.mxu0
      %v5405 = vadd.f32 0.0, %v5404
      %v5406 = vpop.f32.mrf.mxu0
      %v5407 = vpop.f32.mrf.mxu0
      %v5408 = vadd.f32 0.0, %v5407
      %v5409 = vpop.f32.mrf.mxu0
      %5410 = vmatprep.mubr.bf16.mxu0 0
      %5411 = vmatmul.mubr.bf16.gmra.mxu0 %v5280
      %v5412 = vpop.f32.mrf.mxu0
      %v5413 = vadd.f32 0.0, %v5412
      %v5414 = vpop.f32.mrf.mxu0
      %v5415 = vpop.f32.mrf.mxu0
      %v5416 = vadd.f32 0.0, %v5415
      %v5417 = vpop.f32.mrf.mxu0
      %5418 = vmatprep.mubr.bf16.mxu0 0
      %5419 = vmatmul.mubr.bf16.gmra.mxu0 %v5283
      %v5420 = vpop.f32.mrf.mxu0
      %v5421 = vadd.f32 0.0, %v5420
      %v5422 = vpop.f32.mrf.mxu0
      %v5423 = vpop.f32.mrf.mxu0
      %v5424 = vadd.f32 0.0, %v5423
      %v5425 = vpop.f32.mrf.mxu0
      %5426 = vmatprep.mubr.bf16.mxu0 0
      %5427 = vmatmul.mubr.bf16.gmra.mxu0 %v5286
      %v5428 = vpop.f32.mrf.mxu0
      %v5429 = vadd.f32 0.0, %v5428
      %v5430 = vpop.f32.mrf.mxu0
      %v5431 = vpop.f32.mrf.mxu0
      %v5432 = vadd.f32 0.0, %v5431
      %v5433 = vpop.f32.mrf.mxu0
      %5434 = vmatprep.mubr.bf16.mxu0 0
      %5435 = vmatmul.mubr.bf16.gmra.mxu0 %v5289
      %v5436 = vpop.f32.mrf.mxu0
      %v5437 = vadd.f32 0.0, %v5436
      %v5438 = vpop.f32.mrf.mxu0
      %v5439 = vpop.f32.mrf.mxu0
      %v5440 = vadd.f32 0.0, %v5439
      %v5441 = vpop.f32.mrf.mxu0
      %5442 = vmatprep.mubr.bf16.mxu0 0
      %5443 = vmatmul.mubr.bf16.gmra.mxu0 %v5292
      %v5444 = vpop.f32.mrf.mxu0
      %v5445 = vadd.f32 0.0, %v5444
      %v5446 = vpop.f32.mrf.mxu0
      %v5447 = vpop.f32.mrf.mxu0
      %v5448 = vadd.f32 0.0, %v5447
      %v5449 = vpop.f32.mrf.mxu0
      %5450 = vmatprep.mubr.bf16.mxu0 0
      %5451 = vmatmul.mubr.bf16.gmra.mxu0 %v5295
      %v5452 = vpop.f32.mrf.mxu0
      %v5453 = vadd.f32 0.0, %v5452
      %v5454 = vpop.f32.mrf.mxu0
      %v5455 = vpop.f32.mrf.mxu0
      %v5456 = vadd.f32 0.0, %v5455
      %v5457 = vpop.f32.mrf.mxu0
      %5458 = vmatprep.mubr.bf16.mxu0 0
      %5459 = vmatmul.mubr.bf16.gmra.mxu0 %v5298
      %v5460 = vpop.f32.mrf.mxu0
      %v5461 = vadd.f32 0.0, %v5460
      %v5462 = vpop.f32.mrf.mxu0
      %v5463 = vpop.f32.mrf.mxu0
      %v5464 = vadd.f32 0.0, %v5463
      %v5465 = vpop.f32.mrf.mxu0
      %5466 = vmatprep.mubr.bf16.mxu0 0
      %5467 = vmatmul.mubr.bf16.gmra.mxu0 %v5301
      %v5468 = vpop.f32.mrf.mxu0
      %v5469 = vadd.f32 0.0, %v5468
      %v5470 = vpop.f32.mrf.mxu0
      %v5471 = vpop.f32.mrf.mxu0
      %v5472 = vadd.f32 0.0, %v5471
      %v5473 = vpop.f32.mrf.mxu0
      %5474 = vmatprep.mubr.bf16.mxu0 0
      %5475 = vmatmul.mubr.bf16.gmra.mxu0 %v5304
      %v5476 = vpop.f32.mrf.mxu0
      %v5477 = vadd.f32 0.0, %v5476
      %v5478 = vpop.f32.mrf.mxu0
      %v5479 = vpop.f32.mrf.mxu0
      %v5480 = vadd.f32 0.0, %v5479
      %v5481 = vpop.f32.mrf.mxu0
      %5482 = vdwg.mxu0
      %v5483 = vadd.f32 %v5153, %v5341
      %v5484 = vadd.f32 %v5154, %v5344
      %v5485 = vadd.f32 %v5155, %v5349
      %v5486 = vadd.f32 %v5156, %v5352
      %v5487 = vadd.f32 %v5157, %v5357
      %v5488 = vadd.f32 %v5158, %v5360
      %v5489 = vadd.f32 %v5159, %v5365
      %v5490 = vadd.f32 %v5160, %v5368
      %v5491 = vadd.f32 %v5161, %v5373
      %v5492 = vadd.f32 %v5162, %v5376
      %v5493 = vadd.f32 %v5163, %v5381
      %v5494 = vadd.f32 %v5164, %v5384
      %v5495 = vadd.f32 %v5165, %v5389
      %v5496 = vadd.f32 %v5166, %v5392
      %v5497 = vadd.f32 %v5167, %v5397
      %v5498 = vadd.f32 %v5168, %v5400
      %v5499 = vadd.f32 %v5169, %v5405
      %v5500 = vadd.f32 %v5170, %v5408
      %v5501 = vadd.f32 %v5171, %v5413
      %v5502 = vadd.f32 %v5172, %v5416
      %v5503 = vadd.f32 %v5173, %v5421
      %v5504 = vadd.f32 %v5174, %v5424
      %v5505 = vadd.f32 %v5175, %v5429
      %v5506 = vadd.f32 %v5176, %v5432
      %v5507 = vadd.f32 %v5177, %v5437
      %v5508 = vadd.f32 %v5178, %v5440
      %v5509 = vadd.f32 %v5179, %v5445
      %v5510 = vadd.f32 %v5180, %v5448
      %v5511 = vadd.f32 %v5181, %v5453
      %v5512 = vadd.f32 %v5182, %v5456
      %v5513 = vadd.f32 %v5183, %v5461
      %v5514 = vadd.f32 %v5184, %v5464
      %v5515 = vadd.f32 %v5185, %v5469
      %v5516 = vadd.f32 %v5186, %v5472
      %v5517 = vadd.f32 %v5187, %v5477
      %v5518 = vadd.f32 %v5188, %v5480
      %v5519 = vld [vmem:[#allocation2 + $0x13] sm:$0xff]
      %v5520 = vld [vmem:[#allocation2 + $0x1b] sm:$0xff]
      %v5521 = vld [vmem:[#allocation2 + $0x23] sm:$0xff]
      %v5522 = vld [vmem:[#allocation2 + $0x2b] sm:$0xff]
      %v5523 = vld [vmem:[#allocation2 + $0x33] sm:$0xff]
      %v5524 = vld [vmem:[#allocation2 + $0x3b] sm:$0xff]
      %v5525 = vld [vmem:[#allocation2 + $0x43] sm:$0xff]
      %v5526 = vld [vmem:[#allocation2 + $0x4b] sm:$0xff]
      %v5527 = vld [vmem:[#allocation2 + $0x53] sm:$0xff]
      %v5528 = vld [vmem:[#allocation2 + $0x5b] sm:$0xff]
      %v5529 = vld [vmem:[#allocation2 + $0x63] sm:$0xff]
      %v5530 = vld [vmem:[#allocation2 + $0x6b] sm:$0xff]
      %v5531 = vld [vmem:[#allocation2 + $0x73] sm:$0xff]
      %v5532 = vld [vmem:[#allocation2 + $0x7b] sm:$0xff]
      %v5533 = vld [vmem:[#allocation2 + $0x83] sm:$0xff]
      %v5534 = vld [vmem:[#allocation2 + $0x8b] sm:$0xff]
      %v5535 = vld [vmem:[#allocation2 + $0x93] sm:$0xff]
      %v5536 = vld [vmem:[#allocation2 + $0x9b] sm:$0xff]
      %v5537 = vld [vmem:[#allocation2 + $0xa3] sm:$0xff]
      %v5538 = vld [vmem:[#allocation2 + $0xab] sm:$0xff]
      %v5539 = vld [vmem:[#allocation2 + $0xb3] sm:$0xff]
      %v5540 = vld [vmem:[#allocation2 + $0xbb] sm:$0xff]
      %v5541 = vld [vmem:[#allocation2 + $0xc3] sm:$0xff]
      %v5542 = vld [vmem:[#allocation2 + $0xcb] sm:$0xff]
      %v5543 = vld [vmem:[#allocation2 + $0xd3] sm:$0xff]
      %v5544 = vld [vmem:[#allocation2 + $0xdb] sm:$0xff]
      %v5545 = vld [vmem:[#allocation2 + $0xe3] sm:$0xff]
      %v5546 = vld [vmem:[#allocation2 + $0xeb] sm:$0xff]
      %v5547 = vld [vmem:[#allocation2 + $0xf3] sm:$0xff]
      %v5548 = vld [vmem:[#allocation2 + $0xfb] sm:$0xff]
      %v5549 = vld [vmem:[#allocation2 + $0x103] sm:$0xff]
      %v5550 = vld [vmem:[#allocation2 + $0x10b] sm:$0xff]
      %v5551 = vld [vmem:[#allocation2 + $0x113] sm:$0xff]
      %v5552 = vld [vmem:[#allocation2 + $0x11b] sm:$0xff]
      %v5553 = vld [vmem:[#allocation2 + $0x123] sm:$0xff]
      %v5554 = vld [vmem:[#allocation2 + $0x12b] sm:$0x3f]
      %v5555 = vpack.c.bf16 %v5520, %v5519
      %v5556 = vpack.c.bf16 %v5522, %v5521
      %v5557 = vpack.c.bf16 %v5524, %v5523
      %v5558 = vpack.c.bf16 %v5526, %v5525
      %v5559 = vpack.c.bf16 %v5528, %v5527
      %v5560 = vpack.c.bf16 %v5530, %v5529
      %v5561 = vpack.c.bf16 %v5532, %v5531
      %v5562 = vpack.c.bf16 %v5534, %v5533
      %v5563 = vpack.c.bf16 %v5536, %v5535
      %v5564 = vpack.c.bf16 %v5538, %v5537
      %v5565 = vpack.c.bf16 %v5540, %v5539
      %v5566 = vpack.c.bf16 %v5542, %v5541
      %v5567 = vpack.c.bf16 %v5544, %v5543
      %v5568 = vpack.c.bf16 %v5546, %v5545
      %v5569 = vpack.c.bf16 %v5548, %v5547
      %v5570 = vpack.c.bf16 %v5550, %v5549
      %v5571 = vpack.c.bf16 %v5552, %v5551
      %v5572 = vpack.c.bf16 %v5554, %v5553
      %s5573 = scalar_lea.vmem %s2, 32
      %v5574 = vld [vmem:[%s5573] sm:$0xf]
      %v5575 = vld [vmem:[%s5573 + $0x4] sm:$0xf]
      %v5578 = vunpack.c.l.b16 %v5574
      %v5579 = vunpack.c.l.b16 %v5575
      %v5580 = vpack.c.b16 %v5579, %v5578
      %v5583 = vsel %vm3656, %v5555, 0
      %v5586 = vsel %vm3656, %v5556, 0
      %v5589 = vsel %vm3656, %v5557, 0
      %v5592 = vsel %vm3656, %v5558, 0
      %v5595 = vsel %vm3656, %v5559, 0
      %v5598 = vsel %vm3656, %v5560, 0
      %v5601 = vsel %vm3656, %v5561, 0
      %v5604 = vsel %vm3656, %v5562, 0
      %v5607 = vsel %vm3656, %v5563, 0
      %v5610 = vsel %vm3656, %v5564, 0
      %v5613 = vsel %vm3656, %v5565, 0
      %v5616 = vsel %vm3656, %v5566, 0
      %v5619 = vsel %vm3656, %v5567, 0
      %v5622 = vsel %vm3656, %v5568, 0
      %v5625 = vsel %vm3656, %v5569, 0
      %v5628 = vsel %vm3656, %v5570, 0
      %v5631 = vsel %vm3656, %v5571, 0
      %v5634 = vsel %vm3656, %v5572, 0
      %5636 = vmatprep.subr.bf16.mxu0 0
      %5637 = vmatpush1.bf16.msra.mxu0 0
      %5638 = vmatprep.subr.bf16.mxu0 0
      %5639 = vmatpush1.bf16.msra.mxu0 0
      %5640 = vmatprep.subr.bf16.mxu0 0
      %5641 = vmatpush1.bf16.msra.mxu0 0
      %5642 = vmatprep.subr.bf16.mxu0 0
      %5643 = vmatpush1.bf16.msra.mxu0 0
      %5644 = vmatprep.subr.bf16.mxu0 0
      %5645 = vmatpush1.bf16.msra.mxu0 0
      %5646 = vmatprep.subr.bf16.mxu0 0
      %5647 = vmatpush1.bf16.msra.mxu0 0
      %5648 = vmatprep.subr.bf16.mxu0 0
      %5649 = vmatpush1.bf16.msra.mxu0 0
      %5650 = vmatprep.subr.bf16.mxu0 0
      %5651 = vmatpush1.bf16.msra.mxu0 %v5580
      %5652 = vmatprep.subr.bf16.mxu0 0
      %5653 = vmatpush2.bf16.msra.mxu0 0
      %5654 = vmatprep.subr.bf16.mxu0 0
      %5655 = vmatpush2.bf16.msra.mxu0 0
      %5656 = vmatprep.subr.bf16.mxu0 0
      %5657 = vmatpush2.bf16.msra.mxu0 0
      %5658 = vmatprep.subr.bf16.mxu0 0
      %5659 = vmatpush2.bf16.msra.mxu0 0
      %5660 = vmatprep.subr.bf16.mxu0 0
      %5661 = vmatpush2.bf16.msra.mxu0 0
      %5662 = vmatprep.subr.bf16.mxu0 0
      %5663 = vmatpush2.bf16.msra.mxu0 0
      %5664 = vmatprep.subr.bf16.mxu0 0
      %5665 = vmatpush2.bf16.msra.mxu0 0
      %5666 = vmatprep.subr.bf16.mxu0 0
      %5667 = vmatpush2.bf16.msra.mxu0 0
      %5668 = vmatprep.mubr.bf16.mxu0 0
      %5669 = vmatmul.mubr.bf16.gmra.mxu0 %v5583
      %v5670 = vpop.f32.mrf.mxu0
      %v5671 = vadd.f32 0.0, %v5670
      %v5672 = vpop.f32.mrf.mxu0
      %v5673 = vpop.f32.mrf.mxu0
      %v5674 = vadd.f32 0.0, %v5673
      %v5675 = vpop.f32.mrf.mxu0
      %5676 = vmatprep.mubr.bf16.mxu0 0
      %5677 = vmatmul.mubr.bf16.gmra.mxu0 %v5586
      %v5678 = vpop.f32.mrf.mxu0
      %v5679 = vadd.f32 0.0, %v5678
      %v5680 = vpop.f32.mrf.mxu0
      %v5681 = vpop.f32.mrf.mxu0
      %v5682 = vadd.f32 0.0, %v5681
      %v5683 = vpop.f32.mrf.mxu0
      %5684 = vmatprep.mubr.bf16.mxu0 0
      %5685 = vmatmul.mubr.bf16.gmra.mxu0 %v5589
      %v5686 = vpop.f32.mrf.mxu0
      %v5687 = vadd.f32 0.0, %v5686
      %v5688 = vpop.f32.mrf.mxu0
      %v5689 = vpop.f32.mrf.mxu0
      %v5690 = vadd.f32 0.0, %v5689
      %v5691 = vpop.f32.mrf.mxu0
      %5692 = vmatprep.mubr.bf16.mxu0 0
      %5693 = vmatmul.mubr.bf16.gmra.mxu0 %v5592
      %v5694 = vpop.f32.mrf.mxu0
      %v5695 = vadd.f32 0.0, %v5694
      %v5696 = vpop.f32.mrf.mxu0
      %v5697 = vpop.f32.mrf.mxu0
      %v5698 = vadd.f32 0.0, %v5697
      %v5699 = vpop.f32.mrf.mxu0
      %5700 = vmatprep.mubr.bf16.mxu0 0
      %5701 = vmatmul.mubr.bf16.gmra.mxu0 %v5595
      %v5702 = vpop.f32.mrf.mxu0
      %v5703 = vadd.f32 0.0, %v5702
      %v5704 = vpop.f32.mrf.mxu0
      %v5705 = vpop.f32.mrf.mxu0
      %v5706 = vadd.f32 0.0, %v5705
      %v5707 = vpop.f32.mrf.mxu0
      %5708 = vmatprep.mubr.bf16.mxu0 0
      %5709 = vmatmul.mubr.bf16.gmra.mxu0 %v5598
      %v5710 = vpop.f32.mrf.mxu0
      %v5711 = vadd.f32 0.0, %v5710
      %v5712 = vpop.f32.mrf.mxu0
      %v5713 = vpop.f32.mrf.mxu0
      %v5714 = vadd.f32 0.0, %v5713
      %v5715 = vpop.f32.mrf.mxu0
      %5716 = vmatprep.mubr.bf16.mxu0 0
      %5717 = vmatmul.mubr.bf16.gmra.mxu0 %v5601
      %v5718 = vpop.f32.mrf.mxu0
      %v5719 = vadd.f32 0.0, %v5718
      %v5720 = vpop.f32.mrf.mxu0
      %v5721 = vpop.f32.mrf.mxu0
      %v5722 = vadd.f32 0.0, %v5721
      %v5723 = vpop.f32.mrf.mxu0
      %5724 = vmatprep.mubr.bf16.mxu0 0
      %5725 = vmatmul.mubr.bf16.gmra.mxu0 %v5604
      %v5726 = vpop.f32.mrf.mxu0
      %v5727 = vadd.f32 0.0, %v5726
      %v5728 = vpop.f32.mrf.mxu0
      %v5729 = vpop.f32.mrf.mxu0
      %v5730 = vadd.f32 0.0, %v5729
      %v5731 = vpop.f32.mrf.mxu0
      %5732 = vmatprep.mubr.bf16.mxu0 0
      %5733 = vmatmul.mubr.bf16.gmra.mxu0 %v5607
      %v5734 = vpop.f32.mrf.mxu0
      %v5735 = vadd.f32 0.0, %v5734
      %v5736 = vpop.f32.mrf.mxu0
      %v5737 = vpop.f32.mrf.mxu0
      %v5738 = vadd.f32 0.0, %v5737
      %v5739 = vpop.f32.mrf.mxu0
      %5740 = vmatprep.mubr.bf16.mxu0 0
      %5741 = vmatmul.mubr.bf16.gmra.mxu0 %v5610
      %v5742 = vpop.f32.mrf.mxu0
      %v5743 = vadd.f32 0.0, %v5742
      %v5744 = vpop.f32.mrf.mxu0
      %v5745 = vpop.f32.mrf.mxu0
      %v5746 = vadd.f32 0.0, %v5745
      %v5747 = vpop.f32.mrf.mxu0
      %5748 = vmatprep.mubr.bf16.mxu0 0
      %5749 = vmatmul.mubr.bf16.gmra.mxu0 %v5613
      %v5750 = vpop.f32.mrf.mxu0
      %v5751 = vadd.f32 0.0, %v5750
      %v5752 = vpop.f32.mrf.mxu0
      %v5753 = vpop.f32.mrf.mxu0
      %v5754 = vadd.f32 0.0, %v5753
      %v5755 = vpop.f32.mrf.mxu0
      %5756 = vmatprep.mubr.bf16.mxu0 0
      %5757 = vmatmul.mubr.bf16.gmra.mxu0 %v5616
      %v5758 = vpop.f32.mrf.mxu0
      %v5759 = vadd.f32 0.0, %v5758
      %v5760 = vpop.f32.mrf.mxu0
      %v5761 = vpop.f32.mrf.mxu0
      %v5762 = vadd.f32 0.0, %v5761
      %v5763 = vpop.f32.mrf.mxu0
      %5764 = vmatprep.mubr.bf16.mxu0 0
      %5765 = vmatmul.mubr.bf16.gmra.mxu0 %v5619
      %v5766 = vpop.f32.mrf.mxu0
      %v5767 = vadd.f32 0.0, %v5766
      %v5768 = vpop.f32.mrf.mxu0
      %v5769 = vpop.f32.mrf.mxu0
      %v5770 = vadd.f32 0.0, %v5769
      %v5771 = vpop.f32.mrf.mxu0
      %5772 = vmatprep.mubr.bf16.mxu0 0
      %5773 = vmatmul.mubr.bf16.gmra.mxu0 %v5622
      %v5774 = vpop.f32.mrf.mxu0
      %v5775 = vadd.f32 0.0, %v5774
      %v5776 = vpop.f32.mrf.mxu0
      %v5777 = vpop.f32.mrf.mxu0
      %v5778 = vadd.f32 0.0, %v5777
      %v5779 = vpop.f32.mrf.mxu0
      %5780 = vmatprep.mubr.bf16.mxu0 0
      %5781 = vmatmul.mubr.bf16.gmra.mxu0 %v5625
      %v5782 = vpop.f32.mrf.mxu0
      %v5783 = vadd.f32 0.0, %v5782
      %v5784 = vpop.f32.mrf.mxu0
      %v5785 = vpop.f32.mrf.mxu0
      %v5786 = vadd.f32 0.0, %v5785
      %v5787 = vpop.f32.mrf.mxu0
      %5788 = vmatprep.mubr.bf16.mxu0 0
      %5789 = vmatmul.mubr.bf16.gmra.mxu0 %v5628
      %v5790 = vpop.f32.mrf.mxu0
      %v5791 = vadd.f32 0.0, %v5790
      %v5792 = vpop.f32.mrf.mxu0
      %v5793 = vpop.f32.mrf.mxu0
      %v5794 = vadd.f32 0.0, %v5793
      %v5795 = vpop.f32.mrf.mxu0
      %5796 = vmatprep.mubr.bf16.mxu0 0
      %5797 = vmatmul.mubr.bf16.gmra.mxu0 %v5631
      %v5798 = vpop.f32.mrf.mxu0
      %v5799 = vadd.f32 0.0, %v5798
      %v5800 = vpop.f32.mrf.mxu0
      %v5801 = vpop.f32.mrf.mxu0
      %v5802 = vadd.f32 0.0, %v5801
      %v5803 = vpop.f32.mrf.mxu0
      %5804 = vmatprep.mubr.bf16.mxu0 0
      %5805 = vmatmul.mubr.bf16.gmra.mxu0 %v5634
      %v5806 = vpop.f32.mrf.mxu0
      %v5807 = vadd.f32 0.0, %v5806
      %v5808 = vpop.f32.mrf.mxu0
      %v5809 = vpop.f32.mrf.mxu0
      %v5810 = vadd.f32 0.0, %v5809
      %v5811 = vpop.f32.mrf.mxu0
      %5812 = vdwg.mxu0
      %v5813 = vadd.f32 %v5483, %v5671
      %v5814 = vadd.f32 %v5484, %v5674
      %v5815 = vadd.f32 %v5485, %v5679
      %v5816 = vadd.f32 %v5486, %v5682
      %v5817 = vadd.f32 %v5487, %v5687
      %v5818 = vadd.f32 %v5488, %v5690
      %v5819 = vadd.f32 %v5489, %v5695
      %v5820 = vadd.f32 %v5490, %v5698
      %v5821 = vadd.f32 %v5491, %v5703
      %v5822 = vadd.f32 %v5492, %v5706
      %v5823 = vadd.f32 %v5493, %v5711
      %v5824 = vadd.f32 %v5494, %v5714
      %v5825 = vadd.f32 %v5495, %v5719
      %v5826 = vadd.f32 %v5496, %v5722
      %v5827 = vadd.f32 %v5497, %v5727
      %v5828 = vadd.f32 %v5498, %v5730
      %v5829 = vadd.f32 %v5499, %v5735
      %v5830 = vadd.f32 %v5500, %v5738
      %v5831 = vadd.f32 %v5501, %v5743
      %v5832 = vadd.f32 %v5502, %v5746
      %v5833 = vadd.f32 %v5503, %v5751
      %v5834 = vadd.f32 %v5504, %v5754
      %v5835 = vadd.f32 %v5505, %v5759
      %v5836 = vadd.f32 %v5506, %v5762
      %v5837 = vadd.f32 %v5507, %v5767
      %v5838 = vadd.f32 %v5508, %v5770
      %v5839 = vadd.f32 %v5509, %v5775
      %v5840 = vadd.f32 %v5510, %v5778
      %v5841 = vadd.f32 %v5511, %v5783
      %v5842 = vadd.f32 %v5512, %v5786
      %v5843 = vadd.f32 %v5513, %v5791
      %v5844 = vadd.f32 %v5514, %v5794
      %v5845 = vadd.f32 %v5515, %v5799
      %v5846 = vadd.f32 %v5516, %v5802
      %v5847 = vadd.f32 %v5517, %v5807
      %v5848 = vadd.f32 %v5518, %v5810
      %v5849 = vld [vmem:[#allocation2 + $0x14] sm:$0xff]
      %v5850 = vld [vmem:[#allocation2 + $0x1c] sm:$0xff]
      %v5851 = vld [vmem:[#allocation2 + $0x24] sm:$0xff]
      %v5852 = vld [vmem:[#allocation2 + $0x2c] sm:$0xff]
      %v5853 = vld [vmem:[#allocation2 + $0x34] sm:$0xff]
      %v5854 = vld [vmem:[#allocation2 + $0x3c] sm:$0xff]
      %v5855 = vld [vmem:[#allocation2 + $0x44] sm:$0xff]
      %v5856 = vld [vmem:[#allocation2 + $0x4c] sm:$0xff]
      %v5857 = vld [vmem:[#allocation2 + $0x54] sm:$0xff]
      %v5858 = vld [vmem:[#allocation2 + $0x5c] sm:$0xff]
      %v5859 = vld [vmem:[#allocation2 + $0x64] sm:$0xff]
      %v5860 = vld [vmem:[#allocation2 + $0x6c] sm:$0xff]
      %v5861 = vld [vmem:[#allocation2 + $0x74] sm:$0xff]
      %v5862 = vld [vmem:[#allocation2 + $0x7c] sm:$0xff]
      %v5863 = vld [vmem:[#allocation2 + $0x84] sm:$0xff]
      %v5864 = vld [vmem:[#allocation2 + $0x8c] sm:$0xff]
      %v5865 = vld [vmem:[#allocation2 + $0x94] sm:$0xff]
      %v5866 = vld [vmem:[#allocation2 + $0x9c] sm:$0xff]
      %v5867 = vld [vmem:[#allocation2 + $0xa4] sm:$0xff]
      %v5868 = vld [vmem:[#allocation2 + $0xac] sm:$0xff]
      %v5869 = vld [vmem:[#allocation2 + $0xb4] sm:$0xff]
      %v5870 = vld [vmem:[#allocation2 + $0xbc] sm:$0xff]
      %v5871 = vld [vmem:[#allocation2 + $0xc4] sm:$0xff]
      %v5872 = vld [vmem:[#allocation2 + $0xcc] sm:$0xff]
      %v5873 = vld [vmem:[#allocation2 + $0xd4] sm:$0xff]
      %v5874 = vld [vmem:[#allocation2 + $0xdc] sm:$0xff]
      %v5875 = vld [vmem:[#allocation2 + $0xe4] sm:$0xff]
      %v5876 = vld [vmem:[#allocation2 + $0xec] sm:$0xff]
      %v5877 = vld [vmem:[#allocation2 + $0xf4] sm:$0xff]
      %v5878 = vld [vmem:[#allocation2 + $0xfc] sm:$0xff]
      %v5879 = vld [vmem:[#allocation2 + $0x104] sm:$0xff]
      %v5880 = vld [vmem:[#allocation2 + $0x10c] sm:$0xff]
      %v5881 = vld [vmem:[#allocation2 + $0x114] sm:$0xff]
      %v5882 = vld [vmem:[#allocation2 + $0x11c] sm:$0xff]
      %v5883 = vld [vmem:[#allocation2 + $0x124] sm:$0xff]
      %v5884 = vld [vmem:[#allocation2 + $0x12c] sm:$0x3f]
      %v5885 = vpack.c.bf16 %v5850, %v5849
      %v5886 = vpack.c.bf16 %v5852, %v5851
      %v5887 = vpack.c.bf16 %v5854, %v5853
      %v5888 = vpack.c.bf16 %v5856, %v5855
      %v5889 = vpack.c.bf16 %v5858, %v5857
      %v5890 = vpack.c.bf16 %v5860, %v5859
      %v5891 = vpack.c.bf16 %v5862, %v5861
      %v5892 = vpack.c.bf16 %v5864, %v5863
      %v5893 = vpack.c.bf16 %v5866, %v5865
      %v5894 = vpack.c.bf16 %v5868, %v5867
      %v5895 = vpack.c.bf16 %v5870, %v5869
      %v5896 = vpack.c.bf16 %v5872, %v5871
      %v5897 = vpack.c.bf16 %v5874, %v5873
      %v5898 = vpack.c.bf16 %v5876, %v5875
      %v5899 = vpack.c.bf16 %v5878, %v5877
      %v5900 = vpack.c.bf16 %v5880, %v5879
      %v5901 = vpack.c.bf16 %v5882, %v5881
      %v5902 = vpack.c.bf16 %v5884, %v5883
      %s5903 = scalar_lea.vmem %s2, 40
      %v5904 = vld [vmem:[%s5903] sm:$0xf]
      %v5905 = vld [vmem:[%s5903 + $0x4] sm:$0xf]
      %v5908 = vunpack.c.l.b16 %v5904
      %v5909 = vunpack.c.l.b16 %v5905
      %v5910 = vpack.c.b16 %v5909, %v5908
      %v5913 = vsel %vm3656, %v5885, 0
      %v5916 = vsel %vm3656, %v5886, 0
      %v5919 = vsel %vm3656, %v5887, 0
      %v5922 = vsel %vm3656, %v5888, 0
      %v5925 = vsel %vm3656, %v5889, 0
      %v5928 = vsel %vm3656, %v5890, 0
      %v5931 = vsel %vm3656, %v5891, 0
      %v5934 = vsel %vm3656, %v5892, 0
      %v5937 = vsel %vm3656, %v5893, 0
      %v5940 = vsel %vm3656, %v5894, 0
      %v5943 = vsel %vm3656, %v5895, 0
      %v5946 = vsel %vm3656, %v5896, 0
      %v5949 = vsel %vm3656, %v5897, 0
      %v5952 = vsel %vm3656, %v5898, 0
      %v5955 = vsel %vm3656, %v5899, 0
      %v5958 = vsel %vm3656, %v5900, 0
      %v5961 = vsel %vm3656, %v5901, 0
      %v5964 = vsel %vm3656, %v5902, 0
      %5966 = vmatprep.subr.bf16.mxu0 0
      %5967 = vmatpush1.bf16.msra.mxu0 0
      %5968 = vmatprep.subr.bf16.mxu0 0
      %5969 = vmatpush1.bf16.msra.mxu0 0
      %5970 = vmatprep.subr.bf16.mxu0 0
      %5971 = vmatpush1.bf16.msra.mxu0 0
      %5972 = vmatprep.subr.bf16.mxu0 0
      %5973 = vmatpush1.bf16.msra.mxu0 0
      %5974 = vmatprep.subr.bf16.mxu0 0
      %5975 = vmatpush1.bf16.msra.mxu0 0
      %5976 = vmatprep.subr.bf16.mxu0 0
      %5977 = vmatpush1.bf16.msra.mxu0 0
      %5978 = vmatprep.subr.bf16.mxu0 0
      %5979 = vmatpush1.bf16.msra.mxu0 0
      %5980 = vmatprep.subr.bf16.mxu0 0
      %5981 = vmatpush1.bf16.msra.mxu0 %v5910
      %5982 = vmatprep.subr.bf16.mxu0 0
      %5983 = vmatpush2.bf16.msra.mxu0 0
      %5984 = vmatprep.subr.bf16.mxu0 0
      %5985 = vmatpush2.bf16.msra.mxu0 0
      %5986 = vmatprep.subr.bf16.mxu0 0
      %5987 = vmatpush2.bf16.msra.mxu0 0
      %5988 = vmatprep.subr.bf16.mxu0 0
      %5989 = vmatpush2.bf16.msra.mxu0 0
      %5990 = vmatprep.subr.bf16.mxu0 0
      %5991 = vmatpush2.bf16.msra.mxu0 0
      %5992 = vmatprep.subr.bf16.mxu0 0
      %5993 = vmatpush2.bf16.msra.mxu0 0
      %5994 = vmatprep.subr.bf16.mxu0 0
      %5995 = vmatpush2.bf16.msra.mxu0 0
      %5996 = vmatprep.subr.bf16.mxu0 0
      %5997 = vmatpush2.bf16.msra.mxu0 0
      %5998 = vmatprep.mubr.bf16.mxu0 0
      %5999 = vmatmul.mubr.bf16.gmra.mxu0 %v5913
      %v6000 = vpop.f32.mrf.mxu0
      %v6001 = vadd.f32 0.0, %v6000
      %v6002 = vpop.f32.mrf.mxu0
      %v6003 = vpop.f32.mrf.mxu0
      %v6004 = vadd.f32 0.0, %v6003
      %v6005 = vpop.f32.mrf.mxu0
      %6006 = vmatprep.mubr.bf16.mxu0 0
      %6007 = vmatmul.mubr.bf16.gmra.mxu0 %v5916
      %v6008 = vpop.f32.mrf.mxu0
      %v6009 = vadd.f32 0.0, %v6008
      %v6010 = vpop.f32.mrf.mxu0
      %v6011 = vpop.f32.mrf.mxu0
      %v6012 = vadd.f32 0.0, %v6011
      %v6013 = vpop.f32.mrf.mxu0
      %6014 = vmatprep.mubr.bf16.mxu0 0
      %6015 = vmatmul.mubr.bf16.gmra.mxu0 %v5919
      %v6016 = vpop.f32.mrf.mxu0
      %v6017 = vadd.f32 0.0, %v6016
      %v6018 = vpop.f32.mrf.mxu0
      %v6019 = vpop.f32.mrf.mxu0
      %v6020 = vadd.f32 0.0, %v6019
      %v6021 = vpop.f32.mrf.mxu0
      %6022 = vmatprep.mubr.bf16.mxu0 0
      %6023 = vmatmul.mubr.bf16.gmra.mxu0 %v5922
      %v6024 = vpop.f32.mrf.mxu0
      %v6025 = vadd.f32 0.0, %v6024
      %v6026 = vpop.f32.mrf.mxu0
      %v6027 = vpop.f32.mrf.mxu0
      %v6028 = vadd.f32 0.0, %v6027
      %v6029 = vpop.f32.mrf.mxu0
      %6030 = vmatprep.mubr.bf16.mxu0 0
      %6031 = vmatmul.mubr.bf16.gmra.mxu0 %v5925
      %v6032 = vpop.f32.mrf.mxu0
      %v6033 = vadd.f32 0.0, %v6032
      %v6034 = vpop.f32.mrf.mxu0
      %v6035 = vpop.f32.mrf.mxu0
      %v6036 = vadd.f32 0.0, %v6035
      %v6037 = vpop.f32.mrf.mxu0
      %6038 = vmatprep.mubr.bf16.mxu0 0
      %6039 = vmatmul.mubr.bf16.gmra.mxu0 %v5928
      %v6040 = vpop.f32.mrf.mxu0
      %v6041 = vadd.f32 0.0, %v6040
      %v6042 = vpop.f32.mrf.mxu0
      %v6043 = vpop.f32.mrf.mxu0
      %v6044 = vadd.f32 0.0, %v6043
      %v6045 = vpop.f32.mrf.mxu0
      %6046 = vmatprep.mubr.bf16.mxu0 0
      %6047 = vmatmul.mubr.bf16.gmra.mxu0 %v5931
      %v6048 = vpop.f32.mrf.mxu0
      %v6049 = vadd.f32 0.0, %v6048
      %v6050 = vpop.f32.mrf.mxu0
      %v6051 = vpop.f32.mrf.mxu0
      %v6052 = vadd.f32 0.0, %v6051
      %v6053 = vpop.f32.mrf.mxu0
      %6054 = vmatprep.mubr.bf16.mxu0 0
      %6055 = vmatmul.mubr.bf16.gmra.mxu0 %v5934
      %v6056 = vpop.f32.mrf.mxu0
      %v6057 = vadd.f32 0.0, %v6056
      %v6058 = vpop.f32.mrf.mxu0
      %v6059 = vpop.f32.mrf.mxu0
      %v6060 = vadd.f32 0.0, %v6059
      %v6061 = vpop.f32.mrf.mxu0
      %6062 = vmatprep.mubr.bf16.mxu0 0
      %6063 = vmatmul.mubr.bf16.gmra.mxu0 %v5937
      %v6064 = vpop.f32.mrf.mxu0
      %v6065 = vadd.f32 0.0, %v6064
      %v6066 = vpop.f32.mrf.mxu0
      %v6067 = vpop.f32.mrf.mxu0
      %v6068 = vadd.f32 0.0, %v6067
      %v6069 = vpop.f32.mrf.mxu0
      %6070 = vmatprep.mubr.bf16.mxu0 0
      %6071 = vmatmul.mubr.bf16.gmra.mxu0 %v5940
      %v6072 = vpop.f32.mrf.mxu0
      %v6073 = vadd.f32 0.0, %v6072
      %v6074 = vpop.f32.mrf.mxu0
      %v6075 = vpop.f32.mrf.mxu0
      %v6076 = vadd.f32 0.0, %v6075
      %v6077 = vpop.f32.mrf.mxu0
      %6078 = vmatprep.mubr.bf16.mxu0 0
      %6079 = vmatmul.mubr.bf16.gmra.mxu0 %v5943
      %v6080 = vpop.f32.mrf.mxu0
      %v6081 = vadd.f32 0.0, %v6080
      %v6082 = vpop.f32.mrf.mxu0
      %v6083 = vpop.f32.mrf.mxu0
      %v6084 = vadd.f32 0.0, %v6083
      %v6085 = vpop.f32.mrf.mxu0
      %6086 = vmatprep.mubr.bf16.mxu0 0
      %6087 = vmatmul.mubr.bf16.gmra.mxu0 %v5946
      %v6088 = vpop.f32.mrf.mxu0
      %v6089 = vadd.f32 0.0, %v6088
      %v6090 = vpop.f32.mrf.mxu0
      %v6091 = vpop.f32.mrf.mxu0
      %v6092 = vadd.f32 0.0, %v6091
      %v6093 = vpop.f32.mrf.mxu0
      %6094 = vmatprep.mubr.bf16.mxu0 0
      %6095 = vmatmul.mubr.bf16.gmra.mxu0 %v5949
      %v6096 = vpop.f32.mrf.mxu0
      %v6097 = vadd.f32 0.0, %v6096
      %v6098 = vpop.f32.mrf.mxu0
      %v6099 = vpop.f32.mrf.mxu0
      %v6100 = vadd.f32 0.0, %v6099
      %v6101 = vpop.f32.mrf.mxu0
      %6102 = vmatprep.mubr.bf16.mxu0 0
      %6103 = vmatmul.mubr.bf16.gmra.mxu0 %v5952
      %v6104 = vpop.f32.mrf.mxu0
      %v6105 = vadd.f32 0.0, %v6104
      %v6106 = vpop.f32.mrf.mxu0
      %v6107 = vpop.f32.mrf.mxu0
      %v6108 = vadd.f32 0.0, %v6107
      %v6109 = vpop.f32.mrf.mxu0
      %6110 = vmatprep.mubr.bf16.mxu0 0
      %6111 = vmatmul.mubr.bf16.gmra.mxu0 %v5955
      %v6112 = vpop.f32.mrf.mxu0
      %v6113 = vadd.f32 0.0, %v6112
      %v6114 = vpop.f32.mrf.mxu0
      %v6115 = vpop.f32.mrf.mxu0
      %v6116 = vadd.f32 0.0, %v6115
      %v6117 = vpop.f32.mrf.mxu0
      %6118 = vmatprep.mubr.bf16.mxu0 0
      %6119 = vmatmul.mubr.bf16.gmra.mxu0 %v5958
      %v6120 = vpop.f32.mrf.mxu0
      %v6121 = vadd.f32 0.0, %v6120
      %v6122 = vpop.f32.mrf.mxu0
      %v6123 = vpop.f32.mrf.mxu0
      %v6124 = vadd.f32 0.0, %v6123
      %v6125 = vpop.f32.mrf.mxu0
      %6126 = vmatprep.mubr.bf16.mxu0 0
      %6127 = vmatmul.mubr.bf16.gmra.mxu0 %v5961
      %v6128 = vpop.f32.mrf.mxu0
      %v6129 = vadd.f32 0.0, %v6128
      %v6130 = vpop.f32.mrf.mxu0
      %v6131 = vpop.f32.mrf.mxu0
      %v6132 = vadd.f32 0.0, %v6131
      %v6133 = vpop.f32.mrf.mxu0
      %6134 = vmatprep.mubr.bf16.mxu0 0
      %6135 = vmatmul.mubr.bf16.gmra.mxu0 %v5964
      %v6136 = vpop.f32.mrf.mxu0
      %v6137 = vadd.f32 0.0, %v6136
      %v6138 = vpop.f32.mrf.mxu0
      %v6139 = vpop.f32.mrf.mxu0
      %v6140 = vadd.f32 0.0, %v6139
      %v6141 = vpop.f32.mrf.mxu0
      %6142 = vdwg.mxu0
      %v6143 = vadd.f32 %v5813, %v6001
      %v6144 = vadd.f32 %v5814, %v6004
      %v6145 = vadd.f32 %v5815, %v6009
      %v6146 = vadd.f32 %v5816, %v6012
      %v6147 = vadd.f32 %v5817, %v6017
      %v6148 = vadd.f32 %v5818, %v6020
      %v6149 = vadd.f32 %v5819, %v6025
      %v6150 = vadd.f32 %v5820, %v6028
      %v6151 = vadd.f32 %v5821, %v6033
      %v6152 = vadd.f32 %v5822, %v6036
      %v6153 = vadd.f32 %v5823, %v6041
      %v6154 = vadd.f32 %v5824, %v6044
      %v6155 = vadd.f32 %v5825, %v6049
      %v6156 = vadd.f32 %v5826, %v6052
      %v6157 = vadd.f32 %v5827, %v6057
      %v6158 = vadd.f32 %v5828, %v6060
      %v6159 = vadd.f32 %v5829, %v6065
      %v6160 = vadd.f32 %v5830, %v6068
      %v6161 = vadd.f32 %v5831, %v6073
      %v6162 = vadd.f32 %v5832, %v6076
      %v6163 = vadd.f32 %v5833, %v6081
      %v6164 = vadd.f32 %v5834, %v6084
      %v6165 = vadd.f32 %v5835, %v6089
      %v6166 = vadd.f32 %v5836, %v6092
      %v6167 = vadd.f32 %v5837, %v6097
      %v6168 = vadd.f32 %v5838, %v6100
      %v6169 = vadd.f32 %v5839, %v6105
      %v6170 = vadd.f32 %v5840, %v6108
      %v6171 = vadd.f32 %v5841, %v6113
      %v6172 = vadd.f32 %v5842, %v6116
      %v6173 = vadd.f32 %v5843, %v6121
      %v6174 = vadd.f32 %v5844, %v6124
      %v6175 = vadd.f32 %v5845, %v6129
      %v6176 = vadd.f32 %v5846, %v6132
      %v6177 = vadd.f32 %v5847, %v6137
      %v6178 = vadd.f32 %v5848, %v6140
      %v6179 = vld [vmem:[#allocation2 + $0x24] sm:$0xff]
      %v6180 = vld [vmem:[#allocation2 + $0x2c] sm:$0xff]
      %v6181 = vld [vmem:[#allocation2 + $0x34] sm:$0xff]
      %v6182 = vld [vmem:[#allocation2 + $0x3c] sm:$0xff]
      %v6183 = vld [vmem:[#allocation2 + $0x44] sm:$0xff]
      %v6184 = vld [vmem:[#allocation2 + $0x4c] sm:$0xff]
      %v6185 = vld [vmem:[#allocation2 + $0x54] sm:$0xff]
      %v6186 = vld [vmem:[#allocation2 + $0x5c] sm:$0xff]
      %v6187 = vld [vmem:[#allocation2 + $0x64] sm:$0xff]
      %v6188 = vld [vmem:[#allocation2 + $0x6c] sm:$0xff]
      %v6189 = vld [vmem:[#allocation2 + $0x74] sm:$0xff]
      %v6190 = vld [vmem:[#allocation2 + $0x7c] sm:$0xff]
      %v6191 = vld [vmem:[#allocation2 + $0x84] sm:$0xff]
      %v6192 = vld [vmem:[#allocation2 + $0x8c] sm:$0xff]
      %v6193 = vld [vmem:[#allocation2 + $0x94] sm:$0xff]
      %v6194 = vld [vmem:[#allocation2 + $0x9c] sm:$0xff]
      %v6195 = vld [vmem:[#allocation2 + $0xa4] sm:$0xff]
      %v6196 = vld [vmem:[#allocation2 + $0xac] sm:$0xff]
      %v6197 = vld [vmem:[#allocation2 + $0xb4] sm:$0xff]
      %v6198 = vld [vmem:[#allocation2 + $0xbc] sm:$0xff]
      %v6199 = vld [vmem:[#allocation2 + $0xc4] sm:$0xff]
      %v6200 = vld [vmem:[#allocation2 + $0xcc] sm:$0xff]
      %v6201 = vld [vmem:[#allocation2 + $0xd4] sm:$0xff]
      %v6202 = vld [vmem:[#allocation2 + $0xdc] sm:$0xff]
      %v6203 = vld [vmem:[#allocation2 + $0xe4] sm:$0xff]
      %v6204 = vld [vmem:[#allocation2 + $0xec] sm:$0xff]
      %v6205 = vld [vmem:[#allocation2 + $0xf4] sm:$0xff]
      %v6206 = vld [vmem:[#allocation2 + $0xfc] sm:$0xff]
      %v6207 = vld [vmem:[#allocation2 + $0x104] sm:$0xff]
      %v6208 = vld [vmem:[#allocation2 + $0x10c] sm:$0xff]
      %v6209 = vld [vmem:[#allocation2 + $0x114] sm:$0xff]
      %v6210 = vld [vmem:[#allocation2 + $0x11c] sm:$0xff]
      %v6211 = vld [vmem:[#allocation2 + $0x124] sm:$0xff]
      %v6212 = vld [vmem:[#allocation2 + $0x12c] sm:$0xff]
      %v6213 = vld [vmem:[#allocation2 + $0x134] sm:$0xff]
      %v6214 = vld [vmem:[#allocation2 + $0x13c] sm:$0x3f]
      %v6215 = vpack.c.bf16 %v6180, %v6179
      %v6216 = vpack.c.bf16 %v6182, %v6181
      %v6217 = vpack.c.bf16 %v6184, %v6183
      %v6218 = vpack.c.bf16 %v6186, %v6185
      %v6219 = vpack.c.bf16 %v6188, %v6187
      %v6220 = vpack.c.bf16 %v6190, %v6189
      %v6221 = vpack.c.bf16 %v6192, %v6191
      %v6222 = vpack.c.bf16 %v6194, %v6193
      %v6223 = vpack.c.bf16 %v6196, %v6195
      %v6224 = vpack.c.bf16 %v6198, %v6197
      %v6225 = vpack.c.bf16 %v6200, %v6199
      %v6226 = vpack.c.bf16 %v6202, %v6201
      %v6227 = vpack.c.bf16 %v6204, %v6203
      %v6228 = vpack.c.bf16 %v6206, %v6205
      %v6229 = vpack.c.bf16 %v6208, %v6207
      %v6230 = vpack.c.bf16 %v6210, %v6209
      %v6231 = vpack.c.bf16 %v6212, %v6211
      %v6232 = vpack.c.bf16 %v6214, %v6213
      %s6233 = scalar_lea.vmem %s2, 48
      %v6234 = vld [vmem:[%s6233] sm:$0xf]
      %v6235 = vld [vmem:[%s6233 + $0x4] sm:$0xf]
      %v6238 = vunpack.c.l.b16 %v6234
      %v6239 = vunpack.c.l.b16 %v6235
      %v6240 = vpack.c.b16 %v6239, %v6238
      %v6243 = vsel %vm3656, %v6215, 0
      %v6246 = vsel %vm3656, %v6216, 0
      %v6249 = vsel %vm3656, %v6217, 0
      %v6252 = vsel %vm3656, %v6218, 0
      %v6255 = vsel %vm3656, %v6219, 0
      %v6258 = vsel %vm3656, %v6220, 0
      %v6261 = vsel %vm3656, %v6221, 0
      %v6264 = vsel %vm3656, %v6222, 0
      %v6267 = vsel %vm3656, %v6223, 0
      %v6270 = vsel %vm3656, %v6224, 0
      %v6273 = vsel %vm3656, %v6225, 0
      %v6276 = vsel %vm3656, %v6226, 0
      %v6279 = vsel %vm3656, %v6227, 0
      %v6282 = vsel %vm3656, %v6228, 0
      %v6285 = vsel %vm3656, %v6229, 0
      %v6288 = vsel %vm3656, %v6230, 0
      %v6291 = vsel %vm3656, %v6231, 0
      %v6294 = vsel %vm3656, %v6232, 0
      %6296 = vmatprep.subr.bf16.mxu0 0
      %6297 = vmatpush1.bf16.msra.mxu0 0
      %6298 = vmatprep.subr.bf16.mxu0 0
      %6299 = vmatpush1.bf16.msra.mxu0 0
      %6300 = vmatprep.subr.bf16.mxu0 0
      %6301 = vmatpush1.bf16.msra.mxu0 0
      %6302 = vmatprep.subr.bf16.mxu0 0
      %6303 = vmatpush1.bf16.msra.mxu0 0
      %6304 = vmatprep.subr.bf16.mxu0 0
      %6305 = vmatpush1.bf16.msra.mxu0 0
      %6306 = vmatprep.subr.bf16.mxu0 0
      %6307 = vmatpush1.bf16.msra.mxu0 0
      %6308 = vmatprep.subr.bf16.mxu0 0
      %6309 = vmatpush1.bf16.msra.mxu0 0
      %6310 = vmatprep.subr.bf16.mxu0 0
      %6311 = vmatpush1.bf16.msra.mxu0 %v6240
      %6312 = vmatprep.subr.bf16.mxu0 0
      %6313 = vmatpush2.bf16.msra.mxu0 0
      %6314 = vmatprep.subr.bf16.mxu0 0
      %6315 = vmatpush2.bf16.msra.mxu0 0
      %6316 = vmatprep.subr.bf16.mxu0 0
      %6317 = vmatpush2.bf16.msra.mxu0 0
      %6318 = vmatprep.subr.bf16.mxu0 0
      %6319 = vmatpush2.bf16.msra.mxu0 0
      %6320 = vmatprep.subr.bf16.mxu0 0
      %6321 = vmatpush2.bf16.msra.mxu0 0
      %6322 = vmatprep.subr.bf16.mxu0 0
      %6323 = vmatpush2.bf16.msra.mxu0 0
      %6324 = vmatprep.subr.bf16.mxu0 0
      %6325 = vmatpush2.bf16.msra.mxu0 0
      %6326 = vmatprep.subr.bf16.mxu0 0
      %6327 = vmatpush2.bf16.msra.mxu0 0
      %6328 = vmatprep.mubr.bf16.mxu0 0
      %6329 = vmatmul.mubr.bf16.gmra.mxu0 %v6243
      %v6330 = vpop.f32.mrf.mxu0
      %v6331 = vadd.f32 0.0, %v6330
      %v6332 = vpop.f32.mrf.mxu0
      %v6333 = vpop.f32.mrf.mxu0
      %v6334 = vadd.f32 0.0, %v6333
      %v6335 = vpop.f32.mrf.mxu0
      %6336 = vmatprep.mubr.bf16.mxu0 0
      %6337 = vmatmul.mubr.bf16.gmra.mxu0 %v6246
      %v6338 = vpop.f32.mrf.mxu0
      %v6339 = vadd.f32 0.0, %v6338
      %v6340 = vpop.f32.mrf.mxu0
      %v6341 = vpop.f32.mrf.mxu0
      %v6342 = vadd.f32 0.0, %v6341
      %v6343 = vpop.f32.mrf.mxu0
      %6344 = vmatprep.mubr.bf16.mxu0 0
      %6345 = vmatmul.mubr.bf16.gmra.mxu0 %v6249
      %v6346 = vpop.f32.mrf.mxu0
      %v6347 = vadd.f32 0.0, %v6346
      %v6348 = vpop.f32.mrf.mxu0
      %v6349 = vpop.f32.mrf.mxu0
      %v6350 = vadd.f32 0.0, %v6349
      %v6351 = vpop.f32.mrf.mxu0
      %6352 = vmatprep.mubr.bf16.mxu0 0
      %6353 = vmatmul.mubr.bf16.gmra.mxu0 %v6252
      %v6354 = vpop.f32.mrf.mxu0
      %v6355 = vadd.f32 0.0, %v6354
      %v6356 = vpop.f32.mrf.mxu0
      %v6357 = vpop.f32.mrf.mxu0
      %v6358 = vadd.f32 0.0, %v6357
      %v6359 = vpop.f32.mrf.mxu0
      %6360 = vmatprep.mubr.bf16.mxu0 0
      %6361 = vmatmul.mubr.bf16.gmra.mxu0 %v6255
      %v6362 = vpop.f32.mrf.mxu0
      %v6363 = vadd.f32 0.0, %v6362
      %v6364 = vpop.f32.mrf.mxu0
      %v6365 = vpop.f32.mrf.mxu0
      %v6366 = vadd.f32 0.0, %v6365
      %v6367 = vpop.f32.mrf.mxu0
      %6368 = vmatprep.mubr.bf16.mxu0 0
      %6369 = vmatmul.mubr.bf16.gmra.mxu0 %v6258
      %v6370 = vpop.f32.mrf.mxu0
      %v6371 = vadd.f32 0.0, %v6370
      %v6372 = vpop.f32.mrf.mxu0
      %v6373 = vpop.f32.mrf.mxu0
      %v6374 = vadd.f32 0.0, %v6373
      %v6375 = vpop.f32.mrf.mxu0
      %6376 = vmatprep.mubr.bf16.mxu0 0
      %6377 = vmatmul.mubr.bf16.gmra.mxu0 %v6261
      %v6378 = vpop.f32.mrf.mxu0
      %v6379 = vadd.f32 0.0, %v6378
      %v6380 = vpop.f32.mrf.mxu0
      %v6381 = vpop.f32.mrf.mxu0
      %v6382 = vadd.f32 0.0, %v6381
      %v6383 = vpop.f32.mrf.mxu0
      %6384 = vmatprep.mubr.bf16.mxu0 0
      %6385 = vmatmul.mubr.bf16.gmra.mxu0 %v6264
      %v6386 = vpop.f32.mrf.mxu0
      %v6387 = vadd.f32 0.0, %v6386
      %v6388 = vpop.f32.mrf.mxu0
      %v6389 = vpop.f32.mrf.mxu0
      %v6390 = vadd.f32 0.0, %v6389
      %v6391 = vpop.f32.mrf.mxu0
      %6392 = vmatprep.mubr.bf16.mxu0 0
      %6393 = vmatmul.mubr.bf16.gmra.mxu0 %v6267
      %v6394 = vpop.f32.mrf.mxu0
      %v6395 = vadd.f32 0.0, %v6394
      %v6396 = vpop.f32.mrf.mxu0
      %v6397 = vpop.f32.mrf.mxu0
      %v6398 = vadd.f32 0.0, %v6397
      %v6399 = vpop.f32.mrf.mxu0
      %6400 = vmatprep.mubr.bf16.mxu0 0
      %6401 = vmatmul.mubr.bf16.gmra.mxu0 %v6270
      %v6402 = vpop.f32.mrf.mxu0
      %v6403 = vadd.f32 0.0, %v6402
      %v6404 = vpop.f32.mrf.mxu0
      %v6405 = vpop.f32.mrf.mxu0
      %v6406 = vadd.f32 0.0, %v6405
      %v6407 = vpop.f32.mrf.mxu0
      %6408 = vmatprep.mubr.bf16.mxu0 0
      %6409 = vmatmul.mubr.bf16.gmra.mxu0 %v6273
      %v6410 = vpop.f32.mrf.mxu0
      %v6411 = vadd.f32 0.0, %v6410
      %v6412 = vpop.f32.mrf.mxu0
      %v6413 = vpop.f32.mrf.mxu0
      %v6414 = vadd.f32 0.0, %v6413
      %v6415 = vpop.f32.mrf.mxu0
      %6416 = vmatprep.mubr.bf16.mxu0 0
      %6417 = vmatmul.mubr.bf16.gmra.mxu0 %v6276
      %v6418 = vpop.f32.mrf.mxu0
      %v6419 = vadd.f32 0.0, %v6418
      %v6420 = vpop.f32.mrf.mxu0
      %v6421 = vpop.f32.mrf.mxu0
      %v6422 = vadd.f32 0.0, %v6421
      %v6423 = vpop.f32.mrf.mxu0
      %6424 = vmatprep.mubr.bf16.mxu0 0
      %6425 = vmatmul.mubr.bf16.gmra.mxu0 %v6279
      %v6426 = vpop.f32.mrf.mxu0
      %v6427 = vadd.f32 0.0, %v6426
      %v6428 = vpop.f32.mrf.mxu0
      %v6429 = vpop.f32.mrf.mxu0
      %v6430 = vadd.f32 0.0, %v6429
      %v6431 = vpop.f32.mrf.mxu0
      %6432 = vmatprep.mubr.bf16.mxu0 0
      %6433 = vmatmul.mubr.bf16.gmra.mxu0 %v6282
      %v6434 = vpop.f32.mrf.mxu0
      %v6435 = vadd.f32 0.0, %v6434
      %v6436 = vpop.f32.mrf.mxu0
      %v6437 = vpop.f32.mrf.mxu0
      %v6438 = vadd.f32 0.0, %v6437
      %v6439 = vpop.f32.mrf.mxu0
      %6440 = vmatprep.mubr.bf16.mxu0 0
      %6441 = vmatmul.mubr.bf16.gmra.mxu0 %v6285
      %v6442 = vpop.f32.mrf.mxu0
      %v6443 = vadd.f32 0.0, %v6442
      %v6444 = vpop.f32.mrf.mxu0
      %v6445 = vpop.f32.mrf.mxu0
      %v6446 = vadd.f32 0.0, %v6445
      %v6447 = vpop.f32.mrf.mxu0
      %6448 = vmatprep.mubr.bf16.mxu0 0
      %6449 = vmatmul.mubr.bf16.gmra.mxu0 %v6288
      %v6450 = vpop.f32.mrf.mxu0
      %v6451 = vadd.f32 0.0, %v6450
      %v6452 = vpop.f32.mrf.mxu0
      %v6453 = vpop.f32.mrf.mxu0
      %v6454 = vadd.f32 0.0, %v6453
      %v6455 = vpop.f32.mrf.mxu0
      %6456 = vmatprep.mubr.bf16.mxu0 0
      %6457 = vmatmul.mubr.bf16.gmra.mxu0 %v6291
      %v6458 = vpop.f32.mrf.mxu0
      %v6459 = vadd.f32 0.0, %v6458
      %v6460 = vpop.f32.mrf.mxu0
      %v6461 = vpop.f32.mrf.mxu0
      %v6462 = vadd.f32 0.0, %v6461
      %v6463 = vpop.f32.mrf.mxu0
      %6464 = vmatprep.mubr.bf16.mxu0 0
      %6465 = vmatmul.mubr.bf16.gmra.mxu0 %v6294
      %v6466 = vpop.f32.mrf.mxu0
      %v6467 = vadd.f32 0.0, %v6466
      %v6468 = vpop.f32.mrf.mxu0
      %v6469 = vpop.f32.mrf.mxu0
      %v6470 = vadd.f32 0.0, %v6469
      %v6471 = vpop.f32.mrf.mxu0
      %6472 = vdwg.mxu0
      %v6473 = vadd.f32 %v6143, %v6331
      %v6474 = vadd.f32 %v6144, %v6334
      %v6475 = vadd.f32 %v6145, %v6339
      %v6476 = vadd.f32 %v6146, %v6342
      %v6477 = vadd.f32 %v6147, %v6347
      %v6478 = vadd.f32 %v6148, %v6350
      %v6479 = vadd.f32 %v6149, %v6355
      %v6480 = vadd.f32 %v6150, %v6358
      %v6481 = vadd.f32 %v6151, %v6363
      %v6482 = vadd.f32 %v6152, %v6366
      %v6483 = vadd.f32 %v6153, %v6371
      %v6484 = vadd.f32 %v6154, %v6374
      %v6485 = vadd.f32 %v6155, %v6379
      %v6486 = vadd.f32 %v6156, %v6382
      %v6487 = vadd.f32 %v6157, %v6387
      %v6488 = vadd.f32 %v6158, %v6390
      %v6489 = vadd.f32 %v6159, %v6395
      %v6490 = vadd.f32 %v6160, %v6398
      %v6491 = vadd.f32 %v6161, %v6403
      %v6492 = vadd.f32 %v6162, %v6406
      %v6493 = vadd.f32 %v6163, %v6411
      %v6494 = vadd.f32 %v6164, %v6414
      %v6495 = vadd.f32 %v6165, %v6419
      %v6496 = vadd.f32 %v6166, %v6422
      %v6497 = vadd.f32 %v6167, %v6427
      %v6498 = vadd.f32 %v6168, %v6430
      %v6499 = vadd.f32 %v6169, %v6435
      %v6500 = vadd.f32 %v6170, %v6438
      %v6501 = vadd.f32 %v6171, %v6443
      %v6502 = vadd.f32 %v6172, %v6446
      %v6503 = vadd.f32 %v6173, %v6451
      %v6504 = vadd.f32 %v6174, %v6454
      %v6505 = vadd.f32 %v6175, %v6459
      %v6506 = vadd.f32 %v6176, %v6462
      %v6507 = vadd.f32 %v6177, %v6467
      %v6508 = vadd.f32 %v6178, %v6470
      %v6509 = vld [vmem:[#allocation2 + $0x25] sm:$0xff]
      %v6510 = vld [vmem:[#allocation2 + $0x2d] sm:$0xff]
      %v6511 = vld [vmem:[#allocation2 + $0x35] sm:$0xff]
      %v6512 = vld [vmem:[#allocation2 + $0x3d] sm:$0xff]
      %v6513 = vld [vmem:[#allocation2 + $0x45] sm:$0xff]
      %v6514 = vld [vmem:[#allocation2 + $0x4d] sm:$0xff]
      %v6515 = vld [vmem:[#allocation2 + $0x55] sm:$0xff]
      %v6516 = vld [vmem:[#allocation2 + $0x5d] sm:$0xff]
      %v6517 = vld [vmem:[#allocation2 + $0x65] sm:$0xff]
      %v6518 = vld [vmem:[#allocation2 + $0x6d] sm:$0xff]
      %v6519 = vld [vmem:[#allocation2 + $0x75] sm:$0xff]
      %v6520 = vld [vmem:[#allocation2 + $0x7d] sm:$0xff]
      %v6521 = vld [vmem:[#allocation2 + $0x85] sm:$0xff]
      %v6522 = vld [vmem:[#allocation2 + $0x8d] sm:$0xff]
      %v6523 = vld [vmem:[#allocation2 + $0x95] sm:$0xff]
      %v6524 = vld [vmem:[#allocation2 + $0x9d] sm:$0xff]
      %v6525 = vld [vmem:[#allocation2 + $0xa5] sm:$0xff]
      %v6526 = vld [vmem:[#allocation2 + $0xad] sm:$0xff]
      %v6527 = vld [vmem:[#allocation2 + $0xb5] sm:$0xff]
      %v6528 = vld [vmem:[#allocation2 + $0xbd] sm:$0xff]
      %v6529 = vld [vmem:[#allocation2 + $0xc5] sm:$0xff]
      %v6530 = vld [vmem:[#allocation2 + $0xcd] sm:$0xff]
      %v6531 = vld [vmem:[#allocation2 + $0xd5] sm:$0xff]
      %v6532 = vld [vmem:[#allocation2 + $0xdd] sm:$0xff]
      %v6533 = vld [vmem:[#allocation2 + $0xe5] sm:$0xff]
      %v6534 = vld [vmem:[#allocation2 + $0xed] sm:$0xff]
      %v6535 = vld [vmem:[#allocation2 + $0xf5] sm:$0xff]
      %v6536 = vld [vmem:[#allocation2 + $0xfd] sm:$0xff]
      %v6537 = vld [vmem:[#allocation2 + $0x105] sm:$0xff]
      %v6538 = vld [vmem:[#allocation2 + $0x10d] sm:$0xff]
      %v6539 = vld [vmem:[#allocation2 + $0x115] sm:$0xff]
      %v6540 = vld [vmem:[#allocation2 + $0x11d] sm:$0xff]
      %v6541 = vld [vmem:[#allocation2 + $0x125] sm:$0xff]
      %v6542 = vld [vmem:[#allocation2 + $0x12d] sm:$0xff]
      %v6543 = vld [vmem:[#allocation2 + $0x135] sm:$0xff]
      %v6544 = vld [vmem:[#allocation2 + $0x13d] sm:$0x3f]
      %v6545 = vpack.c.bf16 %v6510, %v6509
      %v6546 = vpack.c.bf16 %v6512, %v6511
      %v6547 = vpack.c.bf16 %v6514, %v6513
      %v6548 = vpack.c.bf16 %v6516, %v6515
      %v6549 = vpack.c.bf16 %v6518, %v6517
      %v6550 = vpack.c.bf16 %v6520, %v6519
      %v6551 = vpack.c.bf16 %v6522, %v6521
      %v6552 = vpack.c.bf16 %v6524, %v6523
      %v6553 = vpack.c.bf16 %v6526, %v6525
      %v6554 = vpack.c.bf16 %v6528, %v6527
      %v6555 = vpack.c.bf16 %v6530, %v6529
      %v6556 = vpack.c.bf16 %v6532, %v6531
      %v6557 = vpack.c.bf16 %v6534, %v6533
      %v6558 = vpack.c.bf16 %v6536, %v6535
      %v6559 = vpack.c.bf16 %v6538, %v6537
      %v6560 = vpack.c.bf16 %v6540, %v6539
      %v6561 = vpack.c.bf16 %v6542, %v6541
      %v6562 = vpack.c.bf16 %v6544, %v6543
      %s6563 = scalar_lea.vmem %s2, 56
      %v6564 = vld [vmem:[%s6563] sm:$0xf]
      %v6565 = vld [vmem:[%s6563 + $0x4] sm:$0xf]
      %v6568 = vunpack.c.l.b16 %v6564
      %v6569 = vunpack.c.l.b16 %v6565
      %v6570 = vpack.c.b16 %v6569, %v6568
      %v6573 = vsel %vm3656, %v6545, 0
      %v6576 = vsel %vm3656, %v6546, 0
      %v6579 = vsel %vm3656, %v6547, 0
      %v6582 = vsel %vm3656, %v6548, 0
      %v6585 = vsel %vm3656, %v6549, 0
      %v6588 = vsel %vm3656, %v6550, 0
      %v6591 = vsel %vm3656, %v6551, 0
      %v6594 = vsel %vm3656, %v6552, 0
      %v6597 = vsel %vm3656, %v6553, 0
      %v6600 = vsel %vm3656, %v6554, 0
      %v6603 = vsel %vm3656, %v6555, 0
      %v6606 = vsel %vm3656, %v6556, 0
      %v6609 = vsel %vm3656, %v6557, 0
      %v6612 = vsel %vm3656, %v6558, 0
      %v6615 = vsel %vm3656, %v6559, 0
      %v6618 = vsel %vm3656, %v6560, 0
      %v6621 = vsel %vm3656, %v6561, 0
      %v6624 = vsel %vm3656, %v6562, 0
      %6626 = vmatprep.subr.bf16.mxu0 0
      %6627 = vmatpush1.bf16.msra.mxu0 0
      %6628 = vmatprep.subr.bf16.mxu0 0
      %6629 = vmatpush1.bf16.msra.mxu0 0
      %6630 = vmatprep.subr.bf16.mxu0 0
      %6631 = vmatpush1.bf16.msra.mxu0 0
      %6632 = vmatprep.subr.bf16.mxu0 0
      %6633 = vmatpush1.bf16.msra.mxu0 0
      %6634 = vmatprep.subr.bf16.mxu0 0
      %6635 = vmatpush1.bf16.msra.mxu0 0
      %6636 = vmatprep.subr.bf16.mxu0 0
      %6637 = vmatpush1.bf16.msra.mxu0 0
      %6638 = vmatprep.subr.bf16.mxu0 0
      %6639 = vmatpush1.bf16.msra.mxu0 0
      %6640 = vmatprep.subr.bf16.mxu0 0
      %6641 = vmatpush1.bf16.msra.mxu0 %v6570
      %6642 = vmatprep.subr.bf16.mxu0 0
      %6643 = vmatpush2.bf16.msra.mxu0 0
      %6644 = vmatprep.subr.bf16.mxu0 0
      %6645 = vmatpush2.bf16.msra.mxu0 0
      %6646 = vmatprep.subr.bf16.mxu0 0
      %6647 = vmatpush2.bf16.msra.mxu0 0
      %6648 = vmatprep.subr.bf16.mxu0 0
      %6649 = vmatpush2.bf16.msra.mxu0 0
      %6650 = vmatprep.subr.bf16.mxu0 0
      %6651 = vmatpush2.bf16.msra.mxu0 0
      %6652 = vmatprep.subr.bf16.mxu0 0
      %6653 = vmatpush2.bf16.msra.mxu0 0
      %6654 = vmatprep.subr.bf16.mxu0 0
      %6655 = vmatpush2.bf16.msra.mxu0 0
      %6656 = vmatprep.subr.bf16.mxu0 0
      %6657 = vmatpush2.bf16.msra.mxu0 0
      %6658 = vmatprep.mubr.bf16.mxu0 0
      %6659 = vmatmul.mubr.bf16.gmra.mxu0 %v6573
      %v6660 = vpop.f32.mrf.mxu0
      %v6661 = vadd.f32 0.0, %v6660
      %v6662 = vpop.f32.mrf.mxu0
      %v6663 = vpop.f32.mrf.mxu0
      %v6664 = vadd.f32 0.0, %v6663
      %v6665 = vpop.f32.mrf.mxu0
      %6666 = vmatprep.mubr.bf16.mxu0 0
      %6667 = vmatmul.mubr.bf16.gmra.mxu0 %v6576
      %v6668 = vpop.f32.mrf.mxu0
      %v6669 = vadd.f32 0.0, %v6668
      %v6670 = vpop.f32.mrf.mxu0
      %v6671 = vpop.f32.mrf.mxu0
      %v6672 = vadd.f32 0.0, %v6671
      %v6673 = vpop.f32.mrf.mxu0
      %6674 = vmatprep.mubr.bf16.mxu0 0
      %6675 = vmatmul.mubr.bf16.gmra.mxu0 %v6579
      %v6676 = vpop.f32.mrf.mxu0
      %v6677 = vadd.f32 0.0, %v6676
      %v6678 = vpop.f32.mrf.mxu0
      %v6679 = vpop.f32.mrf.mxu0
      %v6680 = vadd.f32 0.0, %v6679
      %v6681 = vpop.f32.mrf.mxu0
      %6682 = vmatprep.mubr.bf16.mxu0 0
      %6683 = vmatmul.mubr.bf16.gmra.mxu0 %v6582
      %v6684 = vpop.f32.mrf.mxu0
      %v6685 = vadd.f32 0.0, %v6684
      %v6686 = vpop.f32.mrf.mxu0
      %v6687 = vpop.f32.mrf.mxu0
      %v6688 = vadd.f32 0.0, %v6687
      %v6689 = vpop.f32.mrf.mxu0
      %6690 = vmatprep.mubr.bf16.mxu0 0
      %6691 = vmatmul.mubr.bf16.gmra.mxu0 %v6585
      %v6692 = vpop.f32.mrf.mxu0
      %v6693 = vadd.f32 0.0, %v6692
      %v6694 = vpop.f32.mrf.mxu0
      %v6695 = vpop.f32.mrf.mxu0
      %v6696 = vadd.f32 0.0, %v6695
      %v6697 = vpop.f32.mrf.mxu0
      %6698 = vmatprep.mubr.bf16.mxu0 0
      %6699 = vmatmul.mubr.bf16.gmra.mxu0 %v6588
      %v6700 = vpop.f32.mrf.mxu0
      %v6701 = vadd.f32 0.0, %v6700
      %v6702 = vpop.f32.mrf.mxu0
      %v6703 = vpop.f32.mrf.mxu0
      %v6704 = vadd.f32 0.0, %v6703
      %v6705 = vpop.f32.mrf.mxu0
      %6706 = vmatprep.mubr.bf16.mxu0 0
      %6707 = vmatmul.mubr.bf16.gmra.mxu0 %v6591
      %v6708 = vpop.f32.mrf.mxu0
      %v6709 = vadd.f32 0.0, %v6708
      %v6710 = vpop.f32.mrf.mxu0
      %v6711 = vpop.f32.mrf.mxu0
      %v6712 = vadd.f32 0.0, %v6711
      %v6713 = vpop.f32.mrf.mxu0
      %6714 = vmatprep.mubr.bf16.mxu0 0
      %6715 = vmatmul.mubr.bf16.gmra.mxu0 %v6594
      %v6716 = vpop.f32.mrf.mxu0
      %v6717 = vadd.f32 0.0, %v6716
      %v6718 = vpop.f32.mrf.mxu0
      %v6719 = vpop.f32.mrf.mxu0
      %v6720 = vadd.f32 0.0, %v6719
      %v6721 = vpop.f32.mrf.mxu0
      %6722 = vmatprep.mubr.bf16.mxu0 0
      %6723 = vmatmul.mubr.bf16.gmra.mxu0 %v6597
      %v6724 = vpop.f32.mrf.mxu0
      %v6725 = vadd.f32 0.0, %v6724
      %v6726 = vpop.f32.mrf.mxu0
      %v6727 = vpop.f32.mrf.mxu0
      %v6728 = vadd.f32 0.0, %v6727
      %v6729 = vpop.f32.mrf.mxu0
      %6730 = vmatprep.mubr.bf16.mxu0 0
      %6731 = vmatmul.mubr.bf16.gmra.mxu0 %v6600
      %v6732 = vpop.f32.mrf.mxu0
      %v6733 = vadd.f32 0.0, %v6732
      %v6734 = vpop.f32.mrf.mxu0
      %v6735 = vpop.f32.mrf.mxu0
      %v6736 = vadd.f32 0.0, %v6735
      %v6737 = vpop.f32.mrf.mxu0
      %6738 = vmatprep.mubr.bf16.mxu0 0
      %6739 = vmatmul.mubr.bf16.gmra.mxu0 %v6603
      %v6740 = vpop.f32.mrf.mxu0
      %v6741 = vadd.f32 0.0, %v6740
      %v6742 = vpop.f32.mrf.mxu0
      %v6743 = vpop.f32.mrf.mxu0
      %v6744 = vadd.f32 0.0, %v6743
      %v6745 = vpop.f32.mrf.mxu0
      %6746 = vmatprep.mubr.bf16.mxu0 0
      %6747 = vmatmul.mubr.bf16.gmra.mxu0 %v6606
      %v6748 = vpop.f32.mrf.mxu0
      %v6749 = vadd.f32 0.0, %v6748
      %v6750 = vpop.f32.mrf.mxu0
      %v6751 = vpop.f32.mrf.mxu0
      %v6752 = vadd.f32 0.0, %v6751
      %v6753 = vpop.f32.mrf.mxu0
      %6754 = vmatprep.mubr.bf16.mxu0 0
      %6755 = vmatmul.mubr.bf16.gmra.mxu0 %v6609
      %v6756 = vpop.f32.mrf.mxu0
      %v6757 = vadd.f32 0.0, %v6756
      %v6758 = vpop.f32.mrf.mxu0
      %v6759 = vpop.f32.mrf.mxu0
      %v6760 = vadd.f32 0.0, %v6759
      %v6761 = vpop.f32.mrf.mxu0
      %6762 = vmatprep.mubr.bf16.mxu0 0
      %6763 = vmatmul.mubr.bf16.gmra.mxu0 %v6612
      %v6764 = vpop.f32.mrf.mxu0
      %v6765 = vadd.f32 0.0, %v6764
      %v6766 = vpop.f32.mrf.mxu0
      %v6767 = vpop.f32.mrf.mxu0
      %v6768 = vadd.f32 0.0, %v6767
      %v6769 = vpop.f32.mrf.mxu0
      %6770 = vmatprep.mubr.bf16.mxu0 0
      %6771 = vmatmul.mubr.bf16.gmra.mxu0 %v6615
      %v6772 = vpop.f32.mrf.mxu0
      %v6773 = vadd.f32 0.0, %v6772
      %v6774 = vpop.f32.mrf.mxu0
      %v6775 = vpop.f32.mrf.mxu0
      %v6776 = vadd.f32 0.0, %v6775
      %v6777 = vpop.f32.mrf.mxu0
      %6778 = vmatprep.mubr.bf16.mxu0 0
      %6779 = vmatmul.mubr.bf16.gmra.mxu0 %v6618
      %v6780 = vpop.f32.mrf.mxu0
      %v6781 = vadd.f32 0.0, %v6780
      %v6782 = vpop.f32.mrf.mxu0
      %v6783 = vpop.f32.mrf.mxu0
      %v6784 = vadd.f32 0.0, %v6783
      %v6785 = vpop.f32.mrf.mxu0
      %6786 = vmatprep.mubr.bf16.mxu0 0
      %6787 = vmatmul.mubr.bf16.gmra.mxu0 %v6621
      %v6788 = vpop.f32.mrf.mxu0
      %v6789 = vadd.f32 0.0, %v6788
      %v6790 = vpop.f32.mrf.mxu0
      %v6791 = vpop.f32.mrf.mxu0
      %v6792 = vadd.f32 0.0, %v6791
      %v6793 = vpop.f32.mrf.mxu0
      %6794 = vmatprep.mubr.bf16.mxu0 0
      %6795 = vmatmul.mubr.bf16.gmra.mxu0 %v6624
      %v6796 = vpop.f32.mrf.mxu0
      %v6797 = vadd.f32 0.0, %v6796
      %v6798 = vpop.f32.mrf.mxu0
      %v6799 = vpop.f32.mrf.mxu0
      %v6800 = vadd.f32 0.0, %v6799
      %v6801 = vpop.f32.mrf.mxu0
      %6802 = vdwg.mxu0
      %v6803 = vadd.f32 %v6473, %v6661
      %v6804 = vadd.f32 %v6474, %v6664
      %v6805 = vadd.f32 %v6475, %v6669
      %v6806 = vadd.f32 %v6476, %v6672
      %v6807 = vadd.f32 %v6477, %v6677
      %v6808 = vadd.f32 %v6478, %v6680
      %v6809 = vadd.f32 %v6479, %v6685
      %v6810 = vadd.f32 %v6480, %v6688
      %v6811 = vadd.f32 %v6481, %v6693
      %v6812 = vadd.f32 %v6482, %v6696
      %v6813 = vadd.f32 %v6483, %v6701
      %v6814 = vadd.f32 %v6484, %v6704
      %v6815 = vadd.f32 %v6485, %v6709
      %v6816 = vadd.f32 %v6486, %v6712
      %v6817 = vadd.f32 %v6487, %v6717
      %v6818 = vadd.f32 %v6488, %v6720
      %v6819 = vadd.f32 %v6489, %v6725
      %v6820 = vadd.f32 %v6490, %v6728
      %v6821 = vadd.f32 %v6491, %v6733
      %v6822 = vadd.f32 %v6492, %v6736
      %v6823 = vadd.f32 %v6493, %v6741
      %v6824 = vadd.f32 %v6494, %v6744
      %v6825 = vadd.f32 %v6495, %v6749
      %v6826 = vadd.f32 %v6496, %v6752
      %v6827 = vadd.f32 %v6497, %v6757
      %v6828 = vadd.f32 %v6498, %v6760
      %v6829 = vadd.f32 %v6499, %v6765
      %v6830 = vadd.f32 %v6500, %v6768
      %v6831 = vadd.f32 %v6501, %v6773
      %v6832 = vadd.f32 %v6502, %v6776
      %v6833 = vadd.f32 %v6503, %v6781
      %v6834 = vadd.f32 %v6504, %v6784
      %v6835 = vadd.f32 %v6505, %v6789
      %v6836 = vadd.f32 %v6506, %v6792
      %v6837 = vadd.f32 %v6507, %v6797
      %v6838 = vadd.f32 %v6508, %v6800
      %v6839 = vld [vmem:[#allocation2 + $0x26] sm:$0xff]
      %v6840 = vld [vmem:[#allocation2 + $0x2e] sm:$0xff]
      %v6841 = vld [vmem:[#allocation2 + $0x36] sm:$0xff]
      %v6842 = vld [vmem:[#allocation2 + $0x3e] sm:$0xff]
      %v6843 = vld [vmem:[#allocation2 + $0x46] sm:$0xff]
      %v6844 = vld [vmem:[#allocation2 + $0x4e] sm:$0xff]
      %v6845 = vld [vmem:[#allocation2 + $0x56] sm:$0xff]
      %v6846 = vld [vmem:[#allocation2 + $0x5e] sm:$0xff]
      %v6847 = vld [vmem:[#allocation2 + $0x66] sm:$0xff]
      %v6848 = vld [vmem:[#allocation2 + $0x6e] sm:$0xff]
      %v6849 = vld [vmem:[#allocation2 + $0x76] sm:$0xff]
      %v6850 = vld [vmem:[#allocation2 + $0x7e] sm:$0xff]
      %v6851 = vld [vmem:[#allocation2 + $0x86] sm:$0xff]
      %v6852 = vld [vmem:[#allocation2 + $0x8e] sm:$0xff]
      %v6853 = vld [vmem:[#allocation2 + $0x96] sm:$0xff]
      %v6854 = vld [vmem:[#allocation2 + $0x9e] sm:$0xff]
      %v6855 = vld [vmem:[#allocation2 + $0xa6] sm:$0xff]
      %v6856 = vld [vmem:[#allocation2 + $0xae] sm:$0xff]
      %v6857 = vld [vmem:[#allocation2 + $0xb6] sm:$0xff]
      %v6858 = vld [vmem:[#allocation2 + $0xbe] sm:$0xff]
      %v6859 = vld [vmem:[#allocation2 + $0xc6] sm:$0xff]
      %v6860 = vld [vmem:[#allocation2 + $0xce] sm:$0xff]
      %v6861 = vld [vmem:[#allocation2 + $0xd6] sm:$0xff]
      %v6862 = vld [vmem:[#allocation2 + $0xde] sm:$0xff]
      %v6863 = vld [vmem:[#allocation2 + $0xe6] sm:$0xff]
      %v6864 = vld [vmem:[#allocation2 + $0xee] sm:$0xff]
      %v6865 = vld [vmem:[#allocation2 + $0xf6] sm:$0xff]
      %v6866 = vld [vmem:[#allocation2 + $0xfe] sm:$0xff]
      %v6867 = vld [vmem:[#allocation2 + $0x106] sm:$0xff]
      %v6868 = vld [vmem:[#allocation2 + $0x10e] sm:$0xff]
      %v6869 = vld [vmem:[#allocation2 + $0x116] sm:$0xff]
      %v6870 = vld [vmem:[#allocation2 + $0x11e] sm:$0xff]
      %v6871 = vld [vmem:[#allocation2 + $0x126] sm:$0xff]
      %v6872 = vld [vmem:[#allocation2 + $0x12e] sm:$0xff]
      %v6873 = vld [vmem:[#allocation2 + $0x136] sm:$0xff]
      %v6874 = vld [vmem:[#allocation2 + $0x13e] sm:$0x3f]
      %v6875 = vpack.c.bf16 %v6840, %v6839
      %v6876 = vpack.c.bf16 %v6842, %v6841
      %v6877 = vpack.c.bf16 %v6844, %v6843
      %v6878 = vpack.c.bf16 %v6846, %v6845
      %v6879 = vpack.c.bf16 %v6848, %v6847
      %v6880 = vpack.c.bf16 %v6850, %v6849
      %v6881 = vpack.c.bf16 %v6852, %v6851
      %v6882 = vpack.c.bf16 %v6854, %v6853
      %v6883 = vpack.c.bf16 %v6856, %v6855
      %v6884 = vpack.c.bf16 %v6858, %v6857
      %v6885 = vpack.c.bf16 %v6860, %v6859
      %v6886 = vpack.c.bf16 %v6862, %v6861
      %v6887 = vpack.c.bf16 %v6864, %v6863
      %v6888 = vpack.c.bf16 %v6866, %v6865
      %v6889 = vpack.c.bf16 %v6868, %v6867
      %v6890 = vpack.c.bf16 %v6870, %v6869
      %v6891 = vpack.c.bf16 %v6872, %v6871
      %v6892 = vpack.c.bf16 %v6874, %v6873
      %s6893 = scalar_lea.vmem %s2, 64
      %v6894 = vld [vmem:[%s6893] sm:$0xf]
      %v6895 = vld [vmem:[%s6893 + $0x4] sm:$0xf]
      %v6898 = vunpack.c.l.b16 %v6894
      %v6899 = vunpack.c.l.b16 %v6895
      %v6900 = vpack.c.b16 %v6899, %v6898
      %v6903 = vsel %vm3656, %v6875, 0
      %v6906 = vsel %vm3656, %v6876, 0
      %v6909 = vsel %vm3656, %v6877, 0
      %v6912 = vsel %vm3656, %v6878, 0
      %v6915 = vsel %vm3656, %v6879, 0
      %v6918 = vsel %vm3656, %v6880, 0
      %v6921 = vsel %vm3656, %v6881, 0
      %v6924 = vsel %vm3656, %v6882, 0
      %v6927 = vsel %vm3656, %v6883, 0
      %v6930 = vsel %vm3656, %v6884, 0
      %v6933 = vsel %vm3656, %v6885, 0
      %v6936 = vsel %vm3656, %v6886, 0
      %v6939 = vsel %vm3656, %v6887, 0
      %v6942 = vsel %vm3656, %v6888, 0
      %v6945 = vsel %vm3656, %v6889, 0
      %v6948 = vsel %vm3656, %v6890, 0
      %v6951 = vsel %vm3656, %v6891, 0
      %v6954 = vsel %vm3656, %v6892, 0
      %6956 = vmatprep.subr.bf16.mxu0 0
      %6957 = vmatpush1.bf16.msra.mxu0 0
      %6958 = vmatprep.subr.bf16.mxu0 0
      %6959 = vmatpush1.bf16.msra.mxu0 0
      %6960 = vmatprep.subr.bf16.mxu0 0
      %6961 = vmatpush1.bf16.msra.mxu0 0
      %6962 = vmatprep.subr.bf16.mxu0 0
      %6963 = vmatpush1.bf16.msra.mxu0 0
      %6964 = vmatprep.subr.bf16.mxu0 0
      %6965 = vmatpush1.bf16.msra.mxu0 0
      %6966 = vmatprep.subr.bf16.mxu0 0
      %6967 = vmatpush1.bf16.msra.mxu0 0
      %6968 = vmatprep.subr.bf16.mxu0 0
      %6969 = vmatpush1.bf16.msra.mxu0 0
      %6970 = vmatprep.subr.bf16.mxu0 0
      %6971 = vmatpush1.bf16.msra.mxu0 %v6900
      %6972 = vmatprep.subr.bf16.mxu0 0
      %6973 = vmatpush2.bf16.msra.mxu0 0
      %6974 = vmatprep.subr.bf16.mxu0 0
      %6975 = vmatpush2.bf16.msra.mxu0 0
      %6976 = vmatprep.subr.bf16.mxu0 0
      %6977 = vmatpush2.bf16.msra.mxu0 0
      %6978 = vmatprep.subr.bf16.mxu0 0
      %6979 = vmatpush2.bf16.msra.mxu0 0
      %6980 = vmatprep.subr.bf16.mxu0 0
      %6981 = vmatpush2.bf16.msra.mxu0 0
      %6982 = vmatprep.subr.bf16.mxu0 0
      %6983 = vmatpush2.bf16.msra.mxu0 0
      %6984 = vmatprep.subr.bf16.mxu0 0
      %6985 = vmatpush2.bf16.msra.mxu0 0
      %6986 = vmatprep.subr.bf16.mxu0 0
      %6987 = vmatpush2.bf16.msra.mxu0 0
      %6988 = vmatprep.mubr.bf16.mxu0 0
      %6989 = vmatmul.mubr.bf16.gmra.mxu0 %v6903
      %v6990 = vpop.f32.mrf.mxu0
      %v6991 = vadd.f32 0.0, %v6990
      %v6992 = vpop.f32.mrf.mxu0
      %v6993 = vpop.f32.mrf.mxu0
      %v6994 = vadd.f32 0.0, %v6993
      %v6995 = vpop.f32.mrf.mxu0
      %6996 = vmatprep.mubr.bf16.mxu0 0
      %6997 = vmatmul.mubr.bf16.gmra.mxu0 %v6906
      %v6998 = vpop.f32.mrf.mxu0
      %v6999 = vadd.f32 0.0, %v6998
      %v7000 = vpop.f32.mrf.mxu0
      %v7001 = vpop.f32.mrf.mxu0
      %v7002 = vadd.f32 0.0, %v7001
      %v7003 = vpop.f32.mrf.mxu0
      %7004 = vmatprep.mubr.bf16.mxu0 0
      %7005 = vmatmul.mubr.bf16.gmra.mxu0 %v6909
      %v7006 = vpop.f32.mrf.mxu0
      %v7007 = vadd.f32 0.0, %v7006
      %v7008 = vpop.f32.mrf.mxu0
      %v7009 = vpop.f32.mrf.mxu0
      %v7010 = vadd.f32 0.0, %v7009
      %v7011 = vpop.f32.mrf.mxu0
      %7012 = vmatprep.mubr.bf16.mxu0 0
      %7013 = vmatmul.mubr.bf16.gmra.mxu0 %v6912
      %v7014 = vpop.f32.mrf.mxu0
      %v7015 = vadd.f32 0.0, %v7014
      %v7016 = vpop.f32.mrf.mxu0
      %v7017 = vpop.f32.mrf.mxu0
      %v7018 = vadd.f32 0.0, %v7017
      %v7019 = vpop.f32.mrf.mxu0
      %7020 = vmatprep.mubr.bf16.mxu0 0
      %7021 = vmatmul.mubr.bf16.gmra.mxu0 %v6915
      %v7022 = vpop.f32.mrf.mxu0
      %v7023 = vadd.f32 0.0, %v7022
      %v7024 = vpop.f32.mrf.mxu0
      %v7025 = vpop.f32.mrf.mxu0
      %v7026 = vadd.f32 0.0, %v7025
      %v7027 = vpop.f32.mrf.mxu0
      %7028 = vmatprep.mubr.bf16.mxu0 0
      %7029 = vmatmul.mubr.bf16.gmra.mxu0 %v6918
      %v7030 = vpop.f32.mrf.mxu0
      %v7031 = vadd.f32 0.0, %v7030
      %v7032 = vpop.f32.mrf.mxu0
      %v7033 = vpop.f32.mrf.mxu0
      %v7034 = vadd.f32 0.0, %v7033
      %v7035 = vpop.f32.mrf.mxu0
      %7036 = vmatprep.mubr.bf16.mxu0 0
      %7037 = vmatmul.mubr.bf16.gmra.mxu0 %v6921
      %v7038 = vpop.f32.mrf.mxu0
      %v7039 = vadd.f32 0.0, %v7038
      %v7040 = vpop.f32.mrf.mxu0
      %v7041 = vpop.f32.mrf.mxu0
      %v7042 = vadd.f32 0.0, %v7041
      %v7043 = vpop.f32.mrf.mxu0
      %7044 = vmatprep.mubr.bf16.mxu0 0
      %7045 = vmatmul.mubr.bf16.gmra.mxu0 %v6924
      %v7046 = vpop.f32.mrf.mxu0
      %v7047 = vadd.f32 0.0, %v7046
      %v7048 = vpop.f32.mrf.mxu0
      %v7049 = vpop.f32.mrf.mxu0
      %v7050 = vadd.f32 0.0, %v7049
      %v7051 = vpop.f32.mrf.mxu0
      %7052 = vmatprep.mubr.bf16.mxu0 0
      %7053 = vmatmul.mubr.bf16.gmra.mxu0 %v6927
      %v7054 = vpop.f32.mrf.mxu0
      %v7055 = vadd.f32 0.0, %v7054
      %v7056 = vpop.f32.mrf.mxu0
      %v7057 = vpop.f32.mrf.mxu0
      %v7058 = vadd.f32 0.0, %v7057
      %v7059 = vpop.f32.mrf.mxu0
      %7060 = vmatprep.mubr.bf16.mxu0 0
      %7061 = vmatmul.mubr.bf16.gmra.mxu0 %v6930
      %v7062 = vpop.f32.mrf.mxu0
      %v7063 = vadd.f32 0.0, %v7062
      %v7064 = vpop.f32.mrf.mxu0
      %v7065 = vpop.f32.mrf.mxu0
      %v7066 = vadd.f32 0.0, %v7065
      %v7067 = vpop.f32.mrf.mxu0
      %7068 = vmatprep.mubr.bf16.mxu0 0
      %7069 = vmatmul.mubr.bf16.gmra.mxu0 %v6933
      %v7070 = vpop.f32.mrf.mxu0
      %v7071 = vadd.f32 0.0, %v7070
      %v7072 = vpop.f32.mrf.mxu0
      %v7073 = vpop.f32.mrf.mxu0
      %v7074 = vadd.f32 0.0, %v7073
      %v7075 = vpop.f32.mrf.mxu0
      %7076 = vmatprep.mubr.bf16.mxu0 0
      %7077 = vmatmul.mubr.bf16.gmra.mxu0 %v6936
      %v7078 = vpop.f32.mrf.mxu0
      %v7079 = vadd.f32 0.0, %v7078
      %v7080 = vpop.f32.mrf.mxu0
      %v7081 = vpop.f32.mrf.mxu0
      %v7082 = vadd.f32 0.0, %v7081
      %v7083 = vpop.f32.mrf.mxu0
      %7084 = vmatprep.mubr.bf16.mxu0 0
      %7085 = vmatmul.mubr.bf16.gmra.mxu0 %v6939
      %v7086 = vpop.f32.mrf.mxu0
      %v7087 = vadd.f32 0.0, %v7086
      %v7088 = vpop.f32.mrf.mxu0
      %v7089 = vpop.f32.mrf.mxu0
      %v7090 = vadd.f32 0.0, %v7089
      %v7091 = vpop.f32.mrf.mxu0
      %7092 = vmatprep.mubr.bf16.mxu0 0
      %7093 = vmatmul.mubr.bf16.gmra.mxu0 %v6942
      %v7094 = vpop.f32.mrf.mxu0
      %v7095 = vadd.f32 0.0, %v7094
      %v7096 = vpop.f32.mrf.mxu0
      %v7097 = vpop.f32.mrf.mxu0
      %v7098 = vadd.f32 0.0, %v7097
      %v7099 = vpop.f32.mrf.mxu0
      %7100 = vmatprep.mubr.bf16.mxu0 0
      %7101 = vmatmul.mubr.bf16.gmra.mxu0 %v6945
      %v7102 = vpop.f32.mrf.mxu0
      %v7103 = vadd.f32 0.0, %v7102
      %v7104 = vpop.f32.mrf.mxu0
      %v7105 = vpop.f32.mrf.mxu0
      %v7106 = vadd.f32 0.0, %v7105
      %v7107 = vpop.f32.mrf.mxu0
      %7108 = vmatprep.mubr.bf16.mxu0 0
      %7109 = vmatmul.mubr.bf16.gmra.mxu0 %v6948
      %v7110 = vpop.f32.mrf.mxu0
      %v7111 = vadd.f32 0.0, %v7110
      %v7112 = vpop.f32.mrf.mxu0
      %v7113 = vpop.f32.mrf.mxu0
      %v7114 = vadd.f32 0.0, %v7113
      %v7115 = vpop.f32.mrf.mxu0
      %7116 = vmatprep.mubr.bf16.mxu0 0
      %7117 = vmatmul.mubr.bf16.gmra.mxu0 %v6951
      %v7118 = vpop.f32.mrf.mxu0
      %v7119 = vadd.f32 0.0, %v7118
      %v7120 = vpop.f32.mrf.mxu0
      %v7121 = vpop.f32.mrf.mxu0
      %v7122 = vadd.f32 0.0, %v7121
      %v7123 = vpop.f32.mrf.mxu0
      %7124 = vmatprep.mubr.bf16.mxu0 0
      %7125 = vmatmul.mubr.bf16.gmra.mxu0 %v6954
      %v7126 = vpop.f32.mrf.mxu0
      %v7127 = vadd.f32 0.0, %v7126
      %v7128 = vpop.f32.mrf.mxu0
      %v7129 = vpop.f32.mrf.mxu0
      %v7130 = vadd.f32 0.0, %v7129
      %v7131 = vpop.f32.mrf.mxu0
      %7132 = vdwg.mxu0
      %v7133 = vadd.f32 %v6803, %v6991
      %v7134 = vadd.f32 %v6804, %v6994
      %v7135 = vadd.f32 %v6805, %v6999
      %v7136 = vadd.f32 %v6806, %v7002
      %v7137 = vadd.f32 %v6807, %v7007
      %v7138 = vadd.f32 %v6808, %v7010
      %v7139 = vadd.f32 %v6809, %v7015
      %v7140 = vadd.f32 %v6810, %v7018
      %v7141 = vadd.f32 %v6811, %v7023
      %v7142 = vadd.f32 %v6812, %v7026
      %v7143 = vadd.f32 %v6813, %v7031
      %v7144 = vadd.f32 %v6814, %v7034
      %v7145 = vadd.f32 %v6815, %v7039
      %v7146 = vadd.f32 %v6816, %v7042
      %v7147 = vadd.f32 %v6817, %v7047
      %v7148 = vadd.f32 %v6818, %v7050
      %v7149 = vadd.f32 %v6819, %v7055
      %v7150 = vadd.f32 %v6820, %v7058
      %v7151 = vadd.f32 %v6821, %v7063
      %v7152 = vadd.f32 %v6822, %v7066
      %v7153 = vadd.f32 %v6823, %v7071
      %v7154 = vadd.f32 %v6824, %v7074
      %v7155 = vadd.f32 %v6825, %v7079
      %v7156 = vadd.f32 %v6826, %v7082
      %v7157 = vadd.f32 %v6827, %v7087
      %v7158 = vadd.f32 %v6828, %v7090
      %v7159 = vadd.f32 %v6829, %v7095
      %v7160 = vadd.f32 %v6830, %v7098
      %v7161 = vadd.f32 %v6831, %v7103
      %v7162 = vadd.f32 %v6832, %v7106
      %v7163 = vadd.f32 %v6833, %v7111
      %v7164 = vadd.f32 %v6834, %v7114
      %v7165 = vadd.f32 %v6835, %v7119
      %v7166 = vadd.f32 %v6836, %v7122
      %v7167 = vadd.f32 %v6837, %v7127
      %v7168 = vadd.f32 %v6838, %v7130
      %v7169 = vlaneseq
      %v7170 = vshrl.u32 %v7169, 7
      %v7171 = vsub.s32 3, %v7170
      %v7172 = vrot.slane %v609, %v7171
      %v7173 = vadd.f32 %v7133, %v7172
      %v7174 = vadd.f32 %v7134, %v7172
      %v7175 = vadd.f32 %v7135, %v7172
      %v7176 = vadd.f32 %v7136, %v7172
      %v7177 = vadd.f32 %v7137, %v7172
      %v7178 = vadd.f32 %v7138, %v7172
      %v7179 = vadd.f32 %v7139, %v7172
      %v7180 = vadd.f32 %v7140, %v7172
      %v7181 = vadd.f32 %v7141, %v7172
      %v7182 = vadd.f32 %v7142, %v7172
      %v7183 = vadd.f32 %v7143, %v7172
      %v7184 = vadd.f32 %v7144, %v7172
      %v7185 = vadd.f32 %v7145, %v7172
      %v7186 = vadd.f32 %v7146, %v7172
      %v7187 = vadd.f32 %v7147, %v7172
      %v7188 = vadd.f32 %v7148, %v7172
      %v7189 = vadd.f32 %v7149, %v7172
      %v7190 = vadd.f32 %v7150, %v7172
      %v7191 = vadd.f32 %v7151, %v7172
      %v7192 = vadd.f32 %v7152, %v7172
      %v7193 = vadd.f32 %v7153, %v7172
      %v7194 = vadd.f32 %v7154, %v7172
      %v7195 = vadd.f32 %v7155, %v7172
      %v7196 = vadd.f32 %v7156, %v7172
      %v7197 = vadd.f32 %v7157, %v7172
      %v7198 = vadd.f32 %v7158, %v7172
      %v7199 = vadd.f32 %v7159, %v7172
      %v7200 = vadd.f32 %v7160, %v7172
      %v7201 = vadd.f32 %v7161, %v7172
      %v7202 = vadd.f32 %v7162, %v7172
      %v7203 = vadd.f32 %v7163, %v7172
      %v7204 = vadd.f32 %v7164, %v7172
      %v7205 = vadd.f32 %v7165, %v7172
      %v7206 = vadd.f32 %v7166, %v7172
      %v7207 = vadd.f32 %v7167, %v7172
      %v7208 = vadd.f32 %v7168, %v7172
      %v7209 = vmul.f32 %v7173, %v560
      %v7210 = vmul.f32 %v7174, %v561
      %v7211 = vmul.f32 %v7175, %v562
      %v7212 = vmul.f32 %v7176, %v563
      %v7213 = vmul.f32 %v7177, %v564
      %v7214 = vmul.f32 %v7178, %v565
      %v7215 = vmul.f32 %v7179, %v566
      %v7216 = vmul.f32 %v7180, %v567
      %v7217 = vmul.f32 %v7181, %v568
      %v7218 = vmul.f32 %v7182, %v569
      %v7219 = vmul.f32 %v7183, %v570
      %v7220 = vmul.f32 %v7184, %v571
      %v7221 = vmul.f32 %v7185, %v572
      %v7222 = vmul.f32 %v7186, %v573
      %v7223 = vmul.f32 %v7187, %v574
      %v7224 = vmul.f32 %v7188, %v575
      %v7225 = vmul.f32 %v7189, %v576
      %v7226 = vmul.f32 %v7190, %v577
      %v7227 = vmul.f32 %v7191, %v578
      %v7228 = vmul.f32 %v7192, %v579
      %v7229 = vmul.f32 %v7193, %v580
      %v7230 = vmul.f32 %v7194, %v581
      %v7231 = vmul.f32 %v7195, %v582
      %v7232 = vmul.f32 %v7196, %v583
      %v7233 = vmul.f32 %v7197, %v584
      %v7234 = vmul.f32 %v7198, %v585
      %v7235 = vmul.f32 %v7199, %v586
      %v7236 = vmul.f32 %v7200, %v587
      %v7237 = vmul.f32 %v7201, %v588
      %v7238 = vmul.f32 %v7202, %v589
      %v7239 = vmul.f32 %v7203, %v590
      %v7240 = vmul.f32 %v7204, %v591
      %v7241 = vmul.f32 %v7205, %v592
      %v7242 = vmul.f32 %v7206, %v593
      %v7243 = vmul.f32 %v7207, %v594
      %v7244 = vmul.f32 %v7208, %v595
      %v7245 = vsel %vm3656, %v7209, 0.0
      %v7246 = vsel %vm3656, %v7210, 0.0
      %v7247 = vadd.f32 %v7245, %v7246
      %v7248 = vsel %vm3656, %v7211, 0.0
      %v7249 = vadd.f32 %v7247, %v7248
      %v7250 = vsel %vm3656, %v7212, 0.0
      %v7251 = vadd.f32 %v7249, %v7250
      %v7252 = vsel %vm3656, %v7213, 0.0
      %v7253 = vadd.f32 %v7251, %v7252
      %v7254 = vsel %vm3656, %v7214, 0.0
      %v7255 = vadd.f32 %v7253, %v7254
      %v7256 = vsel %vm3656, %v7215, 0.0
      %v7257 = vadd.f32 %v7255, %v7256
      %v7258 = vsel %vm3656, %v7216, 0.0
      %v7259 = vadd.f32 %v7257, %v7258
      %v7260 = vsel %vm3656, %v7217, 0.0
      %v7261 = vadd.f32 %v7259, %v7260
      %v7262 = vsel %vm3656, %v7218, 0.0
      %v7263 = vadd.f32 %v7261, %v7262
      %v7264 = vsel %vm3656, %v7219, 0.0
      %v7265 = vadd.f32 %v7263, %v7264
      %v7266 = vsel %vm3656, %v7220, 0.0
      %v7267 = vadd.f32 %v7265, %v7266
      %v7268 = vsel %vm3656, %v7221, 0.0
      %v7269 = vadd.f32 %v7267, %v7268
      %v7270 = vsel %vm3656, %v7222, 0.0
      %v7271 = vadd.f32 %v7269, %v7270
      %v7272 = vsel %vm3656, %v7223, 0.0
      %v7273 = vadd.f32 %v7271, %v7272
      %v7274 = vsel %vm3656, %v7224, 0.0
      %v7275 = vadd.f32 %v7273, %v7274
      %v7276 = vsel %vm3656, %v7225, 0.0
      %v7277 = vadd.f32 %v7275, %v7276
      %v7278 = vsel %vm3656, %v7226, 0.0
      %v7279 = vadd.f32 %v7277, %v7278
      %v7280 = vsel %vm3656, %v7227, 0.0
      %v7281 = vadd.f32 %v7279, %v7280
      %v7282 = vsel %vm3656, %v7228, 0.0
      %v7283 = vadd.f32 %v7281, %v7282
      %v7284 = vsel %vm3656, %v7229, 0.0
      %v7285 = vadd.f32 %v7283, %v7284
      %v7286 = vsel %vm3656, %v7230, 0.0
      %v7287 = vadd.f32 %v7285, %v7286
      %v7288 = vsel %vm3656, %v7231, 0.0
      %v7289 = vadd.f32 %v7287, %v7288
      %v7290 = vsel %vm3656, %v7232, 0.0
      %v7291 = vadd.f32 %v7289, %v7290
      %v7292 = vsel %vm3656, %v7233, 0.0
      %v7293 = vadd.f32 %v7291, %v7292
      %v7294 = vsel %vm3656, %v7234, 0.0
      %v7295 = vadd.f32 %v7293, %v7294
      %v7296 = vsel %vm3656, %v7235, 0.0
      %v7297 = vadd.f32 %v7295, %v7296
      %v7298 = vsel %vm3656, %v7236, 0.0
      %v7299 = vadd.f32 %v7297, %v7298
      %v7300 = vsel %vm3656, %v7237, 0.0
      %v7301 = vadd.f32 %v7299, %v7300
      %v7302 = vsel %vm3656, %v7238, 0.0
      %v7303 = vadd.f32 %v7301, %v7302
      %v7304 = vsel %vm3656, %v7239, 0.0
      %v7305 = vadd.f32 %v7303, %v7304
      %v7306 = vsel %vm3656, %v7240, 0.0
      %v7307 = vadd.f32 %v7305, %v7306
      %v7308 = vsel %vm3656, %v7241, 0.0
      %v7309 = vadd.f32 %v7307, %v7308
      %v7310 = vsel %vm3656, %v7242, 0.0
      %v7311 = vadd.f32 %v7309, %v7310
      %v7312 = vsel %vm3656, %v7243, 0.0
      %v7313 = vadd.f32 %v7311, %v7312
      %v7314 = vsel %vm3726, %v7244, 0.0
      %v7315 = vadd.f32 %v7313, %v7314
      %v7316 = vrot.slane %v7315, 4
      %v7317 = vadd.f32 %v7315, %v7316
      %v7318 = vrot.slane %v7317, 2
      %v7319 = vadd.f32 %v7317, %v7318
      %v7320 = vrot.slane %v7319, 1
      %v7321 = vadd.f32 %v7319, %v7320
      %v7322 = vmul.f32 %v7209, %v7209
      %v7323 = vmul.f32 %v7210, %v7210
      %v7324 = vmul.f32 %v7211, %v7211
      %v7325 = vmul.f32 %v7212, %v7212
      %v7326 = vmul.f32 %v7213, %v7213
      %v7327 = vmul.f32 %v7214, %v7214
      %v7328 = vmul.f32 %v7215, %v7215
      %v7329 = vmul.f32 %v7216, %v7216
      %v7330 = vmul.f32 %v7217, %v7217
      %v7331 = vmul.f32 %v7218, %v7218
      %v7332 = vmul.f32 %v7219, %v7219
      %v7333 = vmul.f32 %v7220, %v7220
      %v7334 = vmul.f32 %v7221, %v7221
      %v7335 = vmul.f32 %v7222, %v7222
      %v7336 = vmul.f32 %v7223, %v7223
      %v7337 = vmul.f32 %v7224, %v7224
      %v7338 = vmul.f32 %v7225, %v7225
      %v7339 = vmul.f32 %v7226, %v7226
      %v7340 = vmul.f32 %v7227, %v7227
      %v7341 = vmul.f32 %v7228, %v7228
      %v7342 = vmul.f32 %v7229, %v7229
      %v7343 = vmul.f32 %v7230, %v7230
      %v7344 = vmul.f32 %v7231, %v7231
      %v7345 = vmul.f32 %v7232, %v7232
      %v7346 = vmul.f32 %v7233, %v7233
      %v7347 = vmul.f32 %v7234, %v7234
      %v7348 = vmul.f32 %v7235, %v7235
      %v7349 = vmul.f32 %v7236, %v7236
      %v7350 = vmul.f32 %v7237, %v7237
      %v7351 = vmul.f32 %v7238, %v7238
      %v7352 = vmul.f32 %v7239, %v7239
      %v7353 = vmul.f32 %v7240, %v7240
      %v7354 = vmul.f32 %v7241, %v7241
      %v7355 = vmul.f32 %v7242, %v7242
      %v7356 = vmul.f32 %v7243, %v7243
      %v7357 = vmul.f32 %v7244, %v7244
      %v7358 = vsel %vm3656, %v7322, 0.0
      %v7359 = vsel %vm3656, %v7323, 0.0
      %v7360 = vadd.f32 %v7358, %v7359
      %v7361 = vsel %vm3656, %v7324, 0.0
      %v7362 = vadd.f32 %v7360, %v7361
      %v7363 = vsel %vm3656, %v7325, 0.0
      %v7364 = vadd.f32 %v7362, %v7363
      %v7365 = vsel %vm3656, %v7326, 0.0
      %v7366 = vadd.f32 %v7364, %v7365
      %v7367 = vsel %vm3656, %v7327, 0.0
      %v7368 = vadd.f32 %v7366, %v7367
      %v7369 = vsel %vm3656, %v7328, 0.0
      %v7370 = vadd.f32 %v7368, %v7369
      %v7371 = vsel %vm3656, %v7329, 0.0
      %v7372 = vadd.f32 %v7370, %v7371
      %v7373 = vsel %vm3656, %v7330, 0.0
      %v7374 = vadd.f32 %v7372, %v7373
      %v7375 = vsel %vm3656, %v7331, 0.0
      %v7376 = vadd.f32 %v7374, %v7375
      %v7377 = vsel %vm3656, %v7332, 0.0
      %v7378 = vadd.f32 %v7376, %v7377
      %v7379 = vsel %vm3656, %v7333, 0.0
      %v7380 = vadd.f32 %v7378, %v7379
      %v7381 = vsel %vm3656, %v7334, 0.0
      %v7382 = vadd.f32 %v7380, %v7381
      %v7383 = vsel %vm3656, %v7335, 0.0
      %v7384 = vadd.f32 %v7382, %v7383
      %v7385 = vsel %vm3656, %v7336, 0.0
      %v7386 = vadd.f32 %v7384, %v7385
      %v7387 = vsel %vm3656, %v7337, 0.0
      %v7388 = vadd.f32 %v7386, %v7387
      %v7389 = vsel %vm3656, %v7338, 0.0
      %v7390 = vadd.f32 %v7388, %v7389
      %v7391 = vsel %vm3656, %v7339, 0.0
      %v7392 = vadd.f32 %v7390, %v7391
      %v7393 = vsel %vm3656, %v7340, 0.0
      %v7394 = vadd.f32 %v7392, %v7393
      %v7395 = vsel %vm3656, %v7341, 0.0
      %v7396 = vadd.f32 %v7394, %v7395
      %v7397 = vsel %vm3656, %v7342, 0.0
      %v7398 = vadd.f32 %v7396, %v7397
      %v7399 = vsel %vm3656, %v7343, 0.0
      %v7400 = vadd.f32 %v7398, %v7399
      %v7401 = vsel %vm3656, %v7344, 0.0
      %v7402 = vadd.f32 %v7400, %v7401
      %v7403 = vsel %vm3656, %v7345, 0.0
      %v7404 = vadd.f32 %v7402, %v7403
      %v7405 = vsel %vm3656, %v7346, 0.0
      %v7406 = vadd.f32 %v7404, %v7405
      %v7407 = vsel %vm3656, %v7347, 0.0
      %v7408 = vadd.f32 %v7406, %v7407
      %v7409 = vsel %vm3656, %v7348, 0.0
      %v7410 = vadd.f32 %v7408, %v7409
      %v7411 = vsel %vm3656, %v7349, 0.0
      %v7412 = vadd.f32 %v7410, %v7411
      %v7413 = vsel %vm3656, %v7350, 0.0
      %v7414 = vadd.f32 %v7412, %v7413
      %v7415 = vsel %vm3656, %v7351, 0.0
      %v7416 = vadd.f32 %v7414, %v7415
      %v7417 = vsel %vm3656, %v7352, 0.0
      %v7418 = vadd.f32 %v7416, %v7417
      %v7419 = vsel %vm3656, %v7353, 0.0
      %v7420 = vadd.f32 %v7418, %v7419
      %v7421 = vsel %vm3656, %v7354, 0.0
      %v7422 = vadd.f32 %v7420, %v7421
      %v7423 = vsel %vm3656, %v7355, 0.0
      %v7424 = vadd.f32 %v7422, %v7423
      %v7425 = vsel %vm3656, %v7356, 0.0
      %v7426 = vadd.f32 %v7424, %v7425
      %v7427 = vsel %vm3726, %v7357, 0.0
      %v7428 = vadd.f32 %v7426, %v7427
      %v7429 = vrot.slane %v7428, 4
      %v7430 = vadd.f32 %v7428, %v7429
      %v7431 = vrot.slane %v7430, 2
      %v7432 = vadd.f32 %v7430, %v7431
      %v7433 = vrot.slane %v7432, 1
      %v7434 = vadd.f32 %v7432, %v7433
      %v7436 = vsel %vm3656, %v7321, 0
      %7438 = vmatprep.subr.mxu0 0.0
      %7439 = vmatpush1.msra.mxu0 0.0
      %7440 = vmatprep.subr.mxu0 0.0
      %7441 = vmatpush1.msra.mxu0 0.0
      %7442 = vmatprep.subr.mxu0 0.0
      %7443 = vmatpush1.msra.mxu0 0.0
      %7444 = vmatprep.subr.mxu0 0.0
      %7445 = vmatpush1.msra.mxu0 0.0
      %7446 = vmatprep.subr.mxu0 0.0
      %7447 = vmatpush1.msra.mxu0 0.0
      %7448 = vmatprep.subr.mxu0 0.0
      %7449 = vmatpush1.msra.mxu0 0.0
      %7450 = vmatprep.subr.mxu0 0.0
      %7451 = vmatpush1.msra.mxu0 0.0
      %7452 = vmatprep.subr.mxu0 0.0
      %7453 = vmatpush1.msra.mxu0 0.0
      %7454 = vmatprep.subr.mxu0 0.0
      %7455 = vmatpush1.msra.mxu0 0.0
      %7456 = vmatprep.subr.mxu0 0.0
      %7457 = vmatpush1.msra.mxu0 0.0
      %7458 = vmatprep.subr.mxu0 0.0
      %7459 = vmatpush1.msra.mxu0 0.0
      %7460 = vmatprep.subr.mxu0 0.0
      %7461 = vmatpush1.msra.mxu0 0.0
      %7462 = vmatprep.subr.mxu0 0.0
      %7463 = vmatpush1.msra.mxu0 0.0
      %7464 = vmatprep.subr.mxu0 0.0
      %7465 = vmatpush1.msra.mxu0 0.0
      %7466 = vmatprep.subr.mxu0 0.0
      %7467 = vmatpush1.msra.mxu0 %v608
      %7468 = vmatprep.subr.mxu0 0.0
      %7469 = vmatpush1.msra.mxu0 %v607
      %7470 = vmatprep.subr.mxu0 0.0
      %7471 = vmatpush2.msra.mxu0 0.0
      %7472 = vmatprep.subr.mxu0 0.0
      %7473 = vmatpush2.msra.mxu0 0.0
      %7474 = vmatprep.subr.mxu0 0.0
      %7475 = vmatpush2.msra.mxu0 0.0
      %7476 = vmatprep.subr.mxu0 0.0
      %7477 = vmatpush2.msra.mxu0 0.0
      %7478 = vmatprep.subr.mxu0 0.0
      %7479 = vmatpush2.msra.mxu0 0.0
      %7480 = vmatprep.subr.mxu0 0.0
      %7481 = vmatpush2.msra.mxu0 0.0
      %7482 = vmatprep.subr.mxu0 0.0
      %7483 = vmatpush2.msra.mxu0 0.0
      %7484 = vmatprep.subr.mxu0 0.0
      %7485 = vmatpush2.msra.mxu0 0.0
      %7486 = vmatprep.subr.mxu0 0.0
      %7487 = vmatpush2.msra.mxu0 0.0
      %7488 = vmatprep.subr.mxu0 0.0
      %7489 = vmatpush2.msra.mxu0 0.0
      %7490 = vmatprep.subr.mxu0 0.0
      %7491 = vmatpush2.msra.mxu0 0.0
      %7492 = vmatprep.subr.mxu0 0.0
      %7493 = vmatpush2.msra.mxu0 0.0
      %7494 = vmatprep.subr.mxu0 0.0
      %7495 = vmatpush2.msra.mxu0 0.0
      %7496 = vmatprep.subr.mxu0 0.0
      %7497 = vmatpush2.msra.mxu0 0.0
      %7498 = vmatprep.subr.mxu0 0.0
      %7499 = vmatpush2.msra.mxu0 0.0
      %7500 = vmatprep.subr.mxu0 0.0
      %7501 = vmatpush2.msra.mxu0 0.0
      %7502 = vmatprep.mubr.f32.mxu0 0.0
      %7503 = vmatmul.mubr.f32.gmra.mxu0 %v7436
      %v7504 = vpop.f32.mrf.mxu0
      %v7505 = vadd.f32 0.0, %v7504
      %v7506 = vpop.f32.mrf.mxu0
      %7507 = vdwg.mxu0
      %v7509 = vsel %vm3656, %v7434, 0
      %7511 = vmatprep.subr.mxu0 0.0
      %7512 = vmatpush1.msra.mxu0 0.0
      %7513 = vmatprep.subr.mxu0 0.0
      %7514 = vmatpush1.msra.mxu0 0.0
      %7515 = vmatprep.subr.mxu0 0.0
      %7516 = vmatpush1.msra.mxu0 0.0
      %7517 = vmatprep.subr.mxu0 0.0
      %7518 = vmatpush1.msra.mxu0 0.0
      %7519 = vmatprep.subr.mxu0 0.0
      %7520 = vmatpush1.msra.mxu0 0.0
      %7521 = vmatprep.subr.mxu0 0.0
      %7522 = vmatpush1.msra.mxu0 0.0
      %7523 = vmatprep.subr.mxu0 0.0
      %7524 = vmatpush1.msra.mxu0 0.0
      %7525 = vmatprep.subr.mxu0 0.0
      %7526 = vmatpush1.msra.mxu0 0.0
      %7527 = vmatprep.subr.mxu0 0.0
      %7528 = vmatpush1.msra.mxu0 0.0
      %7529 = vmatprep.subr.mxu0 0.0
      %7530 = vmatpush1.msra.mxu0 0.0
      %7531 = vmatprep.subr.mxu0 0.0
      %7532 = vmatpush1.msra.mxu0 0.0
      %7533 = vmatprep.subr.mxu0 0.0
      %7534 = vmatpush1.msra.mxu0 0.0
      %7535 = vmatprep.subr.mxu0 0.0
      %7536 = vmatpush1.msra.mxu0 0.0
      %7537 = vmatprep.subr.mxu0 0.0
      %7538 = vmatpush1.msra.mxu0 0.0
      %7539 = vmatprep.subr.mxu0 0.0
      %7540 = vmatpush1.msra.mxu0 %v608
      %7541 = vmatprep.subr.mxu0 0.0
      %7542 = vmatpush1.msra.mxu0 %v607
      %7543 = vmatprep.subr.mxu0 0.0
      %7544 = vmatpush2.msra.mxu0 0.0
      %7545 = vmatprep.subr.mxu0 0.0
      %7546 = vmatpush2.msra.mxu0 0.0
      %7547 = vmatprep.subr.mxu0 0.0
      %7548 = vmatpush2.msra.mxu0 0.0
      %7549 = vmatprep.subr.mxu0 0.0
      %7550 = vmatpush2.msra.mxu0 0.0
      %7551 = vmatprep.subr.mxu0 0.0
      %7552 = vmatpush2.msra.mxu0 0.0
      %7553 = vmatprep.subr.mxu0 0.0
      %7554 = vmatpush2.msra.mxu0 0.0
      %7555 = vmatprep.subr.mxu0 0.0
      %7556 = vmatpush2.msra.mxu0 0.0
      %7557 = vmatprep.subr.mxu0 0.0
      %7558 = vmatpush2.msra.mxu0 0.0
      %7559 = vmatprep.subr.mxu0 0.0
      %7560 = vmatpush2.msra.mxu0 0.0
      %7561 = vmatprep.subr.mxu0 0.0
      %7562 = vmatpush2.msra.mxu0 0.0
      %7563 = vmatprep.subr.mxu0 0.0
      %7564 = vmatpush2.msra.mxu0 0.0
      %7565 = vmatprep.subr.mxu0 0.0
      %7566 = vmatpush2.msra.mxu0 0.0
      %7567 = vmatprep.subr.mxu0 0.0
      %7568 = vmatpush2.msra.mxu0 0.0
      %7569 = vmatprep.subr.mxu0 0.0
      %7570 = vmatpush2.msra.mxu0 0.0
      %7571 = vmatprep.subr.mxu0 0.0
      %7572 = vmatpush2.msra.mxu0 0.0
      %7573 = vmatprep.subr.mxu0 0.0
      %7574 = vmatpush2.msra.mxu0 0.0
      %7575 = vmatprep.mubr.f32.mxu0 0.0
      %7576 = vmatmul.mubr.f32.gmra.mxu0 %v7509
      %v7577 = vpop.f32.mrf.mxu0
      %v7578 = vadd.f32 0.0, %v7577
      %v7579 = vpop.f32.mrf.mxu0
      %7580 = vdwg.mxu0
      %v7581 = vmul.f32 %v7505, %v7505
      %v7582 = vsub.f32 %v7578, %v7581
      %v7583 = vadd.f32 %v7582, 1e-05
      %v7584 = vrsqrt.pop %v7583
      %v7585 = vlaneseq
      %v7586 = vshrl.u32 %v7585, 7
      %v7587 = vsub.s32 0, %v7586
      %v7588 = vrot.slane %v7505, %v7587
      %v7589 = vsub.f32 %v7173, %v7588
      %v7590 = vsub.f32 %v7174, %v7588
      %v7591 = vsub.f32 %v7175, %v7588
      %v7592 = vsub.f32 %v7176, %v7588
      %v7593 = vsub.f32 %v7177, %v7588
      %v7594 = vsub.f32 %v7178, %v7588
      %v7595 = vsub.f32 %v7179, %v7588
      %v7596 = vsub.f32 %v7180, %v7588
      %v7597 = vsub.f32 %v7181, %v7588
      %v7598 = vsub.f32 %v7182, %v7588
      %v7599 = vsub.f32 %v7183, %v7588
      %v7600 = vsub.f32 %v7184, %v7588
      %v7601 = vsub.f32 %v7185, %v7588
      %v7602 = vsub.f32 %v7186, %v7588
      %v7603 = vsub.f32 %v7187, %v7588
      %v7604 = vsub.f32 %v7188, %v7588
      %v7605 = vsub.f32 %v7189, %v7588
      %v7606 = vsub.f32 %v7190, %v7588
      %v7607 = vsub.f32 %v7191, %v7588
      %v7608 = vsub.f32 %v7192, %v7588
      %v7609 = vsub.f32 %v7193, %v7588
      %v7610 = vsub.f32 %v7194, %v7588
      %v7611 = vsub.f32 %v7195, %v7588
      %v7612 = vsub.f32 %v7196, %v7588
      %v7613 = vsub.f32 %v7197, %v7588
      %v7614 = vsub.f32 %v7198, %v7588
      %v7615 = vsub.f32 %v7199, %v7588
      %v7616 = vsub.f32 %v7200, %v7588
      %v7617 = vsub.f32 %v7201, %v7588
      %v7618 = vsub.f32 %v7202, %v7588
      %v7619 = vsub.f32 %v7203, %v7588
      %v7620 = vsub.f32 %v7204, %v7588
      %v7621 = vsub.f32 %v7205, %v7588
      %v7622 = vsub.f32 %v7206, %v7588
      %v7623 = vsub.f32 %v7207, %v7588
      %v7624 = vsub.f32 %v7208, %v7588
      %v7625 = vrot.slane %v609, 4
      %v7627 = vmul.f32 %v7584, %v7625
      %v7628 = vlaneseq
      %v7629 = vshrl.u32 %v7628, 7
      %v7630 = vsub.s32 0, %v7629
      %v7631 = vrot.slane %v7627, %v7630
      %v7632 = vmul.f32 %v7589, %v7631
      %v7633 = vmul.f32 %v7590, %v7631
      %v7634 = vmul.f32 %v7591, %v7631
      %v7635 = vmul.f32 %v7592, %v7631
      %v7636 = vmul.f32 %v7593, %v7631
      %v7637 = vmul.f32 %v7594, %v7631
      %v7638 = vmul.f32 %v7595, %v7631
      %v7639 = vmul.f32 %v7596, %v7631
      %v7640 = vmul.f32 %v7597, %v7631
      %v7641 = vmul.f32 %v7598, %v7631
      %v7642 = vmul.f32 %v7599, %v7631
      %v7643 = vmul.f32 %v7600, %v7631
      %v7644 = vmul.f32 %v7601, %v7631
      %v7645 = vmul.f32 %v7602, %v7631
      %v7646 = vmul.f32 %v7603, %v7631
      %v7647 = vmul.f32 %v7604, %v7631
      %v7648 = vmul.f32 %v7605, %v7631
      %v7649 = vmul.f32 %v7606, %v7631
      %v7650 = vmul.f32 %v7607, %v7631
      %v7651 = vmul.f32 %v7608, %v7631
      %v7652 = vmul.f32 %v7609, %v7631
      %v7653 = vmul.f32 %v7610, %v7631
      %v7654 = vmul.f32 %v7611, %v7631
      %v7655 = vmul.f32 %v7612, %v7631
      %v7656 = vmul.f32 %v7613, %v7631
      %v7657 = vmul.f32 %v7614, %v7631
      %v7658 = vmul.f32 %v7615, %v7631
      %v7659 = vmul.f32 %v7616, %v7631
      %v7660 = vmul.f32 %v7617, %v7631
      %v7661 = vmul.f32 %v7618, %v7631
      %v7662 = vmul.f32 %v7619, %v7631
      %v7663 = vmul.f32 %v7620, %v7631
      %v7664 = vmul.f32 %v7621, %v7631
      %v7665 = vmul.f32 %v7622, %v7631
      %v7666 = vmul.f32 %v7623, %v7631
      %v7667 = vmul.f32 %v7624, %v7631
      %v7668 = vlaneseq
      %v7669 = vshrl.u32 %v7668, 7
      %v7670 = vsub.s32 5, %v7669
      %v7671 = vrot.slane %v609, %v7670
      %v7672 = vadd.f32 %v7632, %v7671
      %v7673 = vadd.f32 %v7633, %v7671
      %v7674 = vadd.f32 %v7634, %v7671
      %v7675 = vadd.f32 %v7635, %v7671
      %v7676 = vadd.f32 %v7636, %v7671
      %v7677 = vadd.f32 %v7637, %v7671
      %v7678 = vadd.f32 %v7638, %v7671
      %v7679 = vadd.f32 %v7639, %v7671
      %v7680 = vadd.f32 %v7640, %v7671
      %v7681 = vadd.f32 %v7641, %v7671
      %v7682 = vadd.f32 %v7642, %v7671
      %v7683 = vadd.f32 %v7643, %v7671
      %v7684 = vadd.f32 %v7644, %v7671
      %v7685 = vadd.f32 %v7645, %v7671
      %v7686 = vadd.f32 %v7646, %v7671
      %v7687 = vadd.f32 %v7647, %v7671
      %v7688 = vadd.f32 %v7648, %v7671
      %v7689 = vadd.f32 %v7649, %v7671
      %v7690 = vadd.f32 %v7650, %v7671
      %v7691 = vadd.f32 %v7651, %v7671
      %v7692 = vadd.f32 %v7652, %v7671
      %v7693 = vadd.f32 %v7653, %v7671
      %v7694 = vadd.f32 %v7654, %v7671
      %v7695 = vadd.f32 %v7655, %v7671
      %v7696 = vadd.f32 %v7656, %v7671
      %v7697 = vadd.f32 %v7657, %v7671
      %v7698 = vadd.f32 %v7658, %v7671
      %v7699 = vadd.f32 %v7659, %v7671
      %v7700 = vadd.f32 %v7660, %v7671
      %v7701 = vadd.f32 %v7661, %v7671
      %v7702 = vadd.f32 %v7662, %v7671
      %v7703 = vadd.f32 %v7663, %v7671
      %v7704 = vadd.f32 %v7664, %v7671
      %v7705 = vadd.f32 %v7665, %v7671
      %v7706 = vadd.f32 %v7666, %v7671
      %v7707 = vadd.f32 %v7667, %v7671
      %v7708 = vmax.f32 %v7672, 0.0
      %v7709 = vmax.f32 %v7673, 0.0
      %v7710 = vmax.f32 %v7674, 0.0
      %v7711 = vmax.f32 %v7675, 0.0
      %v7712 = vmax.f32 %v7676, 0.0
      %v7713 = vmax.f32 %v7677, 0.0
      %v7714 = vmax.f32 %v7678, 0.0
      %v7715 = vmax.f32 %v7679, 0.0
      %v7716 = vmax.f32 %v7680, 0.0
      %v7717 = vmax.f32 %v7681, 0.0
      %v7718 = vmax.f32 %v7682, 0.0
      %v7719 = vmax.f32 %v7683, 0.0
      %v7720 = vmax.f32 %v7684, 0.0
      %v7721 = vmax.f32 %v7685, 0.0
      %v7722 = vmax.f32 %v7686, 0.0
      %v7723 = vmax.f32 %v7687, 0.0
      %v7724 = vmax.f32 %v7688, 0.0
      %v7725 = vmax.f32 %v7689, 0.0
      %v7726 = vmax.f32 %v7690, 0.0
      %v7727 = vmax.f32 %v7691, 0.0
      %v7728 = vmax.f32 %v7692, 0.0
      %v7729 = vmax.f32 %v7693, 0.0
      %v7730 = vmax.f32 %v7694, 0.0
      %v7731 = vmax.f32 %v7695, 0.0
      %v7732 = vmax.f32 %v7696, 0.0
      %v7733 = vmax.f32 %v7697, 0.0
      %v7734 = vmax.f32 %v7698, 0.0
      %v7735 = vmax.f32 %v7699, 0.0
      %v7736 = vmax.f32 %v7700, 0.0
      %v7737 = vmax.f32 %v7701, 0.0
      %v7738 = vmax.f32 %v7702, 0.0
      %v7739 = vmax.f32 %v7703, 0.0
      %v7740 = vmax.f32 %v7704, 0.0
      %v7741 = vmax.f32 %v7705, 0.0
      %v7742 = vmax.f32 %v7706, 0.0
      %v7743 = vmax.f32 %v7707, 0.0
      %v7744 = vmul.f32 %v7708, %v560
      %v7745 = vmul.f32 %v7709, %v561
      %v7746 = vmul.f32 %v7710, %v562
      %v7747 = vmul.f32 %v7711, %v563
      %v7748 = vmul.f32 %v7712, %v564
      %v7749 = vmul.f32 %v7713, %v565
      %v7750 = vmul.f32 %v7714, %v566
      %v7751 = vmul.f32 %v7715, %v567
      %v7752 = vmul.f32 %v7716, %v568
      %v7753 = vmul.f32 %v7717, %v569
      %v7754 = vmul.f32 %v7718, %v570
      %v7755 = vmul.f32 %v7719, %v571
      %v7756 = vmul.f32 %v7720, %v572
      %v7757 = vmul.f32 %v7721, %v573
      %v7758 = vmul.f32 %v7722, %v574
      %v7759 = vmul.f32 %v7723, %v575
      %v7760 = vmul.f32 %v7724, %v576
      %v7761 = vmul.f32 %v7725, %v577
      %v7762 = vmul.f32 %v7726, %v578
      %v7763 = vmul.f32 %v7727, %v579
      %v7764 = vmul.f32 %v7728, %v580
      %v7765 = vmul.f32 %v7729, %v581
      %v7766 = vmul.f32 %v7730, %v582
      %v7767 = vmul.f32 %v7731, %v583
      %v7768 = vmul.f32 %v7732, %v584
      %v7769 = vmul.f32 %v7733, %v585
      %v7770 = vmul.f32 %v7734, %v586
      %v7771 = vmul.f32 %v7735, %v587
      %v7772 = vmul.f32 %v7736, %v588
      %v7773 = vmul.f32 %v7737, %v589
      %v7774 = vmul.f32 %v7738, %v590
      %v7775 = vmul.f32 %v7739, %v591
      %v7776 = vmul.f32 %v7740, %v592
      %v7777 = vmul.f32 %v7741, %v593
      %v7778 = vmul.f32 %v7742, %v594
      %v7779 = vmul.f32 %v7743, %v595
      %7780 = vst.msk [vmem:[%s197] sm:$0xff] %vm3656, %v7744
      %7781 = vst.msk [vmem:[%s197 + $0x8] sm:$0xff] %vm3656, %v7745
      %7782 = vst.msk [vmem:[%s197 + $0x10] sm:$0xff] %vm3656, %v7746
      %7783 = vst.msk [vmem:[%s197 + $0x18] sm:$0xff] %vm3656, %v7747
      %7784 = vst.msk [vmem:[%s197 + $0x20] sm:$0xff] %vm3656, %v7748
      %7785 = vst.msk [vmem:[%s197 + $0x28] sm:$0xff] %vm3656, %v7749
      %7786 = vst.msk [vmem:[%s197 + $0x30] sm:$0xff] %vm3656, %v7750
      %7787 = vst.msk [vmem:[%s197 + $0x38] sm:$0xff] %vm3656, %v7751
      %7788 = vst.msk [vmem:[%s197 + $0x40] sm:$0xff] %vm3656, %v7752
      %7789 = vst.msk [vmem:[%s197 + $0x48] sm:$0xff] %vm3656, %v7753
      %7790 = vst.msk [vmem:[%s197 + $0x50] sm:$0xff] %vm3656, %v7754
      %7791 = vst.msk [vmem:[%s197 + $0x58] sm:$0xff] %vm3656, %v7755
      %7792 = vst.msk [vmem:[%s197 + $0x60] sm:$0xff] %vm3656, %v7756
      %7793 = vst.msk [vmem:[%s197 + $0x68] sm:$0xff] %vm3656, %v7757
      %7794 = vst.msk [vmem:[%s197 + $0x70] sm:$0xff] %vm3656, %v7758
      %7795 = vst.msk [vmem:[%s197 + $0x78] sm:$0xff] %vm3656, %v7759
      %7796 = vst.msk [vmem:[%s197 + $0x80] sm:$0xff] %vm3656, %v7760
      %7797 = vst.msk [vmem:[%s197 + $0x88] sm:$0xff] %vm3656, %v7761
      %7798 = vst.msk [vmem:[%s197 + $0x90] sm:$0xff] %vm3656, %v7762
      %7799 = vst.msk [vmem:[%s197 + $0x98] sm:$0xff] %vm3656, %v7763
      %7800 = vst.msk [vmem:[%s197 + $0xa0] sm:$0xff] %vm3656, %v7764
      %7801 = vst.msk [vmem:[%s197 + $0xa8] sm:$0xff] %vm3656, %v7765
      %7802 = vst.msk [vmem:[%s197 + $0xb0] sm:$0xff] %vm3656, %v7766
      %7803 = vst.msk [vmem:[%s197 + $0xb8] sm:$0xff] %vm3656, %v7767
      %7804 = vst.msk [vmem:[%s197 + $0xc0] sm:$0xff] %vm3656, %v7768
      %7805 = vst.msk [vmem:[%s197 + $0xc8] sm:$0xff] %vm3656, %v7769
      %7806 = vst.msk [vmem:[%s197 + $0xd0] sm:$0xff] %vm3656, %v7770
      %7807 = vst.msk [vmem:[%s197 + $0xd8] sm:$0xff] %vm3656, %v7771
      %7808 = vst.msk [vmem:[%s197 + $0xe0] sm:$0xff] %vm3656, %v7772
      %7809 = vst.msk [vmem:[%s197 + $0xe8] sm:$0xff] %vm3656, %v7773
      %7810 = vst.msk [vmem:[%s197 + $0xf0] sm:$0xff] %vm3656, %v7774
      %7811 = vst.msk [vmem:[%s197 + $0xf8] sm:$0xff] %vm3656, %v7775
      %7812 = vst.msk [vmem:[%s197 + $0x100] sm:$0xff] %vm3656, %v7776
      %7813 = vst.msk [vmem:[%s197 + $0x108] sm:$0xff] %vm3656, %v7777
      %7814 = vst.msk [vmem:[%s197 + $0x110] sm:$0xff] %vm3656, %v7778
      %7815 = vst.msk [vmem:[%s197 + $0x118] sm:$0x3f] %vm3726, %v7779
      %p7816 = scmp.lt.s32.totalorder %s15, 1
      %s7817 = scalar_select %p7816, %s15, 1
      %s7818 = smul.addr %s7817, 36
      %s7819 = smul.addr %s7818, 8
      %s7820 = scalar_lea.vmem %s4, %s7819
      // Predicated region
      $region37: #{tpu_custom_call.1} parent=35 // pred_check
        %p7821 = pneg %p122
      $region38: #{tpu_custom_call.1} parent=35 // pred_check_branch
        %7823 = sbr.rel (%p7821) target = $region40
      $region39: #{tpu_custom_call.1} parent=35 // pred_region
        _
      $region40: #{tpu_custom_call.1} parent=35 // pred_fallthru
        _
    $region36: #{tpu_custom_call.1} parent=5 // pred_fallthru
      _
    %p7824 = scmp.le.s32.totalorder 2, %s10
    // Predicated region
    $region41: #{tpu_custom_call.1} parent=5 // pred_check
      %p7825 = pneg %p7824
    $region42: #{tpu_custom_call.1} parent=5 // pred_check_branch
      %7827 = sbr.rel (%p7825) target = $region44
    $region43: #{tpu_custom_call.1} parent=5 // pred_region
      %s7828 = ssub.s32 %s10, 2
      // Predicated region
      $region45: #{tpu_custom_call.1} parent=43 // pred_check
        %p7829 = pneg %p128
      $region46: #{tpu_custom_call.1} parent=43 // pred_check_branch
        %7831 = sbr.rel (%p7829) target = $region48
      $region47: #{tpu_custom_call.1} parent=43 // pred_region
        %p7832 = scmp.lt.s32.totalorder %s16, 1
        %s7833 = scalar_select %p7832, %s16, 1
        %s7834 = smul.addr %s7833, 36
        %s7835 = smul.addr %s7834, 8
        %s7836 = scalar_lea.vmem %s4, %s7835
      $region48: #{tpu_custom_call.1} parent=43 // pred_fallthru
        _
    $region44: #{tpu_custom_call.1} parent=5 // pred_fallthru
      _
  $region6: #{tpu_custom_call.1} parent=0 // loop_footer
    %s14 = sadd.s32 1, %s10
  $region7: #{tpu_custom_call.1} parent=0 // loop_footer_branch
    %9 = sbr.rel target = $region3
  $region8: #{tpu_custom_call.1} parent=0 // loop_exit
    _

</llo_original>
